<compile_context>
chip_gen: v7x
topology: tpu7x:2x2x1
jax: 0.10.0
libtpu: 0.0.40
codegen_flags: <defaults>
</compile_context>

<pallas_src>
import functools

import jax
import jax.numpy as jnp
from jax.experimental import pallas as pl
from jax.experimental.pallas import tpu as pltpu

BN_EPS = 1e-5


# --------------------------------------------------------------------------
# In-kernel helpers (operate on jnp values inside the Pallas kernel body)
# --------------------------------------------------------------------------

def _is_pow2(v):
    return v > 0 and (v & (v - 1)) == 0


def _tap_masks(N, H, W):
    """9 combined (1, N*H*W) f32 0/1 tap-validity masks, (dy, dx) row-major.

    mask_t[p] == 1 iff the 3x3 tap (dy, dx) of output pixel p lands inside the
    same image: reproduces the conv zero padding AND the row / batch seams of
    the flattened lane axis.  Built in-kernel from a lane iota (a few VPU ops).
    """
    P = N * H * W
    p = jax.lax.broadcasted_iota(jnp.int32, (1, P), 1)
    if _is_pow2(W) and _is_pow2(H):
        x = p & (W - 1)
        y = (p >> (W.bit_length() - 1)) & (H - 1)
    else:  # pragma: no cover - toy config uses power-of-two spatial dims
        x = p % W
        y = (p // W) % H
    ones = jnp.ones((1, P), jnp.float32)
    ym = {-1: (y >= 1).astype(jnp.float32), 0: ones,
          1: (y <= H - 2).astype(jnp.float32)}
    xm = {-1: (x >= 1).astype(jnp.float32), 0: ones,
          1: (x <= W - 2).astype(jnp.float32)}
    return [ym[dy] * xm[dx] for dy in (-1, 0, 1) for dx in (-1, 0, 1)]


def _shift_lanes(u, off, P):
    """u'[:, p] = u[:, (p + off) % P] (wrapped lanes are zeroed by the masks)."""
    s = off % P
    if s == 0:
        return u
    if P % 128 == 0:
        # Circular lane rotation on the XLU (free-ish slot): equivalent to
        # jnp.roll(u, -off, axis=1).
        return pltpu.roll(u, shift=P - s, axis=1)
    # Deep pyramid levels have a sub-128 lane extent; use a cheap two-slice
    # circular shift there (~3% of the work in the toy config).
    return jnp.concatenate([u[:, s:], u[:, :s]], axis=1)


def _conv3x3(act, w, masks, W):
    """3x3 / stride-1 / pad-1 conv in 'scatter' form (no im2col staging).

    One MXU matmul on the unshifted activation, then 8 lane-rotated,
    tap-masked accumulations of the (Cout, P) result row blocks.

    act:   (Cin, P)       f32
    w:     (9*Cout, Cin)  bf16, rows grouped tap-major ((dy, dx) row-major)
    masks: list of 9 (1, P) f32 tap-validity masks
    """
    _, P = act.shape
    Cout = w.shape[0] // 9
    u = jnp.dot(w, act.astype(jnp.bfloat16),
                preferred_element_type=jnp.float32)            # (9*Cout, P)
    out = u[4 * Cout:5 * Cout, :]                              # center tap
    t = 0
    for dy in (-1, 0, 1):
        for dx in (-1, 0, 1):
            if not (dy == 0 and dx == 0):
                ut = u[t * Cout:(t + 1) * Cout, :]
                out = out + _shift_lanes(ut, dy * W + dx, P) * masks[t]
            t += 1
    return out


# --------------------------------------------------------------------------
# Fused HGBlock kernel: all ResBlocks + pools + upsamples in one pallas_call
# --------------------------------------------------------------------------

def _hg_block_kernel(*refs, N, H, W, C, depth):
    base = 1 + 2 * depth
    x_ref = refs[0]
    pm_refs = refs[1:1 + depth]                  # avg-pool   l   -> l+1 (bf16)
    um_refs = refs[1 + depth:base]               # nearest up l+1 -> l   (bf16)
    (s1_ref, b1_ref, w1_ref,
     s2_ref, b2_ref, w2_ref,
     s3_ref, b3_ref, w3_ref) = refs[base:base + 9]
    o_ref = refs[base + 9]

    # Per-level tap masks: computed once, reused by every block at that level.
    level_masks = [_tap_masks(N, H >> l, W >> l) for l in range(depth + 1)]

    def run_block(v, b, lvl):
        """ResBlock #b applied to activation v living at pyramid level lvl."""
        Wl = W >> lvl
        mk = level_masks[lvl]
        a1 = jnp.maximum(v * s1_ref[b] + b1_ref[b], 0.0)
        o1 = _conv3x3(a1, w1_ref[b], mk, Wl)                   # C   -> C/2
        a2 = jnp.maximum(o1 * s2_ref[b] + b2_ref[b], 0.0)
        o2 = _conv3x3(a2, w2_ref[b], mk, Wl)                   # C/2 -> C/4
        a3 = jnp.maximum(o2 * s3_ref[b] + b3_ref[b], 0.0)
        o3 = _conv3x3(a3, w3_ref[b], mk, Wl)                   # C/4 -> C/4
        return jnp.concatenate([o1, o2, o3], axis=0) + v

    x = x_ref[...]
    cache = []
    for i in range(depth):
        cache.append((x, i))                                   # x at level i
        x = jnp.dot(x.astype(jnp.bfloat16), pm_refs[i][...],
                    preferred_element_type=jnp.float32)        # avg-pool i->i+1
        x = run_block(x, i, i + 1)                             # down_res_i
    x = run_block(x, depth, depth)                             # paral_res_0
    for i in range(depth):
        residual, lvl = cache.pop(-1)
        x = run_block(x, depth + 1 + 2 * i, lvl + 1)           # up_res_i
        up = jnp.dot(x.astype(jnp.bfloat16), um_refs[lvl][...],
                     preferred_element_type=jnp.float32)       # nearest 2x up
        sc = run_block(residual, depth + 2 + 2 * i, lvl)       # shortcut_res_i
        x = up + sc
    o_ref[...] = x


# --------------------------------------------------------------------------
# Host-side constants, parameter stacking, pallas_call wrapper
# --------------------------------------------------------------------------

def _parent_matrix(N, H, W):
    """(N*H*W, N*(H/2)*(W/2)) one-hot: [p, q]=1 iff 2x2-pool parent(p)==q."""
    Hl, Wl = H // 2, W // 2
    p = jnp.arange(N * H * W, dtype=jnp.int32)
    n = p // (H * W)
    y = (p // W) % H
    x = p % W
    parent = n * (Hl * Wl) + (y // 2) * Wl + (x // 2)
    q = jnp.arange(N * Hl * Wl, dtype=jnp.int32)
    return (parent[:, None] == q[None, :]).astype(jnp.float32)


def _ordered_blocks(params, depth):
    """Per-block param dicts in the exact order the fused kernel uses them."""
    blocks = list(params["down"]) + list(params["paral"])
    for i in range(depth):
        blocks.append(params["up"][i])
        blocks.append(params["shortcut"][i])
    return blocks


def _stack_params(params, depth):
    blocks = _ordered_blocks(params, depth)
    keys = ("s1", "b1", "w1", "s2", "b2", "w2", "s3", "b3", "w3")
    return tuple(jnp.stack([blk[k] for blk in blocks], axis=0) for k in keys)


def hg_block(x_nchw, params, depth):
    """Fused HGBlock forward: one pallas_call, everything VMEM resident."""
    N, C, H, W = x_nchw.shape
    assert C % 4 == 0 and H % (1 << depth) == 0 and W % (1 << depth) == 0
    P0 = N * H * W
    # NCHW -> channel-major, batch+space flattened into lanes: (C, N*H*W)
    x = jnp.transpose(x_nchw, (1, 0, 2, 3)).reshape(C, P0)

    pool_mats, up_mats = [], []
    h, w = H, W
    for _ in range(depth):
        M = _parent_matrix(N, h, w)
        pool_mats.append((0.25 * M).astype(jnp.bfloat16))       # avg-pool
        up_mats.append(jnp.transpose(M).astype(jnp.bfloat16))   # nearest 2x up
        h, w = h // 2, w // 2

    args = (x, *pool_mats, *up_mats, *_stack_params(params, depth))
    out = pl.pallas_call(
        functools.partial(_hg_block_kernel, N=N, H=H, W=W, C=C, depth=depth),
        out_shape=jax.ShapeDtypeStruct((C, P0), jnp.float32),
        in_specs=[pl.BlockSpec(memory_space=pltpu.MemorySpace.VMEM)
                  for _ in args],
        out_specs=pl.BlockSpec(memory_space=pltpu.MemorySpace.VMEM),
        compiler_params=pltpu.CompilerParams(
            vmem_limit_bytes=32 * 1024 * 1024),  # explicit budget, << need
    )(*args)
    return jnp.transpose(out.reshape(C, N, H, W), (1, 0, 2, 3))


# --------------------------------------------------------------------------
# Pure-JAX (XLA) reference for a tolerance check
# --------------------------------------------------------------------------

def _ref_res_block(x, p):
    def bn_relu(v, s, b):
        c = s.shape[0]
        return jnp.maximum(v * s.reshape(1, c, 1, 1) + b.reshape(1, c, 1, 1),
                           0.0)

    def conv(v, w):
        cin = w.shape[1]
        cout = w.shape[0] // 9
        hwio = jnp.transpose(
            w.astype(jnp.float32).reshape(3, 3, cout, cin), (0, 1, 3, 2))
        return jax.lax.conv_general_dilated(
            v, hwio, window_strides=(1, 1), padding=((1, 1), (1, 1)),
            dimension_numbers=("NCHW", "HWIO", "NCHW"))

    o1 = conv(bn_relu(x, p["s1"], p["b1"]), p["w1"])
    o2 = conv(bn_relu(o1, p["s2"], p["b2"]), p["w2"])
    o3 = conv(bn_relu(o2, p["s3"], p["b3"]), p["w3"])
    return jnp.concatenate([o1, o2, o3], axis=1) + x


def _ref_hg_block(x, params, depth):
    cache = []
    for i in range(depth):
        cache.append(x)
        n, c, h, w = x.shape
        x = x.reshape(n, c, h // 2, 2, w // 2, 2).mean(axis=(3, 5))
        x = _ref_res_block(x, params["down"][i])
    x = _ref_res_block(x, params["paral"][0])
    for i in range(depth):
        residual = cache.pop(-1)
        residual = _ref_res_block(residual, params["shortcut"][i])
        x = _ref_res_block(x, params["up"][i])
        x = jnp.repeat(jnp.repeat(x, 2, axis=2), 2, axis=3)
        x = x + residual
    return x


# --------------------------------------------------------------------------
# Deterministic parameter construction
# --------------------------------------------------------------------------

def _init_bn(key, c):
    k1, k2, k3, k4 = jax.random.split(key, 4)
    gamma = 1.0 + 0.1 * jax.random.normal(k1, (c,), jnp.float32)
    beta = 0.1 * jax.random.normal(k2, (c,), jnp.float32)
    mean = 0.1 * jax.random.normal(k3, (c,), jnp.float32)
    var = 1.0 + 0.1 * jnp.abs(jax.random.normal(k4, (c,), jnp.float32))
    scale = gamma / jnp.sqrt(var + BN_EPS)
    bias = beta - mean * scale
    return scale.reshape(c, 1), bias.reshape(c, 1)


def _init_conv_w(key, cin, cout):
    # HWIO weights -> (9*cout, cin) bf16, rows tap-major ((ky,kx) row-major),
    # matching the scatter-form matmul in _conv3x3.
    w = 0.1 * jax.random.normal(key, (3, 3, cin, cout), jnp.float32)
    return (jnp.transpose(w, (0, 1, 3, 2))
            .reshape(9 * cout, cin).astype(jnp.bfloat16))


def _init_resblock(key, c):
    assert c % 4 == 0
    c2, c4 = c // 2, c // 4
    ks = jax.random.split(key, 6)
    s1, b1 = _init_bn(ks[0], c)
    s2, b2 = _init_bn(ks[1], c2)
    s3, b3 = _init_bn(ks[2], c4)
    return dict(s1=s1, b1=b1, w1=_init_conv_w(ks[3], c, c2),
                s2=s2, b2=b2, w2=_init_conv_w(ks[4], c2, c4),
                s3=s3, b3=b3, w3=_init_conv_w(ks[5], c4, c4))


def make_hgblock_params(key, feature_channels, depth):
    params = {"down": [], "paral": [], "up": [], "shortcut": []}
    idx = 0
    for name, count in (("down", depth), ("paral", 1),
                        ("up", depth), ("shortcut", depth)):
        for _ in range(count):
            params[name].append(
                _init_resblock(jax.random.fold_in(key, idx), feature_channels))
            idx += 1
    return params


# --------------------------------------------------------------------------
# Main
# --------------------------------------------------------------------------

if __name__ == "__main__":
    feature_channels = 16       # must be divisible by 4
    depth = 2                   # spatial 16 -> 8 -> 4 -> 8 -> 16
    N, H, W = 2, 16, 16
    assert H % (1 << depth) == 0 and W % (1 << depth) == 0

    key = jax.random.PRNGKey(0)
    kx, kp = jax.random.split(key)
    x = jax.random.normal(kx, (N, feature_channels, H, W), jnp.float32)
    params = make_hgblock_params(kp, feature_channels, depth)

    fwd = jax.jit(functools.partial(hg_block, depth=depth))
    y = fwd(x, params)
    jax.block_until_ready(y)

    assert y.shape == x.shape, (y.shape, x.shape)
    assert bool(jnp.all(jnp.isfinite(y)))

    # Pure-JAX reference with identical folded-BN params / bf16 weights; the
    # only deviation is the kernel's bf16 cast of matmul activation operands.
    # This also pins the roll-wrap / tap-mask invariant for all 9 offsets.
    y_ref = jax.jit(functools.partial(_ref_hg_block, depth=depth))(x, params)
    rel_err = float(jnp.max(jnp.abs(y - y_ref)) /
                    jnp.maximum(jnp.max(jnp.abs(y_ref)), 1e-6))
    assert rel_err < 1e-1, f"mismatch vs reference: rel_err={rel_err}"
    print("KERNEL_OK")
</pallas_src>

<mosaic_0001>
module attributes {stable_mosaic.version = 11 : i64} {
  func.func @_hg_block_kernel(%arg0: memref<16x512xf32, #tpu.memory_space<vmem>>, %arg1: memref<512x128xbf16, #tpu.memory_space<vmem>>, %arg2: memref<128x32xbf16, #tpu.memory_space<vmem>>, %arg3: memref<128x512xbf16, #tpu.memory_space<vmem>>, %arg4: memref<32x128xbf16, #tpu.memory_space<vmem>>, %arg5: memref<7x16x1xf32, #tpu.memory_space<vmem>>, %arg6: memref<7x16x1xf32, #tpu.memory_space<vmem>>, %arg7: memref<7x72x16xbf16, #tpu.memory_space<vmem>>, %arg8: memref<7x8x1xf32, #tpu.memory_space<vmem>>, %arg9: memref<7x8x1xf32, #tpu.memory_space<vmem>>, %arg10: memref<7x36x8xbf16, #tpu.memory_space<vmem>>, %arg11: memref<7x4x1xf32, #tpu.memory_space<vmem>>, %arg12: memref<7x4x1xf32, #tpu.memory_space<vmem>>, %arg13: memref<7x36x4xbf16, #tpu.memory_space<vmem>>, %arg14: memref<16x512xf32, #tpu.memory_space<vmem>>) attributes {dimension_semantics = [], scalar_prefetch = 0 : i64, scratch_operands = 0 : i64, tpu.core_type = #tpu.core_type<tc>} {
    %0 = tpu.iota {dimensions = array<i32: 1>} : vector<1x512xi32>
    %c15_i32 = arith.constant 15 : i32
    %1 = vector.broadcast %c15_i32 : i32 to vector<1x512xi32>
    %2 = arith.andi %0, %1 : vector<1x512xi32>
    %c4_i32 = arith.constant 4 : i32
    %3 = vector.broadcast %c4_i32 : i32 to vector<1x512xi32>
    %4 = arith.shrsi %0, %3 : vector<1x512xi32>
    %c15_i32_0 = arith.constant 15 : i32
    %5 = vector.broadcast %c15_i32_0 : i32 to vector<1x512xi32>
    %6 = arith.andi %4, %5 : vector<1x512xi32>
    %cst = arith.constant 1.000000e+00 : f32
    %7 = vector.broadcast %cst : f32 to vector<1x512xf32>
    %c1_i32 = arith.constant 1 : i32
    %8 = vector.broadcast %c1_i32 : i32 to vector<1x512xi32>
    %9 = arith.cmpi sge, %6, %8 : vector<1x512xi32>
    %10 = arith.extui %9 : vector<1x512xi1> to vector<1x512xi32>
    %11 = arith.sitofp %10 : vector<1x512xi32> to vector<1x512xf32>
    %c14_i32 = arith.constant 14 : i32
    %12 = vector.broadcast %c14_i32 : i32 to vector<1x512xi32>
    %13 = arith.cmpi sle, %6, %12 : vector<1x512xi32>
    %14 = arith.extui %13 : vector<1x512xi1> to vector<1x512xi32>
    %15 = arith.sitofp %14 : vector<1x512xi32> to vector<1x512xf32>
    %c1_i32_1 = arith.constant 1 : i32
    %16 = vector.broadcast %c1_i32_1 : i32 to vector<1x512xi32>
    %17 = arith.cmpi sge, %2, %16 : vector<1x512xi32>
    %18 = arith.extui %17 : vector<1x512xi1> to vector<1x512xi32>
    %19 = arith.sitofp %18 : vector<1x512xi32> to vector<1x512xf32>
    %c14_i32_2 = arith.constant 14 : i32
    %20 = vector.broadcast %c14_i32_2 : i32 to vector<1x512xi32>
    %21 = arith.cmpi sle, %2, %20 : vector<1x512xi32>
    %22 = arith.extui %21 : vector<1x512xi1> to vector<1x512xi32>
    %23 = arith.sitofp %22 : vector<1x512xi32> to vector<1x512xf32>
    %24 = arith.mulf %11, %19 : vector<1x512xf32>
    %25 = arith.mulf %11, %7 : vector<1x512xf32>
    %26 = arith.mulf %11, %23 : vector<1x512xf32>
    %27 = arith.mulf %7, %19 : vector<1x512xf32>
    %28 = arith.mulf %7, %23 : vector<1x512xf32>
    %29 = arith.mulf %15, %19 : vector<1x512xf32>
    %30 = arith.mulf %15, %7 : vector<1x512xf32>
    %31 = arith.mulf %15, %23 : vector<1x512xf32>
    %32 = tpu.iota {dimensions = array<i32: 1>} : vector<1x128xi32>
    %c7_i32 = arith.constant 7 : i32
    %33 = vector.broadcast %c7_i32 : i32 to vector<1x128xi32>
    %34 = arith.andi %32, %33 : vector<1x128xi32>
    %c3_i32 = arith.constant 3 : i32
    %35 = vector.broadcast %c3_i32 : i32 to vector<1x128xi32>
    %36 = arith.shrsi %32, %35 : vector<1x128xi32>
    %c7_i32_3 = arith.constant 7 : i32
    %37 = vector.broadcast %c7_i32_3 : i32 to vector<1x128xi32>
    %38 = arith.andi %36, %37 : vector<1x128xi32>
    %cst_4 = arith.constant 1.000000e+00 : f32
    %39 = vector.broadcast %cst_4 : f32 to vector<1x128xf32>
    %c1_i32_5 = arith.constant 1 : i32
    %40 = vector.broadcast %c1_i32_5 : i32 to vector<1x128xi32>
    %41 = arith.cmpi sge, %38, %40 : vector<1x128xi32>
    %42 = arith.extui %41 : vector<1x128xi1> to vector<1x128xi32>
    %43 = arith.sitofp %42 : vector<1x128xi32> to vector<1x128xf32>
    %c6_i32 = arith.constant 6 : i32
    %44 = vector.broadcast %c6_i32 : i32 to vector<1x128xi32>
    %45 = arith.cmpi sle, %38, %44 : vector<1x128xi32>
    %46 = arith.extui %45 : vector<1x128xi1> to vector<1x128xi32>
    %47 = arith.sitofp %46 : vector<1x128xi32> to vector<1x128xf32>
    %c1_i32_6 = arith.constant 1 : i32
    %48 = vector.broadcast %c1_i32_6 : i32 to vector<1x128xi32>
    %49 = arith.cmpi sge, %34, %48 : vector<1x128xi32>
    %50 = arith.extui %49 : vector<1x128xi1> to vector<1x128xi32>
    %51 = arith.sitofp %50 : vector<1x128xi32> to vector<1x128xf32>
    %c6_i32_7 = arith.constant 6 : i32
    %52 = vector.broadcast %c6_i32_7 : i32 to vector<1x128xi32>
    %53 = arith.cmpi sle, %34, %52 : vector<1x128xi32>
    %54 = arith.extui %53 : vector<1x128xi1> to vector<1x128xi32>
    %55 = arith.sitofp %54 : vector<1x128xi32> to vector<1x128xf32>
    %56 = arith.mulf %43, %51 : vector<1x128xf32>
    %57 = arith.mulf %43, %39 : vector<1x128xf32>
    %58 = arith.mulf %43, %55 : vector<1x128xf32>
    %59 = arith.mulf %39, %51 : vector<1x128xf32>
    %60 = arith.mulf %39, %55 : vector<1x128xf32>
    %61 = arith.mulf %47, %51 : vector<1x128xf32>
    %62 = arith.mulf %47, %39 : vector<1x128xf32>
    %63 = arith.mulf %47, %55 : vector<1x128xf32>
    %64 = tpu.iota {dimensions = array<i32: 1>} : vector<1x32xi32>
    %c3_i32_8 = arith.constant 3 : i32
    %65 = vector.broadcast %c3_i32_8 : i32 to vector<1x32xi32>
    %66 = arith.andi %64, %65 : vector<1x32xi32>
    %c2_i32 = arith.constant 2 : i32
    %67 = vector.broadcast %c2_i32 : i32 to vector<1x32xi32>
    %68 = arith.shrsi %64, %67 : vector<1x32xi32>
    %c3_i32_9 = arith.constant 3 : i32
    %69 = vector.broadcast %c3_i32_9 : i32 to vector<1x32xi32>
    %70 = arith.andi %68, %69 : vector<1x32xi32>
    %cst_10 = arith.constant 1.000000e+00 : f32
    %71 = vector.broadcast %cst_10 : f32 to vector<1x32xf32>
    %c1_i32_11 = arith.constant 1 : i32
    %72 = vector.broadcast %c1_i32_11 : i32 to vector<1x32xi32>
    %73 = arith.cmpi sge, %70, %72 : vector<1x32xi32>
    %74 = arith.extui %73 : vector<1x32xi1> to vector<1x32xi32>
    %75 = arith.sitofp %74 : vector<1x32xi32> to vector<1x32xf32>
    %c2_i32_12 = arith.constant 2 : i32
    %76 = vector.broadcast %c2_i32_12 : i32 to vector<1x32xi32>
    %77 = arith.cmpi sle, %70, %76 : vector<1x32xi32>
    %78 = arith.extui %77 : vector<1x32xi1> to vector<1x32xi32>
    %79 = arith.sitofp %78 : vector<1x32xi32> to vector<1x32xf32>
    %c1_i32_13 = arith.constant 1 : i32
    %80 = vector.broadcast %c1_i32_13 : i32 to vector<1x32xi32>
    %81 = arith.cmpi sge, %66, %80 : vector<1x32xi32>
    %82 = arith.extui %81 : vector<1x32xi1> to vector<1x32xi32>
    %83 = arith.sitofp %82 : vector<1x32xi32> to vector<1x32xf32>
    %c2_i32_14 = arith.constant 2 : i32
    %84 = vector.broadcast %c2_i32_14 : i32 to vector<1x32xi32>
    %85 = arith.cmpi sle, %66, %84 : vector<1x32xi32>
    %86 = arith.extui %85 : vector<1x32xi1> to vector<1x32xi32>
    %87 = arith.sitofp %86 : vector<1x32xi32> to vector<1x32xf32>
    %88 = arith.mulf %75, %83 : vector<1x32xf32>
    %89 = arith.mulf %75, %71 : vector<1x32xf32>
    %90 = arith.mulf %75, %87 : vector<1x32xf32>
    %91 = arith.mulf %71, %83 : vector<1x32xf32>
    %92 = arith.mulf %71, %87 : vector<1x32xf32>
    %93 = arith.mulf %79, %83 : vector<1x32xf32>
    %94 = arith.mulf %79, %71 : vector<1x32xf32>
    %95 = arith.mulf %79, %87 : vector<1x32xf32>
    %c0 = arith.constant 0 : index
    %c0_15 = arith.constant 0 : index
    %96 = vector.load %arg0[%c0, %c0_15] : memref<16x512xf32, #tpu.memory_space<vmem>>, vector<16x512xf32>
    %97 = arith.truncf %96 : vector<16x512xf32> to vector<16x512xbf16>
    %c0_16 = arith.constant 0 : index
    %c0_17 = arith.constant 0 : index
    %98 = vector.load %arg1[%c0_16, %c0_17] : memref<512x128xbf16, #tpu.memory_space<vmem>>, vector<512x128xbf16>
    %cst_18 = arith.constant dense<0.000000e+00> : vector<16x128xf32>
    %99 = tpu.matmul %97, %98, %cst_18 {dimension_numbers = #tpu.dot_dimension_numbers<[1], [0], [0], [1], [0, 0, 1, 1], [], []>} : vector<16x512xbf16>, vector<512x128xbf16>, vector<16x128xf32> -> vector<16x128xf32>
    %c0_19 = arith.constant 0 : index
    %c0_20 = arith.constant 0 : index
    %c0_21 = arith.constant 0 : index
    %100 = vector.load %arg5[%c0_19, %c0_20, %c0_21] : memref<7x16x1xf32, #tpu.memory_space<vmem>>, vector<1x16x1xf32>
    %101 = vector.shape_cast %100 : vector<1x16x1xf32> to vector<16x1xf32>
    %102 = vector.broadcast %101 : vector<16x1xf32> to vector<16x128xf32>
    %103 = arith.mulf %99, %102 : vector<16x128xf32>
    %c0_22 = arith.constant 0 : index
    %c0_23 = arith.constant 0 : index
    %c0_24 = arith.constant 0 : index
    %104 = vector.load %arg6[%c0_22, %c0_23, %c0_24] : memref<7x16x1xf32, #tpu.memory_space<vmem>>, vector<1x16x1xf32>
    %105 = vector.shape_cast %104 : vector<1x16x1xf32> to vector<16x1xf32>
    %106 = vector.broadcast %105 : vector<16x1xf32> to vector<16x128xf32>
    %107 = arith.addf %103, %106 : vector<16x128xf32>
    %cst_25 = arith.constant 0.000000e+00 : f32
    %108 = vector.broadcast %cst_25 : f32 to vector<16x128xf32>
    %109 = arith.maximumf %107, %108 : vector<16x128xf32>
    %c0_26 = arith.constant 0 : index
    %c0_27 = arith.constant 0 : index
    %c0_28 = arith.constant 0 : index
    %110 = vector.load %arg7[%c0_26, %c0_27, %c0_28] : memref<7x72x16xbf16, #tpu.memory_space<vmem>>, vector<1x72x16xbf16>
    %111 = vector.shape_cast %110 : vector<1x72x16xbf16> to vector<72x16xbf16>
    %112 = arith.truncf %109 : vector<16x128xf32> to vector<16x128xbf16>
    %cst_29 = arith.constant dense<0.000000e+00> : vector<72x128xf32>
    %113 = tpu.matmul %111, %112, %cst_29 {dimension_numbers = #tpu.dot_dimension_numbers<[1], [0], [0], [1], [0, 0, 1, 1], [], []>} : vector<72x16xbf16>, vector<16x128xbf16>, vector<72x128xf32> -> vector<72x128xf32>
    %114 = vector.extract_strided_slice %113 {offsets = [32, 0], sizes = [8, 128], strides = [1, 1]} : vector<72x128xf32> to vector<8x128xf32>
    %115 = vector.extract_strided_slice %113 {offsets = [0, 0], sizes = [8, 128], strides = [1, 1]} : vector<72x128xf32> to vector<8x128xf32>
    %c9_i32 = arith.constant 9 : i32
    %116 = tpu.dynamic_rotate %115 by %c9_i32 dim 1 : vector<8x128xf32>, i32 -> vector<8x128xf32>
    %117 = vector.broadcast %56 : vector<1x128xf32> to vector<8x128xf32>
    %118 = arith.mulf %116, %117 : vector<8x128xf32>
    %119 = arith.addf %114, %118 : vector<8x128xf32>
    %120 = vector.extract_strided_slice %113 {offsets = [8, 0], sizes = [8, 128], strides = [1, 1]} : vector<72x128xf32> to vector<8x128xf32>
    %c8_i32 = arith.constant 8 : i32
    %121 = tpu.dynamic_rotate %120 by %c8_i32 dim 1 : vector<8x128xf32>, i32 -> vector<8x128xf32>
    %122 = vector.broadcast %57 : vector<1x128xf32> to vector<8x128xf32>
    %123 = arith.mulf %121, %122 : vector<8x128xf32>
    %124 = arith.addf %119, %123 : vector<8x128xf32>
    %125 = vector.extract_strided_slice %113 {offsets = [16, 0], sizes = [8, 128], strides = [1, 1]} : vector<72x128xf32> to vector<8x128xf32>
    %c7_i32_30 = arith.constant 7 : i32
    %126 = tpu.dynamic_rotate %125 by %c7_i32_30 dim 1 : vector<8x128xf32>, i32 -> vector<8x128xf32>
    %127 = vector.broadcast %58 : vector<1x128xf32> to vector<8x128xf32>
    %128 = arith.mulf %126, %127 : vector<8x128xf32>
    %129 = arith.addf %124, %128 : vector<8x128xf32>
    %130 = vector.extract_strided_slice %113 {offsets = [24, 0], sizes = [8, 128], strides = [1, 1]} : vector<72x128xf32> to vector<8x128xf32>
    %c1_i32_31 = arith.constant 1 : i32
    %131 = tpu.dynamic_rotate %130 by %c1_i32_31 dim 1 : vector<8x128xf32>, i32 -> vector<8x128xf32>
    %132 = vector.broadcast %59 : vector<1x128xf32> to vector<8x128xf32>
    %133 = arith.mulf %131, %132 : vector<8x128xf32>
    %134 = arith.addf %129, %133 : vector<8x128xf32>
    %135 = vector.extract_strided_slice %113 {offsets = [40, 0], sizes = [8, 128], strides = [1, 1]} : vector<72x128xf32> to vector<8x128xf32>
    %c127_i32 = arith.constant 127 : i32
    %136 = tpu.dynamic_rotate %135 by %c127_i32 dim 1 : vector<8x128xf32>, i32 -> vector<8x128xf32>
    %137 = vector.broadcast %60 : vector<1x128xf32> to vector<8x128xf32>
    %138 = arith.mulf %136, %137 : vector<8x128xf32>
    %139 = arith.addf %134, %138 : vector<8x128xf32>
    %140 = vector.extract_strided_slice %113 {offsets = [48, 0], sizes = [8, 128], strides = [1, 1]} : vector<72x128xf32> to vector<8x128xf32>
    %c121_i32 = arith.constant 121 : i32
    %141 = tpu.dynamic_rotate %140 by %c121_i32 dim 1 : vector<8x128xf32>, i32 -> vector<8x128xf32>
    %142 = vector.broadcast %61 : vector<1x128xf32> to vector<8x128xf32>
    %143 = arith.mulf %141, %142 : vector<8x128xf32>
    %144 = arith.addf %139, %143 : vector<8x128xf32>
    %145 = vector.extract_strided_slice %113 {offsets = [56, 0], sizes = [8, 128], strides = [1, 1]} : vector<72x128xf32> to vector<8x128xf32>
    %c120_i32 = arith.constant 120 : i32
    %146 = tpu.dynamic_rotate %145 by %c120_i32 dim 1 : vector<8x128xf32>, i32 -> vector<8x128xf32>
    %147 = vector.broadcast %62 : vector<1x128xf32> to vector<8x128xf32>
    %148 = arith.mulf %146, %147 : vector<8x128xf32>
    %149 = arith.addf %144, %148 : vector<8x128xf32>
    %150 = vector.extract_strided_slice %113 {offsets = [64, 0], sizes = [8, 128], strides = [1, 1]} : vector<72x128xf32> to vector<8x128xf32>
    %c119_i32 = arith.constant 119 : i32
    %151 = tpu.dynamic_rotate %150 by %c119_i32 dim 1 : vector<8x128xf32>, i32 -> vector<8x128xf32>
    %152 = vector.broadcast %63 : vector<1x128xf32> to vector<8x128xf32>
    %153 = arith.mulf %151, %152 : vector<8x128xf32>
    %154 = arith.addf %149, %153 : vector<8x128xf32>
    %c0_32 = arith.constant 0 : index
    %c0_33 = arith.constant 0 : index
    %c0_34 = arith.constant 0 : index
    %155 = vector.load %arg8[%c0_32, %c0_33, %c0_34] : memref<7x8x1xf32, #tpu.memory_space<vmem>>, vector<1x8x1xf32>
    %156 = vector.shape_cast %155 : vector<1x8x1xf32> to vector<8x1xf32>
    %157 = vector.broadcast %156 : vector<8x1xf32> to vector<8x128xf32>
    %158 = arith.mulf %154, %157 : vector<8x128xf32>
    %c0_35 = arith.constant 0 : index
    %c0_36 = arith.constant 0 : index
    %c0_37 = arith.constant 0 : index
    %159 = vector.load %arg9[%c0_35, %c0_36, %c0_37] : memref<7x8x1xf32, #tpu.memory_space<vmem>>, vector<1x8x1xf32>
    %160 = vector.shape_cast %159 : vector<1x8x1xf32> to vector<8x1xf32>
    %161 = vector.broadcast %160 : vector<8x1xf32> to vector<8x128xf32>
    %162 = arith.addf %158, %161 : vector<8x128xf32>
    %cst_38 = arith.constant 0.000000e+00 : f32
    %163 = vector.broadcast %cst_38 : f32 to vector<8x128xf32>
    %164 = arith.maximumf %162, %163 : vector<8x128xf32>
    %c0_39 = arith.constant 0 : index
    %c0_40 = arith.constant 0 : index
    %c0_41 = arith.constant 0 : index
    %165 = vector.load %arg10[%c0_39, %c0_40, %c0_41] : memref<7x36x8xbf16, #tpu.memory_space<vmem>>, vector<1x36x8xbf16>
    %166 = vector.shape_cast %165 : vector<1x36x8xbf16> to vector<36x8xbf16>
    %167 = arith.truncf %164 : vector<8x128xf32> to vector<8x128xbf16>
    %cst_42 = arith.constant dense<0.000000e+00> : vector<36x128xf32>
    %168 = tpu.matmul %166, %167, %cst_42 {dimension_numbers = #tpu.dot_dimension_numbers<[1], [0], [0], [1], [0, 0, 1, 1], [], []>} : vector<36x8xbf16>, vector<8x128xbf16>, vector<36x128xf32> -> vector<36x128xf32>
    %169 = vector.extract_strided_slice %168 {offsets = [16, 0], sizes = [4, 128], strides = [1, 1]} : vector<36x128xf32> to vector<4x128xf32>
    %170 = vector.extract_strided_slice %168 {offsets = [0, 0], sizes = [4, 128], strides = [1, 1]} : vector<36x128xf32> to vector<4x128xf32>
    %c9_i32_43 = arith.constant 9 : i32
    %171 = tpu.dynamic_rotate %170 by %c9_i32_43 dim 1 : vector<4x128xf32>, i32 -> vector<4x128xf32>
    %172 = vector.broadcast %56 : vector<1x128xf32> to vector<4x128xf32>
    %173 = arith.mulf %171, %172 : vector<4x128xf32>
    %174 = arith.addf %169, %173 : vector<4x128xf32>
    %175 = vector.extract_strided_slice %168 {offsets = [4, 0], sizes = [4, 128], strides = [1, 1]} : vector<36x128xf32> to vector<4x128xf32>
    %c8_i32_44 = arith.constant 8 : i32
    %176 = tpu.dynamic_rotate %175 by %c8_i32_44 dim 1 : vector<4x128xf32>, i32 -> vector<4x128xf32>
    %177 = vector.broadcast %57 : vector<1x128xf32> to vector<4x128xf32>
    %178 = arith.mulf %176, %177 : vector<4x128xf32>
    %179 = arith.addf %174, %178 : vector<4x128xf32>
    %180 = vector.extract_strided_slice %168 {offsets = [8, 0], sizes = [4, 128], strides = [1, 1]} : vector<36x128xf32> to vector<4x128xf32>
    %c7_i32_45 = arith.constant 7 : i32
    %181 = tpu.dynamic_rotate %180 by %c7_i32_45 dim 1 : vector<4x128xf32>, i32 -> vector<4x128xf32>
    %182 = vector.broadcast %58 : vector<1x128xf32> to vector<4x128xf32>
    %183 = arith.mulf %181, %182 : vector<4x128xf32>
    %184 = arith.addf %179, %183 : vector<4x128xf32>
    %185 = vector.extract_strided_slice %168 {offsets = [12, 0], sizes = [4, 128], strides = [1, 1]} : vector<36x128xf32> to vector<4x128xf32>
    %c1_i32_46 = arith.constant 1 : i32
    %186 = tpu.dynamic_rotate %185 by %c1_i32_46 dim 1 : vector<4x128xf32>, i32 -> vector<4x128xf32>
    %187 = vector.broadcast %59 : vector<1x128xf32> to vector<4x128xf32>
    %188 = arith.mulf %186, %187 : vector<4x128xf32>
    %189 = arith.addf %184, %188 : vector<4x128xf32>
    %190 = vector.extract_strided_slice %168 {offsets = [20, 0], sizes = [4, 128], strides = [1, 1]} : vector<36x128xf32> to vector<4x128xf32>
    %c127_i32_47 = arith.constant 127 : i32
    %191 = tpu.dynamic_rotate %190 by %c127_i32_47 dim 1 : vector<4x128xf32>, i32 -> vector<4x128xf32>
    %192 = vector.broadcast %60 : vector<1x128xf32> to vector<4x128xf32>
    %193 = arith.mulf %191, %192 : vector<4x128xf32>
    %194 = arith.addf %189, %193 : vector<4x128xf32>
    %195 = vector.extract_strided_slice %168 {offsets = [24, 0], sizes = [4, 128], strides = [1, 1]} : vector<36x128xf32> to vector<4x128xf32>
    %c121_i32_48 = arith.constant 121 : i32
    %196 = tpu.dynamic_rotate %195 by %c121_i32_48 dim 1 : vector<4x128xf32>, i32 -> vector<4x128xf32>
    %197 = vector.broadcast %61 : vector<1x128xf32> to vector<4x128xf32>
    %198 = arith.mulf %196, %197 : vector<4x128xf32>
    %199 = arith.addf %194, %198 : vector<4x128xf32>
    %200 = vector.extract_strided_slice %168 {offsets = [28, 0], sizes = [4, 128], strides = [1, 1]} : vector<36x128xf32> to vector<4x128xf32>
    %c120_i32_49 = arith.constant 120 : i32
    %201 = tpu.dynamic_rotate %200 by %c120_i32_49 dim 1 : vector<4x128xf32>, i32 -> vector<4x128xf32>
    %202 = vector.broadcast %62 : vector<1x128xf32> to vector<4x128xf32>
    %203 = arith.mulf %201, %202 : vector<4x128xf32>
    %204 = arith.addf %199, %203 : vector<4x128xf32>
    %205 = vector.extract_strided_slice %168 {offsets = [32, 0], sizes = [4, 128], strides = [1, 1]} : vector<36x128xf32> to vector<4x128xf32>
    %c119_i32_50 = arith.constant 119 : i32
    %206 = tpu.dynamic_rotate %205 by %c119_i32_50 dim 1 : vector<4x128xf32>, i32 -> vector<4x128xf32>
    %207 = vector.broadcast %63 : vector<1x128xf32> to vector<4x128xf32>
    %208 = arith.mulf %206, %207 : vector<4x128xf32>
    %209 = arith.addf %204, %208 : vector<4x128xf32>
    %c0_51 = arith.constant 0 : index
    %c0_52 = arith.constant 0 : index
    %c0_53 = arith.constant 0 : index
    %210 = vector.load %arg11[%c0_51, %c0_52, %c0_53] : memref<7x4x1xf32, #tpu.memory_space<vmem>>, vector<1x4x1xf32>
    %211 = vector.shape_cast %210 : vector<1x4x1xf32> to vector<4x1xf32>
    %212 = vector.broadcast %211 : vector<4x1xf32> to vector<4x128xf32>
    %213 = arith.mulf %209, %212 : vector<4x128xf32>
    %c0_54 = arith.constant 0 : index
    %c0_55 = arith.constant 0 : index
    %c0_56 = arith.constant 0 : index
    %214 = vector.load %arg12[%c0_54, %c0_55, %c0_56] : memref<7x4x1xf32, #tpu.memory_space<vmem>>, vector<1x4x1xf32>
    %215 = vector.shape_cast %214 : vector<1x4x1xf32> to vector<4x1xf32>
    %216 = vector.broadcast %215 : vector<4x1xf32> to vector<4x128xf32>
    %217 = arith.addf %213, %216 : vector<4x128xf32>
    %cst_57 = arith.constant 0.000000e+00 : f32
    %218 = vector.broadcast %cst_57 : f32 to vector<4x128xf32>
    %219 = arith.maximumf %217, %218 : vector<4x128xf32>
    %c0_58 = arith.constant 0 : index
    %c0_59 = arith.constant 0 : index
    %c0_60 = arith.constant 0 : index
    %220 = vector.load %arg13[%c0_58, %c0_59, %c0_60] : memref<7x36x4xbf16, #tpu.memory_space<vmem>>, vector<1x36x4xbf16>
    %221 = vector.shape_cast %220 : vector<1x36x4xbf16> to vector<36x4xbf16>
    %222 = arith.truncf %219 : vector<4x128xf32> to vector<4x128xbf16>
    %cst_61 = arith.constant dense<0.000000e+00> : vector<36x128xf32>
    %223 = tpu.matmul %221, %222, %cst_61 {dimension_numbers = #tpu.dot_dimension_numbers<[1], [0], [0], [1], [0, 0, 1, 1], [], []>} : vector<36x4xbf16>, vector<4x128xbf16>, vector<36x128xf32> -> vector<36x128xf32>
    %224 = vector.extract_strided_slice %223 {offsets = [16, 0], sizes = [4, 128], strides = [1, 1]} : vector<36x128xf32> to vector<4x128xf32>
    %225 = vector.extract_strided_slice %223 {offsets = [0, 0], sizes = [4, 128], strides = [1, 1]} : vector<36x128xf32> to vector<4x128xf32>
    %c9_i32_62 = arith.constant 9 : i32
    %226 = tpu.dynamic_rotate %225 by %c9_i32_62 dim 1 : vector<4x128xf32>, i32 -> vector<4x128xf32>
    %227 = vector.broadcast %56 : vector<1x128xf32> to vector<4x128xf32>
    %228 = arith.mulf %226, %227 : vector<4x128xf32>
    %229 = arith.addf %224, %228 : vector<4x128xf32>
    %230 = vector.extract_strided_slice %223 {offsets = [4, 0], sizes = [4, 128], strides = [1, 1]} : vector<36x128xf32> to vector<4x128xf32>
    %c8_i32_63 = arith.constant 8 : i32
    %231 = tpu.dynamic_rotate %230 by %c8_i32_63 dim 1 : vector<4x128xf32>, i32 -> vector<4x128xf32>
    %232 = vector.broadcast %57 : vector<1x128xf32> to vector<4x128xf32>
    %233 = arith.mulf %231, %232 : vector<4x128xf32>
    %234 = arith.addf %229, %233 : vector<4x128xf32>
    %235 = vector.extract_strided_slice %223 {offsets = [8, 0], sizes = [4, 128], strides = [1, 1]} : vector<36x128xf32> to vector<4x128xf32>
    %c7_i32_64 = arith.constant 7 : i32
    %236 = tpu.dynamic_rotate %235 by %c7_i32_64 dim 1 : vector<4x128xf32>, i32 -> vector<4x128xf32>
    %237 = vector.broadcast %58 : vector<1x128xf32> to vector<4x128xf32>
    %238 = arith.mulf %236, %237 : vector<4x128xf32>
    %239 = arith.addf %234, %238 : vector<4x128xf32>
    %240 = vector.extract_strided_slice %223 {offsets = [12, 0], sizes = [4, 128], strides = [1, 1]} : vector<36x128xf32> to vector<4x128xf32>
    %c1_i32_65 = arith.constant 1 : i32
    %241 = tpu.dynamic_rotate %240 by %c1_i32_65 dim 1 : vector<4x128xf32>, i32 -> vector<4x128xf32>
    %242 = vector.broadcast %59 : vector<1x128xf32> to vector<4x128xf32>
    %243 = arith.mulf %241, %242 : vector<4x128xf32>
    %244 = arith.addf %239, %243 : vector<4x128xf32>
    %245 = vector.extract_strided_slice %223 {offsets = [20, 0], sizes = [4, 128], strides = [1, 1]} : vector<36x128xf32> to vector<4x128xf32>
    %c127_i32_66 = arith.constant 127 : i32
    %246 = tpu.dynamic_rotate %245 by %c127_i32_66 dim 1 : vector<4x128xf32>, i32 -> vector<4x128xf32>
    %247 = vector.broadcast %60 : vector<1x128xf32> to vector<4x128xf32>
    %248 = arith.mulf %246, %247 : vector<4x128xf32>
    %249 = arith.addf %244, %248 : vector<4x128xf32>
    %250 = vector.extract_strided_slice %223 {offsets = [24, 0], sizes = [4, 128], strides = [1, 1]} : vector<36x128xf32> to vector<4x128xf32>
    %c121_i32_67 = arith.constant 121 : i32
    %251 = tpu.dynamic_rotate %250 by %c121_i32_67 dim 1 : vector<4x128xf32>, i32 -> vector<4x128xf32>
    %252 = vector.broadcast %61 : vector<1x128xf32> to vector<4x128xf32>
    %253 = arith.mulf %251, %252 : vector<4x128xf32>
    %254 = arith.addf %249, %253 : vector<4x128xf32>
    %255 = vector.extract_strided_slice %223 {offsets = [28, 0], sizes = [4, 128], strides = [1, 1]} : vector<36x128xf32> to vector<4x128xf32>
    %c120_i32_68 = arith.constant 120 : i32
    %256 = tpu.dynamic_rotate %255 by %c120_i32_68 dim 1 : vector<4x128xf32>, i32 -> vector<4x128xf32>
    %257 = vector.broadcast %62 : vector<1x128xf32> to vector<4x128xf32>
    %258 = arith.mulf %256, %257 : vector<4x128xf32>
    %259 = arith.addf %254, %258 : vector<4x128xf32>
    %260 = vector.extract_strided_slice %223 {offsets = [32, 0], sizes = [4, 128], strides = [1, 1]} : vector<36x128xf32> to vector<4x128xf32>
    %c119_i32_69 = arith.constant 119 : i32
    %261 = tpu.dynamic_rotate %260 by %c119_i32_69 dim 1 : vector<4x128xf32>, i32 -> vector<4x128xf32>
    %262 = vector.broadcast %63 : vector<1x128xf32> to vector<4x128xf32>
    %263 = arith.mulf %261, %262 : vector<4x128xf32>
    %264 = arith.addf %259, %263 : vector<4x128xf32>
    %265 = tpu.concatenate %154, %209, %264 in 0 : vector<8x128xf32>, vector<4x128xf32>, vector<4x128xf32> -> vector<16x128xf32>
    %266 = arith.addf %265, %99 : vector<16x128xf32>
    %267 = arith.truncf %266 : vector<16x128xf32> to vector<16x128xbf16>
    %c0_70 = arith.constant 0 : index
    %c0_71 = arith.constant 0 : index
    %268 = vector.load %arg2[%c0_70, %c0_71] : memref<128x32xbf16, #tpu.memory_space<vmem>>, vector<128x32xbf16>
    %cst_72 = arith.constant dense<0.000000e+00> : vector<16x32xf32>
    %269 = tpu.matmul %267, %268, %cst_72 {dimension_numbers = #tpu.dot_dimension_numbers<[1], [0], [0], [1], [0, 0, 1, 1], [], []>} : vector<16x128xbf16>, vector<128x32xbf16>, vector<16x32xf32> -> vector<16x32xf32>
    %c1 = arith.constant 1 : index
    %c0_73 = arith.constant 0 : index
    %c0_74 = arith.constant 0 : index
    %270 = vector.load %arg5[%c1, %c0_73, %c0_74] : memref<7x16x1xf32, #tpu.memory_space<vmem>>, vector<1x16x1xf32>
    %271 = vector.shape_cast %270 : vector<1x16x1xf32> to vector<16x1xf32>
    %272 = vector.broadcast %271 : vector<16x1xf32> to vector<16x32xf32>
    %273 = arith.mulf %269, %272 : vector<16x32xf32>
    %c1_75 = arith.constant 1 : index
    %c0_76 = arith.constant 0 : index
    %c0_77 = arith.constant 0 : index
    %274 = vector.load %arg6[%c1_75, %c0_76, %c0_77] : memref<7x16x1xf32, #tpu.memory_space<vmem>>, vector<1x16x1xf32>
    %275 = vector.shape_cast %274 : vector<1x16x1xf32> to vector<16x1xf32>
    %276 = vector.broadcast %275 : vector<16x1xf32> to vector<16x32xf32>
    %277 = arith.addf %273, %276 : vector<16x32xf32>
    %cst_78 = arith.constant 0.000000e+00 : f32
    %278 = vector.broadcast %cst_78 : f32 to vector<16x32xf32>
    %279 = arith.maximumf %277, %278 : vector<16x32xf32>
    %c1_79 = arith.constant 1 : index
    %c0_80 = arith.constant 0 : index
    %c0_81 = arith.constant 0 : index
    %280 = vector.load %arg7[%c1_79, %c0_80, %c0_81] : memref<7x72x16xbf16, #tpu.memory_space<vmem>>, vector<1x72x16xbf16>
    %281 = vector.shape_cast %280 : vector<1x72x16xbf16> to vector<72x16xbf16>
    %282 = arith.truncf %279 : vector<16x32xf32> to vector<16x32xbf16>
    %cst_82 = arith.constant dense<0.000000e+00> : vector<72x32xf32>
    %283 = tpu.matmul %281, %282, %cst_82 {dimension_numbers = #tpu.dot_dimension_numbers<[1], [0], [0], [1], [0, 0, 1, 1], [], []>} : vector<72x16xbf16>, vector<16x32xbf16>, vector<72x32xf32> -> vector<72x32xf32>
    %284 = vector.extract_strided_slice %283 {offsets = [32, 0], sizes = [8, 32], strides = [1, 1]} : vector<72x32xf32> to vector<8x32xf32>
    %285 = vector.extract_strided_slice %283 {offsets = [0, 0], sizes = [8, 32], strides = [1, 1]} : vector<72x32xf32> to vector<8x32xf32>
    %286 = vector.extract_strided_slice %285 {offsets = [0, 27], sizes = [8, 5], strides = [1, 1]} : vector<8x32xf32> to vector<8x5xf32>
    %287 = vector.extract_strided_slice %285 {offsets = [0, 0], sizes = [8, 27], strides = [1, 1]} : vector<8x32xf32> to vector<8x27xf32>
    %288 = tpu.concatenate %286, %287 in 1 : vector<8x5xf32>, vector<8x27xf32> -> vector<8x32xf32>
    %289 = vector.broadcast %88 : vector<1x32xf32> to vector<8x32xf32>
    %290 = arith.mulf %288, %289 : vector<8x32xf32>
    %291 = arith.addf %284, %290 : vector<8x32xf32>
    %292 = vector.extract_strided_slice %283 {offsets = [8, 0], sizes = [8, 32], strides = [1, 1]} : vector<72x32xf32> to vector<8x32xf32>
    %293 = vector.extract_strided_slice %292 {offsets = [0, 28], sizes = [8, 4], strides = [1, 1]} : vector<8x32xf32> to vector<8x4xf32>
    %294 = vector.extract_strided_slice %292 {offsets = [0, 0], sizes = [8, 28], strides = [1, 1]} : vector<8x32xf32> to vector<8x28xf32>
    %295 = tpu.concatenate %293, %294 in 1 : vector<8x4xf32>, vector<8x28xf32> -> vector<8x32xf32>
    %296 = vector.broadcast %89 : vector<1x32xf32> to vector<8x32xf32>
    %297 = arith.mulf %295, %296 : vector<8x32xf32>
    %298 = arith.addf %291, %297 : vector<8x32xf32>
    %299 = vector.extract_strided_slice %283 {offsets = [16, 0], sizes = [8, 32], strides = [1, 1]} : vector<72x32xf32> to vector<8x32xf32>
    %300 = vector.extract_strided_slice %299 {offsets = [0, 29], sizes = [8, 3], strides = [1, 1]} : vector<8x32xf32> to vector<8x3xf32>
    %301 = vector.extract_strided_slice %299 {offsets = [0, 0], sizes = [8, 29], strides = [1, 1]} : vector<8x32xf32> to vector<8x29xf32>
    %302 = tpu.concatenate %300, %301 in 1 : vector<8x3xf32>, vector<8x29xf32> -> vector<8x32xf32>
    %303 = vector.broadcast %90 : vector<1x32xf32> to vector<8x32xf32>
    %304 = arith.mulf %302, %303 : vector<8x32xf32>
    %305 = arith.addf %298, %304 : vector<8x32xf32>
    %306 = vector.extract_strided_slice %283 {offsets = [24, 0], sizes = [8, 32], strides = [1, 1]} : vector<72x32xf32> to vector<8x32xf32>
    %307 = vector.extract_strided_slice %306 {offsets = [0, 31], sizes = [8, 1], strides = [1, 1]} : vector<8x32xf32> to vector<8x1xf32>
    %308 = vector.extract_strided_slice %306 {offsets = [0, 0], sizes = [8, 31], strides = [1, 1]} : vector<8x32xf32> to vector<8x31xf32>
    %309 = tpu.concatenate %307, %308 in 1 : vector<8x1xf32>, vector<8x31xf32> -> vector<8x32xf32>
    %310 = vector.broadcast %91 : vector<1x32xf32> to vector<8x32xf32>
    %311 = arith.mulf %309, %310 : vector<8x32xf32>
    %312 = arith.addf %305, %311 : vector<8x32xf32>
    %313 = vector.extract_strided_slice %283 {offsets = [40, 0], sizes = [8, 32], strides = [1, 1]} : vector<72x32xf32> to vector<8x32xf32>
    %314 = vector.extract_strided_slice %313 {offsets = [0, 1], sizes = [8, 31], strides = [1, 1]} : vector<8x32xf32> to vector<8x31xf32>
    %315 = vector.extract_strided_slice %313 {offsets = [0, 0], sizes = [8, 1], strides = [1, 1]} : vector<8x32xf32> to vector<8x1xf32>
    %316 = tpu.concatenate %314, %315 in 1 : vector<8x31xf32>, vector<8x1xf32> -> vector<8x32xf32>
    %317 = vector.broadcast %92 : vector<1x32xf32> to vector<8x32xf32>
    %318 = arith.mulf %316, %317 : vector<8x32xf32>
    %319 = arith.addf %312, %318 : vector<8x32xf32>
    %320 = vector.extract_strided_slice %283 {offsets = [48, 0], sizes = [8, 32], strides = [1, 1]} : vector<72x32xf32> to vector<8x32xf32>
    %321 = vector.extract_strided_slice %320 {offsets = [0, 3], sizes = [8, 29], strides = [1, 1]} : vector<8x32xf32> to vector<8x29xf32>
    %322 = vector.extract_strided_slice %320 {offsets = [0, 0], sizes = [8, 3], strides = [1, 1]} : vector<8x32xf32> to vector<8x3xf32>
    %323 = tpu.concatenate %321, %322 in 1 : vector<8x29xf32>, vector<8x3xf32> -> vector<8x32xf32>
    %324 = vector.broadcast %93 : vector<1x32xf32> to vector<8x32xf32>
    %325 = arith.mulf %323, %324 : vector<8x32xf32>
    %326 = arith.addf %319, %325 : vector<8x32xf32>
    %327 = vector.extract_strided_slice %283 {offsets = [56, 0], sizes = [8, 32], strides = [1, 1]} : vector<72x32xf32> to vector<8x32xf32>
    %328 = vector.extract_strided_slice %327 {offsets = [0, 4], sizes = [8, 28], strides = [1, 1]} : vector<8x32xf32> to vector<8x28xf32>
    %329 = vector.extract_strided_slice %327 {offsets = [0, 0], sizes = [8, 4], strides = [1, 1]} : vector<8x32xf32> to vector<8x4xf32>
    %330 = tpu.concatenate %328, %329 in 1 : vector<8x28xf32>, vector<8x4xf32> -> vector<8x32xf32>
    %331 = vector.broadcast %94 : vector<1x32xf32> to vector<8x32xf32>
    %332 = arith.mulf %330, %331 : vector<8x32xf32>
    %333 = arith.addf %326, %332 : vector<8x32xf32>
    %334 = vector.extract_strided_slice %283 {offsets = [64, 0], sizes = [8, 32], strides = [1, 1]} : vector<72x32xf32> to vector<8x32xf32>
    %335 = vector.extract_strided_slice %334 {offsets = [0, 5], sizes = [8, 27], strides = [1, 1]} : vector<8x32xf32> to vector<8x27xf32>
    %336 = vector.extract_strided_slice %334 {offsets = [0, 0], sizes = [8, 5], strides = [1, 1]} : vector<8x32xf32> to vector<8x5xf32>
    %337 = tpu.concatenate %335, %336 in 1 : vector<8x27xf32>, vector<8x5xf32> -> vector<8x32xf32>
    %338 = vector.broadcast %95 : vector<1x32xf32> to vector<8x32xf32>
    %339 = arith.mulf %337, %338 : vector<8x32xf32>
    %340 = arith.addf %333, %339 : vector<8x32xf32>
    %c1_83 = arith.constant 1 : index
    %c0_84 = arith.constant 0 : index
    %c0_85 = arith.constant 0 : index
    %341 = vector.load %arg8[%c1_83, %c0_84, %c0_85] : memref<7x8x1xf32, #tpu.memory_space<vmem>>, vector<1x8x1xf32>
    %342 = vector.shape_cast %341 : vector<1x8x1xf32> to vector<8x1xf32>
    %343 = vector.broadcast %342 : vector<8x1xf32> to vector<8x32xf32>
    %344 = arith.mulf %340, %343 : vector<8x32xf32>
    %c1_86 = arith.constant 1 : index
    %c0_87 = arith.constant 0 : index
    %c0_88 = arith.constant 0 : index
    %345 = vector.load %arg9[%c1_86, %c0_87, %c0_88] : memref<7x8x1xf32, #tpu.memory_space<vmem>>, vector<1x8x1xf32>
    %346 = vector.shape_cast %345 : vector<1x8x1xf32> to vector<8x1xf32>
    %347 = vector.broadcast %346 : vector<8x1xf32> to vector<8x32xf32>
    %348 = arith.addf %344, %347 : vector<8x32xf32>
    %cst_89 = arith.constant 0.000000e+00 : f32
    %349 = vector.broadcast %cst_89 : f32 to vector<8x32xf32>
    %350 = arith.maximumf %348, %349 : vector<8x32xf32>
    %c1_90 = arith.constant 1 : index
    %c0_91 = arith.constant 0 : index
    %c0_92 = arith.constant 0 : index
    %351 = vector.load %arg10[%c1_90, %c0_91, %c0_92] : memref<7x36x8xbf16, #tpu.memory_space<vmem>>, vector<1x36x8xbf16>
    %352 = vector.shape_cast %351 : vector<1x36x8xbf16> to vector<36x8xbf16>
    %353 = arith.truncf %350 : vector<8x32xf32> to vector<8x32xbf16>
    %cst_93 = arith.constant dense<0.000000e+00> : vector<36x32xf32>
    %354 = tpu.matmul %352, %353, %cst_93 {dimension_numbers = #tpu.dot_dimension_numbers<[1], [0], [0], [1], [0, 0, 1, 1], [], []>} : vector<36x8xbf16>, vector<8x32xbf16>, vector<36x32xf32> -> vector<36x32xf32>
    %355 = vector.extract_strided_slice %354 {offsets = [16, 0], sizes = [4, 32], strides = [1, 1]} : vector<36x32xf32> to vector<4x32xf32>
    %356 = vector.extract_strided_slice %354 {offsets = [0, 0], sizes = [4, 32], strides = [1, 1]} : vector<36x32xf32> to vector<4x32xf32>
    %357 = vector.extract_strided_slice %356 {offsets = [0, 27], sizes = [4, 5], strides = [1, 1]} : vector<4x32xf32> to vector<4x5xf32>
    %358 = vector.extract_strided_slice %356 {offsets = [0, 0], sizes = [4, 27], strides = [1, 1]} : vector<4x32xf32> to vector<4x27xf32>
    %359 = tpu.concatenate %357, %358 in 1 : vector<4x5xf32>, vector<4x27xf32> -> vector<4x32xf32>
    %360 = vector.broadcast %88 : vector<1x32xf32> to vector<4x32xf32>
    %361 = arith.mulf %359, %360 : vector<4x32xf32>
    %362 = arith.addf %355, %361 : vector<4x32xf32>
    %363 = vector.extract_strided_slice %354 {offsets = [4, 0], sizes = [4, 32], strides = [1, 1]} : vector<36x32xf32> to vector<4x32xf32>
    %364 = vector.extract_strided_slice %363 {offsets = [0, 28], sizes = [4, 4], strides = [1, 1]} : vector<4x32xf32> to vector<4x4xf32>
    %365 = vector.extract_strided_slice %363 {offsets = [0, 0], sizes = [4, 28], strides = [1, 1]} : vector<4x32xf32> to vector<4x28xf32>
    %366 = tpu.concatenate %364, %365 in 1 : vector<4x4xf32>, vector<4x28xf32> -> vector<4x32xf32>
    %367 = vector.broadcast %89 : vector<1x32xf32> to vector<4x32xf32>
    %368 = arith.mulf %366, %367 : vector<4x32xf32>
    %369 = arith.addf %362, %368 : vector<4x32xf32>
    %370 = vector.extract_strided_slice %354 {offsets = [8, 0], sizes = [4, 32], strides = [1, 1]} : vector<36x32xf32> to vector<4x32xf32>
    %371 = vector.extract_strided_slice %370 {offsets = [0, 29], sizes = [4, 3], strides = [1, 1]} : vector<4x32xf32> to vector<4x3xf32>
    %372 = vector.extract_strided_slice %370 {offsets = [0, 0], sizes = [4, 29], strides = [1, 1]} : vector<4x32xf32> to vector<4x29xf32>
    %373 = tpu.concatenate %371, %372 in 1 : vector<4x3xf32>, vector<4x29xf32> -> vector<4x32xf32>
    %374 = vector.broadcast %90 : vector<1x32xf32> to vector<4x32xf32>
    %375 = arith.mulf %373, %374 : vector<4x32xf32>
    %376 = arith.addf %369, %375 : vector<4x32xf32>
    %377 = vector.extract_strided_slice %354 {offsets = [12, 0], sizes = [4, 32], strides = [1, 1]} : vector<36x32xf32> to vector<4x32xf32>
    %378 = vector.extract_strided_slice %377 {offsets = [0, 31], sizes = [4, 1], strides = [1, 1]} : vector<4x32xf32> to vector<4x1xf32>
    %379 = vector.extract_strided_slice %377 {offsets = [0, 0], sizes = [4, 31], strides = [1, 1]} : vector<4x32xf32> to vector<4x31xf32>
    %380 = tpu.concatenate %378, %379 in 1 : vector<4x1xf32>, vector<4x31xf32> -> vector<4x32xf32>
    %381 = vector.broadcast %91 : vector<1x32xf32> to vector<4x32xf32>
    %382 = arith.mulf %380, %381 : vector<4x32xf32>
    %383 = arith.addf %376, %382 : vector<4x32xf32>
    %384 = vector.extract_strided_slice %354 {offsets = [20, 0], sizes = [4, 32], strides = [1, 1]} : vector<36x32xf32> to vector<4x32xf32>
    %385 = vector.extract_strided_slice %384 {offsets = [0, 1], sizes = [4, 31], strides = [1, 1]} : vector<4x32xf32> to vector<4x31xf32>
    %386 = vector.extract_strided_slice %384 {offsets = [0, 0], sizes = [4, 1], strides = [1, 1]} : vector<4x32xf32> to vector<4x1xf32>
    %387 = tpu.concatenate %385, %386 in 1 : vector<4x31xf32>, vector<4x1xf32> -> vector<4x32xf32>
    %388 = vector.broadcast %92 : vector<1x32xf32> to vector<4x32xf32>
    %389 = arith.mulf %387, %388 : vector<4x32xf32>
    %390 = arith.addf %383, %389 : vector<4x32xf32>
    %391 = vector.extract_strided_slice %354 {offsets = [24, 0], sizes = [4, 32], strides = [1, 1]} : vector<36x32xf32> to vector<4x32xf32>
    %392 = vector.extract_strided_slice %391 {offsets = [0, 3], sizes = [4, 29], strides = [1, 1]} : vector<4x32xf32> to vector<4x29xf32>
    %393 = vector.extract_strided_slice %391 {offsets = [0, 0], sizes = [4, 3], strides = [1, 1]} : vector<4x32xf32> to vector<4x3xf32>
    %394 = tpu.concatenate %392, %393 in 1 : vector<4x29xf32>, vector<4x3xf32> -> vector<4x32xf32>
    %395 = vector.broadcast %93 : vector<1x32xf32> to vector<4x32xf32>
    %396 = arith.mulf %394, %395 : vector<4x32xf32>
    %397 = arith.addf %390, %396 : vector<4x32xf32>
    %398 = vector.extract_strided_slice %354 {offsets = [28, 0], sizes = [4, 32], strides = [1, 1]} : vector<36x32xf32> to vector<4x32xf32>
    %399 = vector.extract_strided_slice %398 {offsets = [0, 4], sizes = [4, 28], strides = [1, 1]} : vector<4x32xf32> to vector<4x28xf32>
    %400 = vector.extract_strided_slice %398 {offsets = [0, 0], sizes = [4, 4], strides = [1, 1]} : vector<4x32xf32> to vector<4x4xf32>
    %401 = tpu.concatenate %399, %400 in 1 : vector<4x28xf32>, vector<4x4xf32> -> vector<4x32xf32>
    %402 = vector.broadcast %94 : vector<1x32xf32> to vector<4x32xf32>
    %403 = arith.mulf %401, %402 : vector<4x32xf32>
    %404 = arith.addf %397, %403 : vector<4x32xf32>
    %405 = vector.extract_strided_slice %354 {offsets = [32, 0], sizes = [4, 32], strides = [1, 1]} : vector<36x32xf32> to vector<4x32xf32>
    %406 = vector.extract_strided_slice %405 {offsets = [0, 5], sizes = [4, 27], strides = [1, 1]} : vector<4x32xf32> to vector<4x27xf32>
    %407 = vector.extract_strided_slice %405 {offsets = [0, 0], sizes = [4, 5], strides = [1, 1]} : vector<4x32xf32> to vector<4x5xf32>
    %408 = tpu.concatenate %406, %407 in 1 : vector<4x27xf32>, vector<4x5xf32> -> vector<4x32xf32>
    %409 = vector.broadcast %95 : vector<1x32xf32> to vector<4x32xf32>
    %410 = arith.mulf %408, %409 : vector<4x32xf32>
    %411 = arith.addf %404, %410 : vector<4x32xf32>
    %c1_94 = arith.constant 1 : index
    %c0_95 = arith.constant 0 : index
    %c0_96 = arith.constant 0 : index
    %412 = vector.load %arg11[%c1_94, %c0_95, %c0_96] : memref<7x4x1xf32, #tpu.memory_space<vmem>>, vector<1x4x1xf32>
    %413 = vector.shape_cast %412 : vector<1x4x1xf32> to vector<4x1xf32>
    %414 = vector.broadcast %413 : vector<4x1xf32> to vector<4x32xf32>
    %415 = arith.mulf %411, %414 : vector<4x32xf32>
    %c1_97 = arith.constant 1 : index
    %c0_98 = arith.constant 0 : index
    %c0_99 = arith.constant 0 : index
    %416 = vector.load %arg12[%c1_97, %c0_98, %c0_99] : memref<7x4x1xf32, #tpu.memory_space<vmem>>, vector<1x4x1xf32>
    %417 = vector.shape_cast %416 : vector<1x4x1xf32> to vector<4x1xf32>
    %418 = vector.broadcast %417 : vector<4x1xf32> to vector<4x32xf32>
    %419 = arith.addf %415, %418 : vector<4x32xf32>
    %cst_100 = arith.constant 0.000000e+00 : f32
    %420 = vector.broadcast %cst_100 : f32 to vector<4x32xf32>
    %421 = arith.maximumf %419, %420 : vector<4x32xf32>
    %c1_101 = arith.constant 1 : index
    %c0_102 = arith.constant 0 : index
    %c0_103 = arith.constant 0 : index
    %422 = vector.load %arg13[%c1_101, %c0_102, %c0_103] : memref<7x36x4xbf16, #tpu.memory_space<vmem>>, vector<1x36x4xbf16>
    %423 = vector.shape_cast %422 : vector<1x36x4xbf16> to vector<36x4xbf16>
    %424 = arith.truncf %421 : vector<4x32xf32> to vector<4x32xbf16>
    %cst_104 = arith.constant dense<0.000000e+00> : vector<36x32xf32>
    %425 = tpu.matmul %423, %424, %cst_104 {dimension_numbers = #tpu.dot_dimension_numbers<[1], [0], [0], [1], [0, 0, 1, 1], [], []>} : vector<36x4xbf16>, vector<4x32xbf16>, vector<36x32xf32> -> vector<36x32xf32>
    %426 = vector.extract_strided_slice %425 {offsets = [16, 0], sizes = [4, 32], strides = [1, 1]} : vector<36x32xf32> to vector<4x32xf32>
    %427 = vector.extract_strided_slice %425 {offsets = [0, 0], sizes = [4, 32], strides = [1, 1]} : vector<36x32xf32> to vector<4x32xf32>
    %428 = vector.extract_strided_slice %427 {offsets = [0, 27], sizes = [4, 5], strides = [1, 1]} : vector<4x32xf32> to vector<4x5xf32>
    %429 = vector.extract_strided_slice %427 {offsets = [0, 0], sizes = [4, 27], strides = [1, 1]} : vector<4x32xf32> to vector<4x27xf32>
    %430 = tpu.concatenate %428, %429 in 1 : vector<4x5xf32>, vector<4x27xf32> -> vector<4x32xf32>
    %431 = vector.broadcast %88 : vector<1x32xf32> to vector<4x32xf32>
    %432 = arith.mulf %430, %431 : vector<4x32xf32>
    %433 = arith.addf %426, %432 : vector<4x32xf32>
    %434 = vector.extract_strided_slice %425 {offsets = [4, 0], sizes = [4, 32], strides = [1, 1]} : vector<36x32xf32> to vector<4x32xf32>
    %435 = vector.extract_strided_slice %434 {offsets = [0, 28], sizes = [4, 4], strides = [1, 1]} : vector<4x32xf32> to vector<4x4xf32>
    %436 = vector.extract_strided_slice %434 {offsets = [0, 0], sizes = [4, 28], strides = [1, 1]} : vector<4x32xf32> to vector<4x28xf32>
    %437 = tpu.concatenate %435, %436 in 1 : vector<4x4xf32>, vector<4x28xf32> -> vector<4x32xf32>
    %438 = vector.broadcast %89 : vector<1x32xf32> to vector<4x32xf32>
    %439 = arith.mulf %437, %438 : vector<4x32xf32>
    %440 = arith.addf %433, %439 : vector<4x32xf32>
    %441 = vector.extract_strided_slice %425 {offsets = [8, 0], sizes = [4, 32], strides = [1, 1]} : vector<36x32xf32> to vector<4x32xf32>
    %442 = vector.extract_strided_slice %441 {offsets = [0, 29], sizes = [4, 3], strides = [1, 1]} : vector<4x32xf32> to vector<4x3xf32>
    %443 = vector.extract_strided_slice %441 {offsets = [0, 0], sizes = [4, 29], strides = [1, 1]} : vector<4x32xf32> to vector<4x29xf32>
    %444 = tpu.concatenate %442, %443 in 1 : vector<4x3xf32>, vector<4x29xf32> -> vector<4x32xf32>
    %445 = vector.broadcast %90 : vector<1x32xf32> to vector<4x32xf32>
    %446 = arith.mulf %444, %445 : vector<4x32xf32>
    %447 = arith.addf %440, %446 : vector<4x32xf32>
    %448 = vector.extract_strided_slice %425 {offsets = [12, 0], sizes = [4, 32], strides = [1, 1]} : vector<36x32xf32> to vector<4x32xf32>
    %449 = vector.extract_strided_slice %448 {offsets = [0, 31], sizes = [4, 1], strides = [1, 1]} : vector<4x32xf32> to vector<4x1xf32>
    %450 = vector.extract_strided_slice %448 {offsets = [0, 0], sizes = [4, 31], strides = [1, 1]} : vector<4x32xf32> to vector<4x31xf32>
    %451 = tpu.concatenate %449, %450 in 1 : vector<4x1xf32>, vector<4x31xf32> -> vector<4x32xf32>
    %452 = vector.broadcast %91 : vector<1x32xf32> to vector<4x32xf32>
    %453 = arith.mulf %451, %452 : vector<4x32xf32>
    %454 = arith.addf %447, %453 : vector<4x32xf32>
    %455 = vector.extract_strided_slice %425 {offsets = [20, 0], sizes = [4, 32], strides = [1, 1]} : vector<36x32xf32> to vector<4x32xf32>
    %456 = vector.extract_strided_slice %455 {offsets = [0, 1], sizes = [4, 31], strides = [1, 1]} : vector<4x32xf32> to vector<4x31xf32>
    %457 = vector.extract_strided_slice %455 {offsets = [0, 0], sizes = [4, 1], strides = [1, 1]} : vector<4x32xf32> to vector<4x1xf32>
    %458 = tpu.concatenate %456, %457 in 1 : vector<4x31xf32>, vector<4x1xf32> -> vector<4x32xf32>
    %459 = vector.broadcast %92 : vector<1x32xf32> to vector<4x32xf32>
    %460 = arith.mulf %458, %459 : vector<4x32xf32>
    %461 = arith.addf %454, %460 : vector<4x32xf32>
    %462 = vector.extract_strided_slice %425 {offsets = [24, 0], sizes = [4, 32], strides = [1, 1]} : vector<36x32xf32> to vector<4x32xf32>
    %463 = vector.extract_strided_slice %462 {offsets = [0, 3], sizes = [4, 29], strides = [1, 1]} : vector<4x32xf32> to vector<4x29xf32>
    %464 = vector.extract_strided_slice %462 {offsets = [0, 0], sizes = [4, 3], strides = [1, 1]} : vector<4x32xf32> to vector<4x3xf32>
    %465 = tpu.concatenate %463, %464 in 1 : vector<4x29xf32>, vector<4x3xf32> -> vector<4x32xf32>
    %466 = vector.broadcast %93 : vector<1x32xf32> to vector<4x32xf32>
    %467 = arith.mulf %465, %466 : vector<4x32xf32>
    %468 = arith.addf %461, %467 : vector<4x32xf32>
    %469 = vector.extract_strided_slice %425 {offsets = [28, 0], sizes = [4, 32], strides = [1, 1]} : vector<36x32xf32> to vector<4x32xf32>
    %470 = vector.extract_strided_slice %469 {offsets = [0, 4], sizes = [4, 28], strides = [1, 1]} : vector<4x32xf32> to vector<4x28xf32>
    %471 = vector.extract_strided_slice %469 {offsets = [0, 0], sizes = [4, 4], strides = [1, 1]} : vector<4x32xf32> to vector<4x4xf32>
    %472 = tpu.concatenate %470, %471 in 1 : vector<4x28xf32>, vector<4x4xf32> -> vector<4x32xf32>
    %473 = vector.broadcast %94 : vector<1x32xf32> to vector<4x32xf32>
    %474 = arith.mulf %472, %473 : vector<4x32xf32>
    %475 = arith.addf %468, %474 : vector<4x32xf32>
    %476 = vector.extract_strided_slice %425 {offsets = [32, 0], sizes = [4, 32], strides = [1, 1]} : vector<36x32xf32> to vector<4x32xf32>
    %477 = vector.extract_strided_slice %476 {offsets = [0, 5], sizes = [4, 27], strides = [1, 1]} : vector<4x32xf32> to vector<4x27xf32>
    %478 = vector.extract_strided_slice %476 {offsets = [0, 0], sizes = [4, 5], strides = [1, 1]} : vector<4x32xf32> to vector<4x5xf32>
    %479 = tpu.concatenate %477, %478 in 1 : vector<4x27xf32>, vector<4x5xf32> -> vector<4x32xf32>
    %480 = vector.broadcast %95 : vector<1x32xf32> to vector<4x32xf32>
    %481 = arith.mulf %479, %480 : vector<4x32xf32>
    %482 = arith.addf %475, %481 : vector<4x32xf32>
    %483 = tpu.concatenate %340, %411, %482 in 0 : vector<8x32xf32>, vector<4x32xf32>, vector<4x32xf32> -> vector<16x32xf32>
    %484 = arith.addf %483, %269 : vector<16x32xf32>
    %c2 = arith.constant 2 : index
    %c0_105 = arith.constant 0 : index
    %c0_106 = arith.constant 0 : index
    %485 = vector.load %arg5[%c2, %c0_105, %c0_106] : memref<7x16x1xf32, #tpu.memory_space<vmem>>, vector<1x16x1xf32>
    %486 = vector.shape_cast %485 : vector<1x16x1xf32> to vector<16x1xf32>
    %487 = vector.broadcast %486 : vector<16x1xf32> to vector<16x32xf32>
    %488 = arith.mulf %484, %487 : vector<16x32xf32>
    %c2_107 = arith.constant 2 : index
    %c0_108 = arith.constant 0 : index
    %c0_109 = arith.constant 0 : index
    %489 = vector.load %arg6[%c2_107, %c0_108, %c0_109] : memref<7x16x1xf32, #tpu.memory_space<vmem>>, vector<1x16x1xf32>
    %490 = vector.shape_cast %489 : vector<1x16x1xf32> to vector<16x1xf32>
    %491 = vector.broadcast %490 : vector<16x1xf32> to vector<16x32xf32>
    %492 = arith.addf %488, %491 : vector<16x32xf32>
    %cst_110 = arith.constant 0.000000e+00 : f32
    %493 = vector.broadcast %cst_110 : f32 to vector<16x32xf32>
    %494 = arith.maximumf %492, %493 : vector<16x32xf32>
    %c2_111 = arith.constant 2 : index
    %c0_112 = arith.constant 0 : index
    %c0_113 = arith.constant 0 : index
    %495 = vector.load %arg7[%c2_111, %c0_112, %c0_113] : memref<7x72x16xbf16, #tpu.memory_space<vmem>>, vector<1x72x16xbf16>
    %496 = vector.shape_cast %495 : vector<1x72x16xbf16> to vector<72x16xbf16>
    %497 = arith.truncf %494 : vector<16x32xf32> to vector<16x32xbf16>
    %cst_114 = arith.constant dense<0.000000e+00> : vector<72x32xf32>
    %498 = tpu.matmul %496, %497, %cst_114 {dimension_numbers = #tpu.dot_dimension_numbers<[1], [0], [0], [1], [0, 0, 1, 1], [], []>} : vector<72x16xbf16>, vector<16x32xbf16>, vector<72x32xf32> -> vector<72x32xf32>
    %499 = vector.extract_strided_slice %498 {offsets = [32, 0], sizes = [8, 32], strides = [1, 1]} : vector<72x32xf32> to vector<8x32xf32>
    %500 = vector.extract_strided_slice %498 {offsets = [0, 0], sizes = [8, 32], strides = [1, 1]} : vector<72x32xf32> to vector<8x32xf32>
    %501 = vector.extract_strided_slice %500 {offsets = [0, 27], sizes = [8, 5], strides = [1, 1]} : vector<8x32xf32> to vector<8x5xf32>
    %502 = vector.extract_strided_slice %500 {offsets = [0, 0], sizes = [8, 27], strides = [1, 1]} : vector<8x32xf32> to vector<8x27xf32>
    %503 = tpu.concatenate %501, %502 in 1 : vector<8x5xf32>, vector<8x27xf32> -> vector<8x32xf32>
    %504 = vector.broadcast %88 : vector<1x32xf32> to vector<8x32xf32>
    %505 = arith.mulf %503, %504 : vector<8x32xf32>
    %506 = arith.addf %499, %505 : vector<8x32xf32>
    %507 = vector.extract_strided_slice %498 {offsets = [8, 0], sizes = [8, 32], strides = [1, 1]} : vector<72x32xf32> to vector<8x32xf32>
    %508 = vector.extract_strided_slice %507 {offsets = [0, 28], sizes = [8, 4], strides = [1, 1]} : vector<8x32xf32> to vector<8x4xf32>
    %509 = vector.extract_strided_slice %507 {offsets = [0, 0], sizes = [8, 28], strides = [1, 1]} : vector<8x32xf32> to vector<8x28xf32>
    %510 = tpu.concatenate %508, %509 in 1 : vector<8x4xf32>, vector<8x28xf32> -> vector<8x32xf32>
    %511 = vector.broadcast %89 : vector<1x32xf32> to vector<8x32xf32>
    %512 = arith.mulf %510, %511 : vector<8x32xf32>
    %513 = arith.addf %506, %512 : vector<8x32xf32>
    %514 = vector.extract_strided_slice %498 {offsets = [16, 0], sizes = [8, 32], strides = [1, 1]} : vector<72x32xf32> to vector<8x32xf32>
    %515 = vector.extract_strided_slice %514 {offsets = [0, 29], sizes = [8, 3], strides = [1, 1]} : vector<8x32xf32> to vector<8x3xf32>
    %516 = vector.extract_strided_slice %514 {offsets = [0, 0], sizes = [8, 29], strides = [1, 1]} : vector<8x32xf32> to vector<8x29xf32>
    %517 = tpu.concatenate %515, %516 in 1 : vector<8x3xf32>, vector<8x29xf32> -> vector<8x32xf32>
    %518 = vector.broadcast %90 : vector<1x32xf32> to vector<8x32xf32>
    %519 = arith.mulf %517, %518 : vector<8x32xf32>
    %520 = arith.addf %513, %519 : vector<8x32xf32>
    %521 = vector.extract_strided_slice %498 {offsets = [24, 0], sizes = [8, 32], strides = [1, 1]} : vector<72x32xf32> to vector<8x32xf32>
    %522 = vector.extract_strided_slice %521 {offsets = [0, 31], sizes = [8, 1], strides = [1, 1]} : vector<8x32xf32> to vector<8x1xf32>
    %523 = vector.extract_strided_slice %521 {offsets = [0, 0], sizes = [8, 31], strides = [1, 1]} : vector<8x32xf32> to vector<8x31xf32>
    %524 = tpu.concatenate %522, %523 in 1 : vector<8x1xf32>, vector<8x31xf32> -> vector<8x32xf32>
    %525 = vector.broadcast %91 : vector<1x32xf32> to vector<8x32xf32>
    %526 = arith.mulf %524, %525 : vector<8x32xf32>
    %527 = arith.addf %520, %526 : vector<8x32xf32>
    %528 = vector.extract_strided_slice %498 {offsets = [40, 0], sizes = [8, 32], strides = [1, 1]} : vector<72x32xf32> to vector<8x32xf32>
    %529 = vector.extract_strided_slice %528 {offsets = [0, 1], sizes = [8, 31], strides = [1, 1]} : vector<8x32xf32> to vector<8x31xf32>
    %530 = vector.extract_strided_slice %528 {offsets = [0, 0], sizes = [8, 1], strides = [1, 1]} : vector<8x32xf32> to vector<8x1xf32>
    %531 = tpu.concatenate %529, %530 in 1 : vector<8x31xf32>, vector<8x1xf32> -> vector<8x32xf32>
    %532 = vector.broadcast %92 : vector<1x32xf32> to vector<8x32xf32>
    %533 = arith.mulf %531, %532 : vector<8x32xf32>
    %534 = arith.addf %527, %533 : vector<8x32xf32>
    %535 = vector.extract_strided_slice %498 {offsets = [48, 0], sizes = [8, 32], strides = [1, 1]} : vector<72x32xf32> to vector<8x32xf32>
    %536 = vector.extract_strided_slice %535 {offsets = [0, 3], sizes = [8, 29], strides = [1, 1]} : vector<8x32xf32> to vector<8x29xf32>
    %537 = vector.extract_strided_slice %535 {offsets = [0, 0], sizes = [8, 3], strides = [1, 1]} : vector<8x32xf32> to vector<8x3xf32>
    %538 = tpu.concatenate %536, %537 in 1 : vector<8x29xf32>, vector<8x3xf32> -> vector<8x32xf32>
    %539 = vector.broadcast %93 : vector<1x32xf32> to vector<8x32xf32>
    %540 = arith.mulf %538, %539 : vector<8x32xf32>
    %541 = arith.addf %534, %540 : vector<8x32xf32>
    %542 = vector.extract_strided_slice %498 {offsets = [56, 0], sizes = [8, 32], strides = [1, 1]} : vector<72x32xf32> to vector<8x32xf32>
    %543 = vector.extract_strided_slice %542 {offsets = [0, 4], sizes = [8, 28], strides = [1, 1]} : vector<8x32xf32> to vector<8x28xf32>
    %544 = vector.extract_strided_slice %542 {offsets = [0, 0], sizes = [8, 4], strides = [1, 1]} : vector<8x32xf32> to vector<8x4xf32>
    %545 = tpu.concatenate %543, %544 in 1 : vector<8x28xf32>, vector<8x4xf32> -> vector<8x32xf32>
    %546 = vector.broadcast %94 : vector<1x32xf32> to vector<8x32xf32>
    %547 = arith.mulf %545, %546 : vector<8x32xf32>
    %548 = arith.addf %541, %547 : vector<8x32xf32>
    %549 = vector.extract_strided_slice %498 {offsets = [64, 0], sizes = [8, 32], strides = [1, 1]} : vector<72x32xf32> to vector<8x32xf32>
    %550 = vector.extract_strided_slice %549 {offsets = [0, 5], sizes = [8, 27], strides = [1, 1]} : vector<8x32xf32> to vector<8x27xf32>
    %551 = vector.extract_strided_slice %549 {offsets = [0, 0], sizes = [8, 5], strides = [1, 1]} : vector<8x32xf32> to vector<8x5xf32>
    %552 = tpu.concatenate %550, %551 in 1 : vector<8x27xf32>, vector<8x5xf32> -> vector<8x32xf32>
    %553 = vector.broadcast %95 : vector<1x32xf32> to vector<8x32xf32>
    %554 = arith.mulf %552, %553 : vector<8x32xf32>
    %555 = arith.addf %548, %554 : vector<8x32xf32>
    %c2_115 = arith.constant 2 : index
    %c0_116 = arith.constant 0 : index
    %c0_117 = arith.constant 0 : index
    %556 = vector.load %arg8[%c2_115, %c0_116, %c0_117] : memref<7x8x1xf32, #tpu.memory_space<vmem>>, vector<1x8x1xf32>
    %557 = vector.shape_cast %556 : vector<1x8x1xf32> to vector<8x1xf32>
    %558 = vector.broadcast %557 : vector<8x1xf32> to vector<8x32xf32>
    %559 = arith.mulf %555, %558 : vector<8x32xf32>
    %c2_118 = arith.constant 2 : index
    %c0_119 = arith.constant 0 : index
    %c0_120 = arith.constant 0 : index
    %560 = vector.load %arg9[%c2_118, %c0_119, %c0_120] : memref<7x8x1xf32, #tpu.memory_space<vmem>>, vector<1x8x1xf32>
    %561 = vector.shape_cast %560 : vector<1x8x1xf32> to vector<8x1xf32>
    %562 = vector.broadcast %561 : vector<8x1xf32> to vector<8x32xf32>
    %563 = arith.addf %559, %562 : vector<8x32xf32>
    %cst_121 = arith.constant 0.000000e+00 : f32
    %564 = vector.broadcast %cst_121 : f32 to vector<8x32xf32>
    %565 = arith.maximumf %563, %564 : vector<8x32xf32>
    %c2_122 = arith.constant 2 : index
    %c0_123 = arith.constant 0 : index
    %c0_124 = arith.constant 0 : index
    %566 = vector.load %arg10[%c2_122, %c0_123, %c0_124] : memref<7x36x8xbf16, #tpu.memory_space<vmem>>, vector<1x36x8xbf16>
    %567 = vector.shape_cast %566 : vector<1x36x8xbf16> to vector<36x8xbf16>
    %568 = arith.truncf %565 : vector<8x32xf32> to vector<8x32xbf16>
    %cst_125 = arith.constant dense<0.000000e+00> : vector<36x32xf32>
    %569 = tpu.matmul %567, %568, %cst_125 {dimension_numbers = #tpu.dot_dimension_numbers<[1], [0], [0], [1], [0, 0, 1, 1], [], []>} : vector<36x8xbf16>, vector<8x32xbf16>, vector<36x32xf32> -> vector<36x32xf32>
    %570 = vector.extract_strided_slice %569 {offsets = [16, 0], sizes = [4, 32], strides = [1, 1]} : vector<36x32xf32> to vector<4x32xf32>
    %571 = vector.extract_strided_slice %569 {offsets = [0, 0], sizes = [4, 32], strides = [1, 1]} : vector<36x32xf32> to vector<4x32xf32>
    %572 = vector.extract_strided_slice %571 {offsets = [0, 27], sizes = [4, 5], strides = [1, 1]} : vector<4x32xf32> to vector<4x5xf32>
    %573 = vector.extract_strided_slice %571 {offsets = [0, 0], sizes = [4, 27], strides = [1, 1]} : vector<4x32xf32> to vector<4x27xf32>
    %574 = tpu.concatenate %572, %573 in 1 : vector<4x5xf32>, vector<4x27xf32> -> vector<4x32xf32>
    %575 = vector.broadcast %88 : vector<1x32xf32> to vector<4x32xf32>
    %576 = arith.mulf %574, %575 : vector<4x32xf32>
    %577 = arith.addf %570, %576 : vector<4x32xf32>
    %578 = vector.extract_strided_slice %569 {offsets = [4, 0], sizes = [4, 32], strides = [1, 1]} : vector<36x32xf32> to vector<4x32xf32>
    %579 = vector.extract_strided_slice %578 {offsets = [0, 28], sizes = [4, 4], strides = [1, 1]} : vector<4x32xf32> to vector<4x4xf32>
    %580 = vector.extract_strided_slice %578 {offsets = [0, 0], sizes = [4, 28], strides = [1, 1]} : vector<4x32xf32> to vector<4x28xf32>
    %581 = tpu.concatenate %579, %580 in 1 : vector<4x4xf32>, vector<4x28xf32> -> vector<4x32xf32>
    %582 = vector.broadcast %89 : vector<1x32xf32> to vector<4x32xf32>
    %583 = arith.mulf %581, %582 : vector<4x32xf32>
    %584 = arith.addf %577, %583 : vector<4x32xf32>
    %585 = vector.extract_strided_slice %569 {offsets = [8, 0], sizes = [4, 32], strides = [1, 1]} : vector<36x32xf32> to vector<4x32xf32>
    %586 = vector.extract_strided_slice %585 {offsets = [0, 29], sizes = [4, 3], strides = [1, 1]} : vector<4x32xf32> to vector<4x3xf32>
    %587 = vector.extract_strided_slice %585 {offsets = [0, 0], sizes = [4, 29], strides = [1, 1]} : vector<4x32xf32> to vector<4x29xf32>
    %588 = tpu.concatenate %586, %587 in 1 : vector<4x3xf32>, vector<4x29xf32> -> vector<4x32xf32>
    %589 = vector.broadcast %90 : vector<1x32xf32> to vector<4x32xf32>
    %590 = arith.mulf %588, %589 : vector<4x32xf32>
    %591 = arith.addf %584, %590 : vector<4x32xf32>
    %592 = vector.extract_strided_slice %569 {offsets = [12, 0], sizes = [4, 32], strides = [1, 1]} : vector<36x32xf32> to vector<4x32xf32>
    %593 = vector.extract_strided_slice %592 {offsets = [0, 31], sizes = [4, 1], strides = [1, 1]} : vector<4x32xf32> to vector<4x1xf32>
    %594 = vector.extract_strided_slice %592 {offsets = [0, 0], sizes = [4, 31], strides = [1, 1]} : vector<4x32xf32> to vector<4x31xf32>
    %595 = tpu.concatenate %593, %594 in 1 : vector<4x1xf32>, vector<4x31xf32> -> vector<4x32xf32>
    %596 = vector.broadcast %91 : vector<1x32xf32> to vector<4x32xf32>
    %597 = arith.mulf %595, %596 : vector<4x32xf32>
    %598 = arith.addf %591, %597 : vector<4x32xf32>
    %599 = vector.extract_strided_slice %569 {offsets = [20, 0], sizes = [4, 32], strides = [1, 1]} : vector<36x32xf32> to vector<4x32xf32>
    %600 = vector.extract_strided_slice %599 {offsets = [0, 1], sizes = [4, 31], strides = [1, 1]} : vector<4x32xf32> to vector<4x31xf32>
    %601 = vector.extract_strided_slice %599 {offsets = [0, 0], sizes = [4, 1], strides = [1, 1]} : vector<4x32xf32> to vector<4x1xf32>
    %602 = tpu.concatenate %600, %601 in 1 : vector<4x31xf32>, vector<4x1xf32> -> vector<4x32xf32>
    %603 = vector.broadcast %92 : vector<1x32xf32> to vector<4x32xf32>
    %604 = arith.mulf %602, %603 : vector<4x32xf32>
    %605 = arith.addf %598, %604 : vector<4x32xf32>
    %606 = vector.extract_strided_slice %569 {offsets = [24, 0], sizes = [4, 32], strides = [1, 1]} : vector<36x32xf32> to vector<4x32xf32>
    %607 = vector.extract_strided_slice %606 {offsets = [0, 3], sizes = [4, 29], strides = [1, 1]} : vector<4x32xf32> to vector<4x29xf32>
    %608 = vector.extract_strided_slice %606 {offsets = [0, 0], sizes = [4, 3], strides = [1, 1]} : vector<4x32xf32> to vector<4x3xf32>
    %609 = tpu.concatenate %607, %608 in 1 : vector<4x29xf32>, vector<4x3xf32> -> vector<4x32xf32>
    %610 = vector.broadcast %93 : vector<1x32xf32> to vector<4x32xf32>
    %611 = arith.mulf %609, %610 : vector<4x32xf32>
    %612 = arith.addf %605, %611 : vector<4x32xf32>
    %613 = vector.extract_strided_slice %569 {offsets = [28, 0], sizes = [4, 32], strides = [1, 1]} : vector<36x32xf32> to vector<4x32xf32>
    %614 = vector.extract_strided_slice %613 {offsets = [0, 4], sizes = [4, 28], strides = [1, 1]} : vector<4x32xf32> to vector<4x28xf32>
    %615 = vector.extract_strided_slice %613 {offsets = [0, 0], sizes = [4, 4], strides = [1, 1]} : vector<4x32xf32> to vector<4x4xf32>
    %616 = tpu.concatenate %614, %615 in 1 : vector<4x28xf32>, vector<4x4xf32> -> vector<4x32xf32>
    %617 = vector.broadcast %94 : vector<1x32xf32> to vector<4x32xf32>
    %618 = arith.mulf %616, %617 : vector<4x32xf32>
    %619 = arith.addf %612, %618 : vector<4x32xf32>
    %620 = vector.extract_strided_slice %569 {offsets = [32, 0], sizes = [4, 32], strides = [1, 1]} : vector<36x32xf32> to vector<4x32xf32>
    %621 = vector.extract_strided_slice %620 {offsets = [0, 5], sizes = [4, 27], strides = [1, 1]} : vector<4x32xf32> to vector<4x27xf32>
    %622 = vector.extract_strided_slice %620 {offsets = [0, 0], sizes = [4, 5], strides = [1, 1]} : vector<4x32xf32> to vector<4x5xf32>
    %623 = tpu.concatenate %621, %622 in 1 : vector<4x27xf32>, vector<4x5xf32> -> vector<4x32xf32>
    %624 = vector.broadcast %95 : vector<1x32xf32> to vector<4x32xf32>
    %625 = arith.mulf %623, %624 : vector<4x32xf32>
    %626 = arith.addf %619, %625 : vector<4x32xf32>
    %c2_126 = arith.constant 2 : index
    %c0_127 = arith.constant 0 : index
    %c0_128 = arith.constant 0 : index
    %627 = vector.load %arg11[%c2_126, %c0_127, %c0_128] : memref<7x4x1xf32, #tpu.memory_space<vmem>>, vector<1x4x1xf32>
    %628 = vector.shape_cast %627 : vector<1x4x1xf32> to vector<4x1xf32>
    %629 = vector.broadcast %628 : vector<4x1xf32> to vector<4x32xf32>
    %630 = arith.mulf %626, %629 : vector<4x32xf32>
    %c2_129 = arith.constant 2 : index
    %c0_130 = arith.constant 0 : index
    %c0_131 = arith.constant 0 : index
    %631 = vector.load %arg12[%c2_129, %c0_130, %c0_131] : memref<7x4x1xf32, #tpu.memory_space<vmem>>, vector<1x4x1xf32>
    %632 = vector.shape_cast %631 : vector<1x4x1xf32> to vector<4x1xf32>
    %633 = vector.broadcast %632 : vector<4x1xf32> to vector<4x32xf32>
    %634 = arith.addf %630, %633 : vector<4x32xf32>
    %cst_132 = arith.constant 0.000000e+00 : f32
    %635 = vector.broadcast %cst_132 : f32 to vector<4x32xf32>
    %636 = arith.maximumf %634, %635 : vector<4x32xf32>
    %c2_133 = arith.constant 2 : index
    %c0_134 = arith.constant 0 : index
    %c0_135 = arith.constant 0 : index
    %637 = vector.load %arg13[%c2_133, %c0_134, %c0_135] : memref<7x36x4xbf16, #tpu.memory_space<vmem>>, vector<1x36x4xbf16>
    %638 = vector.shape_cast %637 : vector<1x36x4xbf16> to vector<36x4xbf16>
    %639 = arith.truncf %636 : vector<4x32xf32> to vector<4x32xbf16>
    %cst_136 = arith.constant dense<0.000000e+00> : vector<36x32xf32>
    %640 = tpu.matmul %638, %639, %cst_136 {dimension_numbers = #tpu.dot_dimension_numbers<[1], [0], [0], [1], [0, 0, 1, 1], [], []>} : vector<36x4xbf16>, vector<4x32xbf16>, vector<36x32xf32> -> vector<36x32xf32>
    %641 = vector.extract_strided_slice %640 {offsets = [16, 0], sizes = [4, 32], strides = [1, 1]} : vector<36x32xf32> to vector<4x32xf32>
    %642 = vector.extract_strided_slice %640 {offsets = [0, 0], sizes = [4, 32], strides = [1, 1]} : vector<36x32xf32> to vector<4x32xf32>
    %643 = vector.extract_strided_slice %642 {offsets = [0, 27], sizes = [4, 5], strides = [1, 1]} : vector<4x32xf32> to vector<4x5xf32>
    %644 = vector.extract_strided_slice %642 {offsets = [0, 0], sizes = [4, 27], strides = [1, 1]} : vector<4x32xf32> to vector<4x27xf32>
    %645 = tpu.concatenate %643, %644 in 1 : vector<4x5xf32>, vector<4x27xf32> -> vector<4x32xf32>
    %646 = vector.broadcast %88 : vector<1x32xf32> to vector<4x32xf32>
    %647 = arith.mulf %645, %646 : vector<4x32xf32>
    %648 = arith.addf %641, %647 : vector<4x32xf32>
    %649 = vector.extract_strided_slice %640 {offsets = [4, 0], sizes = [4, 32], strides = [1, 1]} : vector<36x32xf32> to vector<4x32xf32>
    %650 = vector.extract_strided_slice %649 {offsets = [0, 28], sizes = [4, 4], strides = [1, 1]} : vector<4x32xf32> to vector<4x4xf32>
    %651 = vector.extract_strided_slice %649 {offsets = [0, 0], sizes = [4, 28], strides = [1, 1]} : vector<4x32xf32> to vector<4x28xf32>
    %652 = tpu.concatenate %650, %651 in 1 : vector<4x4xf32>, vector<4x28xf32> -> vector<4x32xf32>
    %653 = vector.broadcast %89 : vector<1x32xf32> to vector<4x32xf32>
    %654 = arith.mulf %652, %653 : vector<4x32xf32>
    %655 = arith.addf %648, %654 : vector<4x32xf32>
    %656 = vector.extract_strided_slice %640 {offsets = [8, 0], sizes = [4, 32], strides = [1, 1]} : vector<36x32xf32> to vector<4x32xf32>
    %657 = vector.extract_strided_slice %656 {offsets = [0, 29], sizes = [4, 3], strides = [1, 1]} : vector<4x32xf32> to vector<4x3xf32>
    %658 = vector.extract_strided_slice %656 {offsets = [0, 0], sizes = [4, 29], strides = [1, 1]} : vector<4x32xf32> to vector<4x29xf32>
    %659 = tpu.concatenate %657, %658 in 1 : vector<4x3xf32>, vector<4x29xf32> -> vector<4x32xf32>
    %660 = vector.broadcast %90 : vector<1x32xf32> to vector<4x32xf32>
    %661 = arith.mulf %659, %660 : vector<4x32xf32>
    %662 = arith.addf %655, %661 : vector<4x32xf32>
    %663 = vector.extract_strided_slice %640 {offsets = [12, 0], sizes = [4, 32], strides = [1, 1]} : vector<36x32xf32> to vector<4x32xf32>
    %664 = vector.extract_strided_slice %663 {offsets = [0, 31], sizes = [4, 1], strides = [1, 1]} : vector<4x32xf32> to vector<4x1xf32>
    %665 = vector.extract_strided_slice %663 {offsets = [0, 0], sizes = [4, 31], strides = [1, 1]} : vector<4x32xf32> to vector<4x31xf32>
    %666 = tpu.concatenate %664, %665 in 1 : vector<4x1xf32>, vector<4x31xf32> -> vector<4x32xf32>
    %667 = vector.broadcast %91 : vector<1x32xf32> to vector<4x32xf32>
    %668 = arith.mulf %666, %667 : vector<4x32xf32>
    %669 = arith.addf %662, %668 : vector<4x32xf32>
    %670 = vector.extract_strided_slice %640 {offsets = [20, 0], sizes = [4, 32], strides = [1, 1]} : vector<36x32xf32> to vector<4x32xf32>
    %671 = vector.extract_strided_slice %670 {offsets = [0, 1], sizes = [4, 31], strides = [1, 1]} : vector<4x32xf32> to vector<4x31xf32>
    %672 = vector.extract_strided_slice %670 {offsets = [0, 0], sizes = [4, 1], strides = [1, 1]} : vector<4x32xf32> to vector<4x1xf32>
    %673 = tpu.concatenate %671, %672 in 1 : vector<4x31xf32>, vector<4x1xf32> -> vector<4x32xf32>
    %674 = vector.broadcast %92 : vector<1x32xf32> to vector<4x32xf32>
    %675 = arith.mulf %673, %674 : vector<4x32xf32>
    %676 = arith.addf %669, %675 : vector<4x32xf32>
    %677 = vector.extract_strided_slice %640 {offsets = [24, 0], sizes = [4, 32], strides = [1, 1]} : vector<36x32xf32> to vector<4x32xf32>
    %678 = vector.extract_strided_slice %677 {offsets = [0, 3], sizes = [4, 29], strides = [1, 1]} : vector<4x32xf32> to vector<4x29xf32>
    %679 = vector.extract_strided_slice %677 {offsets = [0, 0], sizes = [4, 3], strides = [1, 1]} : vector<4x32xf32> to vector<4x3xf32>
    %680 = tpu.concatenate %678, %679 in 1 : vector<4x29xf32>, vector<4x3xf32> -> vector<4x32xf32>
    %681 = vector.broadcast %93 : vector<1x32xf32> to vector<4x32xf32>
    %682 = arith.mulf %680, %681 : vector<4x32xf32>
    %683 = arith.addf %676, %682 : vector<4x32xf32>
    %684 = vector.extract_strided_slice %640 {offsets = [28, 0], sizes = [4, 32], strides = [1, 1]} : vector<36x32xf32> to vector<4x32xf32>
    %685 = vector.extract_strided_slice %684 {offsets = [0, 4], sizes = [4, 28], strides = [1, 1]} : vector<4x32xf32> to vector<4x28xf32>
    %686 = vector.extract_strided_slice %684 {offsets = [0, 0], sizes = [4, 4], strides = [1, 1]} : vector<4x32xf32> to vector<4x4xf32>
    %687 = tpu.concatenate %685, %686 in 1 : vector<4x28xf32>, vector<4x4xf32> -> vector<4x32xf32>
    %688 = vector.broadcast %94 : vector<1x32xf32> to vector<4x32xf32>
    %689 = arith.mulf %687, %688 : vector<4x32xf32>
    %690 = arith.addf %683, %689 : vector<4x32xf32>
    %691 = vector.extract_strided_slice %640 {offsets = [32, 0], sizes = [4, 32], strides = [1, 1]} : vector<36x32xf32> to vector<4x32xf32>
    %692 = vector.extract_strided_slice %691 {offsets = [0, 5], sizes = [4, 27], strides = [1, 1]} : vector<4x32xf32> to vector<4x27xf32>
    %693 = vector.extract_strided_slice %691 {offsets = [0, 0], sizes = [4, 5], strides = [1, 1]} : vector<4x32xf32> to vector<4x5xf32>
    %694 = tpu.concatenate %692, %693 in 1 : vector<4x27xf32>, vector<4x5xf32> -> vector<4x32xf32>
    %695 = vector.broadcast %95 : vector<1x32xf32> to vector<4x32xf32>
    %696 = arith.mulf %694, %695 : vector<4x32xf32>
    %697 = arith.addf %690, %696 : vector<4x32xf32>
    %698 = tpu.concatenate %555, %626, %697 in 0 : vector<8x32xf32>, vector<4x32xf32>, vector<4x32xf32> -> vector<16x32xf32>
    %699 = arith.addf %698, %484 : vector<16x32xf32>
    %c3 = arith.constant 3 : index
    %c0_137 = arith.constant 0 : index
    %c0_138 = arith.constant 0 : index
    %700 = vector.load %arg5[%c3, %c0_137, %c0_138] : memref<7x16x1xf32, #tpu.memory_space<vmem>>, vector<1x16x1xf32>
    %701 = vector.shape_cast %700 : vector<1x16x1xf32> to vector<16x1xf32>
    %702 = vector.broadcast %701 : vector<16x1xf32> to vector<16x32xf32>
    %703 = arith.mulf %699, %702 : vector<16x32xf32>
    %c3_139 = arith.constant 3 : index
    %c0_140 = arith.constant 0 : index
    %c0_141 = arith.constant 0 : index
    %704 = vector.load %arg6[%c3_139, %c0_140, %c0_141] : memref<7x16x1xf32, #tpu.memory_space<vmem>>, vector<1x16x1xf32>
    %705 = vector.shape_cast %704 : vector<1x16x1xf32> to vector<16x1xf32>
    %706 = vector.broadcast %705 : vector<16x1xf32> to vector<16x32xf32>
    %707 = arith.addf %703, %706 : vector<16x32xf32>
    %cst_142 = arith.constant 0.000000e+00 : f32
    %708 = vector.broadcast %cst_142 : f32 to vector<16x32xf32>
    %709 = arith.maximumf %707, %708 : vector<16x32xf32>
    %c3_143 = arith.constant 3 : index
    %c0_144 = arith.constant 0 : index
    %c0_145 = arith.constant 0 : index
    %710 = vector.load %arg7[%c3_143, %c0_144, %c0_145] : memref<7x72x16xbf16, #tpu.memory_space<vmem>>, vector<1x72x16xbf16>
    %711 = vector.shape_cast %710 : vector<1x72x16xbf16> to vector<72x16xbf16>
    %712 = arith.truncf %709 : vector<16x32xf32> to vector<16x32xbf16>
    %cst_146 = arith.constant dense<0.000000e+00> : vector<72x32xf32>
    %713 = tpu.matmul %711, %712, %cst_146 {dimension_numbers = #tpu.dot_dimension_numbers<[1], [0], [0], [1], [0, 0, 1, 1], [], []>} : vector<72x16xbf16>, vector<16x32xbf16>, vector<72x32xf32> -> vector<72x32xf32>
    %714 = vector.extract_strided_slice %713 {offsets = [32, 0], sizes = [8, 32], strides = [1, 1]} : vector<72x32xf32> to vector<8x32xf32>
    %715 = vector.extract_strided_slice %713 {offsets = [0, 0], sizes = [8, 32], strides = [1, 1]} : vector<72x32xf32> to vector<8x32xf32>
    %716 = vector.extract_strided_slice %715 {offsets = [0, 27], sizes = [8, 5], strides = [1, 1]} : vector<8x32xf32> to vector<8x5xf32>
    %717 = vector.extract_strided_slice %715 {offsets = [0, 0], sizes = [8, 27], strides = [1, 1]} : vector<8x32xf32> to vector<8x27xf32>
    %718 = tpu.concatenate %716, %717 in 1 : vector<8x5xf32>, vector<8x27xf32> -> vector<8x32xf32>
    %719 = vector.broadcast %88 : vector<1x32xf32> to vector<8x32xf32>
    %720 = arith.mulf %718, %719 : vector<8x32xf32>
    %721 = arith.addf %714, %720 : vector<8x32xf32>
    %722 = vector.extract_strided_slice %713 {offsets = [8, 0], sizes = [8, 32], strides = [1, 1]} : vector<72x32xf32> to vector<8x32xf32>
    %723 = vector.extract_strided_slice %722 {offsets = [0, 28], sizes = [8, 4], strides = [1, 1]} : vector<8x32xf32> to vector<8x4xf32>
    %724 = vector.extract_strided_slice %722 {offsets = [0, 0], sizes = [8, 28], strides = [1, 1]} : vector<8x32xf32> to vector<8x28xf32>
    %725 = tpu.concatenate %723, %724 in 1 : vector<8x4xf32>, vector<8x28xf32> -> vector<8x32xf32>
    %726 = vector.broadcast %89 : vector<1x32xf32> to vector<8x32xf32>
    %727 = arith.mulf %725, %726 : vector<8x32xf32>
    %728 = arith.addf %721, %727 : vector<8x32xf32>
    %729 = vector.extract_strided_slice %713 {offsets = [16, 0], sizes = [8, 32], strides = [1, 1]} : vector<72x32xf32> to vector<8x32xf32>
    %730 = vector.extract_strided_slice %729 {offsets = [0, 29], sizes = [8, 3], strides = [1, 1]} : vector<8x32xf32> to vector<8x3xf32>
    %731 = vector.extract_strided_slice %729 {offsets = [0, 0], sizes = [8, 29], strides = [1, 1]} : vector<8x32xf32> to vector<8x29xf32>
    %732 = tpu.concatenate %730, %731 in 1 : vector<8x3xf32>, vector<8x29xf32> -> vector<8x32xf32>
    %733 = vector.broadcast %90 : vector<1x32xf32> to vector<8x32xf32>
    %734 = arith.mulf %732, %733 : vector<8x32xf32>
    %735 = arith.addf %728, %734 : vector<8x32xf32>
    %736 = vector.extract_strided_slice %713 {offsets = [24, 0], sizes = [8, 32], strides = [1, 1]} : vector<72x32xf32> to vector<8x32xf32>
    %737 = vector.extract_strided_slice %736 {offsets = [0, 31], sizes = [8, 1], strides = [1, 1]} : vector<8x32xf32> to vector<8x1xf32>
    %738 = vector.extract_strided_slice %736 {offsets = [0, 0], sizes = [8, 31], strides = [1, 1]} : vector<8x32xf32> to vector<8x31xf32>
    %739 = tpu.concatenate %737, %738 in 1 : vector<8x1xf32>, vector<8x31xf32> -> vector<8x32xf32>
    %740 = vector.broadcast %91 : vector<1x32xf32> to vector<8x32xf32>
    %741 = arith.mulf %739, %740 : vector<8x32xf32>
    %742 = arith.addf %735, %741 : vector<8x32xf32>
    %743 = vector.extract_strided_slice %713 {offsets = [40, 0], sizes = [8, 32], strides = [1, 1]} : vector<72x32xf32> to vector<8x32xf32>
    %744 = vector.extract_strided_slice %743 {offsets = [0, 1], sizes = [8, 31], strides = [1, 1]} : vector<8x32xf32> to vector<8x31xf32>
    %745 = vector.extract_strided_slice %743 {offsets = [0, 0], sizes = [8, 1], strides = [1, 1]} : vector<8x32xf32> to vector<8x1xf32>
    %746 = tpu.concatenate %744, %745 in 1 : vector<8x31xf32>, vector<8x1xf32> -> vector<8x32xf32>
    %747 = vector.broadcast %92 : vector<1x32xf32> to vector<8x32xf32>
    %748 = arith.mulf %746, %747 : vector<8x32xf32>
    %749 = arith.addf %742, %748 : vector<8x32xf32>
    %750 = vector.extract_strided_slice %713 {offsets = [48, 0], sizes = [8, 32], strides = [1, 1]} : vector<72x32xf32> to vector<8x32xf32>
    %751 = vector.extract_strided_slice %750 {offsets = [0, 3], sizes = [8, 29], strides = [1, 1]} : vector<8x32xf32> to vector<8x29xf32>
    %752 = vector.extract_strided_slice %750 {offsets = [0, 0], sizes = [8, 3], strides = [1, 1]} : vector<8x32xf32> to vector<8x3xf32>
    %753 = tpu.concatenate %751, %752 in 1 : vector<8x29xf32>, vector<8x3xf32> -> vector<8x32xf32>
    %754 = vector.broadcast %93 : vector<1x32xf32> to vector<8x32xf32>
    %755 = arith.mulf %753, %754 : vector<8x32xf32>
    %756 = arith.addf %749, %755 : vector<8x32xf32>
    %757 = vector.extract_strided_slice %713 {offsets = [56, 0], sizes = [8, 32], strides = [1, 1]} : vector<72x32xf32> to vector<8x32xf32>
    %758 = vector.extract_strided_slice %757 {offsets = [0, 4], sizes = [8, 28], strides = [1, 1]} : vector<8x32xf32> to vector<8x28xf32>
    %759 = vector.extract_strided_slice %757 {offsets = [0, 0], sizes = [8, 4], strides = [1, 1]} : vector<8x32xf32> to vector<8x4xf32>
    %760 = tpu.concatenate %758, %759 in 1 : vector<8x28xf32>, vector<8x4xf32> -> vector<8x32xf32>
    %761 = vector.broadcast %94 : vector<1x32xf32> to vector<8x32xf32>
    %762 = arith.mulf %760, %761 : vector<8x32xf32>
    %763 = arith.addf %756, %762 : vector<8x32xf32>
    %764 = vector.extract_strided_slice %713 {offsets = [64, 0], sizes = [8, 32], strides = [1, 1]} : vector<72x32xf32> to vector<8x32xf32>
    %765 = vector.extract_strided_slice %764 {offsets = [0, 5], sizes = [8, 27], strides = [1, 1]} : vector<8x32xf32> to vector<8x27xf32>
    %766 = vector.extract_strided_slice %764 {offsets = [0, 0], sizes = [8, 5], strides = [1, 1]} : vector<8x32xf32> to vector<8x5xf32>
    %767 = tpu.concatenate %765, %766 in 1 : vector<8x27xf32>, vector<8x5xf32> -> vector<8x32xf32>
    %768 = vector.broadcast %95 : vector<1x32xf32> to vector<8x32xf32>
    %769 = arith.mulf %767, %768 : vector<8x32xf32>
    %770 = arith.addf %763, %769 : vector<8x32xf32>
    %c3_147 = arith.constant 3 : index
    %c0_148 = arith.constant 0 : index
    %c0_149 = arith.constant 0 : index
    %771 = vector.load %arg8[%c3_147, %c0_148, %c0_149] : memref<7x8x1xf32, #tpu.memory_space<vmem>>, vector<1x8x1xf32>
    %772 = vector.shape_cast %771 : vector<1x8x1xf32> to vector<8x1xf32>
    %773 = vector.broadcast %772 : vector<8x1xf32> to vector<8x32xf32>
    %774 = arith.mulf %770, %773 : vector<8x32xf32>
    %c3_150 = arith.constant 3 : index
    %c0_151 = arith.constant 0 : index
    %c0_152 = arith.constant 0 : index
    %775 = vector.load %arg9[%c3_150, %c0_151, %c0_152] : memref<7x8x1xf32, #tpu.memory_space<vmem>>, vector<1x8x1xf32>
    %776 = vector.shape_cast %775 : vector<1x8x1xf32> to vector<8x1xf32>
    %777 = vector.broadcast %776 : vector<8x1xf32> to vector<8x32xf32>
    %778 = arith.addf %774, %777 : vector<8x32xf32>
    %cst_153 = arith.constant 0.000000e+00 : f32
    %779 = vector.broadcast %cst_153 : f32 to vector<8x32xf32>
    %780 = arith.maximumf %778, %779 : vector<8x32xf32>
    %c3_154 = arith.constant 3 : index
    %c0_155 = arith.constant 0 : index
    %c0_156 = arith.constant 0 : index
    %781 = vector.load %arg10[%c3_154, %c0_155, %c0_156] : memref<7x36x8xbf16, #tpu.memory_space<vmem>>, vector<1x36x8xbf16>
    %782 = vector.shape_cast %781 : vector<1x36x8xbf16> to vector<36x8xbf16>
    %783 = arith.truncf %780 : vector<8x32xf32> to vector<8x32xbf16>
    %cst_157 = arith.constant dense<0.000000e+00> : vector<36x32xf32>
    %784 = tpu.matmul %782, %783, %cst_157 {dimension_numbers = #tpu.dot_dimension_numbers<[1], [0], [0], [1], [0, 0, 1, 1], [], []>} : vector<36x8xbf16>, vector<8x32xbf16>, vector<36x32xf32> -> vector<36x32xf32>
    %785 = vector.extract_strided_slice %784 {offsets = [16, 0], sizes = [4, 32], strides = [1, 1]} : vector<36x32xf32> to vector<4x32xf32>
    %786 = vector.extract_strided_slice %784 {offsets = [0, 0], sizes = [4, 32], strides = [1, 1]} : vector<36x32xf32> to vector<4x32xf32>
    %787 = vector.extract_strided_slice %786 {offsets = [0, 27], sizes = [4, 5], strides = [1, 1]} : vector<4x32xf32> to vector<4x5xf32>
    %788 = vector.extract_strided_slice %786 {offsets = [0, 0], sizes = [4, 27], strides = [1, 1]} : vector<4x32xf32> to vector<4x27xf32>
    %789 = tpu.concatenate %787, %788 in 1 : vector<4x5xf32>, vector<4x27xf32> -> vector<4x32xf32>
    %790 = vector.broadcast %88 : vector<1x32xf32> to vector<4x32xf32>
    %791 = arith.mulf %789, %790 : vector<4x32xf32>
    %792 = arith.addf %785, %791 : vector<4x32xf32>
    %793 = vector.extract_strided_slice %784 {offsets = [4, 0], sizes = [4, 32], strides = [1, 1]} : vector<36x32xf32> to vector<4x32xf32>
    %794 = vector.extract_strided_slice %793 {offsets = [0, 28], sizes = [4, 4], strides = [1, 1]} : vector<4x32xf32> to vector<4x4xf32>
    %795 = vector.extract_strided_slice %793 {offsets = [0, 0], sizes = [4, 28], strides = [1, 1]} : vector<4x32xf32> to vector<4x28xf32>
    %796 = tpu.concatenate %794, %795 in 1 : vector<4x4xf32>, vector<4x28xf32> -> vector<4x32xf32>
    %797 = vector.broadcast %89 : vector<1x32xf32> to vector<4x32xf32>
    %798 = arith.mulf %796, %797 : vector<4x32xf32>
    %799 = arith.addf %792, %798 : vector<4x32xf32>
    %800 = vector.extract_strided_slice %784 {offsets = [8, 0], sizes = [4, 32], strides = [1, 1]} : vector<36x32xf32> to vector<4x32xf32>
    %801 = vector.extract_strided_slice %800 {offsets = [0, 29], sizes = [4, 3], strides = [1, 1]} : vector<4x32xf32> to vector<4x3xf32>
    %802 = vector.extract_strided_slice %800 {offsets = [0, 0], sizes = [4, 29], strides = [1, 1]} : vector<4x32xf32> to vector<4x29xf32>
    %803 = tpu.concatenate %801, %802 in 1 : vector<4x3xf32>, vector<4x29xf32> -> vector<4x32xf32>
    %804 = vector.broadcast %90 : vector<1x32xf32> to vector<4x32xf32>
    %805 = arith.mulf %803, %804 : vector<4x32xf32>
    %806 = arith.addf %799, %805 : vector<4x32xf32>
    %807 = vector.extract_strided_slice %784 {offsets = [12, 0], sizes = [4, 32], strides = [1, 1]} : vector<36x32xf32> to vector<4x32xf32>
    %808 = vector.extract_strided_slice %807 {offsets = [0, 31], sizes = [4, 1], strides = [1, 1]} : vector<4x32xf32> to vector<4x1xf32>
    %809 = vector.extract_strided_slice %807 {offsets = [0, 0], sizes = [4, 31], strides = [1, 1]} : vector<4x32xf32> to vector<4x31xf32>
    %810 = tpu.concatenate %808, %809 in 1 : vector<4x1xf32>, vector<4x31xf32> -> vector<4x32xf32>
    %811 = vector.broadcast %91 : vector<1x32xf32> to vector<4x32xf32>
    %812 = arith.mulf %810, %811 : vector<4x32xf32>
    %813 = arith.addf %806, %812 : vector<4x32xf32>
    %814 = vector.extract_strided_slice %784 {offsets = [20, 0], sizes = [4, 32], strides = [1, 1]} : vector<36x32xf32> to vector<4x32xf32>
    %815 = vector.extract_strided_slice %814 {offsets = [0, 1], sizes = [4, 31], strides = [1, 1]} : vector<4x32xf32> to vector<4x31xf32>
    %816 = vector.extract_strided_slice %814 {offsets = [0, 0], sizes = [4, 1], strides = [1, 1]} : vector<4x32xf32> to vector<4x1xf32>
    %817 = tpu.concatenate %815, %816 in 1 : vector<4x31xf32>, vector<4x1xf32> -> vector<4x32xf32>
    %818 = vector.broadcast %92 : vector<1x32xf32> to vector<4x32xf32>
    %819 = arith.mulf %817, %818 : vector<4x32xf32>
    %820 = arith.addf %813, %819 : vector<4x32xf32>
    %821 = vector.extract_strided_slice %784 {offsets = [24, 0], sizes = [4, 32], strides = [1, 1]} : vector<36x32xf32> to vector<4x32xf32>
    %822 = vector.extract_strided_slice %821 {offsets = [0, 3], sizes = [4, 29], strides = [1, 1]} : vector<4x32xf32> to vector<4x29xf32>
    %823 = vector.extract_strided_slice %821 {offsets = [0, 0], sizes = [4, 3], strides = [1, 1]} : vector<4x32xf32> to vector<4x3xf32>
    %824 = tpu.concatenate %822, %823 in 1 : vector<4x29xf32>, vector<4x3xf32> -> vector<4x32xf32>
    %825 = vector.broadcast %93 : vector<1x32xf32> to vector<4x32xf32>
    %826 = arith.mulf %824, %825 : vector<4x32xf32>
    %827 = arith.addf %820, %826 : vector<4x32xf32>
    %828 = vector.extract_strided_slice %784 {offsets = [28, 0], sizes = [4, 32], strides = [1, 1]} : vector<36x32xf32> to vector<4x32xf32>
    %829 = vector.extract_strided_slice %828 {offsets = [0, 4], sizes = [4, 28], strides = [1, 1]} : vector<4x32xf32> to vector<4x28xf32>
    %830 = vector.extract_strided_slice %828 {offsets = [0, 0], sizes = [4, 4], strides = [1, 1]} : vector<4x32xf32> to vector<4x4xf32>
    %831 = tpu.concatenate %829, %830 in 1 : vector<4x28xf32>, vector<4x4xf32> -> vector<4x32xf32>
    %832 = vector.broadcast %94 : vector<1x32xf32> to vector<4x32xf32>
    %833 = arith.mulf %831, %832 : vector<4x32xf32>
    %834 = arith.addf %827, %833 : vector<4x32xf32>
    %835 = vector.extract_strided_slice %784 {offsets = [32, 0], sizes = [4, 32], strides = [1, 1]} : vector<36x32xf32> to vector<4x32xf32>
    %836 = vector.extract_strided_slice %835 {offsets = [0, 5], sizes = [4, 27], strides = [1, 1]} : vector<4x32xf32> to vector<4x27xf32>
    %837 = vector.extract_strided_slice %835 {offsets = [0, 0], sizes = [4, 5], strides = [1, 1]} : vector<4x32xf32> to vector<4x5xf32>
    %838 = tpu.concatenate %836, %837 in 1 : vector<4x27xf32>, vector<4x5xf32> -> vector<4x32xf32>
    %839 = vector.broadcast %95 : vector<1x32xf32> to vector<4x32xf32>
    %840 = arith.mulf %838, %839 : vector<4x32xf32>
    %841 = arith.addf %834, %840 : vector<4x32xf32>
    %c3_158 = arith.constant 3 : index
    %c0_159 = arith.constant 0 : index
    %c0_160 = arith.constant 0 : index
    %842 = vector.load %arg11[%c3_158, %c0_159, %c0_160] : memref<7x4x1xf32, #tpu.memory_space<vmem>>, vector<1x4x1xf32>
    %843 = vector.shape_cast %842 : vector<1x4x1xf32> to vector<4x1xf32>
    %844 = vector.broadcast %843 : vector<4x1xf32> to vector<4x32xf32>
    %845 = arith.mulf %841, %844 : vector<4x32xf32>
    %c3_161 = arith.constant 3 : index
    %c0_162 = arith.constant 0 : index
    %c0_163 = arith.constant 0 : index
    %846 = vector.load %arg12[%c3_161, %c0_162, %c0_163] : memref<7x4x1xf32, #tpu.memory_space<vmem>>, vector<1x4x1xf32>
    %847 = vector.shape_cast %846 : vector<1x4x1xf32> to vector<4x1xf32>
    %848 = vector.broadcast %847 : vector<4x1xf32> to vector<4x32xf32>
    %849 = arith.addf %845, %848 : vector<4x32xf32>
    %cst_164 = arith.constant 0.000000e+00 : f32
    %850 = vector.broadcast %cst_164 : f32 to vector<4x32xf32>
    %851 = arith.maximumf %849, %850 : vector<4x32xf32>
    %c3_165 = arith.constant 3 : index
    %c0_166 = arith.constant 0 : index
    %c0_167 = arith.constant 0 : index
    %852 = vector.load %arg13[%c3_165, %c0_166, %c0_167] : memref<7x36x4xbf16, #tpu.memory_space<vmem>>, vector<1x36x4xbf16>
    %853 = vector.shape_cast %852 : vector<1x36x4xbf16> to vector<36x4xbf16>
    %854 = arith.truncf %851 : vector<4x32xf32> to vector<4x32xbf16>
    %cst_168 = arith.constant dense<0.000000e+00> : vector<36x32xf32>
    %855 = tpu.matmul %853, %854, %cst_168 {dimension_numbers = #tpu.dot_dimension_numbers<[1], [0], [0], [1], [0, 0, 1, 1], [], []>} : vector<36x4xbf16>, vector<4x32xbf16>, vector<36x32xf32> -> vector<36x32xf32>
    %856 = vector.extract_strided_slice %855 {offsets = [16, 0], sizes = [4, 32], strides = [1, 1]} : vector<36x32xf32> to vector<4x32xf32>
    %857 = vector.extract_strided_slice %855 {offsets = [0, 0], sizes = [4, 32], strides = [1, 1]} : vector<36x32xf32> to vector<4x32xf32>
    %858 = vector.extract_strided_slice %857 {offsets = [0, 27], sizes = [4, 5], strides = [1, 1]} : vector<4x32xf32> to vector<4x5xf32>
    %859 = vector.extract_strided_slice %857 {offsets = [0, 0], sizes = [4, 27], strides = [1, 1]} : vector<4x32xf32> to vector<4x27xf32>
    %860 = tpu.concatenate %858, %859 in 1 : vector<4x5xf32>, vector<4x27xf32> -> vector<4x32xf32>
    %861 = vector.broadcast %88 : vector<1x32xf32> to vector<4x32xf32>
    %862 = arith.mulf %860, %861 : vector<4x32xf32>
    %863 = arith.addf %856, %862 : vector<4x32xf32>
    %864 = vector.extract_strided_slice %855 {offsets = [4, 0], sizes = [4, 32], strides = [1, 1]} : vector<36x32xf32> to vector<4x32xf32>
    %865 = vector.extract_strided_slice %864 {offsets = [0, 28], sizes = [4, 4], strides = [1, 1]} : vector<4x32xf32> to vector<4x4xf32>
    %866 = vector.extract_strided_slice %864 {offsets = [0, 0], sizes = [4, 28], strides = [1, 1]} : vector<4x32xf32> to vector<4x28xf32>
    %867 = tpu.concatenate %865, %866 in 1 : vector<4x4xf32>, vector<4x28xf32> -> vector<4x32xf32>
    %868 = vector.broadcast %89 : vector<1x32xf32> to vector<4x32xf32>
    %869 = arith.mulf %867, %868 : vector<4x32xf32>
    %870 = arith.addf %863, %869 : vector<4x32xf32>
    %871 = vector.extract_strided_slice %855 {offsets = [8, 0], sizes = [4, 32], strides = [1, 1]} : vector<36x32xf32> to vector<4x32xf32>
    %872 = vector.extract_strided_slice %871 {offsets = [0, 29], sizes = [4, 3], strides = [1, 1]} : vector<4x32xf32> to vector<4x3xf32>
    %873 = vector.extract_strided_slice %871 {offsets = [0, 0], sizes = [4, 29], strides = [1, 1]} : vector<4x32xf32> to vector<4x29xf32>
    %874 = tpu.concatenate %872, %873 in 1 : vector<4x3xf32>, vector<4x29xf32> -> vector<4x32xf32>
    %875 = vector.broadcast %90 : vector<1x32xf32> to vector<4x32xf32>
    %876 = arith.mulf %874, %875 : vector<4x32xf32>
    %877 = arith.addf %870, %876 : vector<4x32xf32>
    %878 = vector.extract_strided_slice %855 {offsets = [12, 0], sizes = [4, 32], strides = [1, 1]} : vector<36x32xf32> to vector<4x32xf32>
    %879 = vector.extract_strided_slice %878 {offsets = [0, 31], sizes = [4, 1], strides = [1, 1]} : vector<4x32xf32> to vector<4x1xf32>
    %880 = vector.extract_strided_slice %878 {offsets = [0, 0], sizes = [4, 31], strides = [1, 1]} : vector<4x32xf32> to vector<4x31xf32>
    %881 = tpu.concatenate %879, %880 in 1 : vector<4x1xf32>, vector<4x31xf32> -> vector<4x32xf32>
    %882 = vector.broadcast %91 : vector<1x32xf32> to vector<4x32xf32>
    %883 = arith.mulf %881, %882 : vector<4x32xf32>
    %884 = arith.addf %877, %883 : vector<4x32xf32>
    %885 = vector.extract_strided_slice %855 {offsets = [20, 0], sizes = [4, 32], strides = [1, 1]} : vector<36x32xf32> to vector<4x32xf32>
    %886 = vector.extract_strided_slice %885 {offsets = [0, 1], sizes = [4, 31], strides = [1, 1]} : vector<4x32xf32> to vector<4x31xf32>
    %887 = vector.extract_strided_slice %885 {offsets = [0, 0], sizes = [4, 1], strides = [1, 1]} : vector<4x32xf32> to vector<4x1xf32>
    %888 = tpu.concatenate %886, %887 in 1 : vector<4x31xf32>, vector<4x1xf32> -> vector<4x32xf32>
    %889 = vector.broadcast %92 : vector<1x32xf32> to vector<4x32xf32>
    %890 = arith.mulf %888, %889 : vector<4x32xf32>
    %891 = arith.addf %884, %890 : vector<4x32xf32>
    %892 = vector.extract_strided_slice %855 {offsets = [24, 0], sizes = [4, 32], strides = [1, 1]} : vector<36x32xf32> to vector<4x32xf32>
    %893 = vector.extract_strided_slice %892 {offsets = [0, 3], sizes = [4, 29], strides = [1, 1]} : vector<4x32xf32> to vector<4x29xf32>
    %894 = vector.extract_strided_slice %892 {offsets = [0, 0], sizes = [4, 3], strides = [1, 1]} : vector<4x32xf32> to vector<4x3xf32>
    %895 = tpu.concatenate %893, %894 in 1 : vector<4x29xf32>, vector<4x3xf32> -> vector<4x32xf32>
    %896 = vector.broadcast %93 : vector<1x32xf32> to vector<4x32xf32>
    %897 = arith.mulf %895, %896 : vector<4x32xf32>
    %898 = arith.addf %891, %897 : vector<4x32xf32>
    %899 = vector.extract_strided_slice %855 {offsets = [28, 0], sizes = [4, 32], strides = [1, 1]} : vector<36x32xf32> to vector<4x32xf32>
    %900 = vector.extract_strided_slice %899 {offsets = [0, 4], sizes = [4, 28], strides = [1, 1]} : vector<4x32xf32> to vector<4x28xf32>
    %901 = vector.extract_strided_slice %899 {offsets = [0, 0], sizes = [4, 4], strides = [1, 1]} : vector<4x32xf32> to vector<4x4xf32>
    %902 = tpu.concatenate %900, %901 in 1 : vector<4x28xf32>, vector<4x4xf32> -> vector<4x32xf32>
    %903 = vector.broadcast %94 : vector<1x32xf32> to vector<4x32xf32>
    %904 = arith.mulf %902, %903 : vector<4x32xf32>
    %905 = arith.addf %898, %904 : vector<4x32xf32>
    %906 = vector.extract_strided_slice %855 {offsets = [32, 0], sizes = [4, 32], strides = [1, 1]} : vector<36x32xf32> to vector<4x32xf32>
    %907 = vector.extract_strided_slice %906 {offsets = [0, 5], sizes = [4, 27], strides = [1, 1]} : vector<4x32xf32> to vector<4x27xf32>
    %908 = vector.extract_strided_slice %906 {offsets = [0, 0], sizes = [4, 5], strides = [1, 1]} : vector<4x32xf32> to vector<4x5xf32>
    %909 = tpu.concatenate %907, %908 in 1 : vector<4x27xf32>, vector<4x5xf32> -> vector<4x32xf32>
    %910 = vector.broadcast %95 : vector<1x32xf32> to vector<4x32xf32>
    %911 = arith.mulf %909, %910 : vector<4x32xf32>
    %912 = arith.addf %905, %911 : vector<4x32xf32>
    %913 = tpu.concatenate %770, %841, %912 in 0 : vector<8x32xf32>, vector<4x32xf32>, vector<4x32xf32> -> vector<16x32xf32>
    %914 = arith.addf %913, %699 : vector<16x32xf32>
    %915 = arith.truncf %914 : vector<16x32xf32> to vector<16x32xbf16>
    %c0_169 = arith.constant 0 : index
    %c0_170 = arith.constant 0 : index
    %916 = vector.load %arg4[%c0_169, %c0_170] : memref<32x128xbf16, #tpu.memory_space<vmem>>, vector<32x128xbf16>
    %cst_171 = arith.constant dense<0.000000e+00> : vector<16x128xf32>
    %917 = tpu.matmul %915, %916, %cst_171 {dimension_numbers = #tpu.dot_dimension_numbers<[1], [0], [0], [1], [0, 0, 1, 1], [], []>} : vector<16x32xbf16>, vector<32x128xbf16>, vector<16x128xf32> -> vector<16x128xf32>
    %c4 = arith.constant 4 : index
    %c0_172 = arith.constant 0 : index
    %c0_173 = arith.constant 0 : index
    %918 = vector.load %arg5[%c4, %c0_172, %c0_173] : memref<7x16x1xf32, #tpu.memory_space<vmem>>, vector<1x16x1xf32>
    %919 = vector.shape_cast %918 : vector<1x16x1xf32> to vector<16x1xf32>
    %920 = vector.broadcast %919 : vector<16x1xf32> to vector<16x128xf32>
    %921 = arith.mulf %266, %920 : vector<16x128xf32>
    %c4_174 = arith.constant 4 : index
    %c0_175 = arith.constant 0 : index
    %c0_176 = arith.constant 0 : index
    %922 = vector.load %arg6[%c4_174, %c0_175, %c0_176] : memref<7x16x1xf32, #tpu.memory_space<vmem>>, vector<1x16x1xf32>
    %923 = vector.shape_cast %922 : vector<1x16x1xf32> to vector<16x1xf32>
    %924 = vector.broadcast %923 : vector<16x1xf32> to vector<16x128xf32>
    %925 = arith.addf %921, %924 : vector<16x128xf32>
    %cst_177 = arith.constant 0.000000e+00 : f32
    %926 = vector.broadcast %cst_177 : f32 to vector<16x128xf32>
    %927 = arith.maximumf %925, %926 : vector<16x128xf32>
    %c4_178 = arith.constant 4 : index
    %c0_179 = arith.constant 0 : index
    %c0_180 = arith.constant 0 : index
    %928 = vector.load %arg7[%c4_178, %c0_179, %c0_180] : memref<7x72x16xbf16, #tpu.memory_space<vmem>>, vector<1x72x16xbf16>
    %929 = vector.shape_cast %928 : vector<1x72x16xbf16> to vector<72x16xbf16>
    %930 = arith.truncf %927 : vector<16x128xf32> to vector<16x128xbf16>
    %cst_181 = arith.constant dense<0.000000e+00> : vector<72x128xf32>
    %931 = tpu.matmul %929, %930, %cst_181 {dimension_numbers = #tpu.dot_dimension_numbers<[1], [0], [0], [1], [0, 0, 1, 1], [], []>} : vector<72x16xbf16>, vector<16x128xbf16>, vector<72x128xf32> -> vector<72x128xf32>
    %932 = vector.extract_strided_slice %931 {offsets = [32, 0], sizes = [8, 128], strides = [1, 1]} : vector<72x128xf32> to vector<8x128xf32>
    %933 = vector.extract_strided_slice %931 {offsets = [0, 0], sizes = [8, 128], strides = [1, 1]} : vector<72x128xf32> to vector<8x128xf32>
    %c9_i32_182 = arith.constant 9 : i32
    %934 = tpu.dynamic_rotate %933 by %c9_i32_182 dim 1 : vector<8x128xf32>, i32 -> vector<8x128xf32>
    %935 = vector.broadcast %56 : vector<1x128xf32> to vector<8x128xf32>
    %936 = arith.mulf %934, %935 : vector<8x128xf32>
    %937 = arith.addf %932, %936 : vector<8x128xf32>
    %938 = vector.extract_strided_slice %931 {offsets = [8, 0], sizes = [8, 128], strides = [1, 1]} : vector<72x128xf32> to vector<8x128xf32>
    %c8_i32_183 = arith.constant 8 : i32
    %939 = tpu.dynamic_rotate %938 by %c8_i32_183 dim 1 : vector<8x128xf32>, i32 -> vector<8x128xf32>
    %940 = vector.broadcast %57 : vector<1x128xf32> to vector<8x128xf32>
    %941 = arith.mulf %939, %940 : vector<8x128xf32>
    %942 = arith.addf %937, %941 : vector<8x128xf32>
    %943 = vector.extract_strided_slice %931 {offsets = [16, 0], sizes = [8, 128], strides = [1, 1]} : vector<72x128xf32> to vector<8x128xf32>
    %c7_i32_184 = arith.constant 7 : i32
    %944 = tpu.dynamic_rotate %943 by %c7_i32_184 dim 1 : vector<8x128xf32>, i32 -> vector<8x128xf32>
    %945 = vector.broadcast %58 : vector<1x128xf32> to vector<8x128xf32>
    %946 = arith.mulf %944, %945 : vector<8x128xf32>
    %947 = arith.addf %942, %946 : vector<8x128xf32>
    %948 = vector.extract_strided_slice %931 {offsets = [24, 0], sizes = [8, 128], strides = [1, 1]} : vector<72x128xf32> to vector<8x128xf32>
    %c1_i32_185 = arith.constant 1 : i32
    %949 = tpu.dynamic_rotate %948 by %c1_i32_185 dim 1 : vector<8x128xf32>, i32 -> vector<8x128xf32>
    %950 = vector.broadcast %59 : vector<1x128xf32> to vector<8x128xf32>
    %951 = arith.mulf %949, %950 : vector<8x128xf32>
    %952 = arith.addf %947, %951 : vector<8x128xf32>
    %953 = vector.extract_strided_slice %931 {offsets = [40, 0], sizes = [8, 128], strides = [1, 1]} : vector<72x128xf32> to vector<8x128xf32>
    %c127_i32_186 = arith.constant 127 : i32
    %954 = tpu.dynamic_rotate %953 by %c127_i32_186 dim 1 : vector<8x128xf32>, i32 -> vector<8x128xf32>
    %955 = vector.broadcast %60 : vector<1x128xf32> to vector<8x128xf32>
    %956 = arith.mulf %954, %955 : vector<8x128xf32>
    %957 = arith.addf %952, %956 : vector<8x128xf32>
    %958 = vector.extract_strided_slice %931 {offsets = [48, 0], sizes = [8, 128], strides = [1, 1]} : vector<72x128xf32> to vector<8x128xf32>
    %c121_i32_187 = arith.constant 121 : i32
    %959 = tpu.dynamic_rotate %958 by %c121_i32_187 dim 1 : vector<8x128xf32>, i32 -> vector<8x128xf32>
    %960 = vector.broadcast %61 : vector<1x128xf32> to vector<8x128xf32>
    %961 = arith.mulf %959, %960 : vector<8x128xf32>
    %962 = arith.addf %957, %961 : vector<8x128xf32>
    %963 = vector.extract_strided_slice %931 {offsets = [56, 0], sizes = [8, 128], strides = [1, 1]} : vector<72x128xf32> to vector<8x128xf32>
    %c120_i32_188 = arith.constant 120 : i32
    %964 = tpu.dynamic_rotate %963 by %c120_i32_188 dim 1 : vector<8x128xf32>, i32 -> vector<8x128xf32>
    %965 = vector.broadcast %62 : vector<1x128xf32> to vector<8x128xf32>
    %966 = arith.mulf %964, %965 : vector<8x128xf32>
    %967 = arith.addf %962, %966 : vector<8x128xf32>
    %968 = vector.extract_strided_slice %931 {offsets = [64, 0], sizes = [8, 128], strides = [1, 1]} : vector<72x128xf32> to vector<8x128xf32>
    %c119_i32_189 = arith.constant 119 : i32
    %969 = tpu.dynamic_rotate %968 by %c119_i32_189 dim 1 : vector<8x128xf32>, i32 -> vector<8x128xf32>
    %970 = vector.broadcast %63 : vector<1x128xf32> to vector<8x128xf32>
    %971 = arith.mulf %969, %970 : vector<8x128xf32>
    %972 = arith.addf %967, %971 : vector<8x128xf32>
    %c4_190 = arith.constant 4 : index
    %c0_191 = arith.constant 0 : index
    %c0_192 = arith.constant 0 : index
    %973 = vector.load %arg8[%c4_190, %c0_191, %c0_192] : memref<7x8x1xf32, #tpu.memory_space<vmem>>, vector<1x8x1xf32>
    %974 = vector.shape_cast %973 : vector<1x8x1xf32> to vector<8x1xf32>
    %975 = vector.broadcast %974 : vector<8x1xf32> to vector<8x128xf32>
    %976 = arith.mulf %972, %975 : vector<8x128xf32>
    %c4_193 = arith.constant 4 : index
    %c0_194 = arith.constant 0 : index
    %c0_195 = arith.constant 0 : index
    %977 = vector.load %arg9[%c4_193, %c0_194, %c0_195] : memref<7x8x1xf32, #tpu.memory_space<vmem>>, vector<1x8x1xf32>
    %978 = vector.shape_cast %977 : vector<1x8x1xf32> to vector<8x1xf32>
    %979 = vector.broadcast %978 : vector<8x1xf32> to vector<8x128xf32>
    %980 = arith.addf %976, %979 : vector<8x128xf32>
    %cst_196 = arith.constant 0.000000e+00 : f32
    %981 = vector.broadcast %cst_196 : f32 to vector<8x128xf32>
    %982 = arith.maximumf %980, %981 : vector<8x128xf32>
    %c4_197 = arith.constant 4 : index
    %c0_198 = arith.constant 0 : index
    %c0_199 = arith.constant 0 : index
    %983 = vector.load %arg10[%c4_197, %c0_198, %c0_199] : memref<7x36x8xbf16, #tpu.memory_space<vmem>>, vector<1x36x8xbf16>
    %984 = vector.shape_cast %983 : vector<1x36x8xbf16> to vector<36x8xbf16>
    %985 = arith.truncf %982 : vector<8x128xf32> to vector<8x128xbf16>
    %cst_200 = arith.constant dense<0.000000e+00> : vector<36x128xf32>
    %986 = tpu.matmul %984, %985, %cst_200 {dimension_numbers = #tpu.dot_dimension_numbers<[1], [0], [0], [1], [0, 0, 1, 1], [], []>} : vector<36x8xbf16>, vector<8x128xbf16>, vector<36x128xf32> -> vector<36x128xf32>
    %987 = vector.extract_strided_slice %986 {offsets = [16, 0], sizes = [4, 128], strides = [1, 1]} : vector<36x128xf32> to vector<4x128xf32>
    %988 = vector.extract_strided_slice %986 {offsets = [0, 0], sizes = [4, 128], strides = [1, 1]} : vector<36x128xf32> to vector<4x128xf32>
    %c9_i32_201 = arith.constant 9 : i32
    %989 = tpu.dynamic_rotate %988 by %c9_i32_201 dim 1 : vector<4x128xf32>, i32 -> vector<4x128xf32>
    %990 = vector.broadcast %56 : vector<1x128xf32> to vector<4x128xf32>
    %991 = arith.mulf %989, %990 : vector<4x128xf32>
    %992 = arith.addf %987, %991 : vector<4x128xf32>
    %993 = vector.extract_strided_slice %986 {offsets = [4, 0], sizes = [4, 128], strides = [1, 1]} : vector<36x128xf32> to vector<4x128xf32>
    %c8_i32_202 = arith.constant 8 : i32
    %994 = tpu.dynamic_rotate %993 by %c8_i32_202 dim 1 : vector<4x128xf32>, i32 -> vector<4x128xf32>
    %995 = vector.broadcast %57 : vector<1x128xf32> to vector<4x128xf32>
    %996 = arith.mulf %994, %995 : vector<4x128xf32>
    %997 = arith.addf %992, %996 : vector<4x128xf32>
    %998 = vector.extract_strided_slice %986 {offsets = [8, 0], sizes = [4, 128], strides = [1, 1]} : vector<36x128xf32> to vector<4x128xf32>
    %c7_i32_203 = arith.constant 7 : i32
    %999 = tpu.dynamic_rotate %998 by %c7_i32_203 dim 1 : vector<4x128xf32>, i32 -> vector<4x128xf32>
    %1000 = vector.broadcast %58 : vector<1x128xf32> to vector<4x128xf32>
    %1001 = arith.mulf %999, %1000 : vector<4x128xf32>
    %1002 = arith.addf %997, %1001 : vector<4x128xf32>
    %1003 = vector.extract_strided_slice %986 {offsets = [12, 0], sizes = [4, 128], strides = [1, 1]} : vector<36x128xf32> to vector<4x128xf32>
    %c1_i32_204 = arith.constant 1 : i32
    %1004 = tpu.dynamic_rotate %1003 by %c1_i32_204 dim 1 : vector<4x128xf32>, i32 -> vector<4x128xf32>
    %1005 = vector.broadcast %59 : vector<1x128xf32> to vector<4x128xf32>
    %1006 = arith.mulf %1004, %1005 : vector<4x128xf32>
    %1007 = arith.addf %1002, %1006 : vector<4x128xf32>
    %1008 = vector.extract_strided_slice %986 {offsets = [20, 0], sizes = [4, 128], strides = [1, 1]} : vector<36x128xf32> to vector<4x128xf32>
    %c127_i32_205 = arith.constant 127 : i32
    %1009 = tpu.dynamic_rotate %1008 by %c127_i32_205 dim 1 : vector<4x128xf32>, i32 -> vector<4x128xf32>
    %1010 = vector.broadcast %60 : vector<1x128xf32> to vector<4x128xf32>
    %1011 = arith.mulf %1009, %1010 : vector<4x128xf32>
    %1012 = arith.addf %1007, %1011 : vector<4x128xf32>
    %1013 = vector.extract_strided_slice %986 {offsets = [24, 0], sizes = [4, 128], strides = [1, 1]} : vector<36x128xf32> to vector<4x128xf32>
    %c121_i32_206 = arith.constant 121 : i32
    %1014 = tpu.dynamic_rotate %1013 by %c121_i32_206 dim 1 : vector<4x128xf32>, i32 -> vector<4x128xf32>
    %1015 = vector.broadcast %61 : vector<1x128xf32> to vector<4x128xf32>
    %1016 = arith.mulf %1014, %1015 : vector<4x128xf32>
    %1017 = arith.addf %1012, %1016 : vector<4x128xf32>
    %1018 = vector.extract_strided_slice %986 {offsets = [28, 0], sizes = [4, 128], strides = [1, 1]} : vector<36x128xf32> to vector<4x128xf32>
    %c120_i32_207 = arith.constant 120 : i32
    %1019 = tpu.dynamic_rotate %1018 by %c120_i32_207 dim 1 : vector<4x128xf32>, i32 -> vector<4x128xf32>
    %1020 = vector.broadcast %62 : vector<1x128xf32> to vector<4x128xf32>
    %1021 = arith.mulf %1019, %1020 : vector<4x128xf32>
    %1022 = arith.addf %1017, %1021 : vector<4x128xf32>
    %1023 = vector.extract_strided_slice %986 {offsets = [32, 0], sizes = [4, 128], strides = [1, 1]} : vector<36x128xf32> to vector<4x128xf32>
    %c119_i32_208 = arith.constant 119 : i32
    %1024 = tpu.dynamic_rotate %1023 by %c119_i32_208 dim 1 : vector<4x128xf32>, i32 -> vector<4x128xf32>
    %1025 = vector.broadcast %63 : vector<1x128xf32> to vector<4x128xf32>
    %1026 = arith.mulf %1024, %1025 : vector<4x128xf32>
    %1027 = arith.addf %1022, %1026 : vector<4x128xf32>
    %c4_209 = arith.constant 4 : index
    %c0_210 = arith.constant 0 : index
    %c0_211 = arith.constant 0 : index
    %1028 = vector.load %arg11[%c4_209, %c0_210, %c0_211] : memref<7x4x1xf32, #tpu.memory_space<vmem>>, vector<1x4x1xf32>
    %1029 = vector.shape_cast %1028 : vector<1x4x1xf32> to vector<4x1xf32>
    %1030 = vector.broadcast %1029 : vector<4x1xf32> to vector<4x128xf32>
    %1031 = arith.mulf %1027, %1030 : vector<4x128xf32>
    %c4_212 = arith.constant 4 : index
    %c0_213 = arith.constant 0 : index
    %c0_214 = arith.constant 0 : index
    %1032 = vector.load %arg12[%c4_212, %c0_213, %c0_214] : memref<7x4x1xf32, #tpu.memory_space<vmem>>, vector<1x4x1xf32>
    %1033 = vector.shape_cast %1032 : vector<1x4x1xf32> to vector<4x1xf32>
    %1034 = vector.broadcast %1033 : vector<4x1xf32> to vector<4x128xf32>
    %1035 = arith.addf %1031, %1034 : vector<4x128xf32>
    %cst_215 = arith.constant 0.000000e+00 : f32
    %1036 = vector.broadcast %cst_215 : f32 to vector<4x128xf32>
    %1037 = arith.maximumf %1035, %1036 : vector<4x128xf32>
    %c4_216 = arith.constant 4 : index
    %c0_217 = arith.constant 0 : index
    %c0_218 = arith.constant 0 : index
    %1038 = vector.load %arg13[%c4_216, %c0_217, %c0_218] : memref<7x36x4xbf16, #tpu.memory_space<vmem>>, vector<1x36x4xbf16>
    %1039 = vector.shape_cast %1038 : vector<1x36x4xbf16> to vector<36x4xbf16>
    %1040 = arith.truncf %1037 : vector<4x128xf32> to vector<4x128xbf16>
    %cst_219 = arith.constant dense<0.000000e+00> : vector<36x128xf32>
    %1041 = tpu.matmul %1039, %1040, %cst_219 {dimension_numbers = #tpu.dot_dimension_numbers<[1], [0], [0], [1], [0, 0, 1, 1], [], []>} : vector<36x4xbf16>, vector<4x128xbf16>, vector<36x128xf32> -> vector<36x128xf32>
    %1042 = vector.extract_strided_slice %1041 {offsets = [16, 0], sizes = [4, 128], strides = [1, 1]} : vector<36x128xf32> to vector<4x128xf32>
    %1043 = vector.extract_strided_slice %1041 {offsets = [0, 0], sizes = [4, 128], strides = [1, 1]} : vector<36x128xf32> to vector<4x128xf32>
    %c9_i32_220 = arith.constant 9 : i32
    %1044 = tpu.dynamic_rotate %1043 by %c9_i32_220 dim 1 : vector<4x128xf32>, i32 -> vector<4x128xf32>
    %1045 = vector.broadcast %56 : vector<1x128xf32> to vector<4x128xf32>
    %1046 = arith.mulf %1044, %1045 : vector<4x128xf32>
    %1047 = arith.addf %1042, %1046 : vector<4x128xf32>
    %1048 = vector.extract_strided_slice %1041 {offsets = [4, 0], sizes = [4, 128], strides = [1, 1]} : vector<36x128xf32> to vector<4x128xf32>
    %c8_i32_221 = arith.constant 8 : i32
    %1049 = tpu.dynamic_rotate %1048 by %c8_i32_221 dim 1 : vector<4x128xf32>, i32 -> vector<4x128xf32>
    %1050 = vector.broadcast %57 : vector<1x128xf32> to vector<4x128xf32>
    %1051 = arith.mulf %1049, %1050 : vector<4x128xf32>
    %1052 = arith.addf %1047, %1051 : vector<4x128xf32>
    %1053 = vector.extract_strided_slice %1041 {offsets = [8, 0], sizes = [4, 128], strides = [1, 1]} : vector<36x128xf32> to vector<4x128xf32>
    %c7_i32_222 = arith.constant 7 : i32
    %1054 = tpu.dynamic_rotate %1053 by %c7_i32_222 dim 1 : vector<4x128xf32>, i32 -> vector<4x128xf32>
    %1055 = vector.broadcast %58 : vector<1x128xf32> to vector<4x128xf32>
    %1056 = arith.mulf %1054, %1055 : vector<4x128xf32>
    %1057 = arith.addf %1052, %1056 : vector<4x128xf32>
    %1058 = vector.extract_strided_slice %1041 {offsets = [12, 0], sizes = [4, 128], strides = [1, 1]} : vector<36x128xf32> to vector<4x128xf32>
    %c1_i32_223 = arith.constant 1 : i32
    %1059 = tpu.dynamic_rotate %1058 by %c1_i32_223 dim 1 : vector<4x128xf32>, i32 -> vector<4x128xf32>
    %1060 = vector.broadcast %59 : vector<1x128xf32> to vector<4x128xf32>
    %1061 = arith.mulf %1059, %1060 : vector<4x128xf32>
    %1062 = arith.addf %1057, %1061 : vector<4x128xf32>
    %1063 = vector.extract_strided_slice %1041 {offsets = [20, 0], sizes = [4, 128], strides = [1, 1]} : vector<36x128xf32> to vector<4x128xf32>
    %c127_i32_224 = arith.constant 127 : i32
    %1064 = tpu.dynamic_rotate %1063 by %c127_i32_224 dim 1 : vector<4x128xf32>, i32 -> vector<4x128xf32>
    %1065 = vector.broadcast %60 : vector<1x128xf32> to vector<4x128xf32>
    %1066 = arith.mulf %1064, %1065 : vector<4x128xf32>
    %1067 = arith.addf %1062, %1066 : vector<4x128xf32>
    %1068 = vector.extract_strided_slice %1041 {offsets = [24, 0], sizes = [4, 128], strides = [1, 1]} : vector<36x128xf32> to vector<4x128xf32>
    %c121_i32_225 = arith.constant 121 : i32
    %1069 = tpu.dynamic_rotate %1068 by %c121_i32_225 dim 1 : vector<4x128xf32>, i32 -> vector<4x128xf32>
    %1070 = vector.broadcast %61 : vector<1x128xf32> to vector<4x128xf32>
    %1071 = arith.mulf %1069, %1070 : vector<4x128xf32>
    %1072 = arith.addf %1067, %1071 : vector<4x128xf32>
    %1073 = vector.extract_strided_slice %1041 {offsets = [28, 0], sizes = [4, 128], strides = [1, 1]} : vector<36x128xf32> to vector<4x128xf32>
    %c120_i32_226 = arith.constant 120 : i32
    %1074 = tpu.dynamic_rotate %1073 by %c120_i32_226 dim 1 : vector<4x128xf32>, i32 -> vector<4x128xf32>
    %1075 = vector.broadcast %62 : vector<1x128xf32> to vector<4x128xf32>
    %1076 = arith.mulf %1074, %1075 : vector<4x128xf32>
    %1077 = arith.addf %1072, %1076 : vector<4x128xf32>
    %1078 = vector.extract_strided_slice %1041 {offsets = [32, 0], sizes = [4, 128], strides = [1, 1]} : vector<36x128xf32> to vector<4x128xf32>
    %c119_i32_227 = arith.constant 119 : i32
    %1079 = tpu.dynamic_rotate %1078 by %c119_i32_227 dim 1 : vector<4x128xf32>, i32 -> vector<4x128xf32>
    %1080 = vector.broadcast %63 : vector<1x128xf32> to vector<4x128xf32>
    %1081 = arith.mulf %1079, %1080 : vector<4x128xf32>
    %1082 = arith.addf %1077, %1081 : vector<4x128xf32>
    %1083 = tpu.concatenate %972, %1027, %1082 in 0 : vector<8x128xf32>, vector<4x128xf32>, vector<4x128xf32> -> vector<16x128xf32>
    %1084 = arith.addf %1083, %266 : vector<16x128xf32>
    %1085 = arith.addf %917, %1084 : vector<16x128xf32>
    %c5 = arith.constant 5 : index
    %c0_228 = arith.constant 0 : index
    %c0_229 = arith.constant 0 : index
    %1086 = vector.load %arg5[%c5, %c0_228, %c0_229] : memref<7x16x1xf32, #tpu.memory_space<vmem>>, vector<1x16x1xf32>
    %1087 = vector.shape_cast %1086 : vector<1x16x1xf32> to vector<16x1xf32>
    %1088 = vector.broadcast %1087 : vector<16x1xf32> to vector<16x128xf32>
    %1089 = arith.mulf %1085, %1088 : vector<16x128xf32>
    %c5_230 = arith.constant 5 : index
    %c0_231 = arith.constant 0 : index
    %c0_232 = arith.constant 0 : index
    %1090 = vector.load %arg6[%c5_230, %c0_231, %c0_232] : memref<7x16x1xf32, #tpu.memory_space<vmem>>, vector<1x16x1xf32>
    %1091 = vector.shape_cast %1090 : vector<1x16x1xf32> to vector<16x1xf32>
    %1092 = vector.broadcast %1091 : vector<16x1xf32> to vector<16x128xf32>
    %1093 = arith.addf %1089, %1092 : vector<16x128xf32>
    %cst_233 = arith.constant 0.000000e+00 : f32
    %1094 = vector.broadcast %cst_233 : f32 to vector<16x128xf32>
    %1095 = arith.maximumf %1093, %1094 : vector<16x128xf32>
    %c5_234 = arith.constant 5 : index
    %c0_235 = arith.constant 0 : index
    %c0_236 = arith.constant 0 : index
    %1096 = vector.load %arg7[%c5_234, %c0_235, %c0_236] : memref<7x72x16xbf16, #tpu.memory_space<vmem>>, vector<1x72x16xbf16>
    %1097 = vector.shape_cast %1096 : vector<1x72x16xbf16> to vector<72x16xbf16>
    %1098 = arith.truncf %1095 : vector<16x128xf32> to vector<16x128xbf16>
    %cst_237 = arith.constant dense<0.000000e+00> : vector<72x128xf32>
    %1099 = tpu.matmul %1097, %1098, %cst_237 {dimension_numbers = #tpu.dot_dimension_numbers<[1], [0], [0], [1], [0, 0, 1, 1], [], []>} : vector<72x16xbf16>, vector<16x128xbf16>, vector<72x128xf32> -> vector<72x128xf32>
    %1100 = vector.extract_strided_slice %1099 {offsets = [32, 0], sizes = [8, 128], strides = [1, 1]} : vector<72x128xf32> to vector<8x128xf32>
    %1101 = vector.extract_strided_slice %1099 {offsets = [0, 0], sizes = [8, 128], strides = [1, 1]} : vector<72x128xf32> to vector<8x128xf32>
    %c9_i32_238 = arith.constant 9 : i32
    %1102 = tpu.dynamic_rotate %1101 by %c9_i32_238 dim 1 : vector<8x128xf32>, i32 -> vector<8x128xf32>
    %1103 = vector.broadcast %56 : vector<1x128xf32> to vector<8x128xf32>
    %1104 = arith.mulf %1102, %1103 : vector<8x128xf32>
    %1105 = arith.addf %1100, %1104 : vector<8x128xf32>
    %1106 = vector.extract_strided_slice %1099 {offsets = [8, 0], sizes = [8, 128], strides = [1, 1]} : vector<72x128xf32> to vector<8x128xf32>
    %c8_i32_239 = arith.constant 8 : i32
    %1107 = tpu.dynamic_rotate %1106 by %c8_i32_239 dim 1 : vector<8x128xf32>, i32 -> vector<8x128xf32>
    %1108 = vector.broadcast %57 : vector<1x128xf32> to vector<8x128xf32>
    %1109 = arith.mulf %1107, %1108 : vector<8x128xf32>
    %1110 = arith.addf %1105, %1109 : vector<8x128xf32>
    %1111 = vector.extract_strided_slice %1099 {offsets = [16, 0], sizes = [8, 128], strides = [1, 1]} : vector<72x128xf32> to vector<8x128xf32>
    %c7_i32_240 = arith.constant 7 : i32
    %1112 = tpu.dynamic_rotate %1111 by %c7_i32_240 dim 1 : vector<8x128xf32>, i32 -> vector<8x128xf32>
    %1113 = vector.broadcast %58 : vector<1x128xf32> to vector<8x128xf32>
    %1114 = arith.mulf %1112, %1113 : vector<8x128xf32>
    %1115 = arith.addf %1110, %1114 : vector<8x128xf32>
    %1116 = vector.extract_strided_slice %1099 {offsets = [24, 0], sizes = [8, 128], strides = [1, 1]} : vector<72x128xf32> to vector<8x128xf32>
    %c1_i32_241 = arith.constant 1 : i32
    %1117 = tpu.dynamic_rotate %1116 by %c1_i32_241 dim 1 : vector<8x128xf32>, i32 -> vector<8x128xf32>
    %1118 = vector.broadcast %59 : vector<1x128xf32> to vector<8x128xf32>
    %1119 = arith.mulf %1117, %1118 : vector<8x128xf32>
    %1120 = arith.addf %1115, %1119 : vector<8x128xf32>
    %1121 = vector.extract_strided_slice %1099 {offsets = [40, 0], sizes = [8, 128], strides = [1, 1]} : vector<72x128xf32> to vector<8x128xf32>
    %c127_i32_242 = arith.constant 127 : i32
    %1122 = tpu.dynamic_rotate %1121 by %c127_i32_242 dim 1 : vector<8x128xf32>, i32 -> vector<8x128xf32>
    %1123 = vector.broadcast %60 : vector<1x128xf32> to vector<8x128xf32>
    %1124 = arith.mulf %1122, %1123 : vector<8x128xf32>
    %1125 = arith.addf %1120, %1124 : vector<8x128xf32>
    %1126 = vector.extract_strided_slice %1099 {offsets = [48, 0], sizes = [8, 128], strides = [1, 1]} : vector<72x128xf32> to vector<8x128xf32>
    %c121_i32_243 = arith.constant 121 : i32
    %1127 = tpu.dynamic_rotate %1126 by %c121_i32_243 dim 1 : vector<8x128xf32>, i32 -> vector<8x128xf32>
    %1128 = vector.broadcast %61 : vector<1x128xf32> to vector<8x128xf32>
    %1129 = arith.mulf %1127, %1128 : vector<8x128xf32>
    %1130 = arith.addf %1125, %1129 : vector<8x128xf32>
    %1131 = vector.extract_strided_slice %1099 {offsets = [56, 0], sizes = [8, 128], strides = [1, 1]} : vector<72x128xf32> to vector<8x128xf32>
    %c120_i32_244 = arith.constant 120 : i32
    %1132 = tpu.dynamic_rotate %1131 by %c120_i32_244 dim 1 : vector<8x128xf32>, i32 -> vector<8x128xf32>
    %1133 = vector.broadcast %62 : vector<1x128xf32> to vector<8x128xf32>
    %1134 = arith.mulf %1132, %1133 : vector<8x128xf32>
    %1135 = arith.addf %1130, %1134 : vector<8x128xf32>
    %1136 = vector.extract_strided_slice %1099 {offsets = [64, 0], sizes = [8, 128], strides = [1, 1]} : vector<72x128xf32> to vector<8x128xf32>
    %c119_i32_245 = arith.constant 119 : i32
    %1137 = tpu.dynamic_rotate %1136 by %c119_i32_245 dim 1 : vector<8x128xf32>, i32 -> vector<8x128xf32>
    %1138 = vector.broadcast %63 : vector<1x128xf32> to vector<8x128xf32>
    %1139 = arith.mulf %1137, %1138 : vector<8x128xf32>
    %1140 = arith.addf %1135, %1139 : vector<8x128xf32>
    %c5_246 = arith.constant 5 : index
    %c0_247 = arith.constant 0 : index
    %c0_248 = arith.constant 0 : index
    %1141 = vector.load %arg8[%c5_246, %c0_247, %c0_248] : memref<7x8x1xf32, #tpu.memory_space<vmem>>, vector<1x8x1xf32>
    %1142 = vector.shape_cast %1141 : vector<1x8x1xf32> to vector<8x1xf32>
    %1143 = vector.broadcast %1142 : vector<8x1xf32> to vector<8x128xf32>
    %1144 = arith.mulf %1140, %1143 : vector<8x128xf32>
    %c5_249 = arith.constant 5 : index
    %c0_250 = arith.constant 0 : index
    %c0_251 = arith.constant 0 : index
    %1145 = vector.load %arg9[%c5_249, %c0_250, %c0_251] : memref<7x8x1xf32, #tpu.memory_space<vmem>>, vector<1x8x1xf32>
    %1146 = vector.shape_cast %1145 : vector<1x8x1xf32> to vector<8x1xf32>
    %1147 = vector.broadcast %1146 : vector<8x1xf32> to vector<8x128xf32>
    %1148 = arith.addf %1144, %1147 : vector<8x128xf32>
    %cst_252 = arith.constant 0.000000e+00 : f32
    %1149 = vector.broadcast %cst_252 : f32 to vector<8x128xf32>
    %1150 = arith.maximumf %1148, %1149 : vector<8x128xf32>
    %c5_253 = arith.constant 5 : index
    %c0_254 = arith.constant 0 : index
    %c0_255 = arith.constant 0 : index
    %1151 = vector.load %arg10[%c5_253, %c0_254, %c0_255] : memref<7x36x8xbf16, #tpu.memory_space<vmem>>, vector<1x36x8xbf16>
    %1152 = vector.shape_cast %1151 : vector<1x36x8xbf16> to vector<36x8xbf16>
    %1153 = arith.truncf %1150 : vector<8x128xf32> to vector<8x128xbf16>
    %cst_256 = arith.constant dense<0.000000e+00> : vector<36x128xf32>
    %1154 = tpu.matmul %1152, %1153, %cst_256 {dimension_numbers = #tpu.dot_dimension_numbers<[1], [0], [0], [1], [0, 0, 1, 1], [], []>} : vector<36x8xbf16>, vector<8x128xbf16>, vector<36x128xf32> -> vector<36x128xf32>
    %1155 = vector.extract_strided_slice %1154 {offsets = [16, 0], sizes = [4, 128], strides = [1, 1]} : vector<36x128xf32> to vector<4x128xf32>
    %1156 = vector.extract_strided_slice %1154 {offsets = [0, 0], sizes = [4, 128], strides = [1, 1]} : vector<36x128xf32> to vector<4x128xf32>
    %c9_i32_257 = arith.constant 9 : i32
    %1157 = tpu.dynamic_rotate %1156 by %c9_i32_257 dim 1 : vector<4x128xf32>, i32 -> vector<4x128xf32>
    %1158 = vector.broadcast %56 : vector<1x128xf32> to vector<4x128xf32>
    %1159 = arith.mulf %1157, %1158 : vector<4x128xf32>
    %1160 = arith.addf %1155, %1159 : vector<4x128xf32>
    %1161 = vector.extract_strided_slice %1154 {offsets = [4, 0], sizes = [4, 128], strides = [1, 1]} : vector<36x128xf32> to vector<4x128xf32>
    %c8_i32_258 = arith.constant 8 : i32
    %1162 = tpu.dynamic_rotate %1161 by %c8_i32_258 dim 1 : vector<4x128xf32>, i32 -> vector<4x128xf32>
    %1163 = vector.broadcast %57 : vector<1x128xf32> to vector<4x128xf32>
    %1164 = arith.mulf %1162, %1163 : vector<4x128xf32>
    %1165 = arith.addf %1160, %1164 : vector<4x128xf32>
    %1166 = vector.extract_strided_slice %1154 {offsets = [8, 0], sizes = [4, 128], strides = [1, 1]} : vector<36x128xf32> to vector<4x128xf32>
    %c7_i32_259 = arith.constant 7 : i32
    %1167 = tpu.dynamic_rotate %1166 by %c7_i32_259 dim 1 : vector<4x128xf32>, i32 -> vector<4x128xf32>
    %1168 = vector.broadcast %58 : vector<1x128xf32> to vector<4x128xf32>
    %1169 = arith.mulf %1167, %1168 : vector<4x128xf32>
    %1170 = arith.addf %1165, %1169 : vector<4x128xf32>
    %1171 = vector.extract_strided_slice %1154 {offsets = [12, 0], sizes = [4, 128], strides = [1, 1]} : vector<36x128xf32> to vector<4x128xf32>
    %c1_i32_260 = arith.constant 1 : i32
    %1172 = tpu.dynamic_rotate %1171 by %c1_i32_260 dim 1 : vector<4x128xf32>, i32 -> vector<4x128xf32>
    %1173 = vector.broadcast %59 : vector<1x128xf32> to vector<4x128xf32>
    %1174 = arith.mulf %1172, %1173 : vector<4x128xf32>
    %1175 = arith.addf %1170, %1174 : vector<4x128xf32>
    %1176 = vector.extract_strided_slice %1154 {offsets = [20, 0], sizes = [4, 128], strides = [1, 1]} : vector<36x128xf32> to vector<4x128xf32>
    %c127_i32_261 = arith.constant 127 : i32
    %1177 = tpu.dynamic_rotate %1176 by %c127_i32_261 dim 1 : vector<4x128xf32>, i32 -> vector<4x128xf32>
    %1178 = vector.broadcast %60 : vector<1x128xf32> to vector<4x128xf32>
    %1179 = arith.mulf %1177, %1178 : vector<4x128xf32>
    %1180 = arith.addf %1175, %1179 : vector<4x128xf32>
    %1181 = vector.extract_strided_slice %1154 {offsets = [24, 0], sizes = [4, 128], strides = [1, 1]} : vector<36x128xf32> to vector<4x128xf32>
    %c121_i32_262 = arith.constant 121 : i32
    %1182 = tpu.dynamic_rotate %1181 by %c121_i32_262 dim 1 : vector<4x128xf32>, i32 -> vector<4x128xf32>
    %1183 = vector.broadcast %61 : vector<1x128xf32> to vector<4x128xf32>
    %1184 = arith.mulf %1182, %1183 : vector<4x128xf32>
    %1185 = arith.addf %1180, %1184 : vector<4x128xf32>
    %1186 = vector.extract_strided_slice %1154 {offsets = [28, 0], sizes = [4, 128], strides = [1, 1]} : vector<36x128xf32> to vector<4x128xf32>
    %c120_i32_263 = arith.constant 120 : i32
    %1187 = tpu.dynamic_rotate %1186 by %c120_i32_263 dim 1 : vector<4x128xf32>, i32 -> vector<4x128xf32>
    %1188 = vector.broadcast %62 : vector<1x128xf32> to vector<4x128xf32>
    %1189 = arith.mulf %1187, %1188 : vector<4x128xf32>
    %1190 = arith.addf %1185, %1189 : vector<4x128xf32>
    %1191 = vector.extract_strided_slice %1154 {offsets = [32, 0], sizes = [4, 128], strides = [1, 1]} : vector<36x128xf32> to vector<4x128xf32>
    %c119_i32_264 = arith.constant 119 : i32
    %1192 = tpu.dynamic_rotate %1191 by %c119_i32_264 dim 1 : vector<4x128xf32>, i32 -> vector<4x128xf32>
    %1193 = vector.broadcast %63 : vector<1x128xf32> to vector<4x128xf32>
    %1194 = arith.mulf %1192, %1193 : vector<4x128xf32>
    %1195 = arith.addf %1190, %1194 : vector<4x128xf32>
    %c5_265 = arith.constant 5 : index
    %c0_266 = arith.constant 0 : index
    %c0_267 = arith.constant 0 : index
    %1196 = vector.load %arg11[%c5_265, %c0_266, %c0_267] : memref<7x4x1xf32, #tpu.memory_space<vmem>>, vector<1x4x1xf32>
    %1197 = vector.shape_cast %1196 : vector<1x4x1xf32> to vector<4x1xf32>
    %1198 = vector.broadcast %1197 : vector<4x1xf32> to vector<4x128xf32>
    %1199 = arith.mulf %1195, %1198 : vector<4x128xf32>
    %c5_268 = arith.constant 5 : index
    %c0_269 = arith.constant 0 : index
    %c0_270 = arith.constant 0 : index
    %1200 = vector.load %arg12[%c5_268, %c0_269, %c0_270] : memref<7x4x1xf32, #tpu.memory_space<vmem>>, vector<1x4x1xf32>
    %1201 = vector.shape_cast %1200 : vector<1x4x1xf32> to vector<4x1xf32>
    %1202 = vector.broadcast %1201 : vector<4x1xf32> to vector<4x128xf32>
    %1203 = arith.addf %1199, %1202 : vector<4x128xf32>
    %cst_271 = arith.constant 0.000000e+00 : f32
    %1204 = vector.broadcast %cst_271 : f32 to vector<4x128xf32>
    %1205 = arith.maximumf %1203, %1204 : vector<4x128xf32>
    %c5_272 = arith.constant 5 : index
    %c0_273 = arith.constant 0 : index
    %c0_274 = arith.constant 0 : index
    %1206 = vector.load %arg13[%c5_272, %c0_273, %c0_274] : memref<7x36x4xbf16, #tpu.memory_space<vmem>>, vector<1x36x4xbf16>
    %1207 = vector.shape_cast %1206 : vector<1x36x4xbf16> to vector<36x4xbf16>
    %1208 = arith.truncf %1205 : vector<4x128xf32> to vector<4x128xbf16>
    %cst_275 = arith.constant dense<0.000000e+00> : vector<36x128xf32>
    %1209 = tpu.matmul %1207, %1208, %cst_275 {dimension_numbers = #tpu.dot_dimension_numbers<[1], [0], [0], [1], [0, 0, 1, 1], [], []>} : vector<36x4xbf16>, vector<4x128xbf16>, vector<36x128xf32> -> vector<36x128xf32>
    %1210 = vector.extract_strided_slice %1209 {offsets = [16, 0], sizes = [4, 128], strides = [1, 1]} : vector<36x128xf32> to vector<4x128xf32>
    %1211 = vector.extract_strided_slice %1209 {offsets = [0, 0], sizes = [4, 128], strides = [1, 1]} : vector<36x128xf32> to vector<4x128xf32>
    %c9_i32_276 = arith.constant 9 : i32
    %1212 = tpu.dynamic_rotate %1211 by %c9_i32_276 dim 1 : vector<4x128xf32>, i32 -> vector<4x128xf32>
    %1213 = vector.broadcast %56 : vector<1x128xf32> to vector<4x128xf32>
    %1214 = arith.mulf %1212, %1213 : vector<4x128xf32>
    %1215 = arith.addf %1210, %1214 : vector<4x128xf32>
    %1216 = vector.extract_strided_slice %1209 {offsets = [4, 0], sizes = [4, 128], strides = [1, 1]} : vector<36x128xf32> to vector<4x128xf32>
    %c8_i32_277 = arith.constant 8 : i32
    %1217 = tpu.dynamic_rotate %1216 by %c8_i32_277 dim 1 : vector<4x128xf32>, i32 -> vector<4x128xf32>
    %1218 = vector.broadcast %57 : vector<1x128xf32> to vector<4x128xf32>
    %1219 = arith.mulf %1217, %1218 : vector<4x128xf32>
    %1220 = arith.addf %1215, %1219 : vector<4x128xf32>
    %1221 = vector.extract_strided_slice %1209 {offsets = [8, 0], sizes = [4, 128], strides = [1, 1]} : vector<36x128xf32> to vector<4x128xf32>
    %c7_i32_278 = arith.constant 7 : i32
    %1222 = tpu.dynamic_rotate %1221 by %c7_i32_278 dim 1 : vector<4x128xf32>, i32 -> vector<4x128xf32>
    %1223 = vector.broadcast %58 : vector<1x128xf32> to vector<4x128xf32>
    %1224 = arith.mulf %1222, %1223 : vector<4x128xf32>
    %1225 = arith.addf %1220, %1224 : vector<4x128xf32>
    %1226 = vector.extract_strided_slice %1209 {offsets = [12, 0], sizes = [4, 128], strides = [1, 1]} : vector<36x128xf32> to vector<4x128xf32>
    %c1_i32_279 = arith.constant 1 : i32
    %1227 = tpu.dynamic_rotate %1226 by %c1_i32_279 dim 1 : vector<4x128xf32>, i32 -> vector<4x128xf32>
    %1228 = vector.broadcast %59 : vector<1x128xf32> to vector<4x128xf32>
    %1229 = arith.mulf %1227, %1228 : vector<4x128xf32>
    %1230 = arith.addf %1225, %1229 : vector<4x128xf32>
    %1231 = vector.extract_strided_slice %1209 {offsets = [20, 0], sizes = [4, 128], strides = [1, 1]} : vector<36x128xf32> to vector<4x128xf32>
    %c127_i32_280 = arith.constant 127 : i32
    %1232 = tpu.dynamic_rotate %1231 by %c127_i32_280 dim 1 : vector<4x128xf32>, i32 -> vector<4x128xf32>
    %1233 = vector.broadcast %60 : vector<1x128xf32> to vector<4x128xf32>
    %1234 = arith.mulf %1232, %1233 : vector<4x128xf32>
    %1235 = arith.addf %1230, %1234 : vector<4x128xf32>
    %1236 = vector.extract_strided_slice %1209 {offsets = [24, 0], sizes = [4, 128], strides = [1, 1]} : vector<36x128xf32> to vector<4x128xf32>
    %c121_i32_281 = arith.constant 121 : i32
    %1237 = tpu.dynamic_rotate %1236 by %c121_i32_281 dim 1 : vector<4x128xf32>, i32 -> vector<4x128xf32>
    %1238 = vector.broadcast %61 : vector<1x128xf32> to vector<4x128xf32>
    %1239 = arith.mulf %1237, %1238 : vector<4x128xf32>
    %1240 = arith.addf %1235, %1239 : vector<4x128xf32>
    %1241 = vector.extract_strided_slice %1209 {offsets = [28, 0], sizes = [4, 128], strides = [1, 1]} : vector<36x128xf32> to vector<4x128xf32>
    %c120_i32_282 = arith.constant 120 : i32
    %1242 = tpu.dynamic_rotate %1241 by %c120_i32_282 dim 1 : vector<4x128xf32>, i32 -> vector<4x128xf32>
    %1243 = vector.broadcast %62 : vector<1x128xf32> to vector<4x128xf32>
    %1244 = arith.mulf %1242, %1243 : vector<4x128xf32>
    %1245 = arith.addf %1240, %1244 : vector<4x128xf32>
    %1246 = vector.extract_strided_slice %1209 {offsets = [32, 0], sizes = [4, 128], strides = [1, 1]} : vector<36x128xf32> to vector<4x128xf32>
    %c119_i32_283 = arith.constant 119 : i32
    %1247 = tpu.dynamic_rotate %1246 by %c119_i32_283 dim 1 : vector<4x128xf32>, i32 -> vector<4x128xf32>
    %1248 = vector.broadcast %63 : vector<1x128xf32> to vector<4x128xf32>
    %1249 = arith.mulf %1247, %1248 : vector<4x128xf32>
    %1250 = arith.addf %1245, %1249 : vector<4x128xf32>
    %1251 = tpu.concatenate %1140, %1195, %1250 in 0 : vector<8x128xf32>, vector<4x128xf32>, vector<4x128xf32> -> vector<16x128xf32>
    %1252 = arith.addf %1251, %1085 : vector<16x128xf32>
    %1253 = arith.truncf %1252 : vector<16x128xf32> to vector<16x128xbf16>
    %c0_284 = arith.constant 0 : index
    %c0_285 = arith.constant 0 : index
    %1254 = vector.load %arg3[%c0_284, %c0_285] : memref<128x512xbf16, #tpu.memory_space<vmem>>, vector<128x512xbf16>
    %cst_286 = arith.constant dense<0.000000e+00> : vector<16x512xf32>
    %1255 = tpu.matmul %1253, %1254, %cst_286 {dimension_numbers = #tpu.dot_dimension_numbers<[1], [0], [0], [1], [0, 0, 1, 1], [], []>} : vector<16x128xbf16>, vector<128x512xbf16>, vector<16x512xf32> -> vector<16x512xf32>
    %c6 = arith.constant 6 : index
    %c0_287 = arith.constant 0 : index
    %c0_288 = arith.constant 0 : index
    %1256 = vector.load %arg5[%c6, %c0_287, %c0_288] : memref<7x16x1xf32, #tpu.memory_space<vmem>>, vector<1x16x1xf32>
    %1257 = vector.shape_cast %1256 : vector<1x16x1xf32> to vector<16x1xf32>
    %1258 = vector.broadcast %1257 : vector<16x1xf32> to vector<16x512xf32>
    %1259 = arith.mulf %96, %1258 : vector<16x512xf32>
    %c6_289 = arith.constant 6 : index
    %c0_290 = arith.constant 0 : index
    %c0_291 = arith.constant 0 : index
    %1260 = vector.load %arg6[%c6_289, %c0_290, %c0_291] : memref<7x16x1xf32, #tpu.memory_space<vmem>>, vector<1x16x1xf32>
    %1261 = vector.shape_cast %1260 : vector<1x16x1xf32> to vector<16x1xf32>
    %1262 = vector.broadcast %1261 : vector<16x1xf32> to vector<16x512xf32>
    %1263 = arith.addf %1259, %1262 : vector<16x512xf32>
    %cst_292 = arith.constant 0.000000e+00 : f32
    %1264 = vector.broadcast %cst_292 : f32 to vector<16x512xf32>
    %1265 = arith.maximumf %1263, %1264 : vector<16x512xf32>
    %c6_293 = arith.constant 6 : index
    %c0_294 = arith.constant 0 : index
    %c0_295 = arith.constant 0 : index
    %1266 = vector.load %arg7[%c6_293, %c0_294, %c0_295] : memref<7x72x16xbf16, #tpu.memory_space<vmem>>, vector<1x72x16xbf16>
    %1267 = vector.shape_cast %1266 : vector<1x72x16xbf16> to vector<72x16xbf16>
    %1268 = arith.truncf %1265 : vector<16x512xf32> to vector<16x512xbf16>
    %cst_296 = arith.constant dense<0.000000e+00> : vector<72x512xf32>
    %1269 = tpu.matmul %1267, %1268, %cst_296 {dimension_numbers = #tpu.dot_dimension_numbers<[1], [0], [0], [1], [0, 0, 1, 1], [], []>} : vector<72x16xbf16>, vector<16x512xbf16>, vector<72x512xf32> -> vector<72x512xf32>
    %1270 = vector.extract_strided_slice %1269 {offsets = [32, 0], sizes = [8, 512], strides = [1, 1]} : vector<72x512xf32> to vector<8x512xf32>
    %1271 = vector.extract_strided_slice %1269 {offsets = [0, 0], sizes = [8, 512], strides = [1, 1]} : vector<72x512xf32> to vector<8x512xf32>
    %c17_i32 = arith.constant 17 : i32
    %1272 = tpu.dynamic_rotate %1271 by %c17_i32 dim 1 : vector<8x512xf32>, i32 -> vector<8x512xf32>
    %1273 = vector.broadcast %24 : vector<1x512xf32> to vector<8x512xf32>
    %1274 = arith.mulf %1272, %1273 : vector<8x512xf32>
    %1275 = arith.addf %1270, %1274 : vector<8x512xf32>
    %1276 = vector.extract_strided_slice %1269 {offsets = [8, 0], sizes = [8, 512], strides = [1, 1]} : vector<72x512xf32> to vector<8x512xf32>
    %c16_i32 = arith.constant 16 : i32
    %1277 = tpu.dynamic_rotate %1276 by %c16_i32 dim 1 : vector<8x512xf32>, i32 -> vector<8x512xf32>
    %1278 = vector.broadcast %25 : vector<1x512xf32> to vector<8x512xf32>
    %1279 = arith.mulf %1277, %1278 : vector<8x512xf32>
    %1280 = arith.addf %1275, %1279 : vector<8x512xf32>
    %1281 = vector.extract_strided_slice %1269 {offsets = [16, 0], sizes = [8, 512], strides = [1, 1]} : vector<72x512xf32> to vector<8x512xf32>
    %c15_i32_297 = arith.constant 15 : i32
    %1282 = tpu.dynamic_rotate %1281 by %c15_i32_297 dim 1 : vector<8x512xf32>, i32 -> vector<8x512xf32>
    %1283 = vector.broadcast %26 : vector<1x512xf32> to vector<8x512xf32>
    %1284 = arith.mulf %1282, %1283 : vector<8x512xf32>
    %1285 = arith.addf %1280, %1284 : vector<8x512xf32>
    %1286 = vector.extract_strided_slice %1269 {offsets = [24, 0], sizes = [8, 512], strides = [1, 1]} : vector<72x512xf32> to vector<8x512xf32>
    %c1_i32_298 = arith.constant 1 : i32
    %1287 = tpu.dynamic_rotate %1286 by %c1_i32_298 dim 1 : vector<8x512xf32>, i32 -> vector<8x512xf32>
    %1288 = vector.broadcast %27 : vector<1x512xf32> to vector<8x512xf32>
    %1289 = arith.mulf %1287, %1288 : vector<8x512xf32>
    %1290 = arith.addf %1285, %1289 : vector<8x512xf32>
    %1291 = vector.extract_strided_slice %1269 {offsets = [40, 0], sizes = [8, 512], strides = [1, 1]} : vector<72x512xf32> to vector<8x512xf32>
    %c511_i32 = arith.constant 511 : i32
    %1292 = tpu.dynamic_rotate %1291 by %c511_i32 dim 1 : vector<8x512xf32>, i32 -> vector<8x512xf32>
    %1293 = vector.broadcast %28 : vector<1x512xf32> to vector<8x512xf32>
    %1294 = arith.mulf %1292, %1293 : vector<8x512xf32>
    %1295 = arith.addf %1290, %1294 : vector<8x512xf32>
    %1296 = vector.extract_strided_slice %1269 {offsets = [48, 0], sizes = [8, 512], strides = [1, 1]} : vector<72x512xf32> to vector<8x512xf32>
    %c497_i32 = arith.constant 497 : i32
    %1297 = tpu.dynamic_rotate %1296 by %c497_i32 dim 1 : vector<8x512xf32>, i32 -> vector<8x512xf32>
    %1298 = vector.broadcast %29 : vector<1x512xf32> to vector<8x512xf32>
    %1299 = arith.mulf %1297, %1298 : vector<8x512xf32>
    %1300 = arith.addf %1295, %1299 : vector<8x512xf32>
    %1301 = vector.extract_strided_slice %1269 {offsets = [56, 0], sizes = [8, 512], strides = [1, 1]} : vector<72x512xf32> to vector<8x512xf32>
    %c496_i32 = arith.constant 496 : i32
    %1302 = tpu.dynamic_rotate %1301 by %c496_i32 dim 1 : vector<8x512xf32>, i32 -> vector<8x512xf32>
    %1303 = vector.broadcast %30 : vector<1x512xf32> to vector<8x512xf32>
    %1304 = arith.mulf %1302, %1303 : vector<8x512xf32>
    %1305 = arith.addf %1300, %1304 : vector<8x512xf32>
    %1306 = vector.extract_strided_slice %1269 {offsets = [64, 0], sizes = [8, 512], strides = [1, 1]} : vector<72x512xf32> to vector<8x512xf32>
    %c495_i32 = arith.constant 495 : i32
    %1307 = tpu.dynamic_rotate %1306 by %c495_i32 dim 1 : vector<8x512xf32>, i32 -> vector<8x512xf32>
    %1308 = vector.broadcast %31 : vector<1x512xf32> to vector<8x512xf32>
    %1309 = arith.mulf %1307, %1308 : vector<8x512xf32>
    %1310 = arith.addf %1305, %1309 : vector<8x512xf32>
    %c6_299 = arith.constant 6 : index
    %c0_300 = arith.constant 0 : index
    %c0_301 = arith.constant 0 : index
    %1311 = vector.load %arg8[%c6_299, %c0_300, %c0_301] : memref<7x8x1xf32, #tpu.memory_space<vmem>>, vector<1x8x1xf32>
    %1312 = vector.shape_cast %1311 : vector<1x8x1xf32> to vector<8x1xf32>
    %1313 = vector.broadcast %1312 : vector<8x1xf32> to vector<8x512xf32>
    %1314 = arith.mulf %1310, %1313 : vector<8x512xf32>
    %c6_302 = arith.constant 6 : index
    %c0_303 = arith.constant 0 : index
    %c0_304 = arith.constant 0 : index
    %1315 = vector.load %arg9[%c6_302, %c0_303, %c0_304] : memref<7x8x1xf32, #tpu.memory_space<vmem>>, vector<1x8x1xf32>
    %1316 = vector.shape_cast %1315 : vector<1x8x1xf32> to vector<8x1xf32>
    %1317 = vector.broadcast %1316 : vector<8x1xf32> to vector<8x512xf32>
    %1318 = arith.addf %1314, %1317 : vector<8x512xf32>
    %cst_305 = arith.constant 0.000000e+00 : f32
    %1319 = vector.broadcast %cst_305 : f32 to vector<8x512xf32>
    %1320 = arith.maximumf %1318, %1319 : vector<8x512xf32>
    %c6_306 = arith.constant 6 : index
    %c0_307 = arith.constant 0 : index
    %c0_308 = arith.constant 0 : index
    %1321 = vector.load %arg10[%c6_306, %c0_307, %c0_308] : memref<7x36x8xbf16, #tpu.memory_space<vmem>>, vector<1x36x8xbf16>
    %1322 = vector.shape_cast %1321 : vector<1x36x8xbf16> to vector<36x8xbf16>
    %1323 = arith.truncf %1320 : vector<8x512xf32> to vector<8x512xbf16>
    %cst_309 = arith.constant dense<0.000000e+00> : vector<36x512xf32>
    %1324 = tpu.matmul %1322, %1323, %cst_309 {dimension_numbers = #tpu.dot_dimension_numbers<[1], [0], [0], [1], [0, 0, 1, 1], [], []>} : vector<36x8xbf16>, vector<8x512xbf16>, vector<36x512xf32> -> vector<36x512xf32>
    %1325 = vector.extract_strided_slice %1324 {offsets = [16, 0], sizes = [4, 512], strides = [1, 1]} : vector<36x512xf32> to vector<4x512xf32>
    %1326 = vector.extract_strided_slice %1324 {offsets = [0, 0], sizes = [4, 512], strides = [1, 1]} : vector<36x512xf32> to vector<4x512xf32>
    %c17_i32_310 = arith.constant 17 : i32
    %1327 = tpu.dynamic_rotate %1326 by %c17_i32_310 dim 1 : vector<4x512xf32>, i32 -> vector<4x512xf32>
    %1328 = vector.broadcast %24 : vector<1x512xf32> to vector<4x512xf32>
    %1329 = arith.mulf %1327, %1328 : vector<4x512xf32>
    %1330 = arith.addf %1325, %1329 : vector<4x512xf32>
    %1331 = vector.extract_strided_slice %1324 {offsets = [4, 0], sizes = [4, 512], strides = [1, 1]} : vector<36x512xf32> to vector<4x512xf32>
    %c16_i32_311 = arith.constant 16 : i32
    %1332 = tpu.dynamic_rotate %1331 by %c16_i32_311 dim 1 : vector<4x512xf32>, i32 -> vector<4x512xf32>
    %1333 = vector.broadcast %25 : vector<1x512xf32> to vector<4x512xf32>
    %1334 = arith.mulf %1332, %1333 : vector<4x512xf32>
    %1335 = arith.addf %1330, %1334 : vector<4x512xf32>
    %1336 = vector.extract_strided_slice %1324 {offsets = [8, 0], sizes = [4, 512], strides = [1, 1]} : vector<36x512xf32> to vector<4x512xf32>
    %c15_i32_312 = arith.constant 15 : i32
    %1337 = tpu.dynamic_rotate %1336 by %c15_i32_312 dim 1 : vector<4x512xf32>, i32 -> vector<4x512xf32>
    %1338 = vector.broadcast %26 : vector<1x512xf32> to vector<4x512xf32>
    %1339 = arith.mulf %1337, %1338 : vector<4x512xf32>
    %1340 = arith.addf %1335, %1339 : vector<4x512xf32>
    %1341 = vector.extract_strided_slice %1324 {offsets = [12, 0], sizes = [4, 512], strides = [1, 1]} : vector<36x512xf32> to vector<4x512xf32>
    %c1_i32_313 = arith.constant 1 : i32
    %1342 = tpu.dynamic_rotate %1341 by %c1_i32_313 dim 1 : vector<4x512xf32>, i32 -> vector<4x512xf32>
    %1343 = vector.broadcast %27 : vector<1x512xf32> to vector<4x512xf32>
    %1344 = arith.mulf %1342, %1343 : vector<4x512xf32>
    %1345 = arith.addf %1340, %1344 : vector<4x512xf32>
    %1346 = vector.extract_strided_slice %1324 {offsets = [20, 0], sizes = [4, 512], strides = [1, 1]} : vector<36x512xf32> to vector<4x512xf32>
    %c511_i32_314 = arith.constant 511 : i32
    %1347 = tpu.dynamic_rotate %1346 by %c511_i32_314 dim 1 : vector<4x512xf32>, i32 -> vector<4x512xf32>
    %1348 = vector.broadcast %28 : vector<1x512xf32> to vector<4x512xf32>
    %1349 = arith.mulf %1347, %1348 : vector<4x512xf32>
    %1350 = arith.addf %1345, %1349 : vector<4x512xf32>
    %1351 = vector.extract_strided_slice %1324 {offsets = [24, 0], sizes = [4, 512], strides = [1, 1]} : vector<36x512xf32> to vector<4x512xf32>
    %c497_i32_315 = arith.constant 497 : i32
    %1352 = tpu.dynamic_rotate %1351 by %c497_i32_315 dim 1 : vector<4x512xf32>, i32 -> vector<4x512xf32>
    %1353 = vector.broadcast %29 : vector<1x512xf32> to vector<4x512xf32>
    %1354 = arith.mulf %1352, %1353 : vector<4x512xf32>
    %1355 = arith.addf %1350, %1354 : vector<4x512xf32>
    %1356 = vector.extract_strided_slice %1324 {offsets = [28, 0], sizes = [4, 512], strides = [1, 1]} : vector<36x512xf32> to vector<4x512xf32>
    %c496_i32_316 = arith.constant 496 : i32
    %1357 = tpu.dynamic_rotate %1356 by %c496_i32_316 dim 1 : vector<4x512xf32>, i32 -> vector<4x512xf32>
    %1358 = vector.broadcast %30 : vector<1x512xf32> to vector<4x512xf32>
    %1359 = arith.mulf %1357, %1358 : vector<4x512xf32>
    %1360 = arith.addf %1355, %1359 : vector<4x512xf32>
    %1361 = vector.extract_strided_slice %1324 {offsets = [32, 0], sizes = [4, 512], strides = [1, 1]} : vector<36x512xf32> to vector<4x512xf32>
    %c495_i32_317 = arith.constant 495 : i32
    %1362 = tpu.dynamic_rotate %1361 by %c495_i32_317 dim 1 : vector<4x512xf32>, i32 -> vector<4x512xf32>
    %1363 = vector.broadcast %31 : vector<1x512xf32> to vector<4x512xf32>
    %1364 = arith.mulf %1362, %1363 : vector<4x512xf32>
    %1365 = arith.addf %1360, %1364 : vector<4x512xf32>
    %c6_318 = arith.constant 6 : index
    %c0_319 = arith.constant 0 : index
    %c0_320 = arith.constant 0 : index
    %1366 = vector.load %arg11[%c6_318, %c0_319, %c0_320] : memref<7x4x1xf32, #tpu.memory_space<vmem>>, vector<1x4x1xf32>
    %1367 = vector.shape_cast %1366 : vector<1x4x1xf32> to vector<4x1xf32>
    %1368 = vector.broadcast %1367 : vector<4x1xf32> to vector<4x512xf32>
    %1369 = arith.mulf %1365, %1368 : vector<4x512xf32>
    %c6_321 = arith.constant 6 : index
    %c0_322 = arith.constant 0 : index
    %c0_323 = arith.constant 0 : index
    %1370 = vector.load %arg12[%c6_321, %c0_322, %c0_323] : memref<7x4x1xf32, #tpu.memory_space<vmem>>, vector<1x4x1xf32>
    %1371 = vector.shape_cast %1370 : vector<1x4x1xf32> to vector<4x1xf32>
    %1372 = vector.broadcast %1371 : vector<4x1xf32> to vector<4x512xf32>
    %1373 = arith.addf %1369, %1372 : vector<4x512xf32>
    %cst_324 = arith.constant 0.000000e+00 : f32
    %1374 = vector.broadcast %cst_324 : f32 to vector<4x512xf32>
    %1375 = arith.maximumf %1373, %1374 : vector<4x512xf32>
    %c6_325 = arith.constant 6 : index
    %c0_326 = arith.constant 0 : index
    %c0_327 = arith.constant 0 : index
    %1376 = vector.load %arg13[%c6_325, %c0_326, %c0_327] : memref<7x36x4xbf16, #tpu.memory_space<vmem>>, vector<1x36x4xbf16>
    %1377 = vector.shape_cast %1376 : vector<1x36x4xbf16> to vector<36x4xbf16>
    %1378 = arith.truncf %1375 : vector<4x512xf32> to vector<4x512xbf16>
    %cst_328 = arith.constant dense<0.000000e+00> : vector<36x512xf32>
    %1379 = tpu.matmul %1377, %1378, %cst_328 {dimension_numbers = #tpu.dot_dimension_numbers<[1], [0], [0], [1], [0, 0, 1, 1], [], []>} : vector<36x4xbf16>, vector<4x512xbf16>, vector<36x512xf32> -> vector<36x512xf32>
    %1380 = vector.extract_strided_slice %1379 {offsets = [16, 0], sizes = [4, 512], strides = [1, 1]} : vector<36x512xf32> to vector<4x512xf32>
    %1381 = vector.extract_strided_slice %1379 {offsets = [0, 0], sizes = [4, 512], strides = [1, 1]} : vector<36x512xf32> to vector<4x512xf32>
    %c17_i32_329 = arith.constant 17 : i32
    %1382 = tpu.dynamic_rotate %1381 by %c17_i32_329 dim 1 : vector<4x512xf32>, i32 -> vector<4x512xf32>
    %1383 = vector.broadcast %24 : vector<1x512xf32> to vector<4x512xf32>
    %1384 = arith.mulf %1382, %1383 : vector<4x512xf32>
    %1385 = arith.addf %1380, %1384 : vector<4x512xf32>
    %1386 = vector.extract_strided_slice %1379 {offsets = [4, 0], sizes = [4, 512], strides = [1, 1]} : vector<36x512xf32> to vector<4x512xf32>
    %c16_i32_330 = arith.constant 16 : i32
    %1387 = tpu.dynamic_rotate %1386 by %c16_i32_330 dim 1 : vector<4x512xf32>, i32 -> vector<4x512xf32>
    %1388 = vector.broadcast %25 : vector<1x512xf32> to vector<4x512xf32>
    %1389 = arith.mulf %1387, %1388 : vector<4x512xf32>
    %1390 = arith.addf %1385, %1389 : vector<4x512xf32>
    %1391 = vector.extract_strided_slice %1379 {offsets = [8, 0], sizes = [4, 512], strides = [1, 1]} : vector<36x512xf32> to vector<4x512xf32>
    %c15_i32_331 = arith.constant 15 : i32
    %1392 = tpu.dynamic_rotate %1391 by %c15_i32_331 dim 1 : vector<4x512xf32>, i32 -> vector<4x512xf32>
    %1393 = vector.broadcast %26 : vector<1x512xf32> to vector<4x512xf32>
    %1394 = arith.mulf %1392, %1393 : vector<4x512xf32>
    %1395 = arith.addf %1390, %1394 : vector<4x512xf32>
    %1396 = vector.extract_strided_slice %1379 {offsets = [12, 0], sizes = [4, 512], strides = [1, 1]} : vector<36x512xf32> to vector<4x512xf32>
    %c1_i32_332 = arith.constant 1 : i32
    %1397 = tpu.dynamic_rotate %1396 by %c1_i32_332 dim 1 : vector<4x512xf32>, i32 -> vector<4x512xf32>
    %1398 = vector.broadcast %27 : vector<1x512xf32> to vector<4x512xf32>
    %1399 = arith.mulf %1397, %1398 : vector<4x512xf32>
    %1400 = arith.addf %1395, %1399 : vector<4x512xf32>
    %1401 = vector.extract_strided_slice %1379 {offsets = [20, 0], sizes = [4, 512], strides = [1, 1]} : vector<36x512xf32> to vector<4x512xf32>
    %c511_i32_333 = arith.constant 511 : i32
    %1402 = tpu.dynamic_rotate %1401 by %c511_i32_333 dim 1 : vector<4x512xf32>, i32 -> vector<4x512xf32>
    %1403 = vector.broadcast %28 : vector<1x512xf32> to vector<4x512xf32>
    %1404 = arith.mulf %1402, %1403 : vector<4x512xf32>
    %1405 = arith.addf %1400, %1404 : vector<4x512xf32>
    %1406 = vector.extract_strided_slice %1379 {offsets = [24, 0], sizes = [4, 512], strides = [1, 1]} : vector<36x512xf32> to vector<4x512xf32>
    %c497_i32_334 = arith.constant 497 : i32
    %1407 = tpu.dynamic_rotate %1406 by %c497_i32_334 dim 1 : vector<4x512xf32>, i32 -> vector<4x512xf32>
    %1408 = vector.broadcast %29 : vector<1x512xf32> to vector<4x512xf32>
    %1409 = arith.mulf %1407, %1408 : vector<4x512xf32>
    %1410 = arith.addf %1405, %1409 : vector<4x512xf32>
    %1411 = vector.extract_strided_slice %1379 {offsets = [28, 0], sizes = [4, 512], strides = [1, 1]} : vector<36x512xf32> to vector<4x512xf32>
    %c496_i32_335 = arith.constant 496 : i32
    %1412 = tpu.dynamic_rotate %1411 by %c496_i32_335 dim 1 : vector<4x512xf32>, i32 -> vector<4x512xf32>
    %1413 = vector.broadcast %30 : vector<1x512xf32> to vector<4x512xf32>
    %1414 = arith.mulf %1412, %1413 : vector<4x512xf32>
    %1415 = arith.addf %1410, %1414 : vector<4x512xf32>
    %1416 = vector.extract_strided_slice %1379 {offsets = [32, 0], sizes = [4, 512], strides = [1, 1]} : vector<36x512xf32> to vector<4x512xf32>
    %c495_i32_336 = arith.constant 495 : i32
    %1417 = tpu.dynamic_rotate %1416 by %c495_i32_336 dim 1 : vector<4x512xf32>, i32 -> vector<4x512xf32>
    %1418 = vector.broadcast %31 : vector<1x512xf32> to vector<4x512xf32>
    %1419 = arith.mulf %1417, %1418 : vector<4x512xf32>
    %1420 = arith.addf %1415, %1419 : vector<4x512xf32>
    %1421 = tpu.concatenate %1310, %1365, %1420 in 0 : vector<8x512xf32>, vector<4x512xf32>, vector<4x512xf32> -> vector<16x512xf32>
    %1422 = arith.addf %1421, %96 : vector<16x512xf32>
    %1423 = arith.addf %1255, %1422 : vector<16x512xf32>
    %c0_337 = arith.constant 0 : index
    %c0_338 = arith.constant 0 : index
    %1424 = vector.load %arg14[%c0_337, %c0_338] : memref<16x512xf32, #tpu.memory_space<vmem>>, vector<16x512xf32>
    tpu.vector_store %arg14[%c0_337, %c0_338], %1423 {strides = array<i32>} : memref<16x512xf32, #tpu.memory_space<vmem>>, vector<16x512xf32>,
    return
  }
}

</mosaic_0001>

<llo_original>
// kernel: hg_block.1
$region0: #{hg_block.1}
  #allocation0 [shape = 'u32[]', space=smem, size = 0x4, offset = 0x4, fixed_abs, tag = 'smem constant byte address 0x4 - core index']
  #allocation1 [shape = 'u32[144,128]{1,0:T(1,128)}', space=vmem, size = 0x12000, scoped, tag = 'internal scratch']
  %s0 = inlined_call_operand.vmem [shape: f32[16,512], index: 0, kind: input, shape index: {}]
  %s1 = inlined_call_operand.vmem [shape: bf16[512,128], index: 1, kind: input, shape index: {}]
  %s2 = inlined_call_operand.vmem [shape: bf16[128,32], index: 2, kind: input, shape index: {}]
  %s3 = inlined_call_operand.vmem [shape: bf16[128,512], index: 3, kind: input, shape index: {}]
  %s4 = inlined_call_operand.vmem [shape: bf16[32,128], index: 4, kind: input, shape index: {}]
  %s5 = inlined_call_operand.vmem [shape: f32[7,16,1], index: 5, kind: input, shape index: {}]
  %s6 = inlined_call_operand.vmem [shape: f32[7,16,1], index: 6, kind: input, shape index: {}]
  %s7 = inlined_call_operand.vmem [shape: bf16[7,72,16], index: 7, kind: input, shape index: {}]
  %s8 = inlined_call_operand.vmem [shape: f32[7,8,1], index: 8, kind: input, shape index: {}]
  %s9 = inlined_call_operand.vmem [shape: f32[7,8,1], index: 9, kind: input, shape index: {}]
  %s10 = inlined_call_operand.vmem [shape: bf16[7,36,8], index: 10, kind: input, shape index: {}]
  %s11 = inlined_call_operand.vmem [shape: f32[7,4,1], index: 11, kind: input, shape index: {}]
  %s12 = inlined_call_operand.vmem [shape: f32[7,4,1], index: 12, kind: input, shape index: {}]
  %s13 = inlined_call_operand.vmem [shape: bf16[7,36,4], index: 13, kind: input, shape index: {}]
  %s14 = inlined_call_operand.vmem [shape: f32[16,512], index: 14, kind: output, shape index: {}]
  %s15 = sld [smem:[#allocation0]]
  $region66: #{hg_block.1} parent=0
    _
  %s17 = ssub.s32 1, %s15
  %s18 = scalar_select 0, %s17, %s15
  // Predicated region
  $region2: #{hg_block.1} parent=0 // pred_check
    _
  $region3: #{hg_block.1} parent=0 // pred_check_branch
    %20 = sbr.rel (0) target = $region5
  $region4: #{hg_block.1} parent=0 // pred_region
    _
  $region5: #{hg_block.1} parent=0 // pred_fallthru
    _
  // Predicated region
  $region6: #{hg_block.1} parent=0 // pred_check
    _
  $region7: #{hg_block.1} parent=0 // pred_check_branch
    %22 = sbr.rel (0) target = $region9
  $region8: #{hg_block.1} parent=0 // pred_region
    _
  $region9: #{hg_block.1} parent=0 // pred_fallthru
    _
  // Predicated region
  $region10: #{hg_block.1} parent=0 // pred_check
    _
  $region11: #{hg_block.1} parent=0 // pred_check_branch
    %24 = sbr.rel (0) target = $region13
  $region12: #{hg_block.1} parent=0 // pred_region
    _
  $region13: #{hg_block.1} parent=0 // pred_fallthru
    _
  // Predicated region
  $region14: #{hg_block.1} parent=0 // pred_check
    _
  $region15: #{hg_block.1} parent=0 // pred_check_branch
    %26 = sbr.rel (0) target = $region17
  $region16: #{hg_block.1} parent=0 // pred_region
    _
  $region17: #{hg_block.1} parent=0 // pred_fallthru
    _
  // Predicated region
  $region18: #{hg_block.1} parent=0 // pred_check
    _
  $region19: #{hg_block.1} parent=0 // pred_check_branch
    %28 = sbr.rel (0) target = $region21
  $region20: #{hg_block.1} parent=0 // pred_region
    _
  $region21: #{hg_block.1} parent=0 // pred_fallthru
    _
  // Predicated region
  $region22: #{hg_block.1} parent=0 // pred_check
    _
  $region23: #{hg_block.1} parent=0 // pred_check_branch
    %30 = sbr.rel (0) target = $region25
  $region24: #{hg_block.1} parent=0 // pred_region
    _
  $region25: #{hg_block.1} parent=0 // pred_fallthru
    _
  // Predicated region
  $region26: #{hg_block.1} parent=0 // pred_check
    _
  $region27: #{hg_block.1} parent=0 // pred_check_branch
    %32 = sbr.rel (0) target = $region29
  $region28: #{hg_block.1} parent=0 // pred_region
    _
  $region29: #{hg_block.1} parent=0 // pred_fallthru
    _
  // Predicated region
  $region30: #{hg_block.1} parent=0 // pred_check
    _
  $region31: #{hg_block.1} parent=0 // pred_check_branch
    %34 = sbr.rel (0) target = $region33
  $region32: #{hg_block.1} parent=0 // pred_region
    _
  $region33: #{hg_block.1} parent=0 // pred_fallthru
    _
  // Predicated region
  $region34: #{hg_block.1} parent=0 // pred_check
    _
  $region35: #{hg_block.1} parent=0 // pred_check_branch
    %36 = sbr.rel (0) target = $region37
  $region36: #{hg_block.1} parent=0 // pred_region
    _
  $region37: #{hg_block.1} parent=0 // pred_fallthru
    _
  // Predicated region
  $region38: #{hg_block.1} parent=0 // pred_check
    _
  $region39: #{hg_block.1} parent=0 // pred_check_branch
    %38 = sbr.rel (0) target = $region41
  $region40: #{hg_block.1} parent=0 // pred_region
    _
  $region41: #{hg_block.1} parent=0 // pred_fallthru
    _
  // Predicated region
  $region42: #{hg_block.1} parent=0 // pred_check
    _
  $region43: #{hg_block.1} parent=0 // pred_check_branch
    %40 = sbr.rel (0) target = $region45
  $region44: #{hg_block.1} parent=0 // pred_region
    _
  $region45: #{hg_block.1} parent=0 // pred_fallthru
    _
  // Predicated region
  $region46: #{hg_block.1} parent=0 // pred_check
    _
  $region47: #{hg_block.1} parent=0 // pred_check_branch
    %42 = sbr.rel (0) target = $region49
  $region48: #{hg_block.1} parent=0 // pred_region
    _
  $region49: #{hg_block.1} parent=0 // pred_fallthru
    _
  // Predicated region
  $region50: #{hg_block.1} parent=0 // pred_check
    _
  $region51: #{hg_block.1} parent=0 // pred_check_branch
    %44 = sbr.rel (0) target = $region53
  $region52: #{hg_block.1} parent=0 // pred_region
    _
  $region53: #{hg_block.1} parent=0 // pred_fallthru
    _
  // Predicated region
  $region54: #{hg_block.1} parent=0 // pred_check
    _
  $region55: #{hg_block.1} parent=0 // pred_check_branch
    %46 = sbr.rel (0) target = $region57
  $region56: #{hg_block.1} parent=0 // pred_region
    _
  $region57: #{hg_block.1} parent=0 // pred_fallthru
    _
  %v48 = vlaneseq
  %v49 = vand.u32 %v48, 127
  %v50 = vadd.s32 %v49, 128
  %v51 = vadd.s32 %v49, 256
  %v52 = vadd.s32 %v49, 384
  %v53 = vand.u32 %v49, 15
  %v54 = vand.u32 %v50, 15
  %v55 = vand.u32 %v51, 15
  %v56 = vand.u32 %v52, 15
  %v57 = vshra.s32 %v49, 4
  %v58 = vshra.s32 %v50, 4
  %v59 = vshra.s32 %v51, 4
  %v60 = vshra.s32 %v52, 4
  %v61 = vand.u32 %v57, 15
  %v62 = vand.u32 %v58, 15
  %v63 = vand.u32 %v59, 15
  %v64 = vand.u32 %v60, 15
  %vm65 = vcmp.ge.s32.totalorder %v61, 1
  %vm66 = vcmp.ge.s32.totalorder %v62, 1
  %vm67 = vcmp.ge.s32.totalorder %v63, 1
  %vm68 = vcmp.ge.s32.totalorder %v64, 1
  %v69 = vsel %vm65, 1, 0
  %v70 = vsel %vm66, 1, 0
  %v71 = vsel %vm67, 1, 0
  %v72 = vsel %vm68, 1, 0
  %v73 = vcvt.s32.f32 %v69
  %v74 = vcvt.s32.f32 %v70
  %v75 = vcvt.s32.f32 %v71
  %v76 = vcvt.s32.f32 %v72
  %vm77 = vcmp.le.s32.totalorder %v61, 14
  %vm78 = vcmp.le.s32.totalorder %v62, 14
  %vm79 = vcmp.le.s32.totalorder %v63, 14
  %vm80 = vcmp.le.s32.totalorder %v64, 14
  %v81 = vsel %vm77, 1, 0
  %v82 = vsel %vm78, 1, 0
  %v83 = vsel %vm79, 1, 0
  %v84 = vsel %vm80, 1, 0
  %v85 = vcvt.s32.f32 %v81
  %v86 = vcvt.s32.f32 %v82
  %v87 = vcvt.s32.f32 %v83
  %v88 = vcvt.s32.f32 %v84
  %vm89 = vcmp.ge.s32.totalorder %v53, 1
  %vm90 = vcmp.ge.s32.totalorder %v54, 1
  %vm91 = vcmp.ge.s32.totalorder %v55, 1
  %vm92 = vcmp.ge.s32.totalorder %v56, 1
  %v93 = vsel %vm89, 1, 0
  %v94 = vsel %vm90, 1, 0
  %v95 = vsel %vm91, 1, 0
  %v96 = vsel %vm92, 1, 0
  %v97 = vcvt.s32.f32 %v93
  %v98 = vcvt.s32.f32 %v94
  %v99 = vcvt.s32.f32 %v95
  %v100 = vcvt.s32.f32 %v96
  %vm101 = vcmp.le.s32.totalorder %v53, 14
  %vm102 = vcmp.le.s32.totalorder %v54, 14
  %vm103 = vcmp.le.s32.totalorder %v55, 14
  %vm104 = vcmp.le.s32.totalorder %v56, 14
  %v105 = vsel %vm101, 1, 0
  %v106 = vsel %vm102, 1, 0
  %v107 = vsel %vm103, 1, 0
  %v108 = vsel %vm104, 1, 0
  %v109 = vcvt.s32.f32 %v105
  %v110 = vcvt.s32.f32 %v106
  %v111 = vcvt.s32.f32 %v107
  %v112 = vcvt.s32.f32 %v108
  %v113 = vmul.f32 %v73, %v97
  %v114 = vmul.f32 %v74, %v98
  %v115 = vmul.f32 %v75, %v99
  %v116 = vmul.f32 %v76, %v100
  %v117 = vmul.f32 %v73, %v109
  %v118 = vmul.f32 %v74, %v110
  %v119 = vmul.f32 %v75, %v111
  %v120 = vmul.f32 %v76, %v112
  %v121 = vmul.f32 %v85, %v97
  %v122 = vmul.f32 %v86, %v98
  %v123 = vmul.f32 %v87, %v99
  %v124 = vmul.f32 %v88, %v100
  %v125 = vmul.f32 %v85, %v109
  %v126 = vmul.f32 %v86, %v110
  %v127 = vmul.f32 %v87, %v111
  %v128 = vmul.f32 %v88, %v112
  %v129 = vand.u32 %v49, 7
  %v130 = vshra.s32 %v49, 3
  %v131 = vand.u32 %v130, 7
  %vm132 = vcmp.ge.s32.totalorder %v131, 1
  %v133 = vsel %vm132, 1, 0
  %v134 = vcvt.s32.f32 %v133
  %vm135 = vcmp.le.s32.totalorder %v131, 6
  %v136 = vsel %vm135, 1, 0
  %v137 = vcvt.s32.f32 %v136
  %vm138 = vcmp.ge.s32.totalorder %v129, 1
  %v139 = vsel %vm138, 1, 0
  %v140 = vcvt.s32.f32 %v139
  %vm141 = vcmp.le.s32.totalorder %v129, 6
  %v142 = vsel %vm141, 1, 0
  %v143 = vcvt.s32.f32 %v142
  %v144 = vmul.f32 %v134, %v140
  %v145 = vmul.f32 %v134, %v143
  %v146 = vmul.f32 %v137, %v140
  %v147 = vmul.f32 %v137, %v143
  %v148 = vand.u32 %v49, 3
  %v149 = vshra.s32 %v49, 2
  %v150 = vand.u32 %v149, 3
  %vm151 = vcmp.ge.s32.totalorder %v150, 1
  %v152 = vsel %vm151, 1, 0
  %v153 = vcvt.s32.f32 %v152
  %vm154 = vcmp.le.s32.totalorder %v150, 2
  %v155 = vsel %vm154, 1, 0
  %v156 = vcvt.s32.f32 %v155
  %vm157 = vcmp.ge.s32.totalorder %v148, 1
  %v158 = vsel %vm157, 1, 0
  %v159 = vcvt.s32.f32 %v158
  %vm160 = vcmp.le.s32.totalorder %v148, 2
  %v161 = vsel %vm160, 1, 0
  %v162 = vcvt.s32.f32 %v161
  %v163 = vmul.f32 %v153, %v159
  %v164 = vmul.f32 %v153, %v162
  %v165 = vmul.f32 %v156, %v159
  %v166 = vmul.f32 %v156, %v162
  %v167 = vld [vmem:[%s0] sm:$0xff]
  %v168 = vld [vmem:[%s0 + $0x8] sm:$0xff]
  %v169 = vld [vmem:[%s0 + $0x10] sm:$0xff]
  %v170 = vld [vmem:[%s0 + $0x18] sm:$0xff]
  %v171 = vld [vmem:[%s0 + $0x20] sm:$0xff]
  %v172 = vld [vmem:[%s0 + $0x28] sm:$0xff]
  %v173 = vld [vmem:[%s0 + $0x30] sm:$0xff]
  %v174 = vld [vmem:[%s0 + $0x38] sm:$0xff]
  %v175 = vpack.c.bf16 %v171, %v167
  %v176 = vpack.c.bf16 %v172, %v168
  %v177 = vpack.c.bf16 %v173, %v169
  %v178 = vpack.c.bf16 %v174, %v170
  %v179 = vld [vmem:[%s1] sm:$0xf]
  %v180 = vld [vmem:[%s1 + $0x4] sm:$0xf]
  %v181 = vld [vmem:[%s1 + $0x8] sm:$0xf]
  %v182 = vld [vmem:[%s1 + $0xc] sm:$0xf]
  %v183 = vld [vmem:[%s1 + $0x10] sm:$0xf]
  %v184 = vld [vmem:[%s1 + $0x14] sm:$0xf]
  %v185 = vld [vmem:[%s1 + $0x18] sm:$0xf]
  %v186 = vld [vmem:[%s1 + $0x1c] sm:$0xf]
  %v187 = vld [vmem:[%s1 + $0x20] sm:$0xf]
  %v188 = vld [vmem:[%s1 + $0x24] sm:$0xf]
  %v189 = vld [vmem:[%s1 + $0x28] sm:$0xf]
  %v190 = vld [vmem:[%s1 + $0x2c] sm:$0xf]
  %v191 = vld [vmem:[%s1 + $0x30] sm:$0xf]
  %v192 = vld [vmem:[%s1 + $0x34] sm:$0xf]
  %v193 = vld [vmem:[%s1 + $0x38] sm:$0xf]
  %v194 = vld [vmem:[%s1 + $0x3c] sm:$0xf]
  %v195 = vld [vmem:[%s1 + $0x40] sm:$0xf]
  %v196 = vld [vmem:[%s1 + $0x44] sm:$0xf]
  %v197 = vld [vmem:[%s1 + $0x48] sm:$0xf]
  %v198 = vld [vmem:[%s1 + $0x4c] sm:$0xf]
  %v199 = vld [vmem:[%s1 + $0x50] sm:$0xf]
  %v200 = vld [vmem:[%s1 + $0x54] sm:$0xf]
  %v201 = vld [vmem:[%s1 + $0x58] sm:$0xf]
  %v202 = vld [vmem:[%s1 + $0x5c] sm:$0xf]
  %v203 = vld [vmem:[%s1 + $0x60] sm:$0xf]
  %v204 = vld [vmem:[%s1 + $0x64] sm:$0xf]
  %v205 = vld [vmem:[%s1 + $0x68] sm:$0xf]
  %v206 = vld [vmem:[%s1 + $0x6c] sm:$0xf]
  %v207 = vld [vmem:[%s1 + $0x70] sm:$0xf]
  %v208 = vld [vmem:[%s1 + $0x74] sm:$0xf]
  %v209 = vld [vmem:[%s1 + $0x78] sm:$0xf]
  %v210 = vld [vmem:[%s1 + $0x7c] sm:$0xf]
  %v211 = vld [vmem:[%s1 + $0x80] sm:$0xf]
  %v212 = vld [vmem:[%s1 + $0x84] sm:$0xf]
  %v213 = vld [vmem:[%s1 + $0x88] sm:$0xf]
  %v214 = vld [vmem:[%s1 + $0x8c] sm:$0xf]
  %v215 = vld [vmem:[%s1 + $0x90] sm:$0xf]
  %v216 = vld [vmem:[%s1 + $0x94] sm:$0xf]
  %v217 = vld [vmem:[%s1 + $0x98] sm:$0xf]
  %v218 = vld [vmem:[%s1 + $0x9c] sm:$0xf]
  %v219 = vld [vmem:[%s1 + $0xa0] sm:$0xf]
  %v220 = vld [vmem:[%s1 + $0xa4] sm:$0xf]
  %v221 = vld [vmem:[%s1 + $0xa8] sm:$0xf]
  %v222 = vld [vmem:[%s1 + $0xac] sm:$0xf]
  %v223 = vld [vmem:[%s1 + $0xb0] sm:$0xf]
  %v224 = vld [vmem:[%s1 + $0xb4] sm:$0xf]
  %v225 = vld [vmem:[%s1 + $0xb8] sm:$0xf]
  %v226 = vld [vmem:[%s1 + $0xbc] sm:$0xf]
  %v227 = vld [vmem:[%s1 + $0xc0] sm:$0xf]
  %v228 = vld [vmem:[%s1 + $0xc4] sm:$0xf]
  %v229 = vld [vmem:[%s1 + $0xc8] sm:$0xf]
  %v230 = vld [vmem:[%s1 + $0xcc] sm:$0xf]
  %v231 = vld [vmem:[%s1 + $0xd0] sm:$0xf]
  %v232 = vld [vmem:[%s1 + $0xd4] sm:$0xf]
  %v233 = vld [vmem:[%s1 + $0xd8] sm:$0xf]
  %v234 = vld [vmem:[%s1 + $0xdc] sm:$0xf]
  %v235 = vld [vmem:[%s1 + $0xe0] sm:$0xf]
  %v236 = vld [vmem:[%s1 + $0xe4] sm:$0xf]
  %v237 = vld [vmem:[%s1 + $0xe8] sm:$0xf]
  %v238 = vld [vmem:[%s1 + $0xec] sm:$0xf]
  %v239 = vld [vmem:[%s1 + $0xf0] sm:$0xf]
  %v240 = vld [vmem:[%s1 + $0xf4] sm:$0xf]
  %v241 = vld [vmem:[%s1 + $0xf8] sm:$0xf]
  %v242 = vld [vmem:[%s1 + $0xfc] sm:$0xf]
  %v307 = vunpack.c.l.b16 %v179
  %v308 = vunpack.c.l.b16 %v180
  %v309 = vunpack.c.l.b16 %v181
  %v310 = vunpack.c.l.b16 %v182
  %v311 = vunpack.c.l.b16 %v183
  %v312 = vunpack.c.l.b16 %v184
  %v313 = vunpack.c.l.b16 %v185
  %v314 = vunpack.c.l.b16 %v186
  %v315 = vunpack.c.l.b16 %v187
  %v316 = vunpack.c.l.b16 %v188
  %v317 = vunpack.c.l.b16 %v189
  %v318 = vunpack.c.l.b16 %v190
  %v319 = vunpack.c.l.b16 %v191
  %v320 = vunpack.c.l.b16 %v192
  %v321 = vunpack.c.l.b16 %v193
  %v322 = vunpack.c.l.b16 %v194
  %v323 = vunpack.c.l.b16 %v195
  %v324 = vunpack.c.l.b16 %v196
  %v325 = vunpack.c.l.b16 %v197
  %v326 = vunpack.c.l.b16 %v198
  %v327 = vunpack.c.l.b16 %v199
  %v328 = vunpack.c.l.b16 %v200
  %v329 = vunpack.c.l.b16 %v201
  %v330 = vunpack.c.l.b16 %v202
  %v331 = vunpack.c.l.b16 %v203
  %v332 = vunpack.c.l.b16 %v204
  %v333 = vunpack.c.l.b16 %v205
  %v334 = vunpack.c.l.b16 %v206
  %v335 = vunpack.c.l.b16 %v207
  %v336 = vunpack.c.l.b16 %v208
  %v337 = vunpack.c.l.b16 %v209
  %v338 = vunpack.c.l.b16 %v210
  %v339 = vunpack.c.l.b16 %v211
  %v340 = vunpack.c.l.b16 %v212
  %v341 = vunpack.c.l.b16 %v213
  %v342 = vunpack.c.l.b16 %v214
  %v343 = vunpack.c.l.b16 %v215
  %v344 = vunpack.c.l.b16 %v216
  %v345 = vunpack.c.l.b16 %v217
  %v346 = vunpack.c.l.b16 %v218
  %v347 = vunpack.c.l.b16 %v219
  %v348 = vunpack.c.l.b16 %v220
  %v349 = vunpack.c.l.b16 %v221
  %v350 = vunpack.c.l.b16 %v222
  %v351 = vunpack.c.l.b16 %v223
  %v352 = vunpack.c.l.b16 %v224
  %v353 = vunpack.c.l.b16 %v225
  %v354 = vunpack.c.l.b16 %v226
  %v355 = vunpack.c.l.b16 %v227
  %v356 = vunpack.c.l.b16 %v228
  %v357 = vunpack.c.l.b16 %v229
  %v358 = vunpack.c.l.b16 %v230
  %v359 = vunpack.c.l.b16 %v231
  %v360 = vunpack.c.l.b16 %v232
  %v361 = vunpack.c.l.b16 %v233
  %v362 = vunpack.c.l.b16 %v234
  %v363 = vunpack.c.l.b16 %v235
  %v364 = vunpack.c.l.b16 %v236
  %v365 = vunpack.c.l.b16 %v237
  %v366 = vunpack.c.l.b16 %v238
  %v367 = vunpack.c.l.b16 %v239
  %v368 = vunpack.c.l.b16 %v240
  %v369 = vunpack.c.l.b16 %v241
  %v370 = vunpack.c.l.b16 %v242
  %v371 = vpack.c.b16 %v308, %v307
  %v372 = vpack.c.b16 %v310, %v309
  %v373 = vpack.c.b16 %v312, %v311
  %v374 = vpack.c.b16 %v314, %v313
  %v375 = vpack.c.b16 %v316, %v315
  %v376 = vpack.c.b16 %v318, %v317
  %v377 = vpack.c.b16 %v320, %v319
  %v378 = vpack.c.b16 %v322, %v321
  %v379 = vpack.c.b16 %v324, %v323
  %v380 = vpack.c.b16 %v326, %v325
  %v381 = vpack.c.b16 %v328, %v327
  %v382 = vpack.c.b16 %v330, %v329
  %v383 = vpack.c.b16 %v332, %v331
  %v384 = vpack.c.b16 %v334, %v333
  %v385 = vpack.c.b16 %v336, %v335
  %v386 = vpack.c.b16 %v338, %v337
  %v387 = vpack.c.b16 %v340, %v339
  %v388 = vpack.c.b16 %v342, %v341
  %v389 = vpack.c.b16 %v344, %v343
  %v390 = vpack.c.b16 %v346, %v345
  %v391 = vpack.c.b16 %v348, %v347
  %v392 = vpack.c.b16 %v350, %v349
  %v393 = vpack.c.b16 %v352, %v351
  %v394 = vpack.c.b16 %v354, %v353
  %v395 = vpack.c.b16 %v356, %v355
  %v396 = vpack.c.b16 %v358, %v357
  %v397 = vpack.c.b16 %v360, %v359
  %v398 = vpack.c.b16 %v362, %v361
  %v399 = vpack.c.b16 %v364, %v363
  %v400 = vpack.c.b16 %v366, %v365
  %v401 = vpack.c.b16 %v368, %v367
  %v402 = vpack.c.b16 %v370, %v369
  %435 = vmatprep.subr.bf16.mxu0 0
  %436 = vmatpush1.bf16.msra.mxu0 %v371
  %437 = vmatprep.subr.bf16.mxu0 0
  %438 = vmatpush1.bf16.msra.mxu0 %v372
  %439 = vmatprep.subr.bf16.mxu0 0
  %440 = vmatpush1.bf16.msra.mxu0 %v373
  %441 = vmatprep.subr.bf16.mxu0 0
  %442 = vmatpush1.bf16.msra.mxu0 %v374
  %443 = vmatprep.subr.bf16.mxu0 0
  %444 = vmatpush1.bf16.msra.mxu0 %v375
  %445 = vmatprep.subr.bf16.mxu0 0
  %446 = vmatpush1.bf16.msra.mxu0 %v376
  %447 = vmatprep.subr.bf16.mxu0 0
  %448 = vmatpush1.bf16.msra.mxu0 %v377
  %449 = vmatprep.subr.bf16.mxu0 0
  %450 = vmatpush1.bf16.msra.mxu0 %v378
  %451 = vmatprep.subr.bf16.mxu0 0
  %452 = vmatpush1.bf16.msra.mxu0 %v379
  %453 = vmatprep.subr.bf16.mxu0 0
  %454 = vmatpush1.bf16.msra.mxu0 %v380
  %455 = vmatprep.subr.bf16.mxu0 0
  %456 = vmatpush1.bf16.msra.mxu0 %v381
  %457 = vmatprep.subr.bf16.mxu0 0
  %458 = vmatpush1.bf16.msra.mxu0 %v382
  %459 = vmatprep.subr.bf16.mxu0 0
  %460 = vmatpush1.bf16.msra.mxu0 %v383
  %461 = vmatprep.subr.bf16.mxu0 0
  %462 = vmatpush1.bf16.msra.mxu0 %v384
  %463 = vmatprep.subr.bf16.mxu0 0
  %464 = vmatpush1.bf16.msra.mxu0 %v385
  %465 = vmatprep.subr.bf16.mxu0 0
  %466 = vmatpush1.bf16.msra.mxu0 %v386
  %467 = vmatprep.mubr.bf16.mxu0 %v176
  %468 = vmatmul.mubr.bf16.gmra.mrb[0].mxu0 %v175
  %v469 = vpop.f32.mrb[0].mxu0
  %v470 = vadd.f32 0.0, %v469
  %v471 = vpop.f32.mrb[0].mxu0
  %v472 = vpop.f32.mrb[0].mxu0
  %v473 = vadd.f32 0.0, %v472
  %v474 = vpop.f32.mrb[0].mxu0
  %475 = vdwg.mxu0
  %476 = vmatprep.subr.bf16.mxu0 0
  %477 = vmatpush1.bf16.msra.mxu0 %v387
  %478 = vmatprep.subr.bf16.mxu0 0
  %479 = vmatpush1.bf16.msra.mxu0 %v388
  %480 = vmatprep.subr.bf16.mxu0 0
  %481 = vmatpush1.bf16.msra.mxu0 %v389
  %482 = vmatprep.subr.bf16.mxu0 0
  %483 = vmatpush1.bf16.msra.mxu0 %v390
  %484 = vmatprep.subr.bf16.mxu0 0
  %485 = vmatpush1.bf16.msra.mxu0 %v391
  %486 = vmatprep.subr.bf16.mxu0 0
  %487 = vmatpush1.bf16.msra.mxu0 %v392
  %488 = vmatprep.subr.bf16.mxu0 0
  %489 = vmatpush1.bf16.msra.mxu0 %v393
  %490 = vmatprep.subr.bf16.mxu0 0
  %491 = vmatpush1.bf16.msra.mxu0 %v394
  %492 = vmatprep.subr.bf16.mxu0 0
  %493 = vmatpush1.bf16.msra.mxu0 %v395
  %494 = vmatprep.subr.bf16.mxu0 0
  %495 = vmatpush1.bf16.msra.mxu0 %v396
  %496 = vmatprep.subr.bf16.mxu0 0
  %497 = vmatpush1.bf16.msra.mxu0 %v397
  %498 = vmatprep.subr.bf16.mxu0 0
  %499 = vmatpush1.bf16.msra.mxu0 %v398
  %500 = vmatprep.subr.bf16.mxu0 0
  %501 = vmatpush1.bf16.msra.mxu0 %v399
  %502 = vmatprep.subr.bf16.mxu0 0
  %503 = vmatpush1.bf16.msra.mxu0 %v400
  %504 = vmatprep.subr.bf16.mxu0 0
  %505 = vmatpush1.bf16.msra.mxu0 %v401
  %506 = vmatprep.subr.bf16.mxu0 0
  %507 = vmatpush1.bf16.msra.mxu0 %v402
  %508 = vmatprep.mubr.bf16.mxu0 %v178
  %509 = vmatmul.mubr.bf16.gmra.mrb[0].mxu0 %v177
  %v510 = vpop.f32.mrb[0].mxu0
  %v511 = vadd.f32 %v470, %v510
  %v512 = vpop.f32.mrb[0].mxu0
  %v513 = vpop.f32.mrb[0].mxu0
  %v514 = vadd.f32 %v473, %v513
  %v515 = vpop.f32.mrb[0].mxu0
  %516 = vdwg.mxu0
  %v517 = vld [vmem:[%s5] sm:$0xff]
  %v518 = vld [vmem:[%s5 + $0x8] sm:$0xff]
  %520 = vset.pattern.permute.xlu0 0
  %521 = vperm.xlu0 %520, %v517
  %v522 = vpop.permute.xlu0 %521
  %525 = vset.pattern.permute.xlu0 0
  %526 = vperm.xlu0 %525, %v518
  %v527 = vpop.permute.xlu0 %526
  %v529 = vmul.f32 %v511, %v522
  %v530 = vmul.f32 %v514, %v527
  %v531 = vld [vmem:[%s6] sm:$0xff]
  %v532 = vld [vmem:[%s6 + $0x8] sm:$0xff]
  %534 = vset.pattern.permute.xlu0 0
  %535 = vperm.xlu0 %534, %v531
  %v536 = vpop.permute.xlu0 %535
  %539 = vset.pattern.permute.xlu0 0
  %540 = vperm.xlu0 %539, %v532
  %v541 = vpop.permute.xlu0 %540
  %v543 = vadd.f32 %v529, %v536
  %v544 = vadd.f32 %v530, %v541
  %v545 = vmax.f32 %v543, 0.0
  %v546 = vmax.f32 %v544, 0.0
  %v547 = vld [vmem:[%s7] sm:$0xf]
  %v548 = vld [vmem:[%s7 + $0x4] sm:$0xf]
  %v549 = vld [vmem:[%s7 + $0x8] sm:$0xf]
  %v550 = vld [vmem:[%s7 + $0xc] sm:$0xf]
  %v551 = vld [vmem:[%s7 + $0x10] sm:$0xf]
  %v552 = vld [vmem:[%s7 + $0x14] sm:$0xf]
  %v553 = vld [vmem:[%s7 + $0x18] sm:$0xf]
  %v554 = vld [vmem:[%s7 + $0x1c] sm:$0xf]
  %v555 = vld [vmem:[%s7 + $0x20] sm:$0xf]
  %v556 = vpack.c.bf16 %v546, %v545
  %v566 = vunpack.c.l.b16 %v547
  %v567 = vunpack.c.l.b16 %v548
  %v568 = vunpack.c.l.b16 %v549
  %v569 = vunpack.c.l.b16 %v550
  %v570 = vunpack.c.l.b16 %v551
  %v571 = vunpack.c.l.b16 %v552
  %v572 = vunpack.c.l.b16 %v553
  %v573 = vunpack.c.l.b16 %v554
  %v574 = vunpack.c.l.b16 %v555
  %v575 = vpack.c.b16 %v567, %v566
  %v576 = vpack.c.b16 %v569, %v568
  %v577 = vpack.c.b16 %v571, %v570
  %v578 = vpack.c.b16 %v573, %v572
  %v579 = vpack.c.b16 %v574, %v574
  %vm580 = vcmask 130048
  %v582 = vsel %vm580, %v575, 0
  %v585 = vsel %vm580, %v576, 0
  %v588 = vsel %vm580, %v577, 0
  %v591 = vsel %vm580, %v578, 0
  %v594 = vsel %vm580, %v579, 0
  %596 = vmatprep.subr.bf16.mxu0 0
  %597 = vmatpush1.bf16.msra.mxu0 %v556
  %598 = vmatprep.subr.bf16.mxu0 0
  %599 = vmatpush1.bf16.msra.mxu0 0
  %600 = vmatprep.subr.bf16.mxu0 0
  %601 = vmatpush1.bf16.msra.mxu0 0
  %602 = vmatprep.subr.bf16.mxu0 0
  %603 = vmatpush1.bf16.msra.mxu0 0
  %604 = vmatprep.subr.bf16.mxu0 0
  %605 = vmatpush1.bf16.msra.mxu0 0
  %606 = vmatprep.subr.bf16.mxu0 0
  %607 = vmatpush1.bf16.msra.mxu0 0
  %608 = vmatprep.subr.bf16.mxu0 0
  %609 = vmatpush1.bf16.msra.mxu0 0
  %610 = vmatprep.subr.bf16.mxu0 0
  %611 = vmatpush1.bf16.msra.mxu0 0
  %612 = vmatprep.subr.bf16.mxu0 0
  %613 = vmatpush1.bf16.msra.mxu0 0
  %614 = vmatprep.subr.bf16.mxu0 0
  %615 = vmatpush1.bf16.msra.mxu0 0
  %616 = vmatprep.subr.bf16.mxu0 0
  %617 = vmatpush1.bf16.msra.mxu0 0
  %618 = vmatprep.subr.bf16.mxu0 0
  %619 = vmatpush1.bf16.msra.mxu0 0
  %620 = vmatprep.subr.bf16.mxu0 0
  %621 = vmatpush1.bf16.msra.mxu0 0
  %622 = vmatprep.subr.bf16.mxu0 0
  %623 = vmatpush1.bf16.msra.mxu0 0
  %624 = vmatprep.subr.bf16.mxu0 0
  %625 = vmatpush1.bf16.msra.mxu0 0
  %626 = vmatprep.subr.bf16.mxu0 0
  %627 = vmatpush1.bf16.msra.mxu0 0
  %628 = vmatprep.mubr.bf16.mxu0 0
  %629 = vmatmul.mubr.bf16.gmra.mrb[0].mxu0 %v582
  %v630 = vpop.f32.mrb[0].mxu0
  %v631 = vadd.f32 0.0, %v630
  %v632 = vpop.f32.mrb[0].mxu0
  %v633 = vpop.f32.mrb[0].mxu0
  %v634 = vadd.f32 0.0, %v633
  %v635 = vpop.f32.mrb[0].mxu0
  %636 = vmatprep.mubr.bf16.mxu0 0
  %637 = vmatmul.mubr.bf16.gmra.mrb[0].mxu0 %v585
  %v638 = vpop.f32.mrb[0].mxu0
  %v639 = vadd.f32 0.0, %v638
  %v640 = vpop.f32.mrb[0].mxu0
  %v641 = vpop.f32.mrb[0].mxu0
  %v642 = vadd.f32 0.0, %v641
  %v643 = vpop.f32.mrb[0].mxu0
  %644 = vmatprep.mubr.bf16.mxu0 0
  %645 = vmatmul.mubr.bf16.gmra.mrb[0].mxu0 %v588
  %v646 = vpop.f32.mrb[0].mxu0
  %v647 = vadd.f32 0.0, %v646
  %v648 = vpop.f32.mrb[0].mxu0
  %v649 = vpop.f32.mrb[0].mxu0
  %v650 = vadd.f32 0.0, %v649
  %v651 = vpop.f32.mrb[0].mxu0
  %652 = vmatprep.mubr.bf16.mxu0 0
  %653 = vmatmul.mubr.bf16.gmra.mrb[0].mxu0 %v591
  %v654 = vpop.f32.mrb[0].mxu0
  %v655 = vadd.f32 0.0, %v654
  %v656 = vpop.f32.mrb[0].mxu0
  %v657 = vpop.f32.mrb[0].mxu0
  %v658 = vadd.f32 0.0, %v657
  %v659 = vpop.f32.mrb[0].mxu0
  %660 = vmatprep.mubr.bf16.mxu0 0
  %661 = vmatmul.mubr.bf16.gmra.mrb[0].mxu0 %v594
  %v662 = vpop.f32.mrb[0].mxu0
  %v663 = vadd.f32 0.0, %v662
  %v664 = vpop.f32.mrb[0].mxu0
  %v665 = vpop.f32.mrb[0].mxu0
  %v666 = vpop.f32.mrb[0].mxu0
  %667 = vdwg.mxu0
  %668 = vrot.lane.b32.xlu0 %v631, 9
  %v669 = vpop.permute.xlu0 %668
  %v670 = vmul.f32 %v669, %v144
  %v671 = vadd.f32 %v647, %v670
  %672 = vrot.lane.b32.xlu0 %v634, 8
  %v673 = vpop.permute.xlu0 %672
  %v674 = vmul.f32 %v673, %v134
  %v675 = vadd.f32 %v671, %v674
  %676 = vrot.lane.b32.xlu0 %v639, 7
  %v677 = vpop.permute.xlu0 %676
  %v678 = vmul.f32 %v677, %v145
  %v679 = vadd.f32 %v675, %v678
  %680 = vrot.lane.b32.xlu0 %v642, 1
  %v681 = vpop.permute.xlu0 %680
  %v682 = vmul.f32 %v681, %v140
  %v683 = vadd.f32 %v679, %v682
  %684 = vrot.lane.b32.xlu0 %v650, 127
  %v685 = vpop.permute.xlu0 %684
  %v686 = vmul.f32 %v685, %v143
  %v687 = vadd.f32 %v683, %v686
  %688 = vrot.lane.b32.xlu0 %v655, 121
  %v689 = vpop.permute.xlu0 %688
  %v690 = vmul.f32 %v689, %v146
  %v691 = vadd.f32 %v687, %v690
  %692 = vrot.lane.b32.xlu0 %v658, 120
  %v693 = vpop.permute.xlu0 %692
  %v694 = vmul.f32 %v693, %v137
  %v695 = vadd.f32 %v691, %v694
  %696 = vrot.lane.b32.xlu0 %v663, 119
  %v697 = vpop.permute.xlu0 %696
  %v698 = vmul.f32 %v697, %v147
  %v699 = vadd.f32 %v695, %v698
  %v700 = vld [vmem:[%s8] sm:$0xff]
  %702 = vset.pattern.permute.xlu0 0
  %703 = vperm.xlu0 %702, %v700
  %v704 = vpop.permute.xlu0 %703
  %v706 = vmul.f32 %v699, %v704
  %v707 = vld [vmem:[%s9] sm:$0xff]
  %709 = vset.pattern.permute.xlu0 0
  %710 = vperm.xlu0 %709, %v707
  %v711 = vpop.permute.xlu0 %710
  %v713 = vadd.f32 %v706, %v711
  %v714 = vmax.f32 %v713, 0.0
  %v715 = vld [vmem:[%s10] sm:$0xf]
  %v716 = vld [vmem:[%s10 + $0x4] sm:$0xf]
  %v717 = vld [vmem:[%s10 + $0x8] sm:$0xf]
  %v718 = vld [vmem:[%s10 + $0xc] sm:$0xf]
  %v719 = vld [vmem:[%s10 + $0x10] sm:$0x3]
  %v720 = vpack.c.bf16 %v714, %v714
  %v726 = vunpack.c.l.b16 %v715
  %v727 = vunpack.c.l.b16 %v716
  %v728 = vunpack.c.l.b16 %v717
  %v729 = vunpack.c.l.b16 %v718
  %v730 = vunpack.c.l.b16 %v719
  %v731 = vpack.c.b16 %v727, %v726
  %v732 = vpack.c.b16 %v729, %v728
  %v733 = vpack.c.b16 %v730, %v730
  %vm734 = vcmask 64512
  %v736 = vsel %vm734, %v731, 0
  %v739 = vsel %vm734, %v732, 0
  %v742 = vsel %vm734, %v733, 0
  %vm744 = vcmask 1043456
  %v746 = vsel %vm744, %v720, 0
  %748 = vmatprep.subr.bf16.mxu0 0
  %749 = vmatpush1.bf16.msra.mxu0 %v746
  %750 = vmatprep.subr.bf16.mxu0 0
  %751 = vmatpush1.bf16.msra.mxu0 0
  %752 = vmatprep.subr.bf16.mxu0 0
  %753 = vmatpush1.bf16.msra.mxu0 0
  %754 = vmatprep.subr.bf16.mxu0 0
  %755 = vmatpush1.bf16.msra.mxu0 0
  %756 = vmatprep.subr.bf16.mxu0 0
  %757 = vmatpush1.bf16.msra.mxu0 0
  %758 = vmatprep.subr.bf16.mxu0 0
  %759 = vmatpush1.bf16.msra.mxu0 0
  %760 = vmatprep.subr.bf16.mxu0 0
  %761 = vmatpush1.bf16.msra.mxu0 0
  %762 = vmatprep.subr.bf16.mxu0 0
  %763 = vmatpush1.bf16.msra.mxu0 0
  %764 = vmatprep.subr.bf16.mxu0 0
  %765 = vmatpush1.bf16.msra.mxu0 0
  %766 = vmatprep.subr.bf16.mxu0 0
  %767 = vmatpush1.bf16.msra.mxu0 0
  %768 = vmatprep.subr.bf16.mxu0 0
  %769 = vmatpush1.bf16.msra.mxu0 0
  %770 = vmatprep.subr.bf16.mxu0 0
  %771 = vmatpush1.bf16.msra.mxu0 0
  %772 = vmatprep.subr.bf16.mxu0 0
  %773 = vmatpush1.bf16.msra.mxu0 0
  %774 = vmatprep.subr.bf16.mxu0 0
  %775 = vmatpush1.bf16.msra.mxu0 0
  %776 = vmatprep.subr.bf16.mxu0 0
  %777 = vmatpush1.bf16.msra.mxu0 0
  %778 = vmatprep.subr.bf16.mxu0 0
  %779 = vmatpush1.bf16.msra.mxu0 0
  %780 = vmatprep.mubr.bf16.mxu0 0
  %781 = vmatmul.mubr.bf16.gmra.mrb[0].mxu0 %v736
  %v782 = vpop.f32.mrb[0].mxu0
  %v783 = vadd.f32 0.0, %v782
  %v784 = vpop.f32.mrb[0].mxu0
  %v785 = vpop.f32.mrb[0].mxu0
  %v786 = vadd.f32 0.0, %v785
  %v787 = vpop.f32.mrb[0].mxu0
  %788 = vmatprep.mubr.bf16.mxu0 0
  %789 = vmatmul.mubr.bf16.gmra.mrb[0].mxu0 %v739
  %v790 = vpop.f32.mrb[0].mxu0
  %v791 = vadd.f32 0.0, %v790
  %v792 = vpop.f32.mrb[0].mxu0
  %v793 = vpop.f32.mrb[0].mxu0
  %v794 = vadd.f32 0.0, %v793
  %v795 = vpop.f32.mrb[0].mxu0
  %796 = vmatprep.mubr.bf16.mxu0 0
  %797 = vmatmul.mubr.bf16.gmra.mrb[0].mxu0 %v742
  %v798 = vpop.f32.mrb[0].mxu0
  %v799 = vadd.f32 0.0, %v798
  %v800 = vpop.f32.mrb[0].mxu0
  %v801 = vpop.f32.mrb[0].mxu0
  %v802 = vpop.f32.mrb[0].mxu0
  %803 = vdwg.mxu0
  %804 = vrot.lane.b32.xlu0 %v783, 9
  %v805 = vpop.permute.xlu0 %804
  %v806 = vmul.f32 %v805, %v144
  %v807 = vadd.f32 %v791, %v806
  %v809 = vrot.slane %v783, 4
  %811 = vrot.lane.b32.xlu0 %v809, 8
  %v812 = vpop.permute.xlu0 %811
  %v813 = vmul.f32 %v812, %v134
  %v814 = vadd.f32 %v807, %v813
  %815 = vrot.lane.b32.xlu0 %v786, 7
  %v816 = vpop.permute.xlu0 %815
  %v817 = vmul.f32 %v816, %v145
  %v818 = vadd.f32 %v814, %v817
  %v820 = vrot.slane %v786, 4
  %822 = vrot.lane.b32.xlu0 %v820, 1
  %v823 = vpop.permute.xlu0 %822
  %v824 = vmul.f32 %v823, %v140
  %v825 = vadd.f32 %v818, %v824
  %v827 = vrot.slane %v791, 4
  %829 = vrot.lane.b32.xlu0 %v827, 127
  %v830 = vpop.permute.xlu0 %829
  %v831 = vmul.f32 %v830, %v143
  %v832 = vadd.f32 %v825, %v831
  %833 = vrot.lane.b32.xlu0 %v794, 121
  %v834 = vpop.permute.xlu0 %833
  %v835 = vmul.f32 %v834, %v146
  %v836 = vadd.f32 %v832, %v835
  %v838 = vrot.slane %v794, 4
  %840 = vrot.lane.b32.xlu0 %v838, 120
  %v841 = vpop.permute.xlu0 %840
  %v842 = vmul.f32 %v841, %v137
  %v843 = vadd.f32 %v836, %v842
  %844 = vrot.lane.b32.xlu0 %v799, 119
  %v845 = vpop.permute.xlu0 %844
  %v846 = vmul.f32 %v845, %v147
  %v847 = vadd.f32 %v843, %v846
  %v848 = vld [vmem:[%s11] sm:$0xf]
  %850 = vset.pattern.permute.xlu0 0
  %851 = vperm.xlu0 %850, %v848
  %v852 = vpop.permute.xlu0 %851
  %v854 = vmul.f32 %v847, %v852
  %v855 = vld [vmem:[%s12] sm:$0xf]
  %857 = vset.pattern.permute.xlu0 0
  %858 = vperm.xlu0 %857, %v855
  %v859 = vpop.permute.xlu0 %858
  %v861 = vadd.f32 %v854, %v859
  %v862 = vmax.f32 %v861, 0.0
  %v863 = vld [vmem:[%s13] sm:$0xf]
  %v864 = vld [vmem:[%s13 + $0x4] sm:$0xf]
  %v865 = vld [vmem:[%s13 + $0x8] sm:$0xf]
  %v866 = vld [vmem:[%s13 + $0xc] sm:$0xf]
  %v867 = vld [vmem:[%s13 + $0x10] sm:$0x3]
  %v868 = vpack.c.bf16 %v862, %v862
  %v874 = vunpack.c.l.b16 %v863
  %v875 = vunpack.c.l.b16 %v864
  %v876 = vunpack.c.l.b16 %v865
  %v877 = vunpack.c.l.b16 %v866
  %v878 = vunpack.c.l.b16 %v867
  %v879 = vpack.c.b16 %v875, %v874
  %v880 = vpack.c.b16 %v877, %v876
  %v881 = vpack.c.b16 %v878, %v878
  %vm882 = vcmask 31744
  %v884 = vsel %vm882, %v879, 0
  %v887 = vsel %vm882, %v880, 0
  %v890 = vsel %vm882, %v881, 0
  %vm892 = vcmask 1041408
  %v894 = vsel %vm892, %v868, 0
  %896 = vmatprep.subr.bf16.mxu0 0
  %897 = vmatpush1.bf16.msra.mxu0 %v894
  %898 = vmatprep.subr.bf16.mxu0 0
  %899 = vmatpush1.bf16.msra.mxu0 0
  %900 = vmatprep.subr.bf16.mxu0 0
  %901 = vmatpush1.bf16.msra.mxu0 0
  %902 = vmatprep.subr.bf16.mxu0 0
  %903 = vmatpush1.bf16.msra.mxu0 0
  %904 = vmatprep.subr.bf16.mxu0 0
  %905 = vmatpush1.bf16.msra.mxu0 0
  %906 = vmatprep.subr.bf16.mxu0 0
  %907 = vmatpush1.bf16.msra.mxu0 0
  %908 = vmatprep.subr.bf16.mxu0 0
  %909 = vmatpush1.bf16.msra.mxu0 0
  %910 = vmatprep.subr.bf16.mxu0 0
  %911 = vmatpush1.bf16.msra.mxu0 0
  %912 = vmatprep.subr.bf16.mxu0 0
  %913 = vmatpush1.bf16.msra.mxu0 0
  %914 = vmatprep.subr.bf16.mxu0 0
  %915 = vmatpush1.bf16.msra.mxu0 0
  %916 = vmatprep.subr.bf16.mxu0 0
  %917 = vmatpush1.bf16.msra.mxu0 0
  %918 = vmatprep.subr.bf16.mxu0 0
  %919 = vmatpush1.bf16.msra.mxu0 0
  %920 = vmatprep.subr.bf16.mxu0 0
  %921 = vmatpush1.bf16.msra.mxu0 0
  %922 = vmatprep.subr.bf16.mxu0 0
  %923 = vmatpush1.bf16.msra.mxu0 0
  %924 = vmatprep.subr.bf16.mxu0 0
  %925 = vmatpush1.bf16.msra.mxu0 0
  %926 = vmatprep.subr.bf16.mxu0 0
  %927 = vmatpush1.bf16.msra.mxu0 0
  %928 = vmatprep.mubr.bf16.mxu0 0
  %929 = vmatmul.mubr.bf16.gmra.mrb[0].mxu0 %v884
  %v930 = vpop.f32.mrb[0].mxu0
  %v931 = vadd.f32 0.0, %v930
  %v932 = vpop.f32.mrb[0].mxu0
  %v933 = vpop.f32.mrb[0].mxu0
  %v934 = vadd.f32 0.0, %v933
  %v935 = vpop.f32.mrb[0].mxu0
  %936 = vmatprep.mubr.bf16.mxu0 0
  %937 = vmatmul.mubr.bf16.gmra.mrb[0].mxu0 %v887
  %v938 = vpop.f32.mrb[0].mxu0
  %v939 = vadd.f32 0.0, %v938
  %v940 = vpop.f32.mrb[0].mxu0
  %v941 = vpop.f32.mrb[0].mxu0
  %v942 = vadd.f32 0.0, %v941
  %v943 = vpop.f32.mrb[0].mxu0
  %944 = vmatprep.mubr.bf16.mxu0 0
  %945 = vmatmul.mubr.bf16.gmra.mrb[0].mxu0 %v890
  %v946 = vpop.f32.mrb[0].mxu0
  %v947 = vadd.f32 0.0, %v946
  %v948 = vpop.f32.mrb[0].mxu0
  %v949 = vpop.f32.mrb[0].mxu0
  %v950 = vpop.f32.mrb[0].mxu0
  %951 = vdwg.mxu0
  %952 = vrot.lane.b32.xlu0 %v931, 9
  %v953 = vpop.permute.xlu0 %952
  %v954 = vmul.f32 %v953, %v144
  %v955 = vadd.f32 %v939, %v954
  %v957 = vrot.slane %v931, 4
  %959 = vrot.lane.b32.xlu0 %v957, 8
  %v960 = vpop.permute.xlu0 %959
  %v961 = vmul.f32 %v960, %v134
  %v962 = vadd.f32 %v955, %v961
  %963 = vrot.lane.b32.xlu0 %v934, 7
  %v964 = vpop.permute.xlu0 %963
  %v965 = vmul.f32 %v964, %v145
  %v966 = vadd.f32 %v962, %v965
  %v968 = vrot.slane %v934, 4
  %970 = vrot.lane.b32.xlu0 %v968, 1
  %v971 = vpop.permute.xlu0 %970
  %v972 = vmul.f32 %v971, %v140
  %v973 = vadd.f32 %v966, %v972
  %v975 = vrot.slane %v939, 4
  %977 = vrot.lane.b32.xlu0 %v975, 127
  %v978 = vpop.permute.xlu0 %977
  %v979 = vmul.f32 %v978, %v143
  %v980 = vadd.f32 %v973, %v979
  %981 = vrot.lane.b32.xlu0 %v942, 121
  %v982 = vpop.permute.xlu0 %981
  %v983 = vmul.f32 %v982, %v146
  %v984 = vadd.f32 %v980, %v983
  %v986 = vrot.slane %v942, 4
  %988 = vrot.lane.b32.xlu0 %v986, 120
  %v989 = vpop.permute.xlu0 %988
  %v990 = vmul.f32 %v989, %v137
  %v991 = vadd.f32 %v984, %v990
  %992 = vrot.lane.b32.xlu0 %v947, 119
  %v993 = vpop.permute.xlu0 %992
  %v994 = vmul.f32 %v993, %v147
  %v995 = vadd.f32 %v991, %v994
  %v997 = vrot.slane %v995, 4
  %v999 = vsel %vm744, %v847, %v997
  %v1000 = vadd.f32 %v699, %v511
  %v1001 = vadd.f32 %v999, %v514
  %v1002 = vpack.c.bf16 %v1001, %v1000
  %v1003 = vld [vmem:[%s2] sm:$0xf]
  %v1004 = vld [vmem:[%s2 + $0x4] sm:$0xf]
  %v1005 = vld [vmem:[%s2 + $0x8] sm:$0xf]
  %v1006 = vld [vmem:[%s2 + $0xc] sm:$0xf]
  %v1007 = vld [vmem:[%s2 + $0x10] sm:$0xf]
  %v1008 = vld [vmem:[%s2 + $0x14] sm:$0xf]
  %v1009 = vld [vmem:[%s2 + $0x18] sm:$0xf]
  %v1010 = vld [vmem:[%s2 + $0x1c] sm:$0xf]
  %v1011 = vld [vmem:[%s2 + $0x20] sm:$0xf]
  %v1012 = vld [vmem:[%s2 + $0x24] sm:$0xf]
  %v1013 = vld [vmem:[%s2 + $0x28] sm:$0xf]
  %v1014 = vld [vmem:[%s2 + $0x2c] sm:$0xf]
  %v1015 = vld [vmem:[%s2 + $0x30] sm:$0xf]
  %v1016 = vld [vmem:[%s2 + $0x34] sm:$0xf]
  %v1017 = vld [vmem:[%s2 + $0x38] sm:$0xf]
  %v1018 = vld [vmem:[%s2 + $0x3c] sm:$0xf]
  %v1035 = vunpack.c.l.b16 %v1003
  %v1036 = vunpack.c.l.b16 %v1004
  %v1037 = vunpack.c.l.b16 %v1005
  %v1038 = vunpack.c.l.b16 %v1006
  %v1039 = vunpack.c.l.b16 %v1007
  %v1040 = vunpack.c.l.b16 %v1008
  %v1041 = vunpack.c.l.b16 %v1009
  %v1042 = vunpack.c.l.b16 %v1010
  %v1043 = vunpack.c.l.b16 %v1011
  %v1044 = vunpack.c.l.b16 %v1012
  %v1045 = vunpack.c.l.b16 %v1013
  %v1046 = vunpack.c.l.b16 %v1014
  %v1047 = vunpack.c.l.b16 %v1015
  %v1048 = vunpack.c.l.b16 %v1016
  %v1049 = vunpack.c.l.b16 %v1017
  %v1050 = vunpack.c.l.b16 %v1018
  %v1051 = vpack.c.b16 %v1036, %v1035
  %v1052 = vpack.c.b16 %v1038, %v1037
  %v1053 = vpack.c.b16 %v1040, %v1039
  %v1054 = vpack.c.b16 %v1042, %v1041
  %v1055 = vpack.c.b16 %v1044, %v1043
  %v1056 = vpack.c.b16 %v1046, %v1045
  %v1057 = vpack.c.b16 %v1048, %v1047
  %v1058 = vpack.c.b16 %v1050, %v1049
  %1067 = vmatprep.subr.bf16.mxu0 0
  %1068 = vmatpush1.bf16.msra.mxu0 %v1051
  %1069 = vmatprep.subr.bf16.mxu0 0
  %1070 = vmatpush1.bf16.msra.mxu0 %v1052
  %1071 = vmatprep.subr.bf16.mxu0 0
  %1072 = vmatpush1.bf16.msra.mxu0 %v1053
  %1073 = vmatprep.subr.bf16.mxu0 0
  %1074 = vmatpush1.bf16.msra.mxu0 %v1054
  %1075 = vmatprep.subr.bf16.mxu0 0
  %1076 = vmatpush1.bf16.msra.mxu0 %v1055
  %1077 = vmatprep.subr.bf16.mxu0 0
  %1078 = vmatpush1.bf16.msra.mxu0 %v1056
  %1079 = vmatprep.subr.bf16.mxu0 0
  %1080 = vmatpush1.bf16.msra.mxu0 %v1057
  %1081 = vmatprep.subr.bf16.mxu0 0
  %1082 = vmatpush1.bf16.msra.mxu0 %v1058
  %1083 = vmatprep.subr.bf16.mxu0 0
  %1084 = vmatpush1.bf16.msra.mxu0 0
  %1085 = vmatprep.subr.bf16.mxu0 0
  %1086 = vmatpush1.bf16.msra.mxu0 0
  %1087 = vmatprep.subr.bf16.mxu0 0
  %1088 = vmatpush1.bf16.msra.mxu0 0
  %1089 = vmatprep.subr.bf16.mxu0 0
  %1090 = vmatpush1.bf16.msra.mxu0 0
  %1091 = vmatprep.subr.bf16.mxu0 0
  %1092 = vmatpush1.bf16.msra.mxu0 0
  %1093 = vmatprep.subr.bf16.mxu0 0
  %1094 = vmatpush1.bf16.msra.mxu0 0
  %1095 = vmatprep.subr.bf16.mxu0 0
  %1096 = vmatpush1.bf16.msra.mxu0 0
  %1097 = vmatprep.subr.bf16.mxu0 0
  %1098 = vmatpush1.bf16.msra.mxu0 0
  %1099 = vmatprep.mubr.bf16.mxu0 0
  %1100 = vmatmul.mubr.bf16.gmra.mrb[0].mxu0 %v1002
  %v1101 = vpop.f32.mrb[0].mxu0
  %v1102 = vadd.f32 0.0, %v1101
  %v1103 = vpop.f32.mrb[0].mxu0
  %v1104 = vpop.f32.mrb[0].mxu0
  %v1105 = vadd.f32 0.0, %v1104
  %v1106 = vpop.f32.mrb[0].mxu0
  %1107 = vdwg.mxu0
  %s1108 = scalar_lea.vmem %s5, 16
  %v1109 = vld [vmem:[%s1108] sm:$0xff]
  %v1110 = vld [vmem:[%s1108 + $0x8] sm:$0xff]
  %1112 = vset.pattern.permute.xlu0 0
  %1113 = vperm.xlu0 %1112, %v1109
  %v1114 = vpop.permute.xlu0 %1113
  %1117 = vset.pattern.permute.xlu0 0
  %1118 = vperm.xlu0 %1117, %v1110
  %v1119 = vpop.permute.xlu0 %1118
  %v1121 = vmul.f32 %v1102, %v1114
  %v1122 = vmul.f32 %v1105, %v1119
  %s1123 = scalar_lea.vmem %s6, 16
  %v1124 = vld [vmem:[%s1123] sm:$0xff]
  %v1125 = vld [vmem:[%s1123 + $0x8] sm:$0xff]
  %1127 = vset.pattern.permute.xlu0 0
  %1128 = vperm.xlu0 %1127, %v1124
  %v1129 = vpop.permute.xlu0 %1128
  %1132 = vset.pattern.permute.xlu0 0
  %1133 = vperm.xlu0 %1132, %v1125
  %v1134 = vpop.permute.xlu0 %1133
  %v1136 = vadd.f32 %v1121, %v1129
  %v1137 = vadd.f32 %v1122, %v1134
  %v1138 = vmax.f32 %v1136, 0.0
  %v1139 = vmax.f32 %v1137, 0.0
  %s1140 = scalar_lea.vmem %s7, 36
  %v1141 = vld [vmem:[%s1140] sm:$0xf]
  %v1142 = vld [vmem:[%s1140 + $0x4] sm:$0xf]
  %v1143 = vld [vmem:[%s1140 + $0x8] sm:$0xf]
  %v1144 = vld [vmem:[%s1140 + $0xc] sm:$0xf]
  %v1145 = vld [vmem:[%s1140 + $0x10] sm:$0xf]
  %v1146 = vld [vmem:[%s1140 + $0x14] sm:$0xf]
  %v1147 = vld [vmem:[%s1140 + $0x18] sm:$0xf]
  %v1148 = vld [vmem:[%s1140 + $0x1c] sm:$0xf]
  %v1149 = vld [vmem:[%s1140 + $0x20] sm:$0xf]
  %v1150 = vpack.c.bf16 %v1139, %v1138
  %v1160 = vunpack.c.l.b16 %v1141
  %v1161 = vunpack.c.l.b16 %v1142
  %v1162 = vunpack.c.l.b16 %v1143
  %v1163 = vunpack.c.l.b16 %v1144
  %v1164 = vunpack.c.l.b16 %v1145
  %v1165 = vunpack.c.l.b16 %v1146
  %v1166 = vunpack.c.l.b16 %v1147
  %v1167 = vunpack.c.l.b16 %v1148
  %v1168 = vunpack.c.l.b16 %v1149
  %v1169 = vpack.c.b16 %v1161, %v1160
  %v1170 = vpack.c.b16 %v1163, %v1162
  %v1171 = vpack.c.b16 %v1165, %v1164
  %v1172 = vpack.c.b16 %v1167, %v1166
  %v1173 = vpack.c.b16 %v1168, %v1168
  %v1175 = vsel %vm580, %v1169, 0
  %v1178 = vsel %vm580, %v1170, 0
  %v1181 = vsel %vm580, %v1171, 0
  %v1184 = vsel %vm580, %v1172, 0
  %v1187 = vsel %vm580, %v1173, 0
  %1189 = vmatprep.subr.bf16.mxu0 0
  %1190 = vmatpush1.bf16.msra.mxu0 %v1150
  %1191 = vmatprep.subr.bf16.mxu0 0
  %1192 = vmatpush1.bf16.msra.mxu0 0
  %1193 = vmatprep.subr.bf16.mxu0 0
  %1194 = vmatpush1.bf16.msra.mxu0 0
  %1195 = vmatprep.subr.bf16.mxu0 0
  %1196 = vmatpush1.bf16.msra.mxu0 0
  %1197 = vmatprep.subr.bf16.mxu0 0
  %1198 = vmatpush1.bf16.msra.mxu0 0
  %1199 = vmatprep.subr.bf16.mxu0 0
  %1200 = vmatpush1.bf16.msra.mxu0 0
  %1201 = vmatprep.subr.bf16.mxu0 0
  %1202 = vmatpush1.bf16.msra.mxu0 0
  %1203 = vmatprep.subr.bf16.mxu0 0
  %1204 = vmatpush1.bf16.msra.mxu0 0
  %1205 = vmatprep.subr.bf16.mxu0 0
  %1206 = vmatpush1.bf16.msra.mxu0 0
  %1207 = vmatprep.subr.bf16.mxu0 0
  %1208 = vmatpush1.bf16.msra.mxu0 0
  %1209 = vmatprep.subr.bf16.mxu0 0
  %1210 = vmatpush1.bf16.msra.mxu0 0
  %1211 = vmatprep.subr.bf16.mxu0 0
  %1212 = vmatpush1.bf16.msra.mxu0 0
  %1213 = vmatprep.subr.bf16.mxu0 0
  %1214 = vmatpush1.bf16.msra.mxu0 0
  %1215 = vmatprep.subr.bf16.mxu0 0
  %1216 = vmatpush1.bf16.msra.mxu0 0
  %1217 = vmatprep.subr.bf16.mxu0 0
  %1218 = vmatpush1.bf16.msra.mxu0 0
  %1219 = vmatprep.subr.bf16.mxu0 0
  %1220 = vmatpush1.bf16.msra.mxu0 0
  %1221 = vmatprep.mubr.bf16.mxu0 0
  %1222 = vmatmul.mubr.bf16.gmra.mrb[0].mxu0 %v1175
  %v1223 = vpop.f32.mrb[0].mxu0
  %v1224 = vadd.f32 0.0, %v1223
  %v1225 = vpop.f32.mrb[0].mxu0
  %v1226 = vpop.f32.mrb[0].mxu0
  %v1227 = vadd.f32 0.0, %v1226
  %v1228 = vpop.f32.mrb[0].mxu0
  %1229 = vmatprep.mubr.bf16.mxu0 0
  %1230 = vmatmul.mubr.bf16.gmra.mrb[0].mxu0 %v1178
  %v1231 = vpop.f32.mrb[0].mxu0
  %v1232 = vadd.f32 0.0, %v1231
  %v1233 = vpop.f32.mrb[0].mxu0
  %v1234 = vpop.f32.mrb[0].mxu0
  %v1235 = vadd.f32 0.0, %v1234
  %v1236 = vpop.f32.mrb[0].mxu0
  %1237 = vmatprep.mubr.bf16.mxu0 0
  %1238 = vmatmul.mubr.bf16.gmra.mrb[0].mxu0 %v1181
  %v1239 = vpop.f32.mrb[0].mxu0
  %v1240 = vadd.f32 0.0, %v1239
  %v1241 = vpop.f32.mrb[0].mxu0
  %v1242 = vpop.f32.mrb[0].mxu0
  %v1243 = vadd.f32 0.0, %v1242
  %v1244 = vpop.f32.mrb[0].mxu0
  %1245 = vmatprep.mubr.bf16.mxu0 0
  %1246 = vmatmul.mubr.bf16.gmra.mrb[0].mxu0 %v1184
  %v1247 = vpop.f32.mrb[0].mxu0
  %v1248 = vadd.f32 0.0, %v1247
  %v1249 = vpop.f32.mrb[0].mxu0
  %v1250 = vpop.f32.mrb[0].mxu0
  %v1251 = vadd.f32 0.0, %v1250
  %v1252 = vpop.f32.mrb[0].mxu0
  %1253 = vmatprep.mubr.bf16.mxu0 0
  %1254 = vmatmul.mubr.bf16.gmra.mrb[0].mxu0 %v1187
  %v1255 = vpop.f32.mrb[0].mxu0
  %v1256 = vadd.f32 0.0, %v1255
  %v1257 = vpop.f32.mrb[0].mxu0
  %v1258 = vpop.f32.mrb[0].mxu0
  %v1259 = vpop.f32.mrb[0].mxu0
  %1260 = vdwg.mxu0
  %1262 = vrot.lane.b32.xlu0 %v1224, 101
  %v1263 = vpop.permute.xlu0 %1262
  %1265 = vrot.lane.b32.xlu0 %v1224, 5
  %v1266 = vpop.permute.xlu0 %1265
  %vm1268 = vcmask 39936
  %v1269 = vsel %vm1268, %v1263, %v1266
  %v1270 = vmul.f32 %v1269, %v163
  %v1271 = vadd.f32 %v1240, %v1270
  %1273 = vrot.lane.b32.xlu0 %v1227, 100
  %v1274 = vpop.permute.xlu0 %1273
  %1276 = vrot.lane.b32.xlu0 %v1227, 4
  %v1277 = vpop.permute.xlu0 %1276
  %v1279 = vsel %vm882, %v1274, %v1277
  %v1280 = vmul.f32 %v1279, %v153
  %v1281 = vadd.f32 %v1271, %v1280
  %1283 = vrot.lane.b32.xlu0 %v1232, 99
  %v1284 = vpop.permute.xlu0 %1283
  %1286 = vrot.lane.b32.xlu0 %v1232, 3
  %v1287 = vpop.permute.xlu0 %1286
  %vm1289 = vcmask 23552
  %v1290 = vsel %vm1289, %v1284, %v1287
  %v1291 = vmul.f32 %v1290, %v164
  %v1292 = vadd.f32 %v1281, %v1291
  %1294 = vrot.lane.b32.xlu0 %v1235, 97
  %v1295 = vpop.permute.xlu0 %1294
  %1297 = vrot.lane.b32.xlu0 %v1235, 1
  %v1298 = vpop.permute.xlu0 %1297
  %vm1300 = vcmask 7168
  %v1301 = vsel %vm1300, %v1295, %v1298
  %v1302 = vmul.f32 %v1301, %v159
  %v1303 = vadd.f32 %v1292, %v1302
  %1305 = vrot.lane.b32.xlu0 %v1243, 127
  %v1306 = vpop.permute.xlu0 %1305
  %1308 = vrot.lane.b32.xlu0 %v1243, 31
  %v1309 = vpop.permute.xlu0 %1308
  %vm1311 = vcmask 252928
  %v1312 = vsel %vm1311, %v1306, %v1309
  %v1313 = vmul.f32 %v1312, %v162
  %v1314 = vadd.f32 %v1303, %v1313
  %1316 = vrot.lane.b32.xlu0 %v1248, 125
  %v1317 = vpop.permute.xlu0 %1316
  %1319 = vrot.lane.b32.xlu0 %v1248, 29
  %v1320 = vpop.permute.xlu0 %1319
  %vm1322 = vcmask 236544
  %v1323 = vsel %vm1322, %v1317, %v1320
  %v1324 = vmul.f32 %v1323, %v165
  %v1325 = vadd.f32 %v1314, %v1324
  %1327 = vrot.lane.b32.xlu0 %v1251, 124
  %v1328 = vpop.permute.xlu0 %1327
  %1330 = vrot.lane.b32.xlu0 %v1251, 28
  %v1331 = vpop.permute.xlu0 %1330
  %vm1333 = vcmask 228352
  %v1334 = vsel %vm1333, %v1328, %v1331
  %v1335 = vmul.f32 %v1334, %v156
  %v1336 = vadd.f32 %v1325, %v1335
  %1338 = vrot.lane.b32.xlu0 %v1256, 123
  %v1339 = vpop.permute.xlu0 %1338
  %1341 = vrot.lane.b32.xlu0 %v1256, 27
  %v1342 = vpop.permute.xlu0 %1341
  %vm1344 = vcmask 220160
  %v1345 = vsel %vm1344, %v1339, %v1342
  %v1346 = vmul.f32 %v1345, %v166
  %v1347 = vadd.f32 %v1336, %v1346
  %s1348 = scalar_lea.vmem %s8, 8
  %v1349 = vld [vmem:[%s1348] sm:$0xff]
  %1351 = vset.pattern.permute.xlu0 0
  %1352 = vperm.xlu0 %1351, %v1349
  %v1353 = vpop.permute.xlu0 %1352
  %v1355 = vmul.f32 %v1347, %v1353
  %s1356 = scalar_lea.vmem %s9, 8
  %v1357 = vld [vmem:[%s1356] sm:$0xff]
  %1359 = vset.pattern.permute.xlu0 0
  %1360 = vperm.xlu0 %1359, %v1357
  %v1361 = vpop.permute.xlu0 %1360
  %v1363 = vadd.f32 %v1355, %v1361
  %v1364 = vmax.f32 %v1363, 0.0
  %s1365 = scalar_lea.vmem %s10, 20
  %v1366 = vld [vmem:[%s1365] sm:$0xf]
  %v1367 = vld [vmem:[%s1365 + $0x4] sm:$0xf]
  %v1368 = vld [vmem:[%s1365 + $0x8] sm:$0xf]
  %v1369 = vld [vmem:[%s1365 + $0xc] sm:$0xf]
  %v1370 = vld [vmem:[%s1365 + $0x10] sm:$0x3]
  %v1371 = vpack.c.bf16 %v1364, %v1364
  %v1377 = vunpack.c.l.b16 %v1366
  %v1378 = vunpack.c.l.b16 %v1367
  %v1379 = vunpack.c.l.b16 %v1368
  %v1380 = vunpack.c.l.b16 %v1369
  %v1381 = vunpack.c.l.b16 %v1370
  %v1382 = vpack.c.b16 %v1378, %v1377
  %v1383 = vpack.c.b16 %v1380, %v1379
  %v1384 = vpack.c.b16 %v1381, %v1381
  %v1386 = vsel %vm734, %v1382, 0
  %v1389 = vsel %vm734, %v1383, 0
  %v1392 = vsel %vm734, %v1384, 0
  %v1395 = vsel %vm744, %v1371, 0
  %1397 = vmatprep.subr.bf16.mxu0 0
  %1398 = vmatpush1.bf16.msra.mxu0 %v1395
  %1399 = vmatprep.subr.bf16.mxu0 0
  %1400 = vmatpush1.bf16.msra.mxu0 0
  %1401 = vmatprep.subr.bf16.mxu0 0
  %1402 = vmatpush1.bf16.msra.mxu0 0
  %1403 = vmatprep.subr.bf16.mxu0 0
  %1404 = vmatpush1.bf16.msra.mxu0 0
  %1405 = vmatprep.subr.bf16.mxu0 0
  %1406 = vmatpush1.bf16.msra.mxu0 0
  %1407 = vmatprep.subr.bf16.mxu0 0
  %1408 = vmatpush1.bf16.msra.mxu0 0
  %1409 = vmatprep.subr.bf16.mxu0 0
  %1410 = vmatpush1.bf16.msra.mxu0 0
  %1411 = vmatprep.subr.bf16.mxu0 0
  %1412 = vmatpush1.bf16.msra.mxu0 0
  %1413 = vmatprep.subr.bf16.mxu0 0
  %1414 = vmatpush1.bf16.msra.mxu0 0
  %1415 = vmatprep.subr.bf16.mxu0 0
  %1416 = vmatpush1.bf16.msra.mxu0 0
  %1417 = vmatprep.subr.bf16.mxu0 0
  %1418 = vmatpush1.bf16.msra.mxu0 0
  %1419 = vmatprep.subr.bf16.mxu0 0
  %1420 = vmatpush1.bf16.msra.mxu0 0
  %1421 = vmatprep.subr.bf16.mxu0 0
  %1422 = vmatpush1.bf16.msra.mxu0 0
  %1423 = vmatprep.subr.bf16.mxu0 0
  %1424 = vmatpush1.bf16.msra.mxu0 0
  %1425 = vmatprep.subr.bf16.mxu0 0
  %1426 = vmatpush1.bf16.msra.mxu0 0
  %1427 = vmatprep.subr.bf16.mxu0 0
  %1428 = vmatpush1.bf16.msra.mxu0 0
  %1429 = vmatprep.mubr.bf16.mxu0 0
  %1430 = vmatmul.mubr.bf16.gmra.mrb[0].mxu0 %v1386
  %v1431 = vpop.f32.mrb[0].mxu0
  %v1432 = vadd.f32 0.0, %v1431
  %v1433 = vpop.f32.mrb[0].mxu0
  %v1434 = vpop.f32.mrb[0].mxu0
  %v1435 = vadd.f32 0.0, %v1434
  %v1436 = vpop.f32.mrb[0].mxu0
  %1437 = vmatprep.mubr.bf16.mxu0 0
  %1438 = vmatmul.mubr.bf16.gmra.mrb[0].mxu0 %v1389
  %v1439 = vpop.f32.mrb[0].mxu0
  %v1440 = vadd.f32 0.0, %v1439
  %v1441 = vpop.f32.mrb[0].mxu0
  %v1442 = vpop.f32.mrb[0].mxu0
  %v1443 = vadd.f32 0.0, %v1442
  %v1444 = vpop.f32.mrb[0].mxu0
  %1445 = vmatprep.mubr.bf16.mxu0 0
  %1446 = vmatmul.mubr.bf16.gmra.mrb[0].mxu0 %v1392
  %v1447 = vpop.f32.mrb[0].mxu0
  %v1448 = vadd.f32 0.0, %v1447
  %v1449 = vpop.f32.mrb[0].mxu0
  %v1450 = vpop.f32.mrb[0].mxu0
  %v1451 = vpop.f32.mrb[0].mxu0
  %1452 = vdwg.mxu0
  %1454 = vrot.lane.b32.xlu0 %v1432, 101
  %v1455 = vpop.permute.xlu0 %1454
  %1457 = vrot.lane.b32.xlu0 %v1432, 5
  %v1458 = vpop.permute.xlu0 %1457
  %v1460 = vsel %vm1268, %v1455, %v1458
  %v1461 = vmul.f32 %v1460, %v163
  %v1462 = vadd.f32 %v1440, %v1461
  %1463 = vrot.lane.b32.xlu0 %v1432, 100
  %v1464 = vpop.permute.xlu0 %1463
  %1466 = vrot.lane.b32.xlu0 %v1432, 4
  %v1467 = vpop.permute.xlu0 %1466
  %v1469 = vsel %vm882, %v1464, %v1467
  %v1470 = vmul.f32 %v1469, %v153
  %v1472 = vrot.slane %v1470, 4
  %v1474 = vadd.f32 %v1462, %v1472
  %1476 = vrot.lane.b32.xlu0 %v1435, 99
  %v1477 = vpop.permute.xlu0 %1476
  %1479 = vrot.lane.b32.xlu0 %v1435, 3
  %v1480 = vpop.permute.xlu0 %1479
  %v1482 = vsel %vm1289, %v1477, %v1480
  %v1483 = vmul.f32 %v1482, %v164
  %v1484 = vadd.f32 %v1474, %v1483
  %1485 = vrot.lane.b32.xlu0 %v1435, 97
  %v1486 = vpop.permute.xlu0 %1485
  %1488 = vrot.lane.b32.xlu0 %v1435, 1
  %v1489 = vpop.permute.xlu0 %1488
  %v1491 = vsel %vm1300, %v1486, %v1489
  %v1492 = vmul.f32 %v1491, %v159
  %v1494 = vrot.slane %v1492, 4
  %v1496 = vadd.f32 %v1484, %v1494
  %1498 = vrot.lane.b32.xlu0 %v1440, 127
  %v1499 = vpop.permute.xlu0 %1498
  %1501 = vrot.lane.b32.xlu0 %v1440, 31
  %v1502 = vpop.permute.xlu0 %1501
  %v1504 = vsel %vm1311, %v1499, %v1502
  %v1505 = vmul.f32 %v1504, %v162
  %v1507 = vrot.slane %v1505, 4
  %v1509 = vadd.f32 %v1496, %v1507
  %1511 = vrot.lane.b32.xlu0 %v1443, 125
  %v1512 = vpop.permute.xlu0 %1511
  %1514 = vrot.lane.b32.xlu0 %v1443, 29
  %v1515 = vpop.permute.xlu0 %1514
  %v1517 = vsel %vm1322, %v1512, %v1515
  %v1518 = vmul.f32 %v1517, %v165
  %v1519 = vadd.f32 %v1509, %v1518
  %1520 = vrot.lane.b32.xlu0 %v1443, 124
  %v1521 = vpop.permute.xlu0 %1520
  %1523 = vrot.lane.b32.xlu0 %v1443, 28
  %v1524 = vpop.permute.xlu0 %1523
  %v1526 = vsel %vm1333, %v1521, %v1524
  %v1527 = vmul.f32 %v1526, %v156
  %v1529 = vrot.slane %v1527, 4
  %v1531 = vadd.f32 %v1519, %v1529
  %1533 = vrot.lane.b32.xlu0 %v1448, 123
  %v1534 = vpop.permute.xlu0 %1533
  %1536 = vrot.lane.b32.xlu0 %v1448, 27
  %v1537 = vpop.permute.xlu0 %1536
  %v1539 = vsel %vm1344, %v1534, %v1537
  %v1540 = vmul.f32 %v1539, %v166
  %v1541 = vadd.f32 %v1531, %v1540
  %s1542 = scalar_lea.vmem %s11, 4
  %v1543 = vld [vmem:[%s1542] sm:$0xf]
  %1545 = vset.pattern.permute.xlu0 0
  %1546 = vperm.xlu0 %1545, %v1543
  %v1547 = vpop.permute.xlu0 %1546
  %v1549 = vmul.f32 %v1541, %v1547
  %s1550 = scalar_lea.vmem %s12, 4
  %v1551 = vld [vmem:[%s1550] sm:$0xf]
  %1553 = vset.pattern.permute.xlu0 0
  %1554 = vperm.xlu0 %1553, %v1551
  %v1555 = vpop.permute.xlu0 %1554
  %v1557 = vadd.f32 %v1549, %v1555
  %v1558 = vmax.f32 %v1557, 0.0
  %s1559 = scalar_lea.vmem %s13, 20
  %v1560 = vld [vmem:[%s1559] sm:$0xf]
  %v1561 = vld [vmem:[%s1559 + $0x4] sm:$0xf]
  %v1562 = vld [vmem:[%s1559 + $0x8] sm:$0xf]
  %v1563 = vld [vmem:[%s1559 + $0xc] sm:$0xf]
  %v1564 = vld [vmem:[%s1559 + $0x10] sm:$0x3]
  %v1565 = vpack.c.bf16 %v1558, %v1558
  %v1571 = vunpack.c.l.b16 %v1560
  %v1572 = vunpack.c.l.b16 %v1561
  %v1573 = vunpack.c.l.b16 %v1562
  %v1574 = vunpack.c.l.b16 %v1563
  %v1575 = vunpack.c.l.b16 %v1564
  %v1576 = vpack.c.b16 %v1572, %v1571
  %v1577 = vpack.c.b16 %v1574, %v1573
  %v1578 = vpack.c.b16 %v1575, %v1575
  %v1580 = vsel %vm882, %v1576, 0
  %v1583 = vsel %vm882, %v1577, 0
  %v1586 = vsel %vm882, %v1578, 0
  %v1589 = vsel %vm892, %v1565, 0
  %1591 = vmatprep.subr.bf16.mxu0 0
  %1592 = vmatpush1.bf16.msra.mxu0 %v1589
  %1593 = vmatprep.subr.bf16.mxu0 0
  %1594 = vmatpush1.bf16.msra.mxu0 0
  %1595 = vmatprep.subr.bf16.mxu0 0
  %1596 = vmatpush1.bf16.msra.mxu0 0
  %1597 = vmatprep.subr.bf16.mxu0 0
  %1598 = vmatpush1.bf16.msra.mxu0 0
  %1599 = vmatprep.subr.bf16.mxu0 0
  %1600 = vmatpush1.bf16.msra.mxu0 0
  %1601 = vmatprep.subr.bf16.mxu0 0
  %1602 = vmatpush1.bf16.msra.mxu0 0
  %1603 = vmatprep.subr.bf16.mxu0 0
  %1604 = vmatpush1.bf16.msra.mxu0 0
  %1605 = vmatprep.subr.bf16.mxu0 0
  %1606 = vmatpush1.bf16.msra.mxu0 0
  %1607 = vmatprep.subr.bf16.mxu0 0
  %1608 = vmatpush1.bf16.msra.mxu0 0
  %1609 = vmatprep.subr.bf16.mxu0 0
  %1610 = vmatpush1.bf16.msra.mxu0 0
  %1611 = vmatprep.subr.bf16.mxu0 0
  %1612 = vmatpush1.bf16.msra.mxu0 0
  %1613 = vmatprep.subr.bf16.mxu0 0
  %1614 = vmatpush1.bf16.msra.mxu0 0
  %1615 = vmatprep.subr.bf16.mxu0 0
  %1616 = vmatpush1.bf16.msra.mxu0 0
  %1617 = vmatprep.subr.bf16.mxu0 0
  %1618 = vmatpush1.bf16.msra.mxu0 0
  %1619 = vmatprep.subr.bf16.mxu0 0
  %1620 = vmatpush1.bf16.msra.mxu0 0
  %1621 = vmatprep.subr.bf16.mxu0 0
  %1622 = vmatpush1.bf16.msra.mxu0 0
  %1623 = vmatprep.mubr.bf16.mxu0 0
  %1624 = vmatmul.mubr.bf16.gmra.mrb[0].mxu0 %v1580
  %v1625 = vpop.f32.mrb[0].mxu0
  %v1626 = vadd.f32 0.0, %v1625
  %v1627 = vpop.f32.mrb[0].mxu0
  %v1628 = vpop.f32.mrb[0].mxu0
  %v1629 = vadd.f32 0.0, %v1628
  %v1630 = vpop.f32.mrb[0].mxu0
  %1631 = vmatprep.mubr.bf16.mxu0 0
  %1632 = vmatmul.mubr.bf16.gmra.mrb[0].mxu0 %v1583
  %v1633 = vpop.f32.mrb[0].mxu0
  %v1634 = vadd.f32 0.0, %v1633
  %v1635 = vpop.f32.mrb[0].mxu0
  %v1636 = vpop.f32.mrb[0].mxu0
  %v1637 = vadd.f32 0.0, %v1636
  %v1638 = vpop.f32.mrb[0].mxu0
  %1639 = vmatprep.mubr.bf16.mxu0 0
  %1640 = vmatmul.mubr.bf16.gmra.mrb[0].mxu0 %v1586
  %v1641 = vpop.f32.mrb[0].mxu0
  %v1642 = vadd.f32 0.0, %v1641
  %v1643 = vpop.f32.mrb[0].mxu0
  %v1644 = vpop.f32.mrb[0].mxu0
  %v1645 = vpop.f32.mrb[0].mxu0
  %1646 = vdwg.mxu0
  %1648 = vrot.lane.b32.xlu0 %v1626, 101
  %v1649 = vpop.permute.xlu0 %1648
  %1651 = vrot.lane.b32.xlu0 %v1626, 5
  %v1652 = vpop.permute.xlu0 %1651
  %v1654 = vsel %vm1268, %v1649, %v1652
  %v1655 = vmul.f32 %v1654, %v163
  %v1656 = vadd.f32 %v1634, %v1655
  %1657 = vrot.lane.b32.xlu0 %v1626, 100
  %v1658 = vpop.permute.xlu0 %1657
  %1660 = vrot.lane.b32.xlu0 %v1626, 4
  %v1661 = vpop.permute.xlu0 %1660
  %v1663 = vsel %vm882, %v1658, %v1661
  %v1664 = vmul.f32 %v1663, %v153
  %v1666 = vrot.slane %v1664, 4
  %v1668 = vadd.f32 %v1656, %v1666
  %1670 = vrot.lane.b32.xlu0 %v1629, 99
  %v1671 = vpop.permute.xlu0 %1670
  %1673 = vrot.lane.b32.xlu0 %v1629, 3
  %v1674 = vpop.permute.xlu0 %1673
  %v1676 = vsel %vm1289, %v1671, %v1674
  %v1677 = vmul.f32 %v1676, %v164
  %v1678 = vadd.f32 %v1668, %v1677
  %1679 = vrot.lane.b32.xlu0 %v1629, 97
  %v1680 = vpop.permute.xlu0 %1679
  %1682 = vrot.lane.b32.xlu0 %v1629, 1
  %v1683 = vpop.permute.xlu0 %1682
  %v1685 = vsel %vm1300, %v1680, %v1683
  %v1686 = vmul.f32 %v1685, %v159
  %v1688 = vrot.slane %v1686, 4
  %v1690 = vadd.f32 %v1678, %v1688
  %1692 = vrot.lane.b32.xlu0 %v1634, 127
  %v1693 = vpop.permute.xlu0 %1692
  %1695 = vrot.lane.b32.xlu0 %v1634, 31
  %v1696 = vpop.permute.xlu0 %1695
  %v1698 = vsel %vm1311, %v1693, %v1696
  %v1699 = vmul.f32 %v1698, %v162
  %v1701 = vrot.slane %v1699, 4
  %v1703 = vadd.f32 %v1690, %v1701
  %1705 = vrot.lane.b32.xlu0 %v1637, 125
  %v1706 = vpop.permute.xlu0 %1705
  %1708 = vrot.lane.b32.xlu0 %v1637, 29
  %v1709 = vpop.permute.xlu0 %1708
  %v1711 = vsel %vm1322, %v1706, %v1709
  %v1712 = vmul.f32 %v1711, %v165
  %v1713 = vadd.f32 %v1703, %v1712
  %1714 = vrot.lane.b32.xlu0 %v1637, 124
  %v1715 = vpop.permute.xlu0 %1714
  %1717 = vrot.lane.b32.xlu0 %v1637, 28
  %v1718 = vpop.permute.xlu0 %1717
  %v1720 = vsel %vm1333, %v1715, %v1718
  %v1721 = vmul.f32 %v1720, %v156
  %v1723 = vrot.slane %v1721, 4
  %v1725 = vadd.f32 %v1713, %v1723
  %1727 = vrot.lane.b32.xlu0 %v1642, 123
  %v1728 = vpop.permute.xlu0 %1727
  %1730 = vrot.lane.b32.xlu0 %v1642, 27
  %v1731 = vpop.permute.xlu0 %1730
  %v1733 = vsel %vm1344, %v1728, %v1731
  %v1734 = vmul.f32 %v1733, %v166
  %v1735 = vadd.f32 %v1725, %v1734
  %v1737 = vrot.slane %v1735, 4
  %v1739 = vsel %vm744, %v1541, %v1737
  %v1740 = vadd.f32 %v1347, %v1102
  %v1741 = vadd.f32 %v1739, %v1105
  %s1742 = scalar_lea.vmem %s5, 32
  %v1743 = vld [vmem:[%s1742] sm:$0xff]
  %v1744 = vld [vmem:[%s1742 + $0x8] sm:$0xff]
  %1746 = vset.pattern.permute.xlu0 0
  %1747 = vperm.xlu0 %1746, %v1743
  %v1748 = vpop.permute.xlu0 %1747
  %1751 = vset.pattern.permute.xlu0 0
  %1752 = vperm.xlu0 %1751, %v1744
  %v1753 = vpop.permute.xlu0 %1752
  %v1755 = vmul.f32 %v1740, %v1748
  %v1756 = vmul.f32 %v1741, %v1753
  %s1757 = scalar_lea.vmem %s6, 32
  %v1758 = vld [vmem:[%s1757] sm:$0xff]
  %v1759 = vld [vmem:[%s1757 + $0x8] sm:$0xff]
  %1761 = vset.pattern.permute.xlu0 0
  %1762 = vperm.xlu0 %1761, %v1758
  %v1763 = vpop.permute.xlu0 %1762
  %1766 = vset.pattern.permute.xlu0 0
  %1767 = vperm.xlu0 %1766, %v1759
  %v1768 = vpop.permute.xlu0 %1767
  %v1770 = vadd.f32 %v1755, %v1763
  %v1771 = vadd.f32 %v1756, %v1768
  %v1772 = vmax.f32 %v1770, 0.0
  %v1773 = vmax.f32 %v1771, 0.0
  %s1774 = scalar_lea.vmem %s7, 72
  %v1775 = vld [vmem:[%s1774] sm:$0xf]
  %v1776 = vld [vmem:[%s1774 + $0x4] sm:$0xf]
  %v1777 = vld [vmem:[%s1774 + $0x8] sm:$0xf]
  %v1778 = vld [vmem:[%s1774 + $0xc] sm:$0xf]
  %v1779 = vld [vmem:[%s1774 + $0x10] sm:$0xf]
  %v1780 = vld [vmem:[%s1774 + $0x14] sm:$0xf]
  %v1781 = vld [vmem:[%s1774 + $0x18] sm:$0xf]
  %v1782 = vld [vmem:[%s1774 + $0x1c] sm:$0xf]
  %v1783 = vld [vmem:[%s1774 + $0x20] sm:$0xf]
  %v1784 = vpack.c.bf16 %v1773, %v1772
  %v1794 = vunpack.c.l.b16 %v1775
  %v1795 = vunpack.c.l.b16 %v1776
  %v1796 = vunpack.c.l.b16 %v1777
  %v1797 = vunpack.c.l.b16 %v1778
  %v1798 = vunpack.c.l.b16 %v1779
  %v1799 = vunpack.c.l.b16 %v1780
  %v1800 = vunpack.c.l.b16 %v1781
  %v1801 = vunpack.c.l.b16 %v1782
  %v1802 = vunpack.c.l.b16 %v1783
  %v1803 = vpack.c.b16 %v1795, %v1794
  %v1804 = vpack.c.b16 %v1797, %v1796
  %v1805 = vpack.c.b16 %v1799, %v1798
  %v1806 = vpack.c.b16 %v1801, %v1800
  %v1807 = vpack.c.b16 %v1802, %v1802
  %v1809 = vsel %vm580, %v1803, 0
  %v1812 = vsel %vm580, %v1804, 0
  %v1815 = vsel %vm580, %v1805, 0
  %v1818 = vsel %vm580, %v1806, 0
  %v1821 = vsel %vm580, %v1807, 0
  %1823 = vmatprep.subr.bf16.mxu0 0
  %1824 = vmatpush1.bf16.msra.mxu0 %v1784
  %1825 = vmatprep.subr.bf16.mxu0 0
  %1826 = vmatpush1.bf16.msra.mxu0 0
  %1827 = vmatprep.subr.bf16.mxu0 0
  %1828 = vmatpush1.bf16.msra.mxu0 0
  %1829 = vmatprep.subr.bf16.mxu0 0
  %1830 = vmatpush1.bf16.msra.mxu0 0
  %1831 = vmatprep.subr.bf16.mxu0 0
  %1832 = vmatpush1.bf16.msra.mxu0 0
  %1833 = vmatprep.subr.bf16.mxu0 0
  %1834 = vmatpush1.bf16.msra.mxu0 0
  %1835 = vmatprep.subr.bf16.mxu0 0
  %1836 = vmatpush1.bf16.msra.mxu0 0
  %1837 = vmatprep.subr.bf16.mxu0 0
  %1838 = vmatpush1.bf16.msra.mxu0 0
  %1839 = vmatprep.subr.bf16.mxu0 0
  %1840 = vmatpush1.bf16.msra.mxu0 0
  %1841 = vmatprep.subr.bf16.mxu0 0
  %1842 = vmatpush1.bf16.msra.mxu0 0
  %1843 = vmatprep.subr.bf16.mxu0 0
  %1844 = vmatpush1.bf16.msra.mxu0 0
  %1845 = vmatprep.subr.bf16.mxu0 0
  %1846 = vmatpush1.bf16.msra.mxu0 0
  %1847 = vmatprep.subr.bf16.mxu0 0
  %1848 = vmatpush1.bf16.msra.mxu0 0
  %1849 = vmatprep.subr.bf16.mxu0 0
  %1850 = vmatpush1.bf16.msra.mxu0 0
  %1851 = vmatprep.subr.bf16.mxu0 0
  %1852 = vmatpush1.bf16.msra.mxu0 0
  %1853 = vmatprep.subr.bf16.mxu0 0
  %1854 = vmatpush1.bf16.msra.mxu0 0
  %1855 = vmatprep.mubr.bf16.mxu0 0
  %1856 = vmatmul.mubr.bf16.gmra.mrb[0].mxu0 %v1809
  %v1857 = vpop.f32.mrb[0].mxu0
  %v1858 = vadd.f32 0.0, %v1857
  %v1859 = vpop.f32.mrb[0].mxu0
  %v1860 = vpop.f32.mrb[0].mxu0
  %v1861 = vadd.f32 0.0, %v1860
  %v1862 = vpop.f32.mrb[0].mxu0
  %1863 = vmatprep.mubr.bf16.mxu0 0
  %1864 = vmatmul.mubr.bf16.gmra.mrb[0].mxu0 %v1812
  %v1865 = vpop.f32.mrb[0].mxu0
  %v1866 = vadd.f32 0.0, %v1865
  %v1867 = vpop.f32.mrb[0].mxu0
  %v1868 = vpop.f32.mrb[0].mxu0
  %v1869 = vadd.f32 0.0, %v1868
  %v1870 = vpop.f32.mrb[0].mxu0
  %1871 = vmatprep.mubr.bf16.mxu0 0
  %1872 = vmatmul.mubr.bf16.gmra.mrb[0].mxu0 %v1815
  %v1873 = vpop.f32.mrb[0].mxu0
  %v1874 = vadd.f32 0.0, %v1873
  %v1875 = vpop.f32.mrb[0].mxu0
  %v1876 = vpop.f32.mrb[0].mxu0
  %v1877 = vadd.f32 0.0, %v1876
  %v1878 = vpop.f32.mrb[0].mxu0
  %1879 = vmatprep.mubr.bf16.mxu0 0
  %1880 = vmatmul.mubr.bf16.gmra.mrb[0].mxu0 %v1818
  %v1881 = vpop.f32.mrb[0].mxu0
  %v1882 = vadd.f32 0.0, %v1881
  %v1883 = vpop.f32.mrb[0].mxu0
  %v1884 = vpop.f32.mrb[0].mxu0
  %v1885 = vadd.f32 0.0, %v1884
  %v1886 = vpop.f32.mrb[0].mxu0
  %1887 = vmatprep.mubr.bf16.mxu0 0
  %1888 = vmatmul.mubr.bf16.gmra.mrb[0].mxu0 %v1821
  %v1889 = vpop.f32.mrb[0].mxu0
  %v1890 = vadd.f32 0.0, %v1889
  %v1891 = vpop.f32.mrb[0].mxu0
  %v1892 = vpop.f32.mrb[0].mxu0
  %v1893 = vpop.f32.mrb[0].mxu0
  %1894 = vdwg.mxu0
  %1896 = vrot.lane.b32.xlu0 %v1858, 101
  %v1897 = vpop.permute.xlu0 %1896
  %1899 = vrot.lane.b32.xlu0 %v1858, 5
  %v1900 = vpop.permute.xlu0 %1899
  %v1902 = vsel %vm1268, %v1897, %v1900
  %v1903 = vmul.f32 %v1902, %v163
  %v1904 = vadd.f32 %v1874, %v1903
  %1906 = vrot.lane.b32.xlu0 %v1861, 100
  %v1907 = vpop.permute.xlu0 %1906
  %1909 = vrot.lane.b32.xlu0 %v1861, 4
  %v1910 = vpop.permute.xlu0 %1909
  %v1912 = vsel %vm882, %v1907, %v1910
  %v1913 = vmul.f32 %v1912, %v153
  %v1914 = vadd.f32 %v1904, %v1913
  %1916 = vrot.lane.b32.xlu0 %v1866, 99
  %v1917 = vpop.permute.xlu0 %1916
  %1919 = vrot.lane.b32.xlu0 %v1866, 3
  %v1920 = vpop.permute.xlu0 %1919
  %v1922 = vsel %vm1289, %v1917, %v1920
  %v1923 = vmul.f32 %v1922, %v164
  %v1924 = vadd.f32 %v1914, %v1923
  %1926 = vrot.lane.b32.xlu0 %v1869, 97
  %v1927 = vpop.permute.xlu0 %1926
  %1929 = vrot.lane.b32.xlu0 %v1869, 1
  %v1930 = vpop.permute.xlu0 %1929
  %v1932 = vsel %vm1300, %v1927, %v1930
  %v1933 = vmul.f32 %v1932, %v159
  %v1934 = vadd.f32 %v1924, %v1933
  %1936 = vrot.lane.b32.xlu0 %v1877, 127
  %v1937 = vpop.permute.xlu0 %1936
  %1939 = vrot.lane.b32.xlu0 %v1877, 31
  %v1940 = vpop.permute.xlu0 %1939
  %v1942 = vsel %vm1311, %v1937, %v1940
  %v1943 = vmul.f32 %v1942, %v162
  %v1944 = vadd.f32 %v1934, %v1943
  %1946 = vrot.lane.b32.xlu0 %v1882, 125
  %v1947 = vpop.permute.xlu0 %1946
  %1949 = vrot.lane.b32.xlu0 %v1882, 29
  %v1950 = vpop.permute.xlu0 %1949
  %v1952 = vsel %vm1322, %v1947, %v1950
  %v1953 = vmul.f32 %v1952, %v165
  %v1954 = vadd.f32 %v1944, %v1953
  %1956 = vrot.lane.b32.xlu0 %v1885, 124
  %v1957 = vpop.permute.xlu0 %1956
  %1959 = vrot.lane.b32.xlu0 %v1885, 28
  %v1960 = vpop.permute.xlu0 %1959
  %v1962 = vsel %vm1333, %v1957, %v1960
  %v1963 = vmul.f32 %v1962, %v156
  %v1964 = vadd.f32 %v1954, %v1963
  %1966 = vrot.lane.b32.xlu0 %v1890, 123
  %v1967 = vpop.permute.xlu0 %1966
  %1969 = vrot.lane.b32.xlu0 %v1890, 27
  %v1970 = vpop.permute.xlu0 %1969
  %v1972 = vsel %vm1344, %v1967, %v1970
  %v1973 = vmul.f32 %v1972, %v166
  %v1974 = vadd.f32 %v1964, %v1973
  %s1975 = scalar_lea.vmem %s8, 16
  %v1976 = vld [vmem:[%s1975] sm:$0xff]
  %1978 = vset.pattern.permute.xlu0 0
  %1979 = vperm.xlu0 %1978, %v1976
  %v1980 = vpop.permute.xlu0 %1979
  %v1982 = vmul.f32 %v1974, %v1980
  %s1983 = scalar_lea.vmem %s9, 16
  %v1984 = vld [vmem:[%s1983] sm:$0xff]
  %1986 = vset.pattern.permute.xlu0 0
  %1987 = vperm.xlu0 %1986, %v1984
  %v1988 = vpop.permute.xlu0 %1987
  %v1990 = vadd.f32 %v1982, %v1988
  %v1991 = vmax.f32 %v1990, 0.0
  %s1992 = scalar_lea.vmem %s10, 40
  %v1993 = vld [vmem:[%s1992] sm:$0xf]
  %v1994 = vld [vmem:[%s1992 + $0x4] sm:$0xf]
  %v1995 = vld [vmem:[%s1992 + $0x8] sm:$0xf]
  %v1996 = vld [vmem:[%s1992 + $0xc] sm:$0xf]
  %v1997 = vld [vmem:[%s1992 + $0x10] sm:$0x3]
  %v1998 = vpack.c.bf16 %v1991, %v1991
  %v2004 = vunpack.c.l.b16 %v1993
  %v2005 = vunpack.c.l.b16 %v1994
  %v2006 = vunpack.c.l.b16 %v1995
  %v2007 = vunpack.c.l.b16 %v1996
  %v2008 = vunpack.c.l.b16 %v1997
  %v2009 = vpack.c.b16 %v2005, %v2004
  %v2010 = vpack.c.b16 %v2007, %v2006
  %v2011 = vpack.c.b16 %v2008, %v2008
  %v2013 = vsel %vm734, %v2009, 0
  %v2016 = vsel %vm734, %v2010, 0
  %v2019 = vsel %vm734, %v2011, 0
  %v2022 = vsel %vm744, %v1998, 0
  %2024 = vmatprep.subr.bf16.mxu0 0
  %2025 = vmatpush1.bf16.msra.mxu0 %v2022
  %2026 = vmatprep.subr.bf16.mxu0 0
  %2027 = vmatpush1.bf16.msra.mxu0 0
  %2028 = vmatprep.subr.bf16.mxu0 0
  %2029 = vmatpush1.bf16.msra.mxu0 0
  %2030 = vmatprep.subr.bf16.mxu0 0
  %2031 = vmatpush1.bf16.msra.mxu0 0
  %2032 = vmatprep.subr.bf16.mxu0 0
  %2033 = vmatpush1.bf16.msra.mxu0 0
  %2034 = vmatprep.subr.bf16.mxu0 0
  %2035 = vmatpush1.bf16.msra.mxu0 0
  %2036 = vmatprep.subr.bf16.mxu0 0
  %2037 = vmatpush1.bf16.msra.mxu0 0
  %2038 = vmatprep.subr.bf16.mxu0 0
  %2039 = vmatpush1.bf16.msra.mxu0 0
  %2040 = vmatprep.subr.bf16.mxu0 0
  %2041 = vmatpush1.bf16.msra.mxu0 0
  %2042 = vmatprep.subr.bf16.mxu0 0
  %2043 = vmatpush1.bf16.msra.mxu0 0
  %2044 = vmatprep.subr.bf16.mxu0 0
  %2045 = vmatpush1.bf16.msra.mxu0 0
  %2046 = vmatprep.subr.bf16.mxu0 0
  %2047 = vmatpush1.bf16.msra.mxu0 0
  %2048 = vmatprep.subr.bf16.mxu0 0
  %2049 = vmatpush1.bf16.msra.mxu0 0
  %2050 = vmatprep.subr.bf16.mxu0 0
  %2051 = vmatpush1.bf16.msra.mxu0 0
  %2052 = vmatprep.subr.bf16.mxu0 0
  %2053 = vmatpush1.bf16.msra.mxu0 0
  %2054 = vmatprep.subr.bf16.mxu0 0
  %2055 = vmatpush1.bf16.msra.mxu0 0
  %2056 = vmatprep.mubr.bf16.mxu0 0
  %2057 = vmatmul.mubr.bf16.gmra.mrb[0].mxu0 %v2013
  %v2058 = vpop.f32.mrb[0].mxu0
  %v2059 = vadd.f32 0.0, %v2058
  %v2060 = vpop.f32.mrb[0].mxu0
  %v2061 = vpop.f32.mrb[0].mxu0
  %v2062 = vadd.f32 0.0, %v2061
  %v2063 = vpop.f32.mrb[0].mxu0
  %2064 = vmatprep.mubr.bf16.mxu0 0
  %2065 = vmatmul.mubr.bf16.gmra.mrb[0].mxu0 %v2016
  %v2066 = vpop.f32.mrb[0].mxu0
  %v2067 = vadd.f32 0.0, %v2066
  %v2068 = vpop.f32.mrb[0].mxu0
  %v2069 = vpop.f32.mrb[0].mxu0
  %v2070 = vadd.f32 0.0, %v2069
  %v2071 = vpop.f32.mrb[0].mxu0
  %2072 = vmatprep.mubr.bf16.mxu0 0
  %2073 = vmatmul.mubr.bf16.gmra.mrb[0].mxu0 %v2019
  %v2074 = vpop.f32.mrb[0].mxu0
  %v2075 = vadd.f32 0.0, %v2074
  %v2076 = vpop.f32.mrb[0].mxu0
  %v2077 = vpop.f32.mrb[0].mxu0
  %v2078 = vpop.f32.mrb[0].mxu0
  %2079 = vdwg.mxu0
  %2081 = vrot.lane.b32.xlu0 %v2059, 101
  %v2082 = vpop.permute.xlu0 %2081
  %2084 = vrot.lane.b32.xlu0 %v2059, 5
  %v2085 = vpop.permute.xlu0 %2084
  %v2087 = vsel %vm1268, %v2082, %v2085
  %v2088 = vmul.f32 %v2087, %v163
  %v2089 = vadd.f32 %v2067, %v2088
  %2090 = vrot.lane.b32.xlu0 %v2059, 100
  %v2091 = vpop.permute.xlu0 %2090
  %2093 = vrot.lane.b32.xlu0 %v2059, 4
  %v2094 = vpop.permute.xlu0 %2093
  %v2096 = vsel %vm882, %v2091, %v2094
  %v2097 = vmul.f32 %v2096, %v153
  %v2099 = vrot.slane %v2097, 4
  %v2101 = vadd.f32 %v2089, %v2099
  %2103 = vrot.lane.b32.xlu0 %v2062, 99
  %v2104 = vpop.permute.xlu0 %2103
  %2106 = vrot.lane.b32.xlu0 %v2062, 3
  %v2107 = vpop.permute.xlu0 %2106
  %v2109 = vsel %vm1289, %v2104, %v2107
  %v2110 = vmul.f32 %v2109, %v164
  %v2111 = vadd.f32 %v2101, %v2110
  %2112 = vrot.lane.b32.xlu0 %v2062, 97
  %v2113 = vpop.permute.xlu0 %2112
  %2115 = vrot.lane.b32.xlu0 %v2062, 1
  %v2116 = vpop.permute.xlu0 %2115
  %v2118 = vsel %vm1300, %v2113, %v2116
  %v2119 = vmul.f32 %v2118, %v159
  %v2121 = vrot.slane %v2119, 4
  %v2123 = vadd.f32 %v2111, %v2121
  %2125 = vrot.lane.b32.xlu0 %v2067, 127
  %v2126 = vpop.permute.xlu0 %2125
  %2128 = vrot.lane.b32.xlu0 %v2067, 31
  %v2129 = vpop.permute.xlu0 %2128
  %v2131 = vsel %vm1311, %v2126, %v2129
  %v2132 = vmul.f32 %v2131, %v162
  %v2134 = vrot.slane %v2132, 4
  %v2136 = vadd.f32 %v2123, %v2134
  %2138 = vrot.lane.b32.xlu0 %v2070, 125
  %v2139 = vpop.permute.xlu0 %2138
  %2141 = vrot.lane.b32.xlu0 %v2070, 29
  %v2142 = vpop.permute.xlu0 %2141
  %v2144 = vsel %vm1322, %v2139, %v2142
  %v2145 = vmul.f32 %v2144, %v165
  %v2146 = vadd.f32 %v2136, %v2145
  %2147 = vrot.lane.b32.xlu0 %v2070, 124
  %v2148 = vpop.permute.xlu0 %2147
  %2150 = vrot.lane.b32.xlu0 %v2070, 28
  %v2151 = vpop.permute.xlu0 %2150
  %v2153 = vsel %vm1333, %v2148, %v2151
  %v2154 = vmul.f32 %v2153, %v156
  %v2156 = vrot.slane %v2154, 4
  %v2158 = vadd.f32 %v2146, %v2156
  %2160 = vrot.lane.b32.xlu0 %v2075, 123
  %v2161 = vpop.permute.xlu0 %2160
  %2163 = vrot.lane.b32.xlu0 %v2075, 27
  %v2164 = vpop.permute.xlu0 %2163
  %v2166 = vsel %vm1344, %v2161, %v2164
  %v2167 = vmul.f32 %v2166, %v166
  %v2168 = vadd.f32 %v2158, %v2167
  %s2169 = scalar_lea.vmem %s11, 8
  %v2170 = vld [vmem:[%s2169] sm:$0xf]
  %2172 = vset.pattern.permute.xlu0 0
  %2173 = vperm.xlu0 %2172, %v2170
  %v2174 = vpop.permute.xlu0 %2173
  %v2176 = vmul.f32 %v2168, %v2174
  %s2177 = scalar_lea.vmem %s12, 8
  %v2178 = vld [vmem:[%s2177] sm:$0xf]
  %2180 = vset.pattern.permute.xlu0 0
  %2181 = vperm.xlu0 %2180, %v2178
  %v2182 = vpop.permute.xlu0 %2181
  %v2184 = vadd.f32 %v2176, %v2182
  %v2185 = vmax.f32 %v2184, 0.0
  %s2186 = scalar_lea.vmem %s13, 40
  %v2187 = vld [vmem:[%s2186] sm:$0xf]
  %v2188 = vld [vmem:[%s2186 + $0x4] sm:$0xf]
  %v2189 = vld [vmem:[%s2186 + $0x8] sm:$0xf]
  %v2190 = vld [vmem:[%s2186 + $0xc] sm:$0xf]
  %v2191 = vld [vmem:[%s2186 + $0x10] sm:$0x3]
  %v2192 = vpack.c.bf16 %v2185, %v2185
  %v2198 = vunpack.c.l.b16 %v2187
  %v2199 = vunpack.c.l.b16 %v2188
  %v2200 = vunpack.c.l.b16 %v2189
  %v2201 = vunpack.c.l.b16 %v2190
  %v2202 = vunpack.c.l.b16 %v2191
  %v2203 = vpack.c.b16 %v2199, %v2198
  %v2204 = vpack.c.b16 %v2201, %v2200
  %v2205 = vpack.c.b16 %v2202, %v2202
  %v2207 = vsel %vm882, %v2203, 0
  %v2210 = vsel %vm882, %v2204, 0
  %v2213 = vsel %vm882, %v2205, 0
  %v2216 = vsel %vm892, %v2192, 0
  %2218 = vmatprep.subr.bf16.mxu0 0
  %2219 = vmatpush1.bf16.msra.mxu0 %v2216
  %2220 = vmatprep.subr.bf16.mxu0 0
  %2221 = vmatpush1.bf16.msra.mxu0 0
  %2222 = vmatprep.subr.bf16.mxu0 0
  %2223 = vmatpush1.bf16.msra.mxu0 0
  %2224 = vmatprep.subr.bf16.mxu0 0
  %2225 = vmatpush1.bf16.msra.mxu0 0
  %2226 = vmatprep.subr.bf16.mxu0 0
  %2227 = vmatpush1.bf16.msra.mxu0 0
  %2228 = vmatprep.subr.bf16.mxu0 0
  %2229 = vmatpush1.bf16.msra.mxu0 0
  %2230 = vmatprep.subr.bf16.mxu0 0
  %2231 = vmatpush1.bf16.msra.mxu0 0
  %2232 = vmatprep.subr.bf16.mxu0 0
  %2233 = vmatpush1.bf16.msra.mxu0 0
  %2234 = vmatprep.subr.bf16.mxu0 0
  %2235 = vmatpush1.bf16.msra.mxu0 0
  %2236 = vmatprep.subr.bf16.mxu0 0
  %2237 = vmatpush1.bf16.msra.mxu0 0
  %2238 = vmatprep.subr.bf16.mxu0 0
  %2239 = vmatpush1.bf16.msra.mxu0 0
  %2240 = vmatprep.subr.bf16.mxu0 0
  %2241 = vmatpush1.bf16.msra.mxu0 0
  %2242 = vmatprep.subr.bf16.mxu0 0
  %2243 = vmatpush1.bf16.msra.mxu0 0
  %2244 = vmatprep.subr.bf16.mxu0 0
  %2245 = vmatpush1.bf16.msra.mxu0 0
  %2246 = vmatprep.subr.bf16.mxu0 0
  %2247 = vmatpush1.bf16.msra.mxu0 0
  %2248 = vmatprep.subr.bf16.mxu0 0
  %2249 = vmatpush1.bf16.msra.mxu0 0
  %2250 = vmatprep.mubr.bf16.mxu0 0
  %2251 = vmatmul.mubr.bf16.gmra.mrb[0].mxu0 %v2207
  %v2252 = vpop.f32.mrb[0].mxu0
  %v2253 = vadd.f32 0.0, %v2252
  %v2254 = vpop.f32.mrb[0].mxu0
  %v2255 = vpop.f32.mrb[0].mxu0
  %v2256 = vadd.f32 0.0, %v2255
  %v2257 = vpop.f32.mrb[0].mxu0
  %2258 = vmatprep.mubr.bf16.mxu0 0
  %2259 = vmatmul.mubr.bf16.gmra.mrb[0].mxu0 %v2210
  %v2260 = vpop.f32.mrb[0].mxu0
  %v2261 = vadd.f32 0.0, %v2260
  %v2262 = vpop.f32.mrb[0].mxu0
  %v2263 = vpop.f32.mrb[0].mxu0
  %v2264 = vadd.f32 0.0, %v2263
  %v2265 = vpop.f32.mrb[0].mxu0
  %2266 = vmatprep.mubr.bf16.mxu0 0
  %2267 = vmatmul.mubr.bf16.gmra.mrb[0].mxu0 %v2213
  %v2268 = vpop.f32.mrb[0].mxu0
  %v2269 = vadd.f32 0.0, %v2268
  %v2270 = vpop.f32.mrb[0].mxu0
  %v2271 = vpop.f32.mrb[0].mxu0
  %v2272 = vpop.f32.mrb[0].mxu0
  %2273 = vdwg.mxu0
  %2275 = vrot.lane.b32.xlu0 %v2253, 101
  %v2276 = vpop.permute.xlu0 %2275
  %2278 = vrot.lane.b32.xlu0 %v2253, 5
  %v2279 = vpop.permute.xlu0 %2278
  %v2281 = vsel %vm1268, %v2276, %v2279
  %v2282 = vmul.f32 %v2281, %v163
  %v2283 = vadd.f32 %v2261, %v2282
  %2284 = vrot.lane.b32.xlu0 %v2253, 100
  %v2285 = vpop.permute.xlu0 %2284
  %2287 = vrot.lane.b32.xlu0 %v2253, 4
  %v2288 = vpop.permute.xlu0 %2287
  %v2290 = vsel %vm882, %v2285, %v2288
  %v2291 = vmul.f32 %v2290, %v153
  %v2293 = vrot.slane %v2291, 4
  %v2295 = vadd.f32 %v2283, %v2293
  %2297 = vrot.lane.b32.xlu0 %v2256, 99
  %v2298 = vpop.permute.xlu0 %2297
  %2300 = vrot.lane.b32.xlu0 %v2256, 3
  %v2301 = vpop.permute.xlu0 %2300
  %v2303 = vsel %vm1289, %v2298, %v2301
  %v2304 = vmul.f32 %v2303, %v164
  %v2305 = vadd.f32 %v2295, %v2304
  %2306 = vrot.lane.b32.xlu0 %v2256, 97
  %v2307 = vpop.permute.xlu0 %2306
  %2309 = vrot.lane.b32.xlu0 %v2256, 1
  %v2310 = vpop.permute.xlu0 %2309
  %v2312 = vsel %vm1300, %v2307, %v2310
  %v2313 = vmul.f32 %v2312, %v159
  %v2315 = vrot.slane %v2313, 4
  %v2317 = vadd.f32 %v2305, %v2315
  %2319 = vrot.lane.b32.xlu0 %v2261, 127
  %v2320 = vpop.permute.xlu0 %2319
  %2322 = vrot.lane.b32.xlu0 %v2261, 31
  %v2323 = vpop.permute.xlu0 %2322
  %v2325 = vsel %vm1311, %v2320, %v2323
  %v2326 = vmul.f32 %v2325, %v162
  %v2328 = vrot.slane %v2326, 4
  %v2330 = vadd.f32 %v2317, %v2328
  %2332 = vrot.lane.b32.xlu0 %v2264, 125
  %v2333 = vpop.permute.xlu0 %2332
  %2335 = vrot.lane.b32.xlu0 %v2264, 29
  %v2336 = vpop.permute.xlu0 %2335
  %v2338 = vsel %vm1322, %v2333, %v2336
  %v2339 = vmul.f32 %v2338, %v165
  %v2340 = vadd.f32 %v2330, %v2339
  %2341 = vrot.lane.b32.xlu0 %v2264, 124
  %v2342 = vpop.permute.xlu0 %2341
  %2344 = vrot.lane.b32.xlu0 %v2264, 28
  %v2345 = vpop.permute.xlu0 %2344
  %v2347 = vsel %vm1333, %v2342, %v2345
  %v2348 = vmul.f32 %v2347, %v156
  %v2350 = vrot.slane %v2348, 4
  %v2352 = vadd.f32 %v2340, %v2350
  %2354 = vrot.lane.b32.xlu0 %v2269, 123
  %v2355 = vpop.permute.xlu0 %2354
  %2357 = vrot.lane.b32.xlu0 %v2269, 27
  %v2358 = vpop.permute.xlu0 %2357
  %v2360 = vsel %vm1344, %v2355, %v2358
  %v2361 = vmul.f32 %v2360, %v166
  %v2362 = vadd.f32 %v2352, %v2361
  %v2364 = vrot.slane %v2362, 4
  %v2366 = vsel %vm744, %v2168, %v2364
  %v2367 = vadd.f32 %v1974, %v1740
  %v2368 = vadd.f32 %v2366, %v1741
  %s2369 = scalar_lea.vmem %s5, 48
  %v2370 = vld [vmem:[%s2369] sm:$0xff]
  %v2371 = vld [vmem:[%s2369 + $0x8] sm:$0xff]
  %2373 = vset.pattern.permute.xlu0 0
  %2374 = vperm.xlu0 %2373, %v2370
  %v2375 = vpop.permute.xlu0 %2374
  %2378 = vset.pattern.permute.xlu0 0
  %2379 = vperm.xlu0 %2378, %v2371
  %v2380 = vpop.permute.xlu0 %2379
  %v2382 = vmul.f32 %v2367, %v2375
  %v2383 = vmul.f32 %v2368, %v2380
  %s2384 = scalar_lea.vmem %s6, 48
  %v2385 = vld [vmem:[%s2384] sm:$0xff]
  %v2386 = vld [vmem:[%s2384 + $0x8] sm:$0xff]
  %2388 = vset.pattern.permute.xlu0 0
  %2389 = vperm.xlu0 %2388, %v2385
  %v2390 = vpop.permute.xlu0 %2389
  %2393 = vset.pattern.permute.xlu0 0
  %2394 = vperm.xlu0 %2393, %v2386
  %v2395 = vpop.permute.xlu0 %2394
  %v2397 = vadd.f32 %v2382, %v2390
  %v2398 = vadd.f32 %v2383, %v2395
  %v2399 = vmax.f32 %v2397, 0.0
  %v2400 = vmax.f32 %v2398, 0.0
  %s2401 = scalar_lea.vmem %s7, 108
  %v2402 = vld [vmem:[%s2401] sm:$0xf]
  %v2403 = vld [vmem:[%s2401 + $0x4] sm:$0xf]
  %v2404 = vld [vmem:[%s2401 + $0x8] sm:$0xf]
  %v2405 = vld [vmem:[%s2401 + $0xc] sm:$0xf]
  %v2406 = vld [vmem:[%s2401 + $0x10] sm:$0xf]
  %v2407 = vld [vmem:[%s2401 + $0x14] sm:$0xf]
  %v2408 = vld [vmem:[%s2401 + $0x18] sm:$0xf]
  %v2409 = vld [vmem:[%s2401 + $0x1c] sm:$0xf]
  %v2410 = vld [vmem:[%s2401 + $0x20] sm:$0xf]
  %v2411 = vpack.c.bf16 %v2400, %v2399
  %v2421 = vunpack.c.l.b16 %v2402
  %v2422 = vunpack.c.l.b16 %v2403
  %v2423 = vunpack.c.l.b16 %v2404
  %v2424 = vunpack.c.l.b16 %v2405
  %v2425 = vunpack.c.l.b16 %v2406
  %v2426 = vunpack.c.l.b16 %v2407
  %v2427 = vunpack.c.l.b16 %v2408
  %v2428 = vunpack.c.l.b16 %v2409
  %v2429 = vunpack.c.l.b16 %v2410
  %v2430 = vpack.c.b16 %v2422, %v2421
  %v2431 = vpack.c.b16 %v2424, %v2423
  %v2432 = vpack.c.b16 %v2426, %v2425
  %v2433 = vpack.c.b16 %v2428, %v2427
  %v2434 = vpack.c.b16 %v2429, %v2429
  %v2436 = vsel %vm580, %v2430, 0
  %v2439 = vsel %vm580, %v2431, 0
  %v2442 = vsel %vm580, %v2432, 0
  %v2445 = vsel %vm580, %v2433, 0
  %v2448 = vsel %vm580, %v2434, 0
  %2450 = vmatprep.subr.bf16.mxu0 0
  %2451 = vmatpush1.bf16.msra.mxu0 %v2411
  %2452 = vmatprep.subr.bf16.mxu0 0
  %2453 = vmatpush1.bf16.msra.mxu0 0
  %2454 = vmatprep.subr.bf16.mxu0 0
  %2455 = vmatpush1.bf16.msra.mxu0 0
  %2456 = vmatprep.subr.bf16.mxu0 0
  %2457 = vmatpush1.bf16.msra.mxu0 0
  %2458 = vmatprep.subr.bf16.mxu0 0
  %2459 = vmatpush1.bf16.msra.mxu0 0
  %2460 = vmatprep.subr.bf16.mxu0 0
  %2461 = vmatpush1.bf16.msra.mxu0 0
  %2462 = vmatprep.subr.bf16.mxu0 0
  %2463 = vmatpush1.bf16.msra.mxu0 0
  %2464 = vmatprep.subr.bf16.mxu0 0
  %2465 = vmatpush1.bf16.msra.mxu0 0
  %2466 = vmatprep.subr.bf16.mxu0 0
  %2467 = vmatpush1.bf16.msra.mxu0 0
  %2468 = vmatprep.subr.bf16.mxu0 0
  %2469 = vmatpush1.bf16.msra.mxu0 0
  %2470 = vmatprep.subr.bf16.mxu0 0
  %2471 = vmatpush1.bf16.msra.mxu0 0
  %2472 = vmatprep.subr.bf16.mxu0 0
  %2473 = vmatpush1.bf16.msra.mxu0 0
  %2474 = vmatprep.subr.bf16.mxu0 0
  %2475 = vmatpush1.bf16.msra.mxu0 0
  %2476 = vmatprep.subr.bf16.mxu0 0
  %2477 = vmatpush1.bf16.msra.mxu0 0
  %2478 = vmatprep.subr.bf16.mxu0 0
  %2479 = vmatpush1.bf16.msra.mxu0 0
  %2480 = vmatprep.subr.bf16.mxu0 0
  %2481 = vmatpush1.bf16.msra.mxu0 0
  %2482 = vmatprep.mubr.bf16.mxu0 0
  %2483 = vmatmul.mubr.bf16.gmra.mrb[0].mxu0 %v2436
  %v2484 = vpop.f32.mrb[0].mxu0
  %v2485 = vadd.f32 0.0, %v2484
  %v2486 = vpop.f32.mrb[0].mxu0
  %v2487 = vpop.f32.mrb[0].mxu0
  %v2488 = vadd.f32 0.0, %v2487
  %v2489 = vpop.f32.mrb[0].mxu0
  %2490 = vmatprep.mubr.bf16.mxu0 0
  %2491 = vmatmul.mubr.bf16.gmra.mrb[0].mxu0 %v2439
  %v2492 = vpop.f32.mrb[0].mxu0
  %v2493 = vadd.f32 0.0, %v2492
  %v2494 = vpop.f32.mrb[0].mxu0
  %v2495 = vpop.f32.mrb[0].mxu0
  %v2496 = vadd.f32 0.0, %v2495
  %v2497 = vpop.f32.mrb[0].mxu0
  %2498 = vmatprep.mubr.bf16.mxu0 0
  %2499 = vmatmul.mubr.bf16.gmra.mrb[0].mxu0 %v2442
  %v2500 = vpop.f32.mrb[0].mxu0
  %v2501 = vadd.f32 0.0, %v2500
  %v2502 = vpop.f32.mrb[0].mxu0
  %v2503 = vpop.f32.mrb[0].mxu0
  %v2504 = vadd.f32 0.0, %v2503
  %v2505 = vpop.f32.mrb[0].mxu0
  %2506 = vmatprep.mubr.bf16.mxu0 0
  %2507 = vmatmul.mubr.bf16.gmra.mrb[0].mxu0 %v2445
  %v2508 = vpop.f32.mrb[0].mxu0
  %v2509 = vadd.f32 0.0, %v2508
  %v2510 = vpop.f32.mrb[0].mxu0
  %v2511 = vpop.f32.mrb[0].mxu0
  %v2512 = vadd.f32 0.0, %v2511
  %v2513 = vpop.f32.mrb[0].mxu0
  %2514 = vmatprep.mubr.bf16.mxu0 0
  %2515 = vmatmul.mubr.bf16.gmra.mrb[0].mxu0 %v2448
  %v2516 = vpop.f32.mrb[0].mxu0
  %v2517 = vadd.f32 0.0, %v2516
  %v2518 = vpop.f32.mrb[0].mxu0
  %v2519 = vpop.f32.mrb[0].mxu0
  %v2520 = vpop.f32.mrb[0].mxu0
  %2521 = vdwg.mxu0
  %2523 = vrot.lane.b32.xlu0 %v2485, 101
  %v2524 = vpop.permute.xlu0 %2523
  %2526 = vrot.lane.b32.xlu0 %v2485, 5
  %v2527 = vpop.permute.xlu0 %2526
  %v2529 = vsel %vm1268, %v2524, %v2527
  %v2530 = vmul.f32 %v2529, %v163
  %v2531 = vadd.f32 %v2501, %v2530
  %2533 = vrot.lane.b32.xlu0 %v2488, 100
  %v2534 = vpop.permute.xlu0 %2533
  %2536 = vrot.lane.b32.xlu0 %v2488, 4
  %v2537 = vpop.permute.xlu0 %2536
  %v2539 = vsel %vm882, %v2534, %v2537
  %v2540 = vmul.f32 %v2539, %v153
  %v2541 = vadd.f32 %v2531, %v2540
  %2543 = vrot.lane.b32.xlu0 %v2493, 99
  %v2544 = vpop.permute.xlu0 %2543
  %2546 = vrot.lane.b32.xlu0 %v2493, 3
  %v2547 = vpop.permute.xlu0 %2546
  %v2549 = vsel %vm1289, %v2544, %v2547
  %v2550 = vmul.f32 %v2549, %v164
  %v2551 = vadd.f32 %v2541, %v2550
  %2553 = vrot.lane.b32.xlu0 %v2496, 97
  %v2554 = vpop.permute.xlu0 %2553
  %2556 = vrot.lane.b32.xlu0 %v2496, 1
  %v2557 = vpop.permute.xlu0 %2556
  %v2559 = vsel %vm1300, %v2554, %v2557
  %v2560 = vmul.f32 %v2559, %v159
  %v2561 = vadd.f32 %v2551, %v2560
  %2563 = vrot.lane.b32.xlu0 %v2504, 127
  %v2564 = vpop.permute.xlu0 %2563
  %2566 = vrot.lane.b32.xlu0 %v2504, 31
  %v2567 = vpop.permute.xlu0 %2566
  %v2569 = vsel %vm1311, %v2564, %v2567
  %v2570 = vmul.f32 %v2569, %v162
  %v2571 = vadd.f32 %v2561, %v2570
  %2573 = vrot.lane.b32.xlu0 %v2509, 125
  %v2574 = vpop.permute.xlu0 %2573
  %2576 = vrot.lane.b32.xlu0 %v2509, 29
  %v2577 = vpop.permute.xlu0 %2576
  %v2579 = vsel %vm1322, %v2574, %v2577
  %v2580 = vmul.f32 %v2579, %v165
  %v2581 = vadd.f32 %v2571, %v2580
  %2583 = vrot.lane.b32.xlu0 %v2512, 124
  %v2584 = vpop.permute.xlu0 %2583
  %2586 = vrot.lane.b32.xlu0 %v2512, 28
  %v2587 = vpop.permute.xlu0 %2586
  %v2589 = vsel %vm1333, %v2584, %v2587
  %v2590 = vmul.f32 %v2589, %v156
  %v2591 = vadd.f32 %v2581, %v2590
  %2593 = vrot.lane.b32.xlu0 %v2517, 123
  %v2594 = vpop.permute.xlu0 %2593
  %2596 = vrot.lane.b32.xlu0 %v2517, 27
  %v2597 = vpop.permute.xlu0 %2596
  %v2599 = vsel %vm1344, %v2594, %v2597
  %v2600 = vmul.f32 %v2599, %v166
  %v2601 = vadd.f32 %v2591, %v2600
  %s2602 = scalar_lea.vmem %s8, 24
  %v2603 = vld [vmem:[%s2602] sm:$0xff]
  %2605 = vset.pattern.permute.xlu0 0
  %2606 = vperm.xlu0 %2605, %v2603
  %v2607 = vpop.permute.xlu0 %2606
  %v2609 = vmul.f32 %v2601, %v2607
  %s2610 = scalar_lea.vmem %s9, 24
  %v2611 = vld [vmem:[%s2610] sm:$0xff]
  %2613 = vset.pattern.permute.xlu0 0
  %2614 = vperm.xlu0 %2613, %v2611
  %v2615 = vpop.permute.xlu0 %2614
  %v2617 = vadd.f32 %v2609, %v2615
  %v2618 = vmax.f32 %v2617, 0.0
  %s2619 = scalar_lea.vmem %s10, 60
  %v2620 = vld [vmem:[%s2619] sm:$0xf]
  %v2621 = vld [vmem:[%s2619 + $0x4] sm:$0xf]
  %v2622 = vld [vmem:[%s2619 + $0x8] sm:$0xf]
  %v2623 = vld [vmem:[%s2619 + $0xc] sm:$0xf]
  %v2624 = vld [vmem:[%s2619 + $0x10] sm:$0x3]
  %v2625 = vpack.c.bf16 %v2618, %v2618
  %v2631 = vunpack.c.l.b16 %v2620
  %v2632 = vunpack.c.l.b16 %v2621
  %v2633 = vunpack.c.l.b16 %v2622
  %v2634 = vunpack.c.l.b16 %v2623
  %v2635 = vunpack.c.l.b16 %v2624
  %v2636 = vpack.c.b16 %v2632, %v2631
  %v2637 = vpack.c.b16 %v2634, %v2633
  %v2638 = vpack.c.b16 %v2635, %v2635
  %v2640 = vsel %vm734, %v2636, 0
  %v2643 = vsel %vm734, %v2637, 0
  %v2646 = vsel %vm734, %v2638, 0
  %v2649 = vsel %vm744, %v2625, 0
  %2651 = vmatprep.subr.bf16.mxu0 0
  %2652 = vmatpush1.bf16.msra.mxu0 %v2649
  %2653 = vmatprep.subr.bf16.mxu0 0
  %2654 = vmatpush1.bf16.msra.mxu0 0
  %2655 = vmatprep.subr.bf16.mxu0 0
  %2656 = vmatpush1.bf16.msra.mxu0 0
  %2657 = vmatprep.subr.bf16.mxu0 0
  %2658 = vmatpush1.bf16.msra.mxu0 0
  %2659 = vmatprep.subr.bf16.mxu0 0
  %2660 = vmatpush1.bf16.msra.mxu0 0
  %2661 = vmatprep.subr.bf16.mxu0 0
  %2662 = vmatpush1.bf16.msra.mxu0 0
  %2663 = vmatprep.subr.bf16.mxu0 0
  %2664 = vmatpush1.bf16.msra.mxu0 0
  %2665 = vmatprep.subr.bf16.mxu0 0
  %2666 = vmatpush1.bf16.msra.mxu0 0
  %2667 = vmatprep.subr.bf16.mxu0 0
  %2668 = vmatpush1.bf16.msra.mxu0 0
  %2669 = vmatprep.subr.bf16.mxu0 0
  %2670 = vmatpush1.bf16.msra.mxu0 0
  %2671 = vmatprep.subr.bf16.mxu0 0
  %2672 = vmatpush1.bf16.msra.mxu0 0
  %2673 = vmatprep.subr.bf16.mxu0 0
  %2674 = vmatpush1.bf16.msra.mxu0 0
  %2675 = vmatprep.subr.bf16.mxu0 0
  %2676 = vmatpush1.bf16.msra.mxu0 0
  %2677 = vmatprep.subr.bf16.mxu0 0
  %2678 = vmatpush1.bf16.msra.mxu0 0
  %2679 = vmatprep.subr.bf16.mxu0 0
  %2680 = vmatpush1.bf16.msra.mxu0 0
  %2681 = vmatprep.subr.bf16.mxu0 0
  %2682 = vmatpush1.bf16.msra.mxu0 0
  %2683 = vmatprep.mubr.bf16.mxu0 0
  %2684 = vmatmul.mubr.bf16.gmra.mrb[0].mxu0 %v2640
  %v2685 = vpop.f32.mrb[0].mxu0
  %v2686 = vadd.f32 0.0, %v2685
  %v2687 = vpop.f32.mrb[0].mxu0
  %v2688 = vpop.f32.mrb[0].mxu0
  %v2689 = vadd.f32 0.0, %v2688
  %v2690 = vpop.f32.mrb[0].mxu0
  %2691 = vmatprep.mubr.bf16.mxu0 0
  %2692 = vmatmul.mubr.bf16.gmra.mrb[0].mxu0 %v2643
  %v2693 = vpop.f32.mrb[0].mxu0
  %v2694 = vadd.f32 0.0, %v2693
  %v2695 = vpop.f32.mrb[0].mxu0
  %v2696 = vpop.f32.mrb[0].mxu0
  %v2697 = vadd.f32 0.0, %v2696
  %v2698 = vpop.f32.mrb[0].mxu0
  %2699 = vmatprep.mubr.bf16.mxu0 0
  %2700 = vmatmul.mubr.bf16.gmra.mrb[0].mxu0 %v2646
  %v2701 = vpop.f32.mrb[0].mxu0
  %v2702 = vadd.f32 0.0, %v2701
  %v2703 = vpop.f32.mrb[0].mxu0
  %v2704 = vpop.f32.mrb[0].mxu0
  %v2705 = vpop.f32.mrb[0].mxu0
  %2706 = vdwg.mxu0
  %2708 = vrot.lane.b32.xlu0 %v2686, 101
  %v2709 = vpop.permute.xlu0 %2708
  %2711 = vrot.lane.b32.xlu0 %v2686, 5
  %v2712 = vpop.permute.xlu0 %2711
  %v2714 = vsel %vm1268, %v2709, %v2712
  %v2715 = vmul.f32 %v2714, %v163
  %v2716 = vadd.f32 %v2694, %v2715
  %2717 = vrot.lane.b32.xlu0 %v2686, 100
  %v2718 = vpop.permute.xlu0 %2717
  %2720 = vrot.lane.b32.xlu0 %v2686, 4
  %v2721 = vpop.permute.xlu0 %2720
  %v2723 = vsel %vm882, %v2718, %v2721
  %v2724 = vmul.f32 %v2723, %v153
  %v2726 = vrot.slane %v2724, 4
  %v2728 = vadd.f32 %v2716, %v2726
  %2730 = vrot.lane.b32.xlu0 %v2689, 99
  %v2731 = vpop.permute.xlu0 %2730
  %2733 = vrot.lane.b32.xlu0 %v2689, 3
  %v2734 = vpop.permute.xlu0 %2733
  %v2736 = vsel %vm1289, %v2731, %v2734
  %v2737 = vmul.f32 %v2736, %v164
  %v2738 = vadd.f32 %v2728, %v2737
  %2739 = vrot.lane.b32.xlu0 %v2689, 97
  %v2740 = vpop.permute.xlu0 %2739
  %2742 = vrot.lane.b32.xlu0 %v2689, 1
  %v2743 = vpop.permute.xlu0 %2742
  %v2745 = vsel %vm1300, %v2740, %v2743
  %v2746 = vmul.f32 %v2745, %v159
  %v2748 = vrot.slane %v2746, 4
  %v2750 = vadd.f32 %v2738, %v2748
  %2752 = vrot.lane.b32.xlu0 %v2694, 127
  %v2753 = vpop.permute.xlu0 %2752
  %2755 = vrot.lane.b32.xlu0 %v2694, 31
  %v2756 = vpop.permute.xlu0 %2755
  %v2758 = vsel %vm1311, %v2753, %v2756
  %v2759 = vmul.f32 %v2758, %v162
  %v2761 = vrot.slane %v2759, 4
  %v2763 = vadd.f32 %v2750, %v2761
  %2765 = vrot.lane.b32.xlu0 %v2697, 125
  %v2766 = vpop.permute.xlu0 %2765
  %2768 = vrot.lane.b32.xlu0 %v2697, 29
  %v2769 = vpop.permute.xlu0 %2768
  %v2771 = vsel %vm1322, %v2766, %v2769
  %v2772 = vmul.f32 %v2771, %v165
  %v2773 = vadd.f32 %v2763, %v2772
  %2774 = vrot.lane.b32.xlu0 %v2697, 124
  %v2775 = vpop.permute.xlu0 %2774
  %2777 = vrot.lane.b32.xlu0 %v2697, 28
  %v2778 = vpop.permute.xlu0 %2777
  %v2780 = vsel %vm1333, %v2775, %v2778
  %v2781 = vmul.f32 %v2780, %v156
  %v2783 = vrot.slane %v2781, 4
  %v2785 = vadd.f32 %v2773, %v2783
  %2787 = vrot.lane.b32.xlu0 %v2702, 123
  %v2788 = vpop.permute.xlu0 %2787
  %2790 = vrot.lane.b32.xlu0 %v2702, 27
  %v2791 = vpop.permute.xlu0 %2790
  %v2793 = vsel %vm1344, %v2788, %v2791
  %v2794 = vmul.f32 %v2793, %v166
  %v2795 = vadd.f32 %v2785, %v2794
  %s2796 = scalar_lea.vmem %s11, 12
  %v2797 = vld [vmem:[%s2796] sm:$0xf]
  %2799 = vset.pattern.permute.xlu0 0
  %2800 = vperm.xlu0 %2799, %v2797
  %v2801 = vpop.permute.xlu0 %2800
  %v2803 = vmul.f32 %v2795, %v2801
  %s2804 = scalar_lea.vmem %s12, 12
  %v2805 = vld [vmem:[%s2804] sm:$0xf]
  %2807 = vset.pattern.permute.xlu0 0
  %2808 = vperm.xlu0 %2807, %v2805
  %v2809 = vpop.permute.xlu0 %2808
  %v2811 = vadd.f32 %v2803, %v2809
  %v2812 = vmax.f32 %v2811, 0.0
  %s2813 = scalar_lea.vmem %s13, 60
  %v2814 = vld [vmem:[%s2813] sm:$0xf]
  %v2815 = vld [vmem:[%s2813 + $0x4] sm:$0xf]
  %v2816 = vld [vmem:[%s2813 + $0x8] sm:$0xf]
  %v2817 = vld [vmem:[%s2813 + $0xc] sm:$0xf]
  %v2818 = vld [vmem:[%s2813 + $0x10] sm:$0x3]
  %v2819 = vpack.c.bf16 %v2812, %v2812
  %v2825 = vunpack.c.l.b16 %v2814
  %v2826 = vunpack.c.l.b16 %v2815
  %v2827 = vunpack.c.l.b16 %v2816
  %v2828 = vunpack.c.l.b16 %v2817
  %v2829 = vunpack.c.l.b16 %v2818
  %v2830 = vpack.c.b16 %v2826, %v2825
  %v2831 = vpack.c.b16 %v2828, %v2827
  %v2832 = vpack.c.b16 %v2829, %v2829
  %v2834 = vsel %vm882, %v2830, 0
  %v2837 = vsel %vm882, %v2831, 0
  %v2840 = vsel %vm882, %v2832, 0
  %v2843 = vsel %vm892, %v2819, 0
  %2845 = vmatprep.subr.bf16.mxu0 0
  %2846 = vmatpush1.bf16.msra.mxu0 %v2843
  %2847 = vmatprep.subr.bf16.mxu0 0
  %2848 = vmatpush1.bf16.msra.mxu0 0
  %2849 = vmatprep.subr.bf16.mxu0 0
  %2850 = vmatpush1.bf16.msra.mxu0 0
  %2851 = vmatprep.subr.bf16.mxu0 0
  %2852 = vmatpush1.bf16.msra.mxu0 0
  %2853 = vmatprep.subr.bf16.mxu0 0
  %2854 = vmatpush1.bf16.msra.mxu0 0
  %2855 = vmatprep.subr.bf16.mxu0 0
  %2856 = vmatpush1.bf16.msra.mxu0 0
  %2857 = vmatprep.subr.bf16.mxu0 0
  %2858 = vmatpush1.bf16.msra.mxu0 0
  %2859 = vmatprep.subr.bf16.mxu0 0
  %2860 = vmatpush1.bf16.msra.mxu0 0
  %2861 = vmatprep.subr.bf16.mxu0 0
  %2862 = vmatpush1.bf16.msra.mxu0 0
  %2863 = vmatprep.subr.bf16.mxu0 0
  %2864 = vmatpush1.bf16.msra.mxu0 0
  %2865 = vmatprep.subr.bf16.mxu0 0
  %2866 = vmatpush1.bf16.msra.mxu0 0
  %2867 = vmatprep.subr.bf16.mxu0 0
  %2868 = vmatpush1.bf16.msra.mxu0 0
  %2869 = vmatprep.subr.bf16.mxu0 0
  %2870 = vmatpush1.bf16.msra.mxu0 0
  %2871 = vmatprep.subr.bf16.mxu0 0
  %2872 = vmatpush1.bf16.msra.mxu0 0
  %2873 = vmatprep.subr.bf16.mxu0 0
  %2874 = vmatpush1.bf16.msra.mxu0 0
  %2875 = vmatprep.subr.bf16.mxu0 0
  %2876 = vmatpush1.bf16.msra.mxu0 0
  %2877 = vmatprep.mubr.bf16.mxu0 0
  %2878 = vmatmul.mubr.bf16.gmra.mrb[0].mxu0 %v2834
  %v2879 = vpop.f32.mrb[0].mxu0
  %v2880 = vadd.f32 0.0, %v2879
  %v2881 = vpop.f32.mrb[0].mxu0
  %v2882 = vpop.f32.mrb[0].mxu0
  %v2883 = vadd.f32 0.0, %v2882
  %v2884 = vpop.f32.mrb[0].mxu0
  %2885 = vmatprep.mubr.bf16.mxu0 0
  %2886 = vmatmul.mubr.bf16.gmra.mrb[0].mxu0 %v2837
  %v2887 = vpop.f32.mrb[0].mxu0
  %v2888 = vadd.f32 0.0, %v2887
  %v2889 = vpop.f32.mrb[0].mxu0
  %v2890 = vpop.f32.mrb[0].mxu0
  %v2891 = vadd.f32 0.0, %v2890
  %v2892 = vpop.f32.mrb[0].mxu0
  %2893 = vmatprep.mubr.bf16.mxu0 0
  %2894 = vmatmul.mubr.bf16.gmra.mrb[0].mxu0 %v2840
  %v2895 = vpop.f32.mrb[0].mxu0
  %v2896 = vadd.f32 0.0, %v2895
  %v2897 = vpop.f32.mrb[0].mxu0
  %v2898 = vpop.f32.mrb[0].mxu0
  %v2899 = vpop.f32.mrb[0].mxu0
  %2900 = vdwg.mxu0
  %2902 = vrot.lane.b32.xlu0 %v2880, 101
  %v2903 = vpop.permute.xlu0 %2902
  %2905 = vrot.lane.b32.xlu0 %v2880, 5
  %v2906 = vpop.permute.xlu0 %2905
  %v2908 = vsel %vm1268, %v2903, %v2906
  %v2909 = vmul.f32 %v2908, %v163
  %v2910 = vadd.f32 %v2888, %v2909
  %2911 = vrot.lane.b32.xlu0 %v2880, 100
  %v2912 = vpop.permute.xlu0 %2911
  %2914 = vrot.lane.b32.xlu0 %v2880, 4
  %v2915 = vpop.permute.xlu0 %2914
  %v2917 = vsel %vm882, %v2912, %v2915
  %v2918 = vmul.f32 %v2917, %v153
  %v2920 = vrot.slane %v2918, 4
  %v2922 = vadd.f32 %v2910, %v2920
  %2924 = vrot.lane.b32.xlu0 %v2883, 99
  %v2925 = vpop.permute.xlu0 %2924
  %2927 = vrot.lane.b32.xlu0 %v2883, 3
  %v2928 = vpop.permute.xlu0 %2927
  %v2930 = vsel %vm1289, %v2925, %v2928
  %v2931 = vmul.f32 %v2930, %v164
  %v2932 = vadd.f32 %v2922, %v2931
  %2933 = vrot.lane.b32.xlu0 %v2883, 97
  %v2934 = vpop.permute.xlu0 %2933
  %2936 = vrot.lane.b32.xlu0 %v2883, 1
  %v2937 = vpop.permute.xlu0 %2936
  %v2939 = vsel %vm1300, %v2934, %v2937
  %v2940 = vmul.f32 %v2939, %v159
  %v2942 = vrot.slane %v2940, 4
  %v2944 = vadd.f32 %v2932, %v2942
  %2946 = vrot.lane.b32.xlu0 %v2888, 127
  %v2947 = vpop.permute.xlu0 %2946
  %2949 = vrot.lane.b32.xlu0 %v2888, 31
  %v2950 = vpop.permute.xlu0 %2949
  %v2952 = vsel %vm1311, %v2947, %v2950
  %v2953 = vmul.f32 %v2952, %v162
  %v2955 = vrot.slane %v2953, 4
  %v2957 = vadd.f32 %v2944, %v2955
  %2959 = vrot.lane.b32.xlu0 %v2891, 125
  %v2960 = vpop.permute.xlu0 %2959
  %2962 = vrot.lane.b32.xlu0 %v2891, 29
  %v2963 = vpop.permute.xlu0 %2962
  %v2965 = vsel %vm1322, %v2960, %v2963
  %v2966 = vmul.f32 %v2965, %v165
  %v2967 = vadd.f32 %v2957, %v2966
  %2968 = vrot.lane.b32.xlu0 %v2891, 124
  %v2969 = vpop.permute.xlu0 %2968
  %2971 = vrot.lane.b32.xlu0 %v2891, 28
  %v2972 = vpop.permute.xlu0 %2971
  %v2974 = vsel %vm1333, %v2969, %v2972
  %v2975 = vmul.f32 %v2974, %v156
  %v2977 = vrot.slane %v2975, 4
  %v2979 = vadd.f32 %v2967, %v2977
  %2981 = vrot.lane.b32.xlu0 %v2896, 123
  %v2982 = vpop.permute.xlu0 %2981
  %2984 = vrot.lane.b32.xlu0 %v2896, 27
  %v2985 = vpop.permute.xlu0 %2984
  %v2987 = vsel %vm1344, %v2982, %v2985
  %v2988 = vmul.f32 %v2987, %v166
  %v2989 = vadd.f32 %v2979, %v2988
  %v2991 = vrot.slane %v2989, 4
  %v2993 = vsel %vm744, %v2795, %v2991
  %v2994 = vadd.f32 %v2601, %v2367
  %v2995 = vadd.f32 %v2993, %v2368
  %v2996 = vpack.c.bf16 %v2995, %v2994
  %v2997 = vld [vmem:[%s4] sm:$0xf]
  %v2998 = vld [vmem:[%s4 + $0x4] sm:$0xf]
  %v2999 = vld [vmem:[%s4 + $0x8] sm:$0xf]
  %v3000 = vld [vmem:[%s4 + $0xc] sm:$0xf]
  %s3001 = scalar_lea.vmem %s5, 64
  %v3002 = vld [vmem:[%s3001] sm:$0xff]
  %v3003 = vld [vmem:[%s3001 + $0x8] sm:$0xff]
  %3005 = vset.pattern.permute.xlu0 0
  %3006 = vperm.xlu0 %3005, %v3002
  %v3007 = vpop.permute.xlu0 %3006
  %3010 = vset.pattern.permute.xlu0 0
  %3011 = vperm.xlu0 %3010, %v3003
  %v3012 = vpop.permute.xlu0 %3011
  %v3014 = vmul.f32 %v1000, %v3007
  %v3015 = vmul.f32 %v1001, %v3012
  %s3016 = scalar_lea.vmem %s6, 64
  %v3017 = vld [vmem:[%s3016] sm:$0xff]
  %v3018 = vld [vmem:[%s3016 + $0x8] sm:$0xff]
  %3020 = vset.pattern.permute.xlu0 0
  %3021 = vperm.xlu0 %3020, %v3017
  %v3022 = vpop.permute.xlu0 %3021
  %3025 = vset.pattern.permute.xlu0 0
  %3026 = vperm.xlu0 %3025, %v3018
  %v3027 = vpop.permute.xlu0 %3026
  %v3029 = vadd.f32 %v3014, %v3022
  %v3030 = vadd.f32 %v3015, %v3027
  %v3031 = vmax.f32 %v3029, 0.0
  %v3032 = vmax.f32 %v3030, 0.0
  %s3033 = scalar_lea.vmem %s7, 144
  %v3034 = vld [vmem:[%s3033] sm:$0xf]
  %v3035 = vld [vmem:[%s3033 + $0x4] sm:$0xf]
  %v3036 = vld [vmem:[%s3033 + $0x8] sm:$0xf]
  %v3037 = vld [vmem:[%s3033 + $0xc] sm:$0xf]
  %v3038 = vld [vmem:[%s3033 + $0x10] sm:$0xf]
  %v3039 = vld [vmem:[%s3033 + $0x14] sm:$0xf]
  %v3040 = vld [vmem:[%s3033 + $0x18] sm:$0xf]
  %v3041 = vld [vmem:[%s3033 + $0x1c] sm:$0xf]
  %v3042 = vld [vmem:[%s3033 + $0x20] sm:$0xf]
  %v3043 = vpack.c.bf16 %v3032, %v3031
  %v3053 = vunpack.c.l.b16 %v3034
  %v3054 = vunpack.c.l.b16 %v3035
  %v3055 = vunpack.c.l.b16 %v3036
  %v3056 = vunpack.c.l.b16 %v3037
  %v3057 = vunpack.c.l.b16 %v3038
  %v3058 = vunpack.c.l.b16 %v3039
  %v3059 = vunpack.c.l.b16 %v3040
  %v3060 = vunpack.c.l.b16 %v3041
  %v3061 = vunpack.c.l.b16 %v3042
  %v3062 = vpack.c.b16 %v3054, %v3053
  %v3063 = vpack.c.b16 %v3056, %v3055
  %v3064 = vpack.c.b16 %v3058, %v3057
  %v3065 = vpack.c.b16 %v3060, %v3059
  %v3066 = vpack.c.b16 %v3061, %v3061
  %v3068 = vsel %vm580, %v3062, 0
  %v3071 = vsel %vm580, %v3063, 0
  %v3074 = vsel %vm580, %v3064, 0
  %v3077 = vsel %vm580, %v3065, 0
  %v3080 = vsel %vm580, %v3066, 0
  %3082 = vmatprep.subr.bf16.mxu0 0
  %3083 = vmatpush1.bf16.msra.mxu0 %v3043
  %3084 = vmatprep.subr.bf16.mxu0 0
  %3085 = vmatpush1.bf16.msra.mxu0 0
  %3086 = vmatprep.subr.bf16.mxu0 0
  %3087 = vmatpush1.bf16.msra.mxu0 0
  %3088 = vmatprep.subr.bf16.mxu0 0
  %3089 = vmatpush1.bf16.msra.mxu0 0
  %3090 = vmatprep.subr.bf16.mxu0 0
  %3091 = vmatpush1.bf16.msra.mxu0 0
  %3092 = vmatprep.subr.bf16.mxu0 0
  %3093 = vmatpush1.bf16.msra.mxu0 0
  %3094 = vmatprep.subr.bf16.mxu0 0
  %3095 = vmatpush1.bf16.msra.mxu0 0
  %3096 = vmatprep.subr.bf16.mxu0 0
  %3097 = vmatpush1.bf16.msra.mxu0 0
  %3098 = vmatprep.subr.bf16.mxu0 0
  %3099 = vmatpush1.bf16.msra.mxu0 0
  %3100 = vmatprep.subr.bf16.mxu0 0
  %3101 = vmatpush1.bf16.msra.mxu0 0
  %3102 = vmatprep.subr.bf16.mxu0 0
  %3103 = vmatpush1.bf16.msra.mxu0 0
  %3104 = vmatprep.subr.bf16.mxu0 0
  %3105 = vmatpush1.bf16.msra.mxu0 0
  %3106 = vmatprep.subr.bf16.mxu0 0
  %3107 = vmatpush1.bf16.msra.mxu0 0
  %3108 = vmatprep.subr.bf16.mxu0 0
  %3109 = vmatpush1.bf16.msra.mxu0 0
  %3110 = vmatprep.subr.bf16.mxu0 0
  %3111 = vmatpush1.bf16.msra.mxu0 0
  %3112 = vmatprep.subr.bf16.mxu0 0
  %3113 = vmatpush1.bf16.msra.mxu0 0
  %3114 = vmatprep.mubr.bf16.mxu0 0
  %3115 = vmatmul.mubr.bf16.gmra.mrb[0].mxu0 %v3068
  %v3116 = vpop.f32.mrb[0].mxu0
  %v3117 = vadd.f32 0.0, %v3116
  %v3118 = vpop.f32.mrb[0].mxu0
  %v3119 = vpop.f32.mrb[0].mxu0
  %v3120 = vadd.f32 0.0, %v3119
  %v3121 = vpop.f32.mrb[0].mxu0
  %3122 = vmatprep.mubr.bf16.mxu0 0
  %3123 = vmatmul.mubr.bf16.gmra.mrb[0].mxu0 %v3071
  %v3124 = vpop.f32.mrb[0].mxu0
  %v3125 = vadd.f32 0.0, %v3124
  %v3126 = vpop.f32.mrb[0].mxu0
  %v3127 = vpop.f32.mrb[0].mxu0
  %v3128 = vadd.f32 0.0, %v3127
  %v3129 = vpop.f32.mrb[0].mxu0
  %3130 = vmatprep.mubr.bf16.mxu0 0
  %3131 = vmatmul.mubr.bf16.gmra.mrb[0].mxu0 %v3074
  %v3132 = vpop.f32.mrb[0].mxu0
  %v3133 = vadd.f32 0.0, %v3132
  %v3134 = vpop.f32.mrb[0].mxu0
  %v3135 = vpop.f32.mrb[0].mxu0
  %v3136 = vadd.f32 0.0, %v3135
  %v3137 = vpop.f32.mrb[0].mxu0
  %3138 = vmatprep.mubr.bf16.mxu0 0
  %3139 = vmatmul.mubr.bf16.gmra.mrb[0].mxu0 %v3077
  %v3140 = vpop.f32.mrb[0].mxu0
  %v3141 = vadd.f32 0.0, %v3140
  %v3142 = vpop.f32.mrb[0].mxu0
  %v3143 = vpop.f32.mrb[0].mxu0
  %v3144 = vadd.f32 0.0, %v3143
  %v3145 = vpop.f32.mrb[0].mxu0
  %3146 = vmatprep.mubr.bf16.mxu0 0
  %3147 = vmatmul.mubr.bf16.gmra.mrb[0].mxu0 %v3080
  %v3148 = vpop.f32.mrb[0].mxu0
  %v3149 = vadd.f32 0.0, %v3148
  %v3150 = vpop.f32.mrb[0].mxu0
  %v3151 = vpop.f32.mrb[0].mxu0
  %v3152 = vpop.f32.mrb[0].mxu0
  %3153 = vdwg.mxu0
  %3154 = vrot.lane.b32.xlu0 %v3117, 9
  %v3155 = vpop.permute.xlu0 %3154
  %v3156 = vmul.f32 %v3155, %v144
  %v3157 = vadd.f32 %v3133, %v3156
  %3158 = vrot.lane.b32.xlu0 %v3120, 8
  %v3159 = vpop.permute.xlu0 %3158
  %v3160 = vmul.f32 %v3159, %v134
  %v3161 = vadd.f32 %v3157, %v3160
  %3162 = vrot.lane.b32.xlu0 %v3125, 7
  %v3163 = vpop.permute.xlu0 %3162
  %v3164 = vmul.f32 %v3163, %v145
  %v3165 = vadd.f32 %v3161, %v3164
  %3166 = vrot.lane.b32.xlu0 %v3128, 1
  %v3167 = vpop.permute.xlu0 %3166
  %v3168 = vmul.f32 %v3167, %v140
  %v3169 = vadd.f32 %v3165, %v3168
  %3170 = vrot.lane.b32.xlu0 %v3136, 127
  %v3171 = vpop.permute.xlu0 %3170
  %v3172 = vmul.f32 %v3171, %v143
  %v3173 = vadd.f32 %v3169, %v3172
  %3174 = vrot.lane.b32.xlu0 %v3141, 121
  %v3175 = vpop.permute.xlu0 %3174
  %v3176 = vmul.f32 %v3175, %v146
  %v3177 = vadd.f32 %v3173, %v3176
  %3178 = vrot.lane.b32.xlu0 %v3144, 120
  %v3179 = vpop.permute.xlu0 %3178
  %v3180 = vmul.f32 %v3179, %v137
  %v3181 = vadd.f32 %v3177, %v3180
  %3182 = vrot.lane.b32.xlu0 %v3149, 119
  %v3183 = vpop.permute.xlu0 %3182
  %v3184 = vmul.f32 %v3183, %v147
  %v3185 = vadd.f32 %v3181, %v3184
  %s3186 = scalar_lea.vmem %s8, 32
  %v3187 = vld [vmem:[%s3186] sm:$0xff]
  %3189 = vset.pattern.permute.xlu0 0
  %3190 = vperm.xlu0 %3189, %v3187
  %v3191 = vpop.permute.xlu0 %3190
  %v3193 = vmul.f32 %v3185, %v3191
  %s3194 = scalar_lea.vmem %s9, 32
  %v3195 = vld [vmem:[%s3194] sm:$0xff]
  %3197 = vset.pattern.permute.xlu0 0
  %3198 = vperm.xlu0 %3197, %v3195
  %v3199 = vpop.permute.xlu0 %3198
  %v3201 = vadd.f32 %v3193, %v3199
  %v3202 = vmax.f32 %v3201, 0.0
  %s3203 = scalar_lea.vmem %s10, 80
  %v3204 = vld [vmem:[%s3203] sm:$0xf]
  %v3205 = vld [vmem:[%s3203 + $0x4] sm:$0xf]
  %v3206 = vld [vmem:[%s3203 + $0x8] sm:$0xf]
  %v3207 = vld [vmem:[%s3203 + $0xc] sm:$0xf]
  %v3208 = vld [vmem:[%s3203 + $0x10] sm:$0x3]
  %v3209 = vpack.c.bf16 %v3202, %v3202
  %v3215 = vunpack.c.l.b16 %v3204
  %v3216 = vunpack.c.l.b16 %v3205
  %v3217 = vunpack.c.l.b16 %v3206
  %v3218 = vunpack.c.l.b16 %v3207
  %v3219 = vunpack.c.l.b16 %v3208
  %v3220 = vpack.c.b16 %v3216, %v3215
  %v3221 = vpack.c.b16 %v3218, %v3217
  %v3222 = vpack.c.b16 %v3219, %v3219
  %v3224 = vsel %vm734, %v3220, 0
  %v3227 = vsel %vm734, %v3221, 0
  %v3230 = vsel %vm734, %v3222, 0
  %v3233 = vsel %vm744, %v3209, 0
  %3235 = vmatprep.subr.bf16.mxu0 0
  %3236 = vmatpush1.bf16.msra.mxu0 %v3233
  %3237 = vmatprep.subr.bf16.mxu0 0
  %3238 = vmatpush1.bf16.msra.mxu0 0
  %3239 = vmatprep.subr.bf16.mxu0 0
  %3240 = vmatpush1.bf16.msra.mxu0 0
  %3241 = vmatprep.subr.bf16.mxu0 0
  %3242 = vmatpush1.bf16.msra.mxu0 0
  %3243 = vmatprep.subr.bf16.mxu0 0
  %3244 = vmatpush1.bf16.msra.mxu0 0
  %3245 = vmatprep.subr.bf16.mxu0 0
  %3246 = vmatpush1.bf16.msra.mxu0 0
  %3247 = vmatprep.subr.bf16.mxu0 0
  %3248 = vmatpush1.bf16.msra.mxu0 0
  %3249 = vmatprep.subr.bf16.mxu0 0
  %3250 = vmatpush1.bf16.msra.mxu0 0
  %3251 = vmatprep.subr.bf16.mxu0 0
  %3252 = vmatpush1.bf16.msra.mxu0 0
  %3253 = vmatprep.subr.bf16.mxu0 0
  %3254 = vmatpush1.bf16.msra.mxu0 0
  %3255 = vmatprep.subr.bf16.mxu0 0
  %3256 = vmatpush1.bf16.msra.mxu0 0
  %3257 = vmatprep.subr.bf16.mxu0 0
  %3258 = vmatpush1.bf16.msra.mxu0 0
  %3259 = vmatprep.subr.bf16.mxu0 0
  %3260 = vmatpush1.bf16.msra.mxu0 0
  %3261 = vmatprep.subr.bf16.mxu0 0
  %3262 = vmatpush1.bf16.msra.mxu0 0
  %3263 = vmatprep.subr.bf16.mxu0 0
  %3264 = vmatpush1.bf16.msra.mxu0 0
  %3265 = vmatprep.subr.bf16.mxu0 0
  %3266 = vmatpush1.bf16.msra.mxu0 0
  %3267 = vmatprep.mubr.bf16.mxu0 0
  %3268 = vmatmul.mubr.bf16.gmra.mrb[0].mxu0 %v3224
  %v3269 = vpop.f32.mrb[0].mxu0
  %v3270 = vadd.f32 0.0, %v3269
  %v3271 = vpop.f32.mrb[0].mxu0
  %v3272 = vpop.f32.mrb[0].mxu0
  %v3273 = vadd.f32 0.0, %v3272
  %v3274 = vpop.f32.mrb[0].mxu0
  %3275 = vmatprep.mubr.bf16.mxu0 0
  %3276 = vmatmul.mubr.bf16.gmra.mrb[0].mxu0 %v3227
  %v3277 = vpop.f32.mrb[0].mxu0
  %v3278 = vadd.f32 0.0, %v3277
  %v3279 = vpop.f32.mrb[0].mxu0
  %v3280 = vpop.f32.mrb[0].mxu0
  %v3281 = vadd.f32 0.0, %v3280
  %v3282 = vpop.f32.mrb[0].mxu0
  %3283 = vmatprep.mubr.bf16.mxu0 0
  %3284 = vmatmul.mubr.bf16.gmra.mrb[0].mxu0 %v3230
  %v3285 = vpop.f32.mrb[0].mxu0
  %v3286 = vadd.f32 0.0, %v3285
  %v3287 = vpop.f32.mrb[0].mxu0
  %v3288 = vpop.f32.mrb[0].mxu0
  %v3289 = vpop.f32.mrb[0].mxu0
  %3290 = vdwg.mxu0
  %3291 = vrot.lane.b32.xlu0 %v3270, 9
  %v3292 = vpop.permute.xlu0 %3291
  %v3293 = vmul.f32 %v3292, %v144
  %v3294 = vadd.f32 %v3278, %v3293
  %v3296 = vrot.slane %v3270, 4
  %3298 = vrot.lane.b32.xlu0 %v3296, 8
  %v3299 = vpop.permute.xlu0 %3298
  %v3300 = vmul.f32 %v3299, %v134
  %v3301 = vadd.f32 %v3294, %v3300
  %3302 = vrot.lane.b32.xlu0 %v3273, 7
  %v3303 = vpop.permute.xlu0 %3302
  %v3304 = vmul.f32 %v3303, %v145
  %v3305 = vadd.f32 %v3301, %v3304
  %v3307 = vrot.slane %v3273, 4
  %3309 = vrot.lane.b32.xlu0 %v3307, 1
  %v3310 = vpop.permute.xlu0 %3309
  %v3311 = vmul.f32 %v3310, %v140
  %v3312 = vadd.f32 %v3305, %v3311
  %v3314 = vrot.slane %v3278, 4
  %3316 = vrot.lane.b32.xlu0 %v3314, 127
  %v3317 = vpop.permute.xlu0 %3316
  %v3318 = vmul.f32 %v3317, %v143
  %v3319 = vadd.f32 %v3312, %v3318
  %3320 = vrot.lane.b32.xlu0 %v3281, 121
  %v3321 = vpop.permute.xlu0 %3320
  %v3322 = vmul.f32 %v3321, %v146
  %v3323 = vadd.f32 %v3319, %v3322
  %v3325 = vrot.slane %v3281, 4
  %3327 = vrot.lane.b32.xlu0 %v3325, 120
  %v3328 = vpop.permute.xlu0 %3327
  %v3329 = vmul.f32 %v3328, %v137
  %v3330 = vadd.f32 %v3323, %v3329
  %3331 = vrot.lane.b32.xlu0 %v3286, 119
  %v3332 = vpop.permute.xlu0 %3331
  %v3333 = vmul.f32 %v3332, %v147
  %v3334 = vadd.f32 %v3330, %v3333
  %s3335 = scalar_lea.vmem %s11, 16
  %v3336 = vld [vmem:[%s3335] sm:$0xf]
  %3338 = vset.pattern.permute.xlu0 0
  %3339 = vperm.xlu0 %3338, %v3336
  %v3340 = vpop.permute.xlu0 %3339
  %v3342 = vmul.f32 %v3334, %v3340
  %s3343 = scalar_lea.vmem %s12, 16
  %v3344 = vld [vmem:[%s3343] sm:$0xf]
  %3346 = vset.pattern.permute.xlu0 0
  %3347 = vperm.xlu0 %3346, %v3344
  %v3348 = vpop.permute.xlu0 %3347
  %v3350 = vadd.f32 %v3342, %v3348
  %v3351 = vmax.f32 %v3350, 0.0
  %s3352 = scalar_lea.vmem %s13, 80
  %v3353 = vld [vmem:[%s3352] sm:$0xf]
  %v3354 = vld [vmem:[%s3352 + $0x4] sm:$0xf]
  %v3355 = vld [vmem:[%s3352 + $0x8] sm:$0xf]
  %v3356 = vld [vmem:[%s3352 + $0xc] sm:$0xf]
  %v3357 = vld [vmem:[%s3352 + $0x10] sm:$0x3]
  %v3358 = vpack.c.bf16 %v3351, %v3351
  %v3364 = vunpack.c.l.b16 %v3353
  %v3365 = vunpack.c.l.b16 %v3354
  %v3366 = vunpack.c.l.b16 %v3355
  %v3367 = vunpack.c.l.b16 %v3356
  %v3368 = vunpack.c.l.b16 %v3357
  %v3369 = vpack.c.b16 %v3365, %v3364
  %v3370 = vpack.c.b16 %v3367, %v3366
  %v3371 = vpack.c.b16 %v3368, %v3368
  %v3373 = vsel %vm882, %v3369, 0
  %v3376 = vsel %vm882, %v3370, 0
  %v3379 = vsel %vm882, %v3371, 0
  %v3382 = vsel %vm892, %v3358, 0
  %3384 = vmatprep.subr.bf16.mxu0 0
  %3385 = vmatpush1.bf16.msra.mxu0 %v3382
  %3386 = vmatprep.subr.bf16.mxu0 0
  %3387 = vmatpush1.bf16.msra.mxu0 0
  %3388 = vmatprep.subr.bf16.mxu0 0
  %3389 = vmatpush1.bf16.msra.mxu0 0
  %3390 = vmatprep.subr.bf16.mxu0 0
  %3391 = vmatpush1.bf16.msra.mxu0 0
  %3392 = vmatprep.subr.bf16.mxu0 0
  %3393 = vmatpush1.bf16.msra.mxu0 0
  %3394 = vmatprep.subr.bf16.mxu0 0
  %3395 = vmatpush1.bf16.msra.mxu0 0
  %3396 = vmatprep.subr.bf16.mxu0 0
  %3397 = vmatpush1.bf16.msra.mxu0 0
  %3398 = vmatprep.subr.bf16.mxu0 0
  %3399 = vmatpush1.bf16.msra.mxu0 0
  %3400 = vmatprep.subr.bf16.mxu0 0
  %3401 = vmatpush1.bf16.msra.mxu0 0
  %3402 = vmatprep.subr.bf16.mxu0 0
  %3403 = vmatpush1.bf16.msra.mxu0 0
  %3404 = vmatprep.subr.bf16.mxu0 0
  %3405 = vmatpush1.bf16.msra.mxu0 0
  %3406 = vmatprep.subr.bf16.mxu0 0
  %3407 = vmatpush1.bf16.msra.mxu0 0
  %3408 = vmatprep.subr.bf16.mxu0 0
  %3409 = vmatpush1.bf16.msra.mxu0 0
  %3410 = vmatprep.subr.bf16.mxu0 0
  %3411 = vmatpush1.bf16.msra.mxu0 0
  %3412 = vmatprep.subr.bf16.mxu0 0
  %3413 = vmatpush1.bf16.msra.mxu0 0
  %3414 = vmatprep.subr.bf16.mxu0 0
  %3415 = vmatpush1.bf16.msra.mxu0 0
  %3416 = vmatprep.mubr.bf16.mxu0 0
  %3417 = vmatmul.mubr.bf16.gmra.mrb[0].mxu0 %v3373
  %v3418 = vpop.f32.mrb[0].mxu0
  %v3419 = vadd.f32 0.0, %v3418
  %v3420 = vpop.f32.mrb[0].mxu0
  %v3421 = vpop.f32.mrb[0].mxu0
  %v3422 = vadd.f32 0.0, %v3421
  %v3423 = vpop.f32.mrb[0].mxu0
  %3424 = vmatprep.mubr.bf16.mxu0 0
  %3425 = vmatmul.mubr.bf16.gmra.mrb[0].mxu0 %v3376
  %v3426 = vpop.f32.mrb[0].mxu0
  %v3427 = vadd.f32 0.0, %v3426
  %v3428 = vpop.f32.mrb[0].mxu0
  %v3429 = vpop.f32.mrb[0].mxu0
  %v3430 = vadd.f32 0.0, %v3429
  %v3431 = vpop.f32.mrb[0].mxu0
  %3432 = vmatprep.mubr.bf16.mxu0 0
  %3433 = vmatmul.mubr.bf16.gmra.mrb[0].mxu0 %v3379
  %v3434 = vpop.f32.mrb[0].mxu0
  %v3435 = vadd.f32 0.0, %v3434
  %v3436 = vpop.f32.mrb[0].mxu0
  %v3437 = vpop.f32.mrb[0].mxu0
  %v3438 = vpop.f32.mrb[0].mxu0
  %3439 = vdwg.mxu0
  %3440 = vrot.lane.b32.xlu0 %v3419, 9
  %v3441 = vpop.permute.xlu0 %3440
  %v3442 = vmul.f32 %v3441, %v144
  %v3443 = vadd.f32 %v3427, %v3442
  %v3445 = vrot.slane %v3419, 4
  %3447 = vrot.lane.b32.xlu0 %v3445, 8
  %v3448 = vpop.permute.xlu0 %3447
  %v3449 = vmul.f32 %v3448, %v134
  %v3450 = vadd.f32 %v3443, %v3449
  %3451 = vrot.lane.b32.xlu0 %v3422, 7
  %v3452 = vpop.permute.xlu0 %3451
  %v3453 = vmul.f32 %v3452, %v145
  %v3454 = vadd.f32 %v3450, %v3453
  %v3456 = vrot.slane %v3422, 4
  %3458 = vrot.lane.b32.xlu0 %v3456, 1
  %v3459 = vpop.permute.xlu0 %3458
  %v3460 = vmul.f32 %v3459, %v140
  %v3461 = vadd.f32 %v3454, %v3460
  %v3463 = vrot.slane %v3427, 4
  %3465 = vrot.lane.b32.xlu0 %v3463, 127
  %v3466 = vpop.permute.xlu0 %3465
  %v3467 = vmul.f32 %v3466, %v143
  %v3468 = vadd.f32 %v3461, %v3467
  %3469 = vrot.lane.b32.xlu0 %v3430, 121
  %v3470 = vpop.permute.xlu0 %3469
  %v3471 = vmul.f32 %v3470, %v146
  %v3472 = vadd.f32 %v3468, %v3471
  %v3474 = vrot.slane %v3430, 4
  %3476 = vrot.lane.b32.xlu0 %v3474, 120
  %v3477 = vpop.permute.xlu0 %3476
  %v3478 = vmul.f32 %v3477, %v137
  %v3479 = vadd.f32 %v3472, %v3478
  %3480 = vrot.lane.b32.xlu0 %v3435, 119
  %v3481 = vpop.permute.xlu0 %3480
  %v3482 = vmul.f32 %v3481, %v147
  %v3483 = vadd.f32 %v3479, %v3482
  %v3485 = vrot.slane %v3483, 4
  %v3487 = vsel %vm744, %v3334, %v3485
  %v3488 = vadd.f32 %v3185, %v1000
  %v3489 = vadd.f32 %v3487, %v1001
  %v3494 = vunpack.c.l.b16 %v2997
  %v3495 = vunpack.c.l.b16 %v2998
  %v3496 = vunpack.c.l.b16 %v2999
  %v3497 = vunpack.c.l.b16 %v3000
  %v3498 = vpack.c.b16 %v3495, %v3494
  %v3499 = vpack.c.b16 %v3497, %v3496
  %vm3502 = vcmask 261120
  %v3504 = vsel %vm3502, %v2996, 0
  %3506 = vmatprep.subr.bf16.mxu0 0
  %3507 = vmatpush1.bf16.msra.mxu0 %v3498
  %3508 = vmatprep.subr.bf16.mxu0 0
  %3509 = vmatpush1.bf16.msra.mxu0 %v3499
  %3510 = vmatprep.subr.bf16.mxu0 0
  %3511 = vmatpush1.bf16.msra.mxu0 0
  %3512 = vmatprep.subr.bf16.mxu0 0
  %3513 = vmatpush1.bf16.msra.mxu0 0
  %3514 = vmatprep.subr.bf16.mxu0 0
  %3515 = vmatpush1.bf16.msra.mxu0 0
  %3516 = vmatprep.subr.bf16.mxu0 0
  %3517 = vmatpush1.bf16.msra.mxu0 0
  %3518 = vmatprep.subr.bf16.mxu0 0
  %3519 = vmatpush1.bf16.msra.mxu0 0
  %3520 = vmatprep.subr.bf16.mxu0 0
  %3521 = vmatpush1.bf16.msra.mxu0 0
  %3522 = vmatprep.subr.bf16.mxu0 0
  %3523 = vmatpush1.bf16.msra.mxu0 0
  %3524 = vmatprep.subr.bf16.mxu0 0
  %3525 = vmatpush1.bf16.msra.mxu0 0
  %3526 = vmatprep.subr.bf16.mxu0 0
  %3527 = vmatpush1.bf16.msra.mxu0 0
  %3528 = vmatprep.subr.bf16.mxu0 0
  %3529 = vmatpush1.bf16.msra.mxu0 0
  %3530 = vmatprep.subr.bf16.mxu0 0
  %3531 = vmatpush1.bf16.msra.mxu0 0
  %3532 = vmatprep.subr.bf16.mxu0 0
  %3533 = vmatpush1.bf16.msra.mxu0 0
  %3534 = vmatprep.subr.bf16.mxu0 0
  %3535 = vmatpush1.bf16.msra.mxu0 0
  %3536 = vmatprep.subr.bf16.mxu0 0
  %3537 = vmatpush1.bf16.msra.mxu0 0
  %3538 = vmatprep.mubr.bf16.mxu0 0
  %3539 = vmatmul.mubr.bf16.gmra.mrb[0].mxu0 %v3504
  %v3540 = vpop.f32.mrb[0].mxu0
  %v3541 = vadd.f32 %v3488, %v3540
  %v3542 = vpop.f32.mrb[0].mxu0
  %v3543 = vpop.f32.mrb[0].mxu0
  %v3544 = vadd.f32 %v3489, %v3543
  %v3545 = vpop.f32.mrb[0].mxu0
  %3546 = vdwg.mxu0
  %s3547 = scalar_lea.vmem %s5, 80
  %v3548 = vld [vmem:[%s3547] sm:$0xff]
  %v3549 = vld [vmem:[%s3547 + $0x8] sm:$0xff]
  %3551 = vset.pattern.permute.xlu0 0
  %3552 = vperm.xlu0 %3551, %v3548
  %v3553 = vpop.permute.xlu0 %3552
  %3556 = vset.pattern.permute.xlu0 0
  %3557 = vperm.xlu0 %3556, %v3549
  %v3558 = vpop.permute.xlu0 %3557
  %v3560 = vmul.f32 %v3541, %v3553
  %v3561 = vmul.f32 %v3544, %v3558
  %s3562 = scalar_lea.vmem %s6, 80
  %v3563 = vld [vmem:[%s3562] sm:$0xff]
  %v3564 = vld [vmem:[%s3562 + $0x8] sm:$0xff]
  %3566 = vset.pattern.permute.xlu0 0
  %3567 = vperm.xlu0 %3566, %v3563
  %v3568 = vpop.permute.xlu0 %3567
  %3571 = vset.pattern.permute.xlu0 0
  %3572 = vperm.xlu0 %3571, %v3564
  %v3573 = vpop.permute.xlu0 %3572
  %v3575 = vadd.f32 %v3560, %v3568
  %v3576 = vadd.f32 %v3561, %v3573
  %v3577 = vmax.f32 %v3575, 0.0
  %v3578 = vmax.f32 %v3576, 0.0
  %s3579 = scalar_lea.vmem %s7, 180
  %v3580 = vld [vmem:[%s3579] sm:$0xf]
  %v3581 = vld [vmem:[%s3579 + $0x4] sm:$0xf]
  %v3582 = vld [vmem:[%s3579 + $0x8] sm:$0xf]
  %v3583 = vld [vmem:[%s3579 + $0xc] sm:$0xf]
  %v3584 = vld [vmem:[%s3579 + $0x10] sm:$0xf]
  %v3585 = vld [vmem:[%s3579 + $0x14] sm:$0xf]
  %v3586 = vld [vmem:[%s3579 + $0x18] sm:$0xf]
  %v3587 = vld [vmem:[%s3579 + $0x1c] sm:$0xf]
  %v3588 = vld [vmem:[%s3579 + $0x20] sm:$0xf]
  %v3589 = vpack.c.bf16 %v3578, %v3577
  %v3599 = vunpack.c.l.b16 %v3580
  %v3600 = vunpack.c.l.b16 %v3581
  %v3601 = vunpack.c.l.b16 %v3582
  %v3602 = vunpack.c.l.b16 %v3583
  %v3603 = vunpack.c.l.b16 %v3584
  %v3604 = vunpack.c.l.b16 %v3585
  %v3605 = vunpack.c.l.b16 %v3586
  %v3606 = vunpack.c.l.b16 %v3587
  %v3607 = vunpack.c.l.b16 %v3588
  %v3608 = vpack.c.b16 %v3600, %v3599
  %v3609 = vpack.c.b16 %v3602, %v3601
  %v3610 = vpack.c.b16 %v3604, %v3603
  %v3611 = vpack.c.b16 %v3606, %v3605
  %v3612 = vpack.c.b16 %v3607, %v3607
  %v3614 = vsel %vm580, %v3608, 0
  %v3617 = vsel %vm580, %v3609, 0
  %v3620 = vsel %vm580, %v3610, 0
  %v3623 = vsel %vm580, %v3611, 0
  %v3626 = vsel %vm580, %v3612, 0
  %3628 = vmatprep.subr.bf16.mxu0 0
  %3629 = vmatpush1.bf16.msra.mxu0 %v3589
  %3630 = vmatprep.subr.bf16.mxu0 0
  %3631 = vmatpush1.bf16.msra.mxu0 0
  %3632 = vmatprep.subr.bf16.mxu0 0
  %3633 = vmatpush1.bf16.msra.mxu0 0
  %3634 = vmatprep.subr.bf16.mxu0 0
  %3635 = vmatpush1.bf16.msra.mxu0 0
  %3636 = vmatprep.subr.bf16.mxu0 0
  %3637 = vmatpush1.bf16.msra.mxu0 0
  %3638 = vmatprep.subr.bf16.mxu0 0
  %3639 = vmatpush1.bf16.msra.mxu0 0
  %3640 = vmatprep.subr.bf16.mxu0 0
  %3641 = vmatpush1.bf16.msra.mxu0 0
  %3642 = vmatprep.subr.bf16.mxu0 0
  %3643 = vmatpush1.bf16.msra.mxu0 0
  %3644 = vmatprep.subr.bf16.mxu0 0
  %3645 = vmatpush1.bf16.msra.mxu0 0
  %3646 = vmatprep.subr.bf16.mxu0 0
  %3647 = vmatpush1.bf16.msra.mxu0 0
  %3648 = vmatprep.subr.bf16.mxu0 0
  %3649 = vmatpush1.bf16.msra.mxu0 0
  %3650 = vmatprep.subr.bf16.mxu0 0
  %3651 = vmatpush1.bf16.msra.mxu0 0
  %3652 = vmatprep.subr.bf16.mxu0 0
  %3653 = vmatpush1.bf16.msra.mxu0 0
  %3654 = vmatprep.subr.bf16.mxu0 0
  %3655 = vmatpush1.bf16.msra.mxu0 0
  %3656 = vmatprep.subr.bf16.mxu0 0
  %3657 = vmatpush1.bf16.msra.mxu0 0
  %3658 = vmatprep.subr.bf16.mxu0 0
  %3659 = vmatpush1.bf16.msra.mxu0 0
  %3660 = vmatprep.mubr.bf16.mxu0 0
  %3661 = vmatmul.mubr.bf16.gmra.mrb[0].mxu0 %v3614
  %v3662 = vpop.f32.mrb[0].mxu0
  %v3663 = vadd.f32 0.0, %v3662
  %v3664 = vpop.f32.mrb[0].mxu0
  %v3665 = vpop.f32.mrb[0].mxu0
  %v3666 = vadd.f32 0.0, %v3665
  %v3667 = vpop.f32.mrb[0].mxu0
  %3668 = vmatprep.mubr.bf16.mxu0 0
  %3669 = vmatmul.mubr.bf16.gmra.mrb[0].mxu0 %v3617
  %v3670 = vpop.f32.mrb[0].mxu0
  %v3671 = vadd.f32 0.0, %v3670
  %v3672 = vpop.f32.mrb[0].mxu0
  %v3673 = vpop.f32.mrb[0].mxu0
  %v3674 = vadd.f32 0.0, %v3673
  %v3675 = vpop.f32.mrb[0].mxu0
  %3676 = vmatprep.mubr.bf16.mxu0 0
  %3677 = vmatmul.mubr.bf16.gmra.mrb[0].mxu0 %v3620
  %v3678 = vpop.f32.mrb[0].mxu0
  %v3679 = vadd.f32 0.0, %v3678
  %v3680 = vpop.f32.mrb[0].mxu0
  %v3681 = vpop.f32.mrb[0].mxu0
  %v3682 = vadd.f32 0.0, %v3681
  %v3683 = vpop.f32.mrb[0].mxu0
  %3684 = vmatprep.mubr.bf16.mxu0 0
  %3685 = vmatmul.mubr.bf16.gmra.mrb[0].mxu0 %v3623
  %v3686 = vpop.f32.mrb[0].mxu0
  %v3687 = vadd.f32 0.0, %v3686
  %v3688 = vpop.f32.mrb[0].mxu0
  %v3689 = vpop.f32.mrb[0].mxu0
  %v3690 = vadd.f32 0.0, %v3689
  %v3691 = vpop.f32.mrb[0].mxu0
  %3692 = vmatprep.mubr.bf16.mxu0 0
  %3693 = vmatmul.mubr.bf16.gmra.mrb[0].mxu0 %v3626
  %v3694 = vpop.f32.mrb[0].mxu0
  %v3695 = vadd.f32 0.0, %v3694
  %v3696 = vpop.f32.mrb[0].mxu0
  %v3697 = vpop.f32.mrb[0].mxu0
  %v3698 = vpop.f32.mrb[0].mxu0
  %3699 = vdwg.mxu0
  %3700 = vrot.lane.b32.xlu0 %v3663, 9
  %v3701 = vpop.permute.xlu0 %3700
  %v3702 = vmul.f32 %v3701, %v144
  %v3703 = vadd.f32 %v3679, %v3702
  %3704 = vrot.lane.b32.xlu0 %v3666, 8
  %v3705 = vpop.permute.xlu0 %3704
  %v3706 = vmul.f32 %v3705, %v134
  %v3707 = vadd.f32 %v3703, %v3706
  %3708 = vrot.lane.b32.xlu0 %v3671, 7
  %v3709 = vpop.permute.xlu0 %3708
  %v3710 = vmul.f32 %v3709, %v145
  %v3711 = vadd.f32 %v3707, %v3710
  %3712 = vrot.lane.b32.xlu0 %v3674, 1
  %v3713 = vpop.permute.xlu0 %3712
  %v3714 = vmul.f32 %v3713, %v140
  %v3715 = vadd.f32 %v3711, %v3714
  %3716 = vrot.lane.b32.xlu0 %v3682, 127
  %v3717 = vpop.permute.xlu0 %3716
  %v3718 = vmul.f32 %v3717, %v143
  %v3719 = vadd.f32 %v3715, %v3718
  %3720 = vrot.lane.b32.xlu0 %v3687, 121
  %v3721 = vpop.permute.xlu0 %3720
  %v3722 = vmul.f32 %v3721, %v146
  %v3723 = vadd.f32 %v3719, %v3722
  %3724 = vrot.lane.b32.xlu0 %v3690, 120
  %v3725 = vpop.permute.xlu0 %3724
  %v3726 = vmul.f32 %v3725, %v137
  %v3727 = vadd.f32 %v3723, %v3726
  %3728 = vrot.lane.b32.xlu0 %v3695, 119
  %v3729 = vpop.permute.xlu0 %3728
  %v3730 = vmul.f32 %v3729, %v147
  %v3731 = vadd.f32 %v3727, %v3730
  %s3732 = scalar_lea.vmem %s8, 40
  %v3733 = vld [vmem:[%s3732] sm:$0xff]
  %3735 = vset.pattern.permute.xlu0 0
  %3736 = vperm.xlu0 %3735, %v3733
  %v3737 = vpop.permute.xlu0 %3736
  %v3739 = vmul.f32 %v3731, %v3737
  %s3740 = scalar_lea.vmem %s9, 40
  %v3741 = vld [vmem:[%s3740] sm:$0xff]
  %3743 = vset.pattern.permute.xlu0 0
  %3744 = vperm.xlu0 %3743, %v3741
  %v3745 = vpop.permute.xlu0 %3744
  %v3747 = vadd.f32 %v3739, %v3745
  %v3748 = vmax.f32 %v3747, 0.0
  %s3749 = scalar_lea.vmem %s10, 100
  %v3750 = vld [vmem:[%s3749] sm:$0xf]
  %v3751 = vld [vmem:[%s3749 + $0x4] sm:$0xf]
  %v3752 = vld [vmem:[%s3749 + $0x8] sm:$0xf]
  %v3753 = vld [vmem:[%s3749 + $0xc] sm:$0xf]
  %v3754 = vld [vmem:[%s3749 + $0x10] sm:$0x3]
  %v3755 = vpack.c.bf16 %v3748, %v3748
  %v3761 = vunpack.c.l.b16 %v3750
  %v3762 = vunpack.c.l.b16 %v3751
  %v3763 = vunpack.c.l.b16 %v3752
  %v3764 = vunpack.c.l.b16 %v3753
  %v3765 = vunpack.c.l.b16 %v3754
  %v3766 = vpack.c.b16 %v3762, %v3761
  %v3767 = vpack.c.b16 %v3764, %v3763
  %v3768 = vpack.c.b16 %v3765, %v3765
  %v3770 = vsel %vm734, %v3766, 0
  %v3773 = vsel %vm734, %v3767, 0
  %v3776 = vsel %vm734, %v3768, 0
  %v3779 = vsel %vm744, %v3755, 0
  %3781 = vmatprep.subr.bf16.mxu0 0
  %3782 = vmatpush1.bf16.msra.mxu0 %v3779
  %3783 = vmatprep.subr.bf16.mxu0 0
  %3784 = vmatpush1.bf16.msra.mxu0 0
  %3785 = vmatprep.subr.bf16.mxu0 0
  %3786 = vmatpush1.bf16.msra.mxu0 0
  %3787 = vmatprep.subr.bf16.mxu0 0
  %3788 = vmatpush1.bf16.msra.mxu0 0
  %3789 = vmatprep.subr.bf16.mxu0 0
  %3790 = vmatpush1.bf16.msra.mxu0 0
  %3791 = vmatprep.subr.bf16.mxu0 0
  %3792 = vmatpush1.bf16.msra.mxu0 0
  %3793 = vmatprep.subr.bf16.mxu0 0
  %3794 = vmatpush1.bf16.msra.mxu0 0
  %3795 = vmatprep.subr.bf16.mxu0 0
  %3796 = vmatpush1.bf16.msra.mxu0 0
  %3797 = vmatprep.subr.bf16.mxu0 0
  %3798 = vmatpush1.bf16.msra.mxu0 0
  %3799 = vmatprep.subr.bf16.mxu0 0
  %3800 = vmatpush1.bf16.msra.mxu0 0
  %3801 = vmatprep.subr.bf16.mxu0 0
  %3802 = vmatpush1.bf16.msra.mxu0 0
  %3803 = vmatprep.subr.bf16.mxu0 0
  %3804 = vmatpush1.bf16.msra.mxu0 0
  %3805 = vmatprep.subr.bf16.mxu0 0
  %3806 = vmatpush1.bf16.msra.mxu0 0
  %3807 = vmatprep.subr.bf16.mxu0 0
  %3808 = vmatpush1.bf16.msra.mxu0 0
  %3809 = vmatprep.subr.bf16.mxu0 0
  %3810 = vmatpush1.bf16.msra.mxu0 0
  %3811 = vmatprep.subr.bf16.mxu0 0
  %3812 = vmatpush1.bf16.msra.mxu0 0
  %3813 = vmatprep.mubr.bf16.mxu0 0
  %3814 = vmatmul.mubr.bf16.gmra.mrb[0].mxu0 %v3770
  %v3815 = vpop.f32.mrb[0].mxu0
  %v3816 = vadd.f32 0.0, %v3815
  %v3817 = vpop.f32.mrb[0].mxu0
  %v3818 = vpop.f32.mrb[0].mxu0
  %v3819 = vadd.f32 0.0, %v3818
  %v3820 = vpop.f32.mrb[0].mxu0
  %3821 = vmatprep.mubr.bf16.mxu0 0
  %3822 = vmatmul.mubr.bf16.gmra.mrb[0].mxu0 %v3773
  %v3823 = vpop.f32.mrb[0].mxu0
  %v3824 = vadd.f32 0.0, %v3823
  %v3825 = vpop.f32.mrb[0].mxu0
  %v3826 = vpop.f32.mrb[0].mxu0
  %v3827 = vadd.f32 0.0, %v3826
  %v3828 = vpop.f32.mrb[0].mxu0
  %3829 = vmatprep.mubr.bf16.mxu0 0
  %3830 = vmatmul.mubr.bf16.gmra.mrb[0].mxu0 %v3776
  %v3831 = vpop.f32.mrb[0].mxu0
  %v3832 = vadd.f32 0.0, %v3831
  %v3833 = vpop.f32.mrb[0].mxu0
  %v3834 = vpop.f32.mrb[0].mxu0
  %v3835 = vpop.f32.mrb[0].mxu0
  %3836 = vdwg.mxu0
  %3837 = vrot.lane.b32.xlu0 %v3816, 9
  %v3838 = vpop.permute.xlu0 %3837
  %v3839 = vmul.f32 %v3838, %v144
  %v3840 = vadd.f32 %v3824, %v3839
  %v3842 = vrot.slane %v3816, 4
  %3844 = vrot.lane.b32.xlu0 %v3842, 8
  %v3845 = vpop.permute.xlu0 %3844
  %v3846 = vmul.f32 %v3845, %v134
  %v3847 = vadd.f32 %v3840, %v3846
  %3848 = vrot.lane.b32.xlu0 %v3819, 7
  %v3849 = vpop.permute.xlu0 %3848
  %v3850 = vmul.f32 %v3849, %v145
  %v3851 = vadd.f32 %v3847, %v3850
  %v3853 = vrot.slane %v3819, 4
  %3855 = vrot.lane.b32.xlu0 %v3853, 1
  %v3856 = vpop.permute.xlu0 %3855
  %v3857 = vmul.f32 %v3856, %v140
  %v3858 = vadd.f32 %v3851, %v3857
  %v3860 = vrot.slane %v3824, 4
  %3862 = vrot.lane.b32.xlu0 %v3860, 127
  %v3863 = vpop.permute.xlu0 %3862
  %v3864 = vmul.f32 %v3863, %v143
  %v3865 = vadd.f32 %v3858, %v3864
  %3866 = vrot.lane.b32.xlu0 %v3827, 121
  %v3867 = vpop.permute.xlu0 %3866
  %v3868 = vmul.f32 %v3867, %v146
  %v3869 = vadd.f32 %v3865, %v3868
  %v3871 = vrot.slane %v3827, 4
  %3873 = vrot.lane.b32.xlu0 %v3871, 120
  %v3874 = vpop.permute.xlu0 %3873
  %v3875 = vmul.f32 %v3874, %v137
  %v3876 = vadd.f32 %v3869, %v3875
  %3877 = vrot.lane.b32.xlu0 %v3832, 119
  %v3878 = vpop.permute.xlu0 %3877
  %v3879 = vmul.f32 %v3878, %v147
  %v3880 = vadd.f32 %v3876, %v3879
  %s3881 = scalar_lea.vmem %s11, 20
  %v3882 = vld [vmem:[%s3881] sm:$0xf]
  %3884 = vset.pattern.permute.xlu0 0
  %3885 = vperm.xlu0 %3884, %v3882
  %v3886 = vpop.permute.xlu0 %3885
  %v3888 = vmul.f32 %v3880, %v3886
  %s3889 = scalar_lea.vmem %s12, 20
  %v3890 = vld [vmem:[%s3889] sm:$0xf]
  %3892 = vset.pattern.permute.xlu0 0
  %3893 = vperm.xlu0 %3892, %v3890
  %v3894 = vpop.permute.xlu0 %3893
  %v3896 = vadd.f32 %v3888, %v3894
  %v3897 = vmax.f32 %v3896, 0.0
  %s3898 = scalar_lea.vmem %s13, 100
  %v3899 = vld [vmem:[%s3898] sm:$0xf]
  %v3900 = vld [vmem:[%s3898 + $0x4] sm:$0xf]
  %v3901 = vld [vmem:[%s3898 + $0x8] sm:$0xf]
  %v3902 = vld [vmem:[%s3898 + $0xc] sm:$0xf]
  %v3903 = vld [vmem:[%s3898 + $0x10] sm:$0x3]
  %v3904 = vpack.c.bf16 %v3897, %v3897
  %v3910 = vunpack.c.l.b16 %v3899
  %v3911 = vunpack.c.l.b16 %v3900
  %v3912 = vunpack.c.l.b16 %v3901
  %v3913 = vunpack.c.l.b16 %v3902
  %v3914 = vunpack.c.l.b16 %v3903
  %v3915 = vpack.c.b16 %v3911, %v3910
  %v3916 = vpack.c.b16 %v3913, %v3912
  %v3917 = vpack.c.b16 %v3914, %v3914
  %v3919 = vsel %vm882, %v3915, 0
  %v3922 = vsel %vm882, %v3916, 0
  %v3925 = vsel %vm882, %v3917, 0
  %v3928 = vsel %vm892, %v3904, 0
  %3930 = vmatprep.subr.bf16.mxu0 0
  %3931 = vmatpush1.bf16.msra.mxu0 %v3928
  %3932 = vmatprep.subr.bf16.mxu0 0
  %3933 = vmatpush1.bf16.msra.mxu0 0
  %3934 = vmatprep.subr.bf16.mxu0 0
  %3935 = vmatpush1.bf16.msra.mxu0 0
  %3936 = vmatprep.subr.bf16.mxu0 0
  %3937 = vmatpush1.bf16.msra.mxu0 0
  %3938 = vmatprep.subr.bf16.mxu0 0
  %3939 = vmatpush1.bf16.msra.mxu0 0
  %3940 = vmatprep.subr.bf16.mxu0 0
  %3941 = vmatpush1.bf16.msra.mxu0 0
  %3942 = vmatprep.subr.bf16.mxu0 0
  %3943 = vmatpush1.bf16.msra.mxu0 0
  %3944 = vmatprep.subr.bf16.mxu0 0
  %3945 = vmatpush1.bf16.msra.mxu0 0
  %3946 = vmatprep.subr.bf16.mxu0 0
  %3947 = vmatpush1.bf16.msra.mxu0 0
  %3948 = vmatprep.subr.bf16.mxu0 0
  %3949 = vmatpush1.bf16.msra.mxu0 0
  %3950 = vmatprep.subr.bf16.mxu0 0
  %3951 = vmatpush1.bf16.msra.mxu0 0
  %3952 = vmatprep.subr.bf16.mxu0 0
  %3953 = vmatpush1.bf16.msra.mxu0 0
  %3954 = vmatprep.subr.bf16.mxu0 0
  %3955 = vmatpush1.bf16.msra.mxu0 0
  %3956 = vmatprep.subr.bf16.mxu0 0
  %3957 = vmatpush1.bf16.msra.mxu0 0
  %3958 = vmatprep.subr.bf16.mxu0 0
  %3959 = vmatpush1.bf16.msra.mxu0 0
  %3960 = vmatprep.subr.bf16.mxu0 0
  %3961 = vmatpush1.bf16.msra.mxu0 0
  %3962 = vmatprep.mubr.bf16.mxu0 0
  %3963 = vmatmul.mubr.bf16.gmra.mrb[0].mxu0 %v3919
  %v3964 = vpop.f32.mrb[0].mxu0
  %v3965 = vadd.f32 0.0, %v3964
  %v3966 = vpop.f32.mrb[0].mxu0
  %v3967 = vpop.f32.mrb[0].mxu0
  %v3968 = vadd.f32 0.0, %v3967
  %v3969 = vpop.f32.mrb[0].mxu0
  %3970 = vmatprep.mubr.bf16.mxu0 0
  %3971 = vmatmul.mubr.bf16.gmra.mrb[0].mxu0 %v3922
  %v3972 = vpop.f32.mrb[0].mxu0
  %v3973 = vadd.f32 0.0, %v3972
  %v3974 = vpop.f32.mrb[0].mxu0
  %v3975 = vpop.f32.mrb[0].mxu0
  %v3976 = vadd.f32 0.0, %v3975
  %v3977 = vpop.f32.mrb[0].mxu0
  %3978 = vmatprep.mubr.bf16.mxu0 0
  %3979 = vmatmul.mubr.bf16.gmra.mrb[0].mxu0 %v3925
  %v3980 = vpop.f32.mrb[0].mxu0
  %v3981 = vadd.f32 0.0, %v3980
  %v3982 = vpop.f32.mrb[0].mxu0
  %v3983 = vpop.f32.mrb[0].mxu0
  %v3984 = vpop.f32.mrb[0].mxu0
  %3985 = vdwg.mxu0
  %3986 = vrot.lane.b32.xlu0 %v3965, 9
  %v3987 = vpop.permute.xlu0 %3986
  %v3988 = vmul.f32 %v3987, %v144
  %v3989 = vadd.f32 %v3973, %v3988
  %v3991 = vrot.slane %v3965, 4
  %3993 = vrot.lane.b32.xlu0 %v3991, 8
  %v3994 = vpop.permute.xlu0 %3993
  %v3995 = vmul.f32 %v3994, %v134
  %v3996 = vadd.f32 %v3989, %v3995
  %3997 = vrot.lane.b32.xlu0 %v3968, 7
  %v3998 = vpop.permute.xlu0 %3997
  %v3999 = vmul.f32 %v3998, %v145
  %v4000 = vadd.f32 %v3996, %v3999
  %v4002 = vrot.slane %v3968, 4
  %4004 = vrot.lane.b32.xlu0 %v4002, 1
  %v4005 = vpop.permute.xlu0 %4004
  %v4006 = vmul.f32 %v4005, %v140
  %v4007 = vadd.f32 %v4000, %v4006
  %v4009 = vrot.slane %v3973, 4
  %4011 = vrot.lane.b32.xlu0 %v4009, 127
  %v4012 = vpop.permute.xlu0 %4011
  %v4013 = vmul.f32 %v4012, %v143
  %v4014 = vadd.f32 %v4007, %v4013
  %4015 = vrot.lane.b32.xlu0 %v3976, 121
  %v4016 = vpop.permute.xlu0 %4015
  %v4017 = vmul.f32 %v4016, %v146
  %v4018 = vadd.f32 %v4014, %v4017
  %v4020 = vrot.slane %v3976, 4
  %4022 = vrot.lane.b32.xlu0 %v4020, 120
  %v4023 = vpop.permute.xlu0 %4022
  %v4024 = vmul.f32 %v4023, %v137
  %v4025 = vadd.f32 %v4018, %v4024
  %4026 = vrot.lane.b32.xlu0 %v3981, 119
  %v4027 = vpop.permute.xlu0 %4026
  %v4028 = vmul.f32 %v4027, %v147
  %v4029 = vadd.f32 %v4025, %v4028
  %v4031 = vrot.slane %v4029, 4
  %v4033 = vsel %vm744, %v3880, %v4031
  %v4034 = vadd.f32 %v3731, %v3541
  %v4035 = vadd.f32 %v4033, %v3544
  %v4036 = vpack.c.bf16 %v4035, %v4034
  %v4037 = vld [vmem:[%s3] sm:$0xff]
  %v4038 = vld [vmem:[%s3 + $0x8] sm:$0xff]
  %v4039 = vld [vmem:[%s3 + $0x10] sm:$0xff]
  %v4040 = vld [vmem:[%s3 + $0x18] sm:$0xff]
  %v4041 = vld [vmem:[%s3 + $0x20] sm:$0xff]
  %v4042 = vld [vmem:[%s3 + $0x28] sm:$0xff]
  %v4043 = vld [vmem:[%s3 + $0x30] sm:$0xff]
  %v4044 = vld [vmem:[%s3 + $0x38] sm:$0xff]
  %v4045 = vld [vmem:[%s3 + $0x40] sm:$0xff]
  %v4046 = vld [vmem:[%s3 + $0x48] sm:$0xff]
  %v4047 = vld [vmem:[%s3 + $0x50] sm:$0xff]
  %v4048 = vld [vmem:[%s3 + $0x58] sm:$0xff]
  %v4049 = vld [vmem:[%s3 + $0x60] sm:$0xff]
  %v4050 = vld [vmem:[%s3 + $0x68] sm:$0xff]
  %v4051 = vld [vmem:[%s3 + $0x70] sm:$0xff]
  %v4052 = vld [vmem:[%s3 + $0x78] sm:$0xff]
  %v4053 = vld [vmem:[%s3 + $0x80] sm:$0xff]
  %v4054 = vld [vmem:[%s3 + $0x88] sm:$0xff]
  %v4055 = vld [vmem:[%s3 + $0x90] sm:$0xff]
  %v4056 = vld [vmem:[%s3 + $0x98] sm:$0xff]
  %v4057 = vld [vmem:[%s3 + $0xa0] sm:$0xff]
  %v4058 = vld [vmem:[%s3 + $0xa8] sm:$0xff]
  %v4059 = vld [vmem:[%s3 + $0xb0] sm:$0xff]
  %v4060 = vld [vmem:[%s3 + $0xb8] sm:$0xff]
  %v4061 = vld [vmem:[%s3 + $0xc0] sm:$0xff]
  %v4062 = vld [vmem:[%s3 + $0xc8] sm:$0xff]
  %v4063 = vld [vmem:[%s3 + $0xd0] sm:$0xff]
  %v4064 = vld [vmem:[%s3 + $0xd8] sm:$0xff]
  %v4065 = vld [vmem:[%s3 + $0xe0] sm:$0xff]
  %v4066 = vld [vmem:[%s3 + $0xe8] sm:$0xff]
  %v4067 = vld [vmem:[%s3 + $0xf0] sm:$0xff]
  %v4068 = vld [vmem:[%s3 + $0xf8] sm:$0xff]
  %s4069 = scalar_lea.vmem %s5, 96
  %v4070 = vld [vmem:[%s4069] sm:$0xff]
  %v4071 = vld [vmem:[%s4069 + $0x8] sm:$0xff]
  %4073 = vset.pattern.permute.xlu0 0
  %4074 = vperm.xlu0 %4073, %v4070
  %v4075 = vpop.permute.xlu0 %4074
  %4078 = vset.pattern.permute.xlu0 0
  %4079 = vperm.xlu0 %4078, %v4071
  %v4080 = vpop.permute.xlu0 %4079
  %v4082 = vmul.f32 %v167, %v4075
  %v4083 = vmul.f32 %v168, %v4075
  %v4084 = vmul.f32 %v169, %v4075
  %v4085 = vmul.f32 %v170, %v4075
  %v4086 = vmul.f32 %v171, %v4080
  %v4087 = vmul.f32 %v172, %v4080
  %v4088 = vmul.f32 %v173, %v4080
  %v4089 = vmul.f32 %v174, %v4080
  %s4090 = scalar_lea.vmem %s6, 96
  %v4091 = vld [vmem:[%s4090] sm:$0xff]
  %v4092 = vld [vmem:[%s4090 + $0x8] sm:$0xff]
  %4094 = vset.pattern.permute.xlu0 0
  %4095 = vperm.xlu0 %4094, %v4091
  %v4096 = vpop.permute.xlu0 %4095
  %4099 = vset.pattern.permute.xlu0 0
  %4100 = vperm.xlu0 %4099, %v4092
  %v4101 = vpop.permute.xlu0 %4100
  %v4103 = vadd.f32 %v4082, %v4096
  %v4104 = vadd.f32 %v4083, %v4096
  %v4105 = vadd.f32 %v4084, %v4096
  %v4106 = vadd.f32 %v4085, %v4096
  %v4107 = vadd.f32 %v4086, %v4101
  %v4108 = vadd.f32 %v4087, %v4101
  %v4109 = vadd.f32 %v4088, %v4101
  %v4110 = vadd.f32 %v4089, %v4101
  %v4111 = vmax.f32 %v4103, 0.0
  %v4112 = vmax.f32 %v4104, 0.0
  %v4113 = vmax.f32 %v4105, 0.0
  %v4114 = vmax.f32 %v4106, 0.0
  %v4115 = vmax.f32 %v4107, 0.0
  %v4116 = vmax.f32 %v4108, 0.0
  %v4117 = vmax.f32 %v4109, 0.0
  %v4118 = vmax.f32 %v4110, 0.0
  %s4119 = scalar_lea.vmem %s7, 216
  %v4120 = vld [vmem:[%s4119] sm:$0xf]
  %v4121 = vld [vmem:[%s4119 + $0x4] sm:$0xf]
  %v4122 = vld [vmem:[%s4119 + $0x8] sm:$0xf]
  %v4123 = vld [vmem:[%s4119 + $0xc] sm:$0xf]
  %v4124 = vld [vmem:[%s4119 + $0x10] sm:$0xf]
  %v4125 = vld [vmem:[%s4119 + $0x14] sm:$0xf]
  %v4126 = vld [vmem:[%s4119 + $0x18] sm:$0xf]
  %v4127 = vld [vmem:[%s4119 + $0x1c] sm:$0xf]
  %v4128 = vld [vmem:[%s4119 + $0x20] sm:$0xf]
  %v4129 = vpack.c.bf16 %v4115, %v4111
  %v4130 = vpack.c.bf16 %v4116, %v4112
  %v4131 = vpack.c.bf16 %v4117, %v4113
  %v4132 = vpack.c.bf16 %v4118, %v4114
  %v4142 = vunpack.c.l.b16 %v4120
  %v4143 = vunpack.c.l.b16 %v4121
  %v4144 = vunpack.c.l.b16 %v4122
  %v4145 = vunpack.c.l.b16 %v4123
  %v4146 = vunpack.c.l.b16 %v4124
  %v4147 = vunpack.c.l.b16 %v4125
  %v4148 = vunpack.c.l.b16 %v4126
  %v4149 = vunpack.c.l.b16 %v4127
  %v4150 = vunpack.c.l.b16 %v4128
  %v4151 = vpack.c.b16 %v4143, %v4142
  %v4152 = vpack.c.b16 %v4145, %v4144
  %v4153 = vpack.c.b16 %v4147, %v4146
  %v4154 = vpack.c.b16 %v4149, %v4148
  %v4155 = vpack.c.b16 %v4150, %v4150
  %v4157 = vsel %vm580, %v4151, 0
  %v4160 = vsel %vm580, %v4152, 0
  %v4163 = vsel %vm580, %v4153, 0
  %v4166 = vsel %vm580, %v4154, 0
  %v4169 = vsel %vm580, %v4155, 0
  %4171 = vmatprep.subr.bf16.mxu0 %v4130
  %4172 = vmatpush1.bf16.msra.mxu0 %v4129
  %4173 = vmatprep.subr.bf16.mxu0 0
  %4174 = vmatpush1.bf16.msra.mxu0 0
  %4175 = vmatprep.subr.bf16.mxu0 0
  %4176 = vmatpush1.bf16.msra.mxu0 0
  %4177 = vmatprep.subr.bf16.mxu0 0
  %4178 = vmatpush1.bf16.msra.mxu0 0
  %4179 = vmatprep.subr.bf16.mxu0 0
  %4180 = vmatpush1.bf16.msra.mxu0 0
  %4181 = vmatprep.subr.bf16.mxu0 0
  %4182 = vmatpush1.bf16.msra.mxu0 0
  %4183 = vmatprep.subr.bf16.mxu0 0
  %4184 = vmatpush1.bf16.msra.mxu0 0
  %4185 = vmatprep.subr.bf16.mxu0 0
  %4186 = vmatpush1.bf16.msra.mxu0 0
  %4187 = vmatprep.subr.bf16.mxu0 0
  %4188 = vmatpush1.bf16.msra.mxu0 0
  %4189 = vmatprep.subr.bf16.mxu0 0
  %4190 = vmatpush1.bf16.msra.mxu0 0
  %4191 = vmatprep.subr.bf16.mxu0 0
  %4192 = vmatpush1.bf16.msra.mxu0 0
  %4193 = vmatprep.subr.bf16.mxu0 0
  %4194 = vmatpush1.bf16.msra.mxu0 0
  %4195 = vmatprep.subr.bf16.mxu0 0
  %4196 = vmatpush1.bf16.msra.mxu0 0
  %4197 = vmatprep.subr.bf16.mxu0 0
  %4198 = vmatpush1.bf16.msra.mxu0 0
  %4199 = vmatprep.subr.bf16.mxu0 0
  %4200 = vmatpush1.bf16.msra.mxu0 0
  %4201 = vmatprep.subr.bf16.mxu0 0
  %4202 = vmatpush1.bf16.msra.mxu0 0
  %4203 = vmatprep.mubr.bf16.mxu0 0
  %4204 = vmatmul.mubr.bf16.gmra.mrb[0].mxu0 %v4157
  %v4205 = vpop.f32.mrb[0].mxu0
  %v4206 = vadd.f32 0.0, %v4205
  %v4207 = vpop.f32.mrb[0].mxu0
  %v4208 = vadd.f32 0.0, %v4207
  %v4209 = vpop.f32.mrb[0].mxu0
  %v4210 = vadd.f32 0.0, %v4209
  %v4211 = vpop.f32.mrb[0].mxu0
  %v4212 = vadd.f32 0.0, %v4211
  %4213 = vmatprep.mubr.bf16.mxu0 0
  %4214 = vmatmul.mubr.bf16.gmra.mrb[0].mxu0 %v4160
  %v4215 = vpop.f32.mrb[0].mxu0
  %v4216 = vadd.f32 0.0, %v4215
  %v4217 = vpop.f32.mrb[0].mxu0
  %v4218 = vadd.f32 0.0, %v4217
  %v4219 = vpop.f32.mrb[0].mxu0
  %v4220 = vadd.f32 0.0, %v4219
  %v4221 = vpop.f32.mrb[0].mxu0
  %v4222 = vadd.f32 0.0, %v4221
  %4223 = vmatprep.mubr.bf16.mxu0 0
  %4224 = vmatmul.mubr.bf16.gmra.mrb[0].mxu0 %v4163
  %v4225 = vpop.f32.mrb[0].mxu0
  %v4226 = vadd.f32 0.0, %v4225
  %v4227 = vpop.f32.mrb[0].mxu0
  %v4228 = vadd.f32 0.0, %v4227
  %v4229 = vpop.f32.mrb[0].mxu0
  %v4230 = vadd.f32 0.0, %v4229
  %v4231 = vpop.f32.mrb[0].mxu0
  %v4232 = vadd.f32 0.0, %v4231
  %4233 = vmatprep.mubr.bf16.mxu0 0
  %4234 = vmatmul.mubr.bf16.gmra.mrb[0].mxu0 %v4166
  %v4235 = vpop.f32.mrb[0].mxu0
  %v4236 = vadd.f32 0.0, %v4235
  %v4237 = vpop.f32.mrb[0].mxu0
  %v4238 = vadd.f32 0.0, %v4237
  %v4239 = vpop.f32.mrb[0].mxu0
  %v4240 = vadd.f32 0.0, %v4239
  %v4241 = vpop.f32.mrb[0].mxu0
  %v4242 = vadd.f32 0.0, %v4241
  %4243 = vmatprep.mubr.bf16.mxu0 0
  %4244 = vmatmul.mubr.bf16.gmra.mrb[0].mxu0 %v4169
  %v4245 = vpop.f32.mrb[0].mxu0
  %v4246 = vadd.f32 0.0, %v4245
  %v4247 = vpop.f32.mrb[0].mxu0
  %v4248 = vadd.f32 0.0, %v4247
  %v4249 = vpop.f32.mrb[0].mxu0
  %v4250 = vpop.f32.mrb[0].mxu0
  %4251 = vdwg.mxu0
  %4252 = vmatprep.subr.bf16.mxu0 %v4132
  %4253 = vmatpush1.bf16.msra.mxu0 %v4131
  %4254 = vmatprep.subr.bf16.mxu0 0
  %4255 = vmatpush1.bf16.msra.mxu0 0
  %4256 = vmatprep.subr.bf16.mxu0 0
  %4257 = vmatpush1.bf16.msra.mxu0 0
  %4258 = vmatprep.subr.bf16.mxu0 0
  %4259 = vmatpush1.bf16.msra.mxu0 0
  %4260 = vmatprep.subr.bf16.mxu0 0
  %4261 = vmatpush1.bf16.msra.mxu0 0
  %4262 = vmatprep.subr.bf16.mxu0 0
  %4263 = vmatpush1.bf16.msra.mxu0 0
  %4264 = vmatprep.subr.bf16.mxu0 0
  %4265 = vmatpush1.bf16.msra.mxu0 0
  %4266 = vmatprep.subr.bf16.mxu0 0
  %4267 = vmatpush1.bf16.msra.mxu0 0
  %4268 = vmatprep.subr.bf16.mxu0 0
  %4269 = vmatpush1.bf16.msra.mxu0 0
  %4270 = vmatprep.subr.bf16.mxu0 0
  %4271 = vmatpush1.bf16.msra.mxu0 0
  %4272 = vmatprep.subr.bf16.mxu0 0
  %4273 = vmatpush1.bf16.msra.mxu0 0
  %4274 = vmatprep.subr.bf16.mxu0 0
  %4275 = vmatpush1.bf16.msra.mxu0 0
  %4276 = vmatprep.subr.bf16.mxu0 0
  %4277 = vmatpush1.bf16.msra.mxu0 0
  %4278 = vmatprep.subr.bf16.mxu0 0
  %4279 = vmatpush1.bf16.msra.mxu0 0
  %4280 = vmatprep.subr.bf16.mxu0 0
  %4281 = vmatpush1.bf16.msra.mxu0 0
  %4282 = vmatprep.subr.bf16.mxu0 0
  %4283 = vmatpush1.bf16.msra.mxu0 0
  %4284 = vmatprep.mubr.bf16.mxu0 0
  %4285 = vmatmul.mubr.bf16.gmra.mrb[0].mxu0 %v4157
  %v4286 = vpop.f32.mrb[0].mxu0
  %v4287 = vadd.f32 0.0, %v4286
  %v4288 = vpop.f32.mrb[0].mxu0
  %v4289 = vadd.f32 0.0, %v4288
  %v4290 = vpop.f32.mrb[0].mxu0
  %v4291 = vadd.f32 0.0, %v4290
  %v4292 = vpop.f32.mrb[0].mxu0
  %v4293 = vadd.f32 0.0, %v4292
  %4294 = vmatprep.mubr.bf16.mxu0 0
  %4295 = vmatmul.mubr.bf16.gmra.mrb[0].mxu0 %v4160
  %v4296 = vpop.f32.mrb[0].mxu0
  %v4297 = vadd.f32 0.0, %v4296
  %v4298 = vpop.f32.mrb[0].mxu0
  %v4299 = vadd.f32 0.0, %v4298
  %v4300 = vpop.f32.mrb[0].mxu0
  %v4301 = vadd.f32 0.0, %v4300
  %v4302 = vpop.f32.mrb[0].mxu0
  %v4303 = vadd.f32 0.0, %v4302
  %4304 = vmatprep.mubr.bf16.mxu0 0
  %4305 = vmatmul.mubr.bf16.gmra.mrb[0].mxu0 %v4163
  %v4306 = vpop.f32.mrb[0].mxu0
  %v4307 = vadd.f32 0.0, %v4306
  %v4308 = vpop.f32.mrb[0].mxu0
  %v4309 = vadd.f32 0.0, %v4308
  %v4310 = vpop.f32.mrb[0].mxu0
  %v4311 = vadd.f32 0.0, %v4310
  %v4312 = vpop.f32.mrb[0].mxu0
  %v4313 = vadd.f32 0.0, %v4312
  %4314 = vmatprep.mubr.bf16.mxu0 0
  %4315 = vmatmul.mubr.bf16.gmra.mrb[0].mxu0 %v4166
  %v4316 = vpop.f32.mrb[0].mxu0
  %v4317 = vadd.f32 0.0, %v4316
  %v4318 = vpop.f32.mrb[0].mxu0
  %v4319 = vadd.f32 0.0, %v4318
  %v4320 = vpop.f32.mrb[0].mxu0
  %v4321 = vadd.f32 0.0, %v4320
  %v4322 = vpop.f32.mrb[0].mxu0
  %v4323 = vadd.f32 0.0, %v4322
  %4324 = vmatprep.mubr.bf16.mxu0 0
  %4325 = vmatmul.mubr.bf16.gmra.mrb[0].mxu0 %v4169
  %v4326 = vpop.f32.mrb[0].mxu0
  %v4327 = vadd.f32 0.0, %v4326
  %v4328 = vpop.f32.mrb[0].mxu0
  %v4329 = vadd.f32 0.0, %v4328
  %v4330 = vpop.f32.mrb[0].mxu0
  %v4331 = vpop.f32.mrb[0].mxu0
  %4332 = vdwg.mxu0
  %4333 = vrot.lane.b32.xlu0 %v4206, 17
  %v4334 = vpop.permute.xlu0 %4333
  %4335 = vrot.lane.b32.xlu0 %v4208, 17
  %v4336 = vpop.permute.xlu0 %4335
  %4337 = vrot.lane.b32.xlu0 %v4287, 17
  %v4338 = vpop.permute.xlu0 %4337
  %4339 = vrot.lane.b32.xlu0 %v4289, 17
  %v4340 = vpop.permute.xlu0 %4339
  %vm4341 = vcmp.lt.s32.totalorder %v49, 17
  %v4342 = vsel %vm4341, %v4338, %v4340
  %v4343 = vsel %vm4341, %v4336, %v4338
  %v4344 = vsel %vm4341, %v4334, %v4336
  %v4345 = vsel %vm4341, %v4340, %v4334
  %v4346 = vmul.f32 %v4345, %v113
  %v4347 = vmul.f32 %v4344, %v114
  %v4348 = vmul.f32 %v4343, %v115
  %v4349 = vmul.f32 %v4342, %v116
  %v4350 = vadd.f32 %v4226, %v4346
  %v4351 = vadd.f32 %v4228, %v4347
  %v4352 = vadd.f32 %v4307, %v4348
  %v4353 = vadd.f32 %v4309, %v4349
  %4354 = vrot.lane.b32.xlu0 %v4210, 16
  %v4355 = vpop.permute.xlu0 %4354
  %4356 = vrot.lane.b32.xlu0 %v4212, 16
  %v4357 = vpop.permute.xlu0 %4356
  %4358 = vrot.lane.b32.xlu0 %v4291, 16
  %v4359 = vpop.permute.xlu0 %4358
  %4360 = vrot.lane.b32.xlu0 %v4293, 16
  %v4361 = vpop.permute.xlu0 %4360
  %vm4362 = vcmp.lt.s32.totalorder %v49, 16
  %v4363 = vsel %vm4362, %v4359, %v4361
  %v4364 = vsel %vm4362, %v4357, %v4359
  %v4365 = vsel %vm4362, %v4355, %v4357
  %v4366 = vsel %vm4362, %v4361, %v4355
  %v4367 = vmul.f32 %v4366, %v73
  %v4368 = vmul.f32 %v4365, %v74
  %v4369 = vmul.f32 %v4364, %v75
  %v4370 = vmul.f32 %v4363, %v76
  %v4371 = vadd.f32 %v4350, %v4367
  %v4372 = vadd.f32 %v4351, %v4368
  %v4373 = vadd.f32 %v4352, %v4369
  %v4374 = vadd.f32 %v4353, %v4370
  %4375 = vrot.lane.b32.xlu0 %v4216, 15
  %v4376 = vpop.permute.xlu0 %4375
  %4377 = vrot.lane.b32.xlu0 %v4218, 15
  %v4378 = vpop.permute.xlu0 %4377
  %4379 = vrot.lane.b32.xlu0 %v4297, 15
  %v4380 = vpop.permute.xlu0 %4379
  %4381 = vrot.lane.b32.xlu0 %v4299, 15
  %v4382 = vpop.permute.xlu0 %4381
  %vm4383 = vcmp.lt.s32.totalorder %v49, 15
  %v4384 = vsel %vm4383, %v4380, %v4382
  %v4385 = vsel %vm4383, %v4378, %v4380
  %v4386 = vsel %vm4383, %v4376, %v4378
  %v4387 = vsel %vm4383, %v4382, %v4376
  %v4388 = vmul.f32 %v4387, %v117
  %v4389 = vmul.f32 %v4386, %v118
  %v4390 = vmul.f32 %v4385, %v119
  %v4391 = vmul.f32 %v4384, %v120
  %v4392 = vadd.f32 %v4371, %v4388
  %v4393 = vadd.f32 %v4372, %v4389
  %v4394 = vadd.f32 %v4373, %v4390
  %v4395 = vadd.f32 %v4374, %v4391
  %4396 = vrot.lane.b32.xlu0 %v4220, 1
  %v4397 = vpop.permute.xlu0 %4396
  %4398 = vrot.lane.b32.xlu0 %v4222, 1
  %v4399 = vpop.permute.xlu0 %4398
  %4400 = vrot.lane.b32.xlu0 %v4301, 1
  %v4401 = vpop.permute.xlu0 %4400
  %4402 = vrot.lane.b32.xlu0 %v4303, 1
  %v4403 = vpop.permute.xlu0 %4402
  %vm4404 = vcmp.lt.s32.totalorder %v49, 1
  %v4405 = vsel %vm4404, %v4401, %v4403
  %v4406 = vsel %vm4404, %v4399, %v4401
  %v4407 = vsel %vm4404, %v4397, %v4399
  %v4408 = vsel %vm4404, %v4403, %v4397
  %v4409 = vmul.f32 %v4408, %v97
  %v4410 = vmul.f32 %v4407, %v98
  %v4411 = vmul.f32 %v4406, %v99
  %v4412 = vmul.f32 %v4405, %v100
  %v4413 = vadd.f32 %v4392, %v4409
  %v4414 = vadd.f32 %v4393, %v4410
  %v4415 = vadd.f32 %v4394, %v4411
  %v4416 = vadd.f32 %v4395, %v4412
  %4417 = vrot.lane.b32.xlu0 %v4230, 127
  %v4418 = vpop.permute.xlu0 %4417
  %4419 = vrot.lane.b32.xlu0 %v4232, 127
  %v4420 = vpop.permute.xlu0 %4419
  %4421 = vrot.lane.b32.xlu0 %v4311, 127
  %v4422 = vpop.permute.xlu0 %4421
  %4423 = vrot.lane.b32.xlu0 %v4313, 127
  %v4424 = vpop.permute.xlu0 %4423
  %vm4425 = vcmp.lt.s32.totalorder %v49, 127
  %v4426 = vsel %vm4425, %v4422, %v4424
  %v4427 = vsel %vm4425, %v4420, %v4422
  %v4428 = vsel %vm4425, %v4418, %v4420
  %v4429 = vsel %vm4425, %v4424, %v4418
  %v4430 = vmul.f32 %v4428, %v109
  %v4431 = vmul.f32 %v4427, %v110
  %v4432 = vmul.f32 %v4426, %v111
  %v4433 = vmul.f32 %v4429, %v112
  %v4434 = vadd.f32 %v4413, %v4430
  %v4435 = vadd.f32 %v4414, %v4431
  %v4436 = vadd.f32 %v4415, %v4432
  %v4437 = vadd.f32 %v4416, %v4433
  %4438 = vrot.lane.b32.xlu0 %v4236, 113
  %v4439 = vpop.permute.xlu0 %4438
  %4440 = vrot.lane.b32.xlu0 %v4238, 113
  %v4441 = vpop.permute.xlu0 %4440
  %4442 = vrot.lane.b32.xlu0 %v4317, 113
  %v4443 = vpop.permute.xlu0 %4442
  %4444 = vrot.lane.b32.xlu0 %v4319, 113
  %v4445 = vpop.permute.xlu0 %4444
  %vm4446 = vcmp.lt.s32.totalorder %v49, 113
  %v4447 = vsel %vm4446, %v4443, %v4445
  %v4448 = vsel %vm4446, %v4441, %v4443
  %v4449 = vsel %vm4446, %v4439, %v4441
  %v4450 = vsel %vm4446, %v4445, %v4439
  %v4451 = vmul.f32 %v4449, %v121
  %v4452 = vmul.f32 %v4448, %v122
  %v4453 = vmul.f32 %v4447, %v123
  %v4454 = vmul.f32 %v4450, %v124
  %v4455 = vadd.f32 %v4434, %v4451
  %v4456 = vadd.f32 %v4435, %v4452
  %v4457 = vadd.f32 %v4436, %v4453
  %v4458 = vadd.f32 %v4437, %v4454
  %4459 = vrot.lane.b32.xlu0 %v4240, 112
  %v4460 = vpop.permute.xlu0 %4459
  %4461 = vrot.lane.b32.xlu0 %v4242, 112
  %v4462 = vpop.permute.xlu0 %4461
  %4463 = vrot.lane.b32.xlu0 %v4321, 112
  %v4464 = vpop.permute.xlu0 %4463
  %4465 = vrot.lane.b32.xlu0 %v4323, 112
  %v4466 = vpop.permute.xlu0 %4465
  %vm4467 = vcmp.lt.s32.totalorder %v49, 112
  %v4468 = vsel %vm4467, %v4464, %v4466
  %v4469 = vsel %vm4467, %v4462, %v4464
  %v4470 = vsel %vm4467, %v4460, %v4462
  %v4471 = vsel %vm4467, %v4466, %v4460
  %v4472 = vmul.f32 %v4470, %v85
  %v4473 = vmul.f32 %v4469, %v86
  %v4474 = vmul.f32 %v4468, %v87
  %v4475 = vmul.f32 %v4471, %v88
  %v4476 = vadd.f32 %v4455, %v4472
  %v4477 = vadd.f32 %v4456, %v4473
  %v4478 = vadd.f32 %v4457, %v4474
  %v4479 = vadd.f32 %v4458, %v4475
  %4480 = vrot.lane.b32.xlu0 %v4246, 111
  %v4481 = vpop.permute.xlu0 %4480
  %4482 = vrot.lane.b32.xlu0 %v4248, 111
  %v4483 = vpop.permute.xlu0 %4482
  %4484 = vrot.lane.b32.xlu0 %v4327, 111
  %v4485 = vpop.permute.xlu0 %4484
  %4486 = vrot.lane.b32.xlu0 %v4329, 111
  %v4487 = vpop.permute.xlu0 %4486
  %vm4488 = vcmp.lt.s32.totalorder %v49, 111
  %v4489 = vsel %vm4488, %v4485, %v4487
  %v4490 = vsel %vm4488, %v4483, %v4485
  %v4491 = vsel %vm4488, %v4481, %v4483
  %v4492 = vsel %vm4488, %v4487, %v4481
  %v4493 = vmul.f32 %v4491, %v125
  %v4494 = vmul.f32 %v4490, %v126
  %v4495 = vmul.f32 %v4489, %v127
  %v4496 = vmul.f32 %v4492, %v128
  %v4497 = vadd.f32 %v4476, %v4493
  %v4498 = vadd.f32 %v4477, %v4494
  %v4499 = vadd.f32 %v4478, %v4495
  %v4500 = vadd.f32 %v4479, %v4496
  %s4501 = scalar_lea.vmem %s8, 48
  %v4502 = vld [vmem:[%s4501] sm:$0xff]
  %4504 = vset.pattern.permute.xlu0 0
  %4505 = vperm.xlu0 %4504, %v4502
  %v4506 = vpop.permute.xlu0 %4505
  %v4508 = vmul.f32 %v4497, %v4506
  %v4509 = vmul.f32 %v4498, %v4506
  %v4510 = vmul.f32 %v4499, %v4506
  %v4511 = vmul.f32 %v4500, %v4506
  %s4512 = scalar_lea.vmem %s9, 48
  %v4513 = vld [vmem:[%s4512] sm:$0xff]
  %4515 = vset.pattern.permute.xlu0 0
  %4516 = vperm.xlu0 %4515, %v4513
  %v4517 = vpop.permute.xlu0 %4516
  %v4519 = vadd.f32 %v4508, %v4517
  %v4520 = vadd.f32 %v4509, %v4517
  %v4521 = vadd.f32 %v4510, %v4517
  %v4522 = vadd.f32 %v4511, %v4517
  %v4523 = vmax.f32 %v4519, 0.0
  %v4524 = vmax.f32 %v4520, 0.0
  %v4525 = vmax.f32 %v4521, 0.0
  %v4526 = vmax.f32 %v4522, 0.0
  %s4527 = scalar_lea.vmem %s10, 120
  %v4528 = vld [vmem:[%s4527] sm:$0xf]
  %v4529 = vld [vmem:[%s4527 + $0x4] sm:$0xf]
  %v4530 = vld [vmem:[%s4527 + $0x8] sm:$0xf]
  %v4531 = vld [vmem:[%s4527 + $0xc] sm:$0xf]
  %v4532 = vld [vmem:[%s4527 + $0x10] sm:$0x3]
  %v4533 = vpack.c.bf16 %v4523, %v4523
  %v4534 = vpack.c.bf16 %v4524, %v4524
  %v4535 = vpack.c.bf16 %v4525, %v4525
  %v4536 = vpack.c.bf16 %v4526, %v4526
  %v4542 = vunpack.c.l.b16 %v4528
  %v4543 = vunpack.c.l.b16 %v4529
  %v4544 = vunpack.c.l.b16 %v4530
  %v4545 = vunpack.c.l.b16 %v4531
  %v4546 = vunpack.c.l.b16 %v4532
  %v4547 = vpack.c.b16 %v4543, %v4542
  %v4548 = vpack.c.b16 %v4545, %v4544
  %v4549 = vpack.c.b16 %v4546, %v4546
  %v4551 = vsel %vm734, %v4547, 0
  %v4554 = vsel %vm734, %v4548, 0
  %v4557 = vsel %vm734, %v4549, 0
  %v4560 = vsel %vm744, %v4533, 0
  %v4563 = vsel %vm744, %v4534, 0
  %v4566 = vsel %vm744, %v4535, 0
  %v4569 = vsel %vm744, %v4536, 0
  %4571 = vmatprep.subr.bf16.mxu0 %v4563
  %4572 = vmatpush1.bf16.msra.mxu0 %v4560
  %4573 = vmatprep.subr.bf16.mxu0 0
  %4574 = vmatpush1.bf16.msra.mxu0 0
  %4575 = vmatprep.subr.bf16.mxu0 0
  %4576 = vmatpush1.bf16.msra.mxu0 0
  %4577 = vmatprep.subr.bf16.mxu0 0
  %4578 = vmatpush1.bf16.msra.mxu0 0
  %4579 = vmatprep.subr.bf16.mxu0 0
  %4580 = vmatpush1.bf16.msra.mxu0 0
  %4581 = vmatprep.subr.bf16.mxu0 0
  %4582 = vmatpush1.bf16.msra.mxu0 0
  %4583 = vmatprep.subr.bf16.mxu0 0
  %4584 = vmatpush1.bf16.msra.mxu0 0
  %4585 = vmatprep.subr.bf16.mxu0 0
  %4586 = vmatpush1.bf16.msra.mxu0 0
  %4587 = vmatprep.subr.bf16.mxu0 0
  %4588 = vmatpush1.bf16.msra.mxu0 0
  %4589 = vmatprep.subr.bf16.mxu0 0
  %4590 = vmatpush1.bf16.msra.mxu0 0
  %4591 = vmatprep.subr.bf16.mxu0 0
  %4592 = vmatpush1.bf16.msra.mxu0 0
  %4593 = vmatprep.subr.bf16.mxu0 0
  %4594 = vmatpush1.bf16.msra.mxu0 0
  %4595 = vmatprep.subr.bf16.mxu0 0
  %4596 = vmatpush1.bf16.msra.mxu0 0
  %4597 = vmatprep.subr.bf16.mxu0 0
  %4598 = vmatpush1.bf16.msra.mxu0 0
  %4599 = vmatprep.subr.bf16.mxu0 0
  %4600 = vmatpush1.bf16.msra.mxu0 0
  %4601 = vmatprep.subr.bf16.mxu0 0
  %4602 = vmatpush1.bf16.msra.mxu0 0
  %4603 = vmatprep.mubr.bf16.mxu0 0
  %4604 = vmatmul.mubr.bf16.gmra.mrb[0].mxu0 %v4551
  %v4605 = vpop.f32.mrb[0].mxu0
  %v4606 = vadd.f32 0.0, %v4605
  %v4607 = vpop.f32.mrb[0].mxu0
  %v4608 = vadd.f32 0.0, %v4607
  %v4609 = vpop.f32.mrb[0].mxu0
  %v4610 = vadd.f32 0.0, %v4609
  %v4611 = vpop.f32.mrb[0].mxu0
  %v4612 = vadd.f32 0.0, %v4611
  %4613 = vmatprep.mubr.bf16.mxu0 0
  %4614 = vmatmul.mubr.bf16.gmra.mrb[0].mxu0 %v4554
  %v4615 = vpop.f32.mrb[0].mxu0
  %v4616 = vadd.f32 0.0, %v4615
  %v4617 = vpop.f32.mrb[0].mxu0
  %v4618 = vadd.f32 0.0, %v4617
  %v4619 = vpop.f32.mrb[0].mxu0
  %v4620 = vadd.f32 0.0, %v4619
  %v4621 = vpop.f32.mrb[0].mxu0
  %v4622 = vadd.f32 0.0, %v4621
  %4623 = vmatprep.mubr.bf16.mxu0 0
  %4624 = vmatmul.mubr.bf16.gmra.mrb[0].mxu0 %v4557
  %v4625 = vpop.f32.mrb[0].mxu0
  %v4626 = vadd.f32 0.0, %v4625
  %v4627 = vpop.f32.mrb[0].mxu0
  %v4628 = vadd.f32 0.0, %v4627
  %v4629 = vpop.f32.mrb[0].mxu0
  %v4630 = vpop.f32.mrb[0].mxu0
  %4631 = vdwg.mxu0
  %4632 = vmatprep.subr.bf16.mxu0 %v4569
  %4633 = vmatpush1.bf16.msra.mxu0 %v4566
  %4634 = vmatprep.subr.bf16.mxu0 0
  %4635 = vmatpush1.bf16.msra.mxu0 0
  %4636 = vmatprep.subr.bf16.mxu0 0
  %4637 = vmatpush1.bf16.msra.mxu0 0
  %4638 = vmatprep.subr.bf16.mxu0 0
  %4639 = vmatpush1.bf16.msra.mxu0 0
  %4640 = vmatprep.subr.bf16.mxu0 0
  %4641 = vmatpush1.bf16.msra.mxu0 0
  %4642 = vmatprep.subr.bf16.mxu0 0
  %4643 = vmatpush1.bf16.msra.mxu0 0
  %4644 = vmatprep.subr.bf16.mxu0 0
  %4645 = vmatpush1.bf16.msra.mxu0 0
  %4646 = vmatprep.subr.bf16.mxu0 0
  %4647 = vmatpush1.bf16.msra.mxu0 0
  %4648 = vmatprep.subr.bf16.mxu0 0
  %4649 = vmatpush1.bf16.msra.mxu0 0
  %4650 = vmatprep.subr.bf16.mxu0 0
  %4651 = vmatpush1.bf16.msra.mxu0 0
  %4652 = vmatprep.subr.bf16.mxu0 0
  %4653 = vmatpush1.bf16.msra.mxu0 0
  %4654 = vmatprep.subr.bf16.mxu0 0
  %4655 = vmatpush1.bf16.msra.mxu0 0
  %4656 = vmatprep.subr.bf16.mxu0 0
  %4657 = vmatpush1.bf16.msra.mxu0 0
  %4658 = vmatprep.subr.bf16.mxu0 0
  %4659 = vmatpush1.bf16.msra.mxu0 0
  %4660 = vmatprep.subr.bf16.mxu0 0
  %4661 = vmatpush1.bf16.msra.mxu0 0
  %4662 = vmatprep.subr.bf16.mxu0 0
  %4663 = vmatpush1.bf16.msra.mxu0 0
  %4664 = vmatprep.mubr.bf16.mxu0 0
  %4665 = vmatmul.mubr.bf16.gmra.mrb[0].mxu0 %v4551
  %v4666 = vpop.f32.mrb[0].mxu0
  %v4667 = vadd.f32 0.0, %v4666
  %v4668 = vpop.f32.mrb[0].mxu0
  %v4669 = vadd.f32 0.0, %v4668
  %v4670 = vpop.f32.mrb[0].mxu0
  %v4671 = vadd.f32 0.0, %v4670
  %v4672 = vpop.f32.mrb[0].mxu0
  %v4673 = vadd.f32 0.0, %v4672
  %4674 = vmatprep.mubr.bf16.mxu0 0
  %4675 = vmatmul.mubr.bf16.gmra.mrb[0].mxu0 %v4554
  %v4676 = vpop.f32.mrb[0].mxu0
  %v4677 = vadd.f32 0.0, %v4676
  %v4678 = vpop.f32.mrb[0].mxu0
  %v4679 = vadd.f32 0.0, %v4678
  %v4680 = vpop.f32.mrb[0].mxu0
  %v4681 = vadd.f32 0.0, %v4680
  %v4682 = vpop.f32.mrb[0].mxu0
  %v4683 = vadd.f32 0.0, %v4682
  %4684 = vmatprep.mubr.bf16.mxu0 0
  %4685 = vmatmul.mubr.bf16.gmra.mrb[0].mxu0 %v4557
  %v4686 = vpop.f32.mrb[0].mxu0
  %v4687 = vadd.f32 0.0, %v4686
  %v4688 = vpop.f32.mrb[0].mxu0
  %v4689 = vadd.f32 0.0, %v4688
  %v4690 = vpop.f32.mrb[0].mxu0
  %v4691 = vpop.f32.mrb[0].mxu0
  %4692 = vdwg.mxu0
  %4693 = vrot.lane.b32.xlu0 %v4606, 17
  %v4694 = vpop.permute.xlu0 %4693
  %4695 = vrot.lane.b32.xlu0 %v4608, 17
  %v4696 = vpop.permute.xlu0 %4695
  %4697 = vrot.lane.b32.xlu0 %v4667, 17
  %v4698 = vpop.permute.xlu0 %4697
  %4699 = vrot.lane.b32.xlu0 %v4669, 17
  %v4700 = vpop.permute.xlu0 %4699
  %v4701 = vsel %vm4341, %v4698, %v4700
  %v4702 = vsel %vm4341, %v4696, %v4698
  %v4703 = vsel %vm4341, %v4694, %v4696
  %v4704 = vsel %vm4341, %v4700, %v4694
  %v4705 = vmul.f32 %v4704, %v113
  %v4706 = vmul.f32 %v4703, %v114
  %v4707 = vmul.f32 %v4702, %v115
  %v4708 = vmul.f32 %v4701, %v116
  %v4709 = vadd.f32 %v4616, %v4705
  %v4710 = vadd.f32 %v4618, %v4706
  %v4711 = vadd.f32 %v4677, %v4707
  %v4712 = vadd.f32 %v4679, %v4708
  %v4717 = vrot.slane %v4606, 4
  %v4718 = vrot.slane %v4608, 4
  %v4719 = vrot.slane %v4667, 4
  %v4720 = vrot.slane %v4669, 4
  %4725 = vrot.lane.b32.xlu0 %v4717, 16
  %v4726 = vpop.permute.xlu0 %4725
  %4727 = vrot.lane.b32.xlu0 %v4718, 16
  %v4728 = vpop.permute.xlu0 %4727
  %4729 = vrot.lane.b32.xlu0 %v4719, 16
  %v4730 = vpop.permute.xlu0 %4729
  %4731 = vrot.lane.b32.xlu0 %v4720, 16
  %v4732 = vpop.permute.xlu0 %4731
  %v4733 = vsel %vm4362, %v4730, %v4732
  %v4734 = vsel %vm4362, %v4728, %v4730
  %v4735 = vsel %vm4362, %v4726, %v4728
  %v4736 = vsel %vm4362, %v4732, %v4726
  %v4737 = vmul.f32 %v4736, %v73
  %v4738 = vmul.f32 %v4735, %v74
  %v4739 = vmul.f32 %v4734, %v75
  %v4740 = vmul.f32 %v4733, %v76
  %v4741 = vadd.f32 %v4709, %v4737
  %v4742 = vadd.f32 %v4710, %v4738
  %v4743 = vadd.f32 %v4711, %v4739
  %v4744 = vadd.f32 %v4712, %v4740
  %4745 = vrot.lane.b32.xlu0 %v4610, 15
  %v4746 = vpop.permute.xlu0 %4745
  %4747 = vrot.lane.b32.xlu0 %v4612, 15
  %v4748 = vpop.permute.xlu0 %4747
  %4749 = vrot.lane.b32.xlu0 %v4671, 15
  %v4750 = vpop.permute.xlu0 %4749
  %4751 = vrot.lane.b32.xlu0 %v4673, 15
  %v4752 = vpop.permute.xlu0 %4751
  %v4753 = vsel %vm4383, %v4750, %v4752
  %v4754 = vsel %vm4383, %v4748, %v4750
  %v4755 = vsel %vm4383, %v4746, %v4748
  %v4756 = vsel %vm4383, %v4752, %v4746
  %v4757 = vmul.f32 %v4756, %v117
  %v4758 = vmul.f32 %v4755, %v118
  %v4759 = vmul.f32 %v4754, %v119
  %v4760 = vmul.f32 %v4753, %v120
  %v4761 = vadd.f32 %v4741, %v4757
  %v4762 = vadd.f32 %v4742, %v4758
  %v4763 = vadd.f32 %v4743, %v4759
  %v4764 = vadd.f32 %v4744, %v4760
  %v4769 = vrot.slane %v4610, 4
  %v4770 = vrot.slane %v4612, 4
  %v4771 = vrot.slane %v4671, 4
  %v4772 = vrot.slane %v4673, 4
  %4777 = vrot.lane.b32.xlu0 %v4769, 1
  %v4778 = vpop.permute.xlu0 %4777
  %4779 = vrot.lane.b32.xlu0 %v4770, 1
  %v4780 = vpop.permute.xlu0 %4779
  %4781 = vrot.lane.b32.xlu0 %v4771, 1
  %v4782 = vpop.permute.xlu0 %4781
  %4783 = vrot.lane.b32.xlu0 %v4772, 1
  %v4784 = vpop.permute.xlu0 %4783
  %v4785 = vsel %vm4404, %v4782, %v4784
  %v4786 = vsel %vm4404, %v4780, %v4782
  %v4787 = vsel %vm4404, %v4778, %v4780
  %v4788 = vsel %vm4404, %v4784, %v4778
  %v4789 = vmul.f32 %v4788, %v97
  %v4790 = vmul.f32 %v4787, %v98
  %v4791 = vmul.f32 %v4786, %v99
  %v4792 = vmul.f32 %v4785, %v100
  %v4793 = vadd.f32 %v4761, %v4789
  %v4794 = vadd.f32 %v4762, %v4790
  %v4795 = vadd.f32 %v4763, %v4791
  %v4796 = vadd.f32 %v4764, %v4792
  %v4801 = vrot.slane %v4616, 4
  %v4802 = vrot.slane %v4618, 4
  %v4803 = vrot.slane %v4677, 4
  %v4804 = vrot.slane %v4679, 4
  %4809 = vrot.lane.b32.xlu0 %v4801, 127
  %v4810 = vpop.permute.xlu0 %4809
  %4811 = vrot.lane.b32.xlu0 %v4802, 127
  %v4812 = vpop.permute.xlu0 %4811
  %4813 = vrot.lane.b32.xlu0 %v4803, 127
  %v4814 = vpop.permute.xlu0 %4813
  %4815 = vrot.lane.b32.xlu0 %v4804, 127
  %v4816 = vpop.permute.xlu0 %4815
  %v4817 = vsel %vm4425, %v4814, %v4816
  %v4818 = vsel %vm4425, %v4812, %v4814
  %v4819 = vsel %vm4425, %v4810, %v4812
  %v4820 = vsel %vm4425, %v4816, %v4810
  %v4821 = vmul.f32 %v4819, %v109
  %v4822 = vmul.f32 %v4818, %v110
  %v4823 = vmul.f32 %v4817, %v111
  %v4824 = vmul.f32 %v4820, %v112
  %v4825 = vadd.f32 %v4793, %v4821
  %v4826 = vadd.f32 %v4794, %v4822
  %v4827 = vadd.f32 %v4795, %v4823
  %v4828 = vadd.f32 %v4796, %v4824
  %4829 = vrot.lane.b32.xlu0 %v4620, 113
  %v4830 = vpop.permute.xlu0 %4829
  %4831 = vrot.lane.b32.xlu0 %v4622, 113
  %v4832 = vpop.permute.xlu0 %4831
  %4833 = vrot.lane.b32.xlu0 %v4681, 113
  %v4834 = vpop.permute.xlu0 %4833
  %4835 = vrot.lane.b32.xlu0 %v4683, 113
  %v4836 = vpop.permute.xlu0 %4835
  %v4837 = vsel %vm4446, %v4834, %v4836
  %v4838 = vsel %vm4446, %v4832, %v4834
  %v4839 = vsel %vm4446, %v4830, %v4832
  %v4840 = vsel %vm4446, %v4836, %v4830
  %v4841 = vmul.f32 %v4839, %v121
  %v4842 = vmul.f32 %v4838, %v122
  %v4843 = vmul.f32 %v4837, %v123
  %v4844 = vmul.f32 %v4840, %v124
  %v4845 = vadd.f32 %v4825, %v4841
  %v4846 = vadd.f32 %v4826, %v4842
  %v4847 = vadd.f32 %v4827, %v4843
  %v4848 = vadd.f32 %v4828, %v4844
  %v4853 = vrot.slane %v4620, 4
  %v4854 = vrot.slane %v4622, 4
  %v4855 = vrot.slane %v4681, 4
  %v4856 = vrot.slane %v4683, 4
  %4861 = vrot.lane.b32.xlu0 %v4853, 112
  %v4862 = vpop.permute.xlu0 %4861
  %4863 = vrot.lane.b32.xlu0 %v4854, 112
  %v4864 = vpop.permute.xlu0 %4863
  %4865 = vrot.lane.b32.xlu0 %v4855, 112
  %v4866 = vpop.permute.xlu0 %4865
  %4867 = vrot.lane.b32.xlu0 %v4856, 112
  %v4868 = vpop.permute.xlu0 %4867
  %v4869 = vsel %vm4467, %v4866, %v4868
  %v4870 = vsel %vm4467, %v4864, %v4866
  %v4871 = vsel %vm4467, %v4862, %v4864
  %v4872 = vsel %vm4467, %v4868, %v4862
  %v4873 = vmul.f32 %v4871, %v85
  %v4874 = vmul.f32 %v4870, %v86
  %v4875 = vmul.f32 %v4869, %v87
  %v4876 = vmul.f32 %v4872, %v88
  %v4877 = vadd.f32 %v4845, %v4873
  %v4878 = vadd.f32 %v4846, %v4874
  %v4879 = vadd.f32 %v4847, %v4875
  %v4880 = vadd.f32 %v4848, %v4876
  %4881 = vrot.lane.b32.xlu0 %v4626, 111
  %v4882 = vpop.permute.xlu0 %4881
  %4883 = vrot.lane.b32.xlu0 %v4628, 111
  %v4884 = vpop.permute.xlu0 %4883
  %4885 = vrot.lane.b32.xlu0 %v4687, 111
  %v4886 = vpop.permute.xlu0 %4885
  %4887 = vrot.lane.b32.xlu0 %v4689, 111
  %v4888 = vpop.permute.xlu0 %4887
  %v4889 = vsel %vm4488, %v4886, %v4888
  %v4890 = vsel %vm4488, %v4884, %v4886
  %v4891 = vsel %vm4488, %v4882, %v4884
  %v4892 = vsel %vm4488, %v4888, %v4882
  %v4893 = vmul.f32 %v4891, %v125
  %v4894 = vmul.f32 %v4890, %v126
  %v4895 = vmul.f32 %v4889, %v127
  %v4896 = vmul.f32 %v4892, %v128
  %v4897 = vadd.f32 %v4877, %v4893
  %v4898 = vadd.f32 %v4878, %v4894
  %v4899 = vadd.f32 %v4879, %v4895
  %v4900 = vadd.f32 %v4880, %v4896
  %s4901 = scalar_lea.vmem %s11, 24
  %v4902 = vld [vmem:[%s4901] sm:$0xf]
  %4904 = vset.pattern.permute.xlu0 0
  %4905 = vperm.xlu0 %4904, %v4902
  %v4906 = vpop.permute.xlu0 %4905
  %v4908 = vmul.f32 %v4897, %v4906
  %v4909 = vmul.f32 %v4898, %v4906
  %v4910 = vmul.f32 %v4899, %v4906
  %v4911 = vmul.f32 %v4900, %v4906
  %s4912 = scalar_lea.vmem %s12, 24
  %v4913 = vld [vmem:[%s4912] sm:$0xf]
  %4915 = vset.pattern.permute.xlu0 0
  %4916 = vperm.xlu0 %4915, %v4913
  %v4917 = vpop.permute.xlu0 %4916
  %v4919 = vadd.f32 %v4908, %v4917
  %v4920 = vadd.f32 %v4909, %v4917
  %v4921 = vadd.f32 %v4910, %v4917
  %v4922 = vadd.f32 %v4911, %v4917
  %v4923 = vmax.f32 %v4919, 0.0
  %v4924 = vmax.f32 %v4920, 0.0
  %v4925 = vmax.f32 %v4921, 0.0
  %v4926 = vmax.f32 %v4922, 0.0
  %s4927 = scalar_lea.vmem %s13, 120
  %v4928 = vld [vmem:[%s4927] sm:$0xf]
  %v4929 = vld [vmem:[%s4927 + $0x4] sm:$0xf]
  %v4930 = vld [vmem:[%s4927 + $0x8] sm:$0xf]
  %v4931 = vld [vmem:[%s4927 + $0xc] sm:$0xf]
  %v4932 = vld [vmem:[%s4927 + $0x10] sm:$0x3]
  %v4933 = vpack.c.bf16 %v4923, %v4923
  %v4934 = vpack.c.bf16 %v4924, %v4924
  %v4935 = vpack.c.bf16 %v4925, %v4925
  %v4936 = vpack.c.bf16 %v4926, %v4926
  %v4942 = vunpack.c.l.b16 %v4928
  %v4943 = vunpack.c.l.b16 %v4929
  %v4944 = vunpack.c.l.b16 %v4930
  %v4945 = vunpack.c.l.b16 %v4931
  %v4946 = vunpack.c.l.b16 %v4932
  %v4947 = vpack.c.b16 %v4943, %v4942
  %v4948 = vpack.c.b16 %v4945, %v4944
  %v4949 = vpack.c.b16 %v4946, %v4946
  %v4951 = vsel %vm882, %v4947, 0
  %v4954 = vsel %vm882, %v4948, 0
  %v4957 = vsel %vm882, %v4949, 0
  %v4960 = vsel %vm892, %v4933, 0
  %v4963 = vsel %vm892, %v4934, 0
  %v4966 = vsel %vm892, %v4935, 0
  %v4969 = vsel %vm892, %v4936, 0
  %4971 = vmatprep.subr.bf16.mxu0 %v4963
  %4972 = vmatpush1.bf16.msra.mxu0 %v4960
  %4973 = vmatprep.subr.bf16.mxu0 0
  %4974 = vmatpush1.bf16.msra.mxu0 0
  %4975 = vmatprep.subr.bf16.mxu0 0
  %4976 = vmatpush1.bf16.msra.mxu0 0
  %4977 = vmatprep.subr.bf16.mxu0 0
  %4978 = vmatpush1.bf16.msra.mxu0 0
  %4979 = vmatprep.subr.bf16.mxu0 0
  %4980 = vmatpush1.bf16.msra.mxu0 0
  %4981 = vmatprep.subr.bf16.mxu0 0
  %4982 = vmatpush1.bf16.msra.mxu0 0
  %4983 = vmatprep.subr.bf16.mxu0 0
  %4984 = vmatpush1.bf16.msra.mxu0 0
  %4985 = vmatprep.subr.bf16.mxu0 0
  %4986 = vmatpush1.bf16.msra.mxu0 0
  %4987 = vmatprep.subr.bf16.mxu0 0
  %4988 = vmatpush1.bf16.msra.mxu0 0
  %4989 = vmatprep.subr.bf16.mxu0 0
  %4990 = vmatpush1.bf16.msra.mxu0 0
  %4991 = vmatprep.subr.bf16.mxu0 0
  %4992 = vmatpush1.bf16.msra.mxu0 0
  %4993 = vmatprep.subr.bf16.mxu0 0
  %4994 = vmatpush1.bf16.msra.mxu0 0
  %4995 = vmatprep.subr.bf16.mxu0 0
  %4996 = vmatpush1.bf16.msra.mxu0 0
  %4997 = vmatprep.subr.bf16.mxu0 0
  %4998 = vmatpush1.bf16.msra.mxu0 0
  %4999 = vmatprep.subr.bf16.mxu0 0
  %5000 = vmatpush1.bf16.msra.mxu0 0
  %5001 = vmatprep.subr.bf16.mxu0 0
  %5002 = vmatpush1.bf16.msra.mxu0 0
  %5003 = vmatprep.mubr.bf16.mxu0 0
  %5004 = vmatmul.mubr.bf16.gmra.mrb[0].mxu0 %v4951
  %v5005 = vpop.f32.mrb[0].mxu0
  %v5006 = vadd.f32 0.0, %v5005
  %v5007 = vpop.f32.mrb[0].mxu0
  %v5008 = vadd.f32 0.0, %v5007
  %v5009 = vpop.f32.mrb[0].mxu0
  %v5010 = vadd.f32 0.0, %v5009
  %v5011 = vpop.f32.mrb[0].mxu0
  %v5012 = vadd.f32 0.0, %v5011
  %5013 = vmatprep.mubr.bf16.mxu0 0
  %5014 = vmatmul.mubr.bf16.gmra.mrb[0].mxu0 %v4954
  %v5015 = vpop.f32.mrb[0].mxu0
  %v5016 = vadd.f32 0.0, %v5015
  %v5017 = vpop.f32.mrb[0].mxu0
  %v5018 = vadd.f32 0.0, %v5017
  %v5019 = vpop.f32.mrb[0].mxu0
  %v5020 = vadd.f32 0.0, %v5019
  %v5021 = vpop.f32.mrb[0].mxu0
  %v5022 = vadd.f32 0.0, %v5021
  %5023 = vmatprep.mubr.bf16.mxu0 0
  %5024 = vmatmul.mubr.bf16.gmra.mrb[0].mxu0 %v4957
  %v5025 = vpop.f32.mrb[0].mxu0
  %v5026 = vadd.f32 0.0, %v5025
  %v5027 = vpop.f32.mrb[0].mxu0
  %v5028 = vadd.f32 0.0, %v5027
  %v5029 = vpop.f32.mrb[0].mxu0
  %v5030 = vpop.f32.mrb[0].mxu0
  %5031 = vdwg.mxu0
  %5032 = vmatprep.subr.bf16.mxu0 %v4969
  %5033 = vmatpush1.bf16.msra.mxu0 %v4966
  %5034 = vmatprep.subr.bf16.mxu0 0
  %5035 = vmatpush1.bf16.msra.mxu0 0
  %5036 = vmatprep.subr.bf16.mxu0 0
  %5037 = vmatpush1.bf16.msra.mxu0 0
  %5038 = vmatprep.subr.bf16.mxu0 0
  %5039 = vmatpush1.bf16.msra.mxu0 0
  %5040 = vmatprep.subr.bf16.mxu0 0
  %5041 = vmatpush1.bf16.msra.mxu0 0
  %5042 = vmatprep.subr.bf16.mxu0 0
  %5043 = vmatpush1.bf16.msra.mxu0 0
  %5044 = vmatprep.subr.bf16.mxu0 0
  %5045 = vmatpush1.bf16.msra.mxu0 0
  %5046 = vmatprep.subr.bf16.mxu0 0
  %5047 = vmatpush1.bf16.msra.mxu0 0
  %5048 = vmatprep.subr.bf16.mxu0 0
  %5049 = vmatpush1.bf16.msra.mxu0 0
  %5050 = vmatprep.subr.bf16.mxu0 0
  %5051 = vmatpush1.bf16.msra.mxu0 0
  %5052 = vmatprep.subr.bf16.mxu0 0
  %5053 = vmatpush1.bf16.msra.mxu0 0
  %5054 = vmatprep.subr.bf16.mxu0 0
  %5055 = vmatpush1.bf16.msra.mxu0 0
  %5056 = vmatprep.subr.bf16.mxu0 0
  %5057 = vmatpush1.bf16.msra.mxu0 0
  %5058 = vmatprep.subr.bf16.mxu0 0
  %5059 = vmatpush1.bf16.msra.mxu0 0
  %5060 = vmatprep.subr.bf16.mxu0 0
  %5061 = vmatpush1.bf16.msra.mxu0 0
  %5062 = vmatprep.subr.bf16.mxu0 0
  %5063 = vmatpush1.bf16.msra.mxu0 0
  %5064 = vmatprep.mubr.bf16.mxu0 0
  %5065 = vmatmul.mubr.bf16.gmra.mrb[0].mxu0 %v4951
  %v5066 = vpop.f32.mrb[0].mxu0
  %v5067 = vadd.f32 0.0, %v5066
  %v5068 = vpop.f32.mrb[0].mxu0
  %v5069 = vadd.f32 0.0, %v5068
  %v5070 = vpop.f32.mrb[0].mxu0
  %v5071 = vadd.f32 0.0, %v5070
  %v5072 = vpop.f32.mrb[0].mxu0
  %v5073 = vadd.f32 0.0, %v5072
  %5074 = vmatprep.mubr.bf16.mxu0 0
  %5075 = vmatmul.mubr.bf16.gmra.mrb[0].mxu0 %v4954
  %v5076 = vpop.f32.mrb[0].mxu0
  %v5077 = vadd.f32 0.0, %v5076
  %v5078 = vpop.f32.mrb[0].mxu0
  %v5079 = vadd.f32 0.0, %v5078
  %v5080 = vpop.f32.mrb[0].mxu0
  %v5081 = vadd.f32 0.0, %v5080
  %v5082 = vpop.f32.mrb[0].mxu0
  %v5083 = vadd.f32 0.0, %v5082
  %5084 = vmatprep.mubr.bf16.mxu0 0
  %5085 = vmatmul.mubr.bf16.gmra.mrb[0].mxu0 %v4957
  %v5086 = vpop.f32.mrb[0].mxu0
  %v5087 = vadd.f32 0.0, %v5086
  %v5088 = vpop.f32.mrb[0].mxu0
  %v5089 = vadd.f32 0.0, %v5088
  %v5090 = vpop.f32.mrb[0].mxu0
  %v5091 = vpop.f32.mrb[0].mxu0
  %5092 = vdwg.mxu0
  %5093 = vrot.lane.b32.xlu0 %v5006, 17
  %v5094 = vpop.permute.xlu0 %5093
  %5095 = vrot.lane.b32.xlu0 %v5008, 17
  %v5096 = vpop.permute.xlu0 %5095
  %5097 = vrot.lane.b32.xlu0 %v5067, 17
  %v5098 = vpop.permute.xlu0 %5097
  %5099 = vrot.lane.b32.xlu0 %v5069, 17
  %v5100 = vpop.permute.xlu0 %5099
  %v5101 = vsel %vm4341, %v5098, %v5100
  %v5102 = vsel %vm4341, %v5096, %v5098
  %v5103 = vsel %vm4341, %v5094, %v5096
  %v5104 = vsel %vm4341, %v5100, %v5094
  %v5105 = vmul.f32 %v5104, %v113
  %v5106 = vmul.f32 %v5103, %v114
  %v5107 = vmul.f32 %v5102, %v115
  %v5108 = vmul.f32 %v5101, %v116
  %v5109 = vadd.f32 %v5016, %v5105
  %v5110 = vadd.f32 %v5018, %v5106
  %v5111 = vadd.f32 %v5077, %v5107
  %v5112 = vadd.f32 %v5079, %v5108
  %v5117 = vrot.slane %v5006, 4
  %v5118 = vrot.slane %v5008, 4
  %v5119 = vrot.slane %v5067, 4
  %v5120 = vrot.slane %v5069, 4
  %5125 = vrot.lane.b32.xlu0 %v5117, 16
  %v5126 = vpop.permute.xlu0 %5125
  %5127 = vrot.lane.b32.xlu0 %v5118, 16
  %v5128 = vpop.permute.xlu0 %5127
  %5129 = vrot.lane.b32.xlu0 %v5119, 16
  %v5130 = vpop.permute.xlu0 %5129
  %5131 = vrot.lane.b32.xlu0 %v5120, 16
  %v5132 = vpop.permute.xlu0 %5131
  %v5133 = vsel %vm4362, %v5130, %v5132
  %v5134 = vsel %vm4362, %v5128, %v5130
  %v5135 = vsel %vm4362, %v5126, %v5128
  %v5136 = vsel %vm4362, %v5132, %v5126
  %v5137 = vmul.f32 %v5136, %v73
  %v5138 = vmul.f32 %v5135, %v74
  %v5139 = vmul.f32 %v5134, %v75
  %v5140 = vmul.f32 %v5133, %v76
  %v5141 = vadd.f32 %v5109, %v5137
  %v5142 = vadd.f32 %v5110, %v5138
  %v5143 = vadd.f32 %v5111, %v5139
  %v5144 = vadd.f32 %v5112, %v5140
  %5145 = vrot.lane.b32.xlu0 %v5010, 15
  %v5146 = vpop.permute.xlu0 %5145
  %5147 = vrot.lane.b32.xlu0 %v5012, 15
  %v5148 = vpop.permute.xlu0 %5147
  %5149 = vrot.lane.b32.xlu0 %v5071, 15
  %v5150 = vpop.permute.xlu0 %5149
  %5151 = vrot.lane.b32.xlu0 %v5073, 15
  %v5152 = vpop.permute.xlu0 %5151
  %v5153 = vsel %vm4383, %v5150, %v5152
  %v5154 = vsel %vm4383, %v5148, %v5150
  %v5155 = vsel %vm4383, %v5146, %v5148
  %v5156 = vsel %vm4383, %v5152, %v5146
  %v5157 = vmul.f32 %v5156, %v117
  %v5158 = vmul.f32 %v5155, %v118
  %v5159 = vmul.f32 %v5154, %v119
  %v5160 = vmul.f32 %v5153, %v120
  %v5161 = vadd.f32 %v5141, %v5157
  %v5162 = vadd.f32 %v5142, %v5158
  %v5163 = vadd.f32 %v5143, %v5159
  %v5164 = vadd.f32 %v5144, %v5160
  %v5169 = vrot.slane %v5010, 4
  %v5170 = vrot.slane %v5012, 4
  %v5171 = vrot.slane %v5071, 4
  %v5172 = vrot.slane %v5073, 4
  %5177 = vrot.lane.b32.xlu0 %v5169, 1
  %v5178 = vpop.permute.xlu0 %5177
  %5179 = vrot.lane.b32.xlu0 %v5170, 1
  %v5180 = vpop.permute.xlu0 %5179
  %5181 = vrot.lane.b32.xlu0 %v5171, 1
  %v5182 = vpop.permute.xlu0 %5181
  %5183 = vrot.lane.b32.xlu0 %v5172, 1
  %v5184 = vpop.permute.xlu0 %5183
  %v5185 = vsel %vm4404, %v5182, %v5184
  %v5186 = vsel %vm4404, %v5180, %v5182
  %v5187 = vsel %vm4404, %v5178, %v5180
  %v5188 = vsel %vm4404, %v5184, %v5178
  %v5189 = vmul.f32 %v5188, %v97
  %v5190 = vmul.f32 %v5187, %v98
  %v5191 = vmul.f32 %v5186, %v99
  %v5192 = vmul.f32 %v5185, %v100
  %v5193 = vadd.f32 %v5161, %v5189
  %v5194 = vadd.f32 %v5162, %v5190
  %v5195 = vadd.f32 %v5163, %v5191
  %v5196 = vadd.f32 %v5164, %v5192
  %v5201 = vrot.slane %v5016, 4
  %v5202 = vrot.slane %v5018, 4
  %v5203 = vrot.slane %v5077, 4
  %v5204 = vrot.slane %v5079, 4
  %5209 = vrot.lane.b32.xlu0 %v5201, 127
  %v5210 = vpop.permute.xlu0 %5209
  %5211 = vrot.lane.b32.xlu0 %v5202, 127
  %v5212 = vpop.permute.xlu0 %5211
  %5213 = vrot.lane.b32.xlu0 %v5203, 127
  %v5214 = vpop.permute.xlu0 %5213
  %5215 = vrot.lane.b32.xlu0 %v5204, 127
  %v5216 = vpop.permute.xlu0 %5215
  %v5217 = vsel %vm4425, %v5214, %v5216
  %v5218 = vsel %vm4425, %v5212, %v5214
  %v5219 = vsel %vm4425, %v5210, %v5212
  %v5220 = vsel %vm4425, %v5216, %v5210
  %v5221 = vmul.f32 %v5219, %v109
  %v5222 = vmul.f32 %v5218, %v110
  %v5223 = vmul.f32 %v5217, %v111
  %v5224 = vmul.f32 %v5220, %v112
  %v5225 = vadd.f32 %v5193, %v5221
  %v5226 = vadd.f32 %v5194, %v5222
  %v5227 = vadd.f32 %v5195, %v5223
  %v5228 = vadd.f32 %v5196, %v5224
  %5229 = vrot.lane.b32.xlu0 %v5020, 113
  %v5230 = vpop.permute.xlu0 %5229
  %5231 = vrot.lane.b32.xlu0 %v5022, 113
  %v5232 = vpop.permute.xlu0 %5231
  %5233 = vrot.lane.b32.xlu0 %v5081, 113
  %v5234 = vpop.permute.xlu0 %5233
  %5235 = vrot.lane.b32.xlu0 %v5083, 113
  %v5236 = vpop.permute.xlu0 %5235
  %v5237 = vsel %vm4446, %v5234, %v5236
  %v5238 = vsel %vm4446, %v5232, %v5234
  %v5239 = vsel %vm4446, %v5230, %v5232
  %v5240 = vsel %vm4446, %v5236, %v5230
  %v5241 = vmul.f32 %v5239, %v121
  %v5242 = vmul.f32 %v5238, %v122
  %v5243 = vmul.f32 %v5237, %v123
  %v5244 = vmul.f32 %v5240, %v124
  %v5245 = vadd.f32 %v5225, %v5241
  %v5246 = vadd.f32 %v5226, %v5242
  %v5247 = vadd.f32 %v5227, %v5243
  %v5248 = vadd.f32 %v5228, %v5244
  %v5253 = vrot.slane %v5020, 4
  %v5254 = vrot.slane %v5022, 4
  %v5255 = vrot.slane %v5081, 4
  %v5256 = vrot.slane %v5083, 4
  %5261 = vrot.lane.b32.xlu0 %v5253, 112
  %v5262 = vpop.permute.xlu0 %5261
  %5263 = vrot.lane.b32.xlu0 %v5254, 112
  %v5264 = vpop.permute.xlu0 %5263
  %5265 = vrot.lane.b32.xlu0 %v5255, 112
  %v5266 = vpop.permute.xlu0 %5265
  %5267 = vrot.lane.b32.xlu0 %v5256, 112
  %v5268 = vpop.permute.xlu0 %5267
  %v5269 = vsel %vm4467, %v5266, %v5268
  %v5270 = vsel %vm4467, %v5264, %v5266
  %v5271 = vsel %vm4467, %v5262, %v5264
  %v5272 = vsel %vm4467, %v5268, %v5262
  %v5273 = vmul.f32 %v5271, %v85
  %v5274 = vmul.f32 %v5270, %v86
  %v5275 = vmul.f32 %v5269, %v87
  %v5276 = vmul.f32 %v5272, %v88
  %v5277 = vadd.f32 %v5245, %v5273
  %v5278 = vadd.f32 %v5246, %v5274
  %v5279 = vadd.f32 %v5247, %v5275
  %v5280 = vadd.f32 %v5248, %v5276
  %5281 = vrot.lane.b32.xlu0 %v5026, 111
  %v5282 = vpop.permute.xlu0 %5281
  %5283 = vrot.lane.b32.xlu0 %v5028, 111
  %v5284 = vpop.permute.xlu0 %5283
  %5285 = vrot.lane.b32.xlu0 %v5087, 111
  %v5286 = vpop.permute.xlu0 %5285
  %5287 = vrot.lane.b32.xlu0 %v5089, 111
  %v5288 = vpop.permute.xlu0 %5287
  %v5289 = vsel %vm4488, %v5286, %v5288
  %v5290 = vsel %vm4488, %v5284, %v5286
  %v5291 = vsel %vm4488, %v5282, %v5284
  %v5292 = vsel %vm4488, %v5288, %v5282
  %v5293 = vmul.f32 %v5291, %v125
  %v5294 = vmul.f32 %v5290, %v126
  %v5295 = vmul.f32 %v5289, %v127
  %v5296 = vmul.f32 %v5292, %v128
  %v5297 = vadd.f32 %v5277, %v5293
  %v5298 = vadd.f32 %v5278, %v5294
  %v5299 = vadd.f32 %v5279, %v5295
  %v5300 = vadd.f32 %v5280, %v5296
  %v5305 = vrot.slane %v5297, 4
  %v5306 = vrot.slane %v5298, 4
  %v5307 = vrot.slane %v5299, 4
  %v5308 = vrot.slane %v5300, 4
  %v5313 = vsel %vm744, %v4897, %v5305
  %v5314 = vsel %vm744, %v4898, %v5306
  %v5315 = vsel %vm744, %v4899, %v5307
  %v5316 = vsel %vm744, %v4900, %v5308
  %v5317 = vadd.f32 %v4497, %v167
  %v5318 = vadd.f32 %v4498, %v168
  %v5319 = vadd.f32 %v4499, %v169
  %v5320 = vadd.f32 %v4500, %v170
  %v5321 = vadd.f32 %v5313, %v171
  %v5322 = vadd.f32 %v5314, %v172
  %v5323 = vadd.f32 %v5315, %v173
  %v5324 = vadd.f32 %v5316, %v174
  %v5357 = vunpack.c.l.b16 %v4037
  %v5358 = vunpack.c.h.b16 %v4037
  %v5359 = vunpack.c.l.b16 %v4038
  %v5360 = vunpack.c.h.b16 %v4038
  %v5361 = vunpack.c.l.b16 %v4039
  %v5362 = vunpack.c.h.b16 %v4039
  %v5363 = vunpack.c.l.b16 %v4040
  %v5364 = vunpack.c.h.b16 %v4040
  %v5365 = vunpack.c.l.b16 %v4041
  %v5366 = vunpack.c.h.b16 %v4041
  %v5367 = vunpack.c.l.b16 %v4042
  %v5368 = vunpack.c.h.b16 %v4042
  %v5369 = vunpack.c.l.b16 %v4043
  %v5370 = vunpack.c.h.b16 %v4043
  %v5371 = vunpack.c.l.b16 %v4044
  %v5372 = vunpack.c.h.b16 %v4044
  %v5373 = vunpack.c.l.b16 %v4045
  %v5374 = vunpack.c.h.b16 %v4045
  %v5375 = vunpack.c.l.b16 %v4046
  %v5376 = vunpack.c.h.b16 %v4046
  %v5377 = vunpack.c.l.b16 %v4047
  %v5378 = vunpack.c.h.b16 %v4047
  %v5379 = vunpack.c.l.b16 %v4048
  %v5380 = vunpack.c.h.b16 %v4048
  %v5381 = vunpack.c.l.b16 %v4049
  %v5382 = vunpack.c.h.b16 %v4049
  %v5383 = vunpack.c.l.b16 %v4050
  %v5384 = vunpack.c.h.b16 %v4050
  %v5385 = vunpack.c.l.b16 %v4051
  %v5386 = vunpack.c.h.b16 %v4051
  %v5387 = vunpack.c.l.b16 %v4052
  %v5388 = vunpack.c.h.b16 %v4052
  %v5389 = vunpack.c.l.b16 %v4053
  %v5390 = vunpack.c.h.b16 %v4053
  %v5391 = vunpack.c.l.b16 %v4054
  %v5392 = vunpack.c.h.b16 %v4054
  %v5393 = vunpack.c.l.b16 %v4055
  %v5394 = vunpack.c.h.b16 %v4055
  %v5395 = vunpack.c.l.b16 %v4056
  %v5396 = vunpack.c.h.b16 %v4056
  %v5397 = vunpack.c.l.b16 %v4057
  %v5398 = vunpack.c.h.b16 %v4057
  %v5399 = vunpack.c.l.b16 %v4058
  %v5400 = vunpack.c.h.b16 %v4058
  %v5401 = vunpack.c.l.b16 %v4059
  %v5402 = vunpack.c.h.b16 %v4059
  %v5403 = vunpack.c.l.b16 %v4060
  %v5404 = vunpack.c.h.b16 %v4060
  %v5405 = vunpack.c.l.b16 %v4061
  %v5406 = vunpack.c.h.b16 %v4061
  %v5407 = vunpack.c.l.b16 %v4062
  %v5408 = vunpack.c.h.b16 %v4062
  %v5409 = vunpack.c.l.b16 %v4063
  %v5410 = vunpack.c.h.b16 %v4063
  %v5411 = vunpack.c.l.b16 %v4064
  %v5412 = vunpack.c.h.b16 %v4064
  %v5413 = vunpack.c.l.b16 %v4065
  %v5414 = vunpack.c.h.b16 %v4065
  %v5415 = vunpack.c.l.b16 %v4066
  %v5416 = vunpack.c.h.b16 %v4066
  %v5417 = vunpack.c.l.b16 %v4067
  %v5418 = vunpack.c.h.b16 %v4067
  %v5419 = vunpack.c.l.b16 %v4068
  %v5420 = vunpack.c.h.b16 %v4068
  %v5421 = vpack.c.b16 %v5361, %v5357
  %v5422 = vpack.c.b16 %v5362, %v5358
  %v5423 = vpack.c.b16 %v5363, %v5359
  %v5424 = vpack.c.b16 %v5364, %v5360
  %v5425 = vpack.c.b16 %v5369, %v5365
  %v5426 = vpack.c.b16 %v5370, %v5366
  %v5427 = vpack.c.b16 %v5371, %v5367
  %v5428 = vpack.c.b16 %v5372, %v5368
  %v5429 = vpack.c.b16 %v5377, %v5373
  %v5430 = vpack.c.b16 %v5378, %v5374
  %v5431 = vpack.c.b16 %v5379, %v5375
  %v5432 = vpack.c.b16 %v5380, %v5376
  %v5433 = vpack.c.b16 %v5385, %v5381
  %v5434 = vpack.c.b16 %v5386, %v5382
  %v5435 = vpack.c.b16 %v5387, %v5383
  %v5436 = vpack.c.b16 %v5388, %v5384
  %v5437 = vpack.c.b16 %v5393, %v5389
  %v5438 = vpack.c.b16 %v5394, %v5390
  %v5439 = vpack.c.b16 %v5395, %v5391
  %v5440 = vpack.c.b16 %v5396, %v5392
  %v5441 = vpack.c.b16 %v5401, %v5397
  %v5442 = vpack.c.b16 %v5402, %v5398
  %v5443 = vpack.c.b16 %v5403, %v5399
  %v5444 = vpack.c.b16 %v5404, %v5400
  %v5445 = vpack.c.b16 %v5409, %v5405
  %v5446 = vpack.c.b16 %v5410, %v5406
  %v5447 = vpack.c.b16 %v5411, %v5407
  %v5448 = vpack.c.b16 %v5412, %v5408
  %v5449 = vpack.c.b16 %v5417, %v5413
  %v5450 = vpack.c.b16 %v5418, %v5414
  %v5451 = vpack.c.b16 %v5419, %v5415
  %v5452 = vpack.c.b16 %v5420, %v5416
  %5485 = vmatprep.subr.bf16.mxu0 %v5422
  %5486 = vmatpush1.bf16.msra.mxu0 %v5421
  %5487 = vmatprep.subr.bf16.mxu0 %v5426
  %5488 = vmatpush1.bf16.msra.mxu0 %v5425
  %5489 = vmatprep.subr.bf16.mxu0 %v5430
  %5490 = vmatpush1.bf16.msra.mxu0 %v5429
  %5491 = vmatprep.subr.bf16.mxu0 %v5434
  %5492 = vmatpush1.bf16.msra.mxu0 %v5433
  %5493 = vmatprep.subr.bf16.mxu0 %v5438
  %5494 = vmatpush1.bf16.msra.mxu0 %v5437
  %5495 = vmatprep.subr.bf16.mxu0 %v5442
  %5496 = vmatpush1.bf16.msra.mxu0 %v5441
  %5497 = vmatprep.subr.bf16.mxu0 %v5446
  %5498 = vmatpush1.bf16.msra.mxu0 %v5445
  %5499 = vmatprep.subr.bf16.mxu0 %v5450
  %5500 = vmatpush1.bf16.msra.mxu0 %v5449
  %5501 = vmatprep.subr.bf16.mxu0 0
  %5502 = vmatpush1.bf16.msra.mxu0 0
  %5503 = vmatprep.subr.bf16.mxu0 0
  %5504 = vmatpush1.bf16.msra.mxu0 0
  %5505 = vmatprep.subr.bf16.mxu0 0
  %5506 = vmatpush1.bf16.msra.mxu0 0
  %5507 = vmatprep.subr.bf16.mxu0 0
  %5508 = vmatpush1.bf16.msra.mxu0 0
  %5509 = vmatprep.subr.bf16.mxu0 0
  %5510 = vmatpush1.bf16.msra.mxu0 0
  %5511 = vmatprep.subr.bf16.mxu0 0
  %5512 = vmatpush1.bf16.msra.mxu0 0
  %5513 = vmatprep.subr.bf16.mxu0 0
  %5514 = vmatpush1.bf16.msra.mxu0 0
  %5515 = vmatprep.subr.bf16.mxu0 0
  %5516 = vmatpush1.bf16.msra.mxu0 0
  %5517 = vmatprep.mubr.bf16.mxu0 0
  %5518 = vmatmul.mubr.bf16.gmra.mrb[0].mxu0 %v4036
  %v5519 = vpop.f32.mrb[0].mxu0
  %v5520 = vadd.f32 %v5317, %v5519
  %v5521 = vpop.f32.mrb[0].mxu0
  %v5522 = vadd.f32 %v5318, %v5521
  %v5523 = vpop.f32.mrb[0].mxu0
  %v5524 = vadd.f32 %v5321, %v5523
  %v5525 = vpop.f32.mrb[0].mxu0
  %v5526 = vadd.f32 %v5322, %v5525
  %5527 = vdwg.mxu0
  %5528 = vmatprep.subr.bf16.mxu0 %v5424
  %5529 = vmatpush1.bf16.msra.mxu0 %v5423
  %5530 = vmatprep.subr.bf16.mxu0 %v5428
  %5531 = vmatpush1.bf16.msra.mxu0 %v5427
  %5532 = vmatprep.subr.bf16.mxu0 %v5432
  %5533 = vmatpush1.bf16.msra.mxu0 %v5431
  %5534 = vmatprep.subr.bf16.mxu0 %v5436
  %5535 = vmatpush1.bf16.msra.mxu0 %v5435
  %5536 = vmatprep.subr.bf16.mxu0 %v5440
  %5537 = vmatpush1.bf16.msra.mxu0 %v5439
  %5538 = vmatprep.subr.bf16.mxu0 %v5444
  %5539 = vmatpush1.bf16.msra.mxu0 %v5443
  %5540 = vmatprep.subr.bf16.mxu0 %v5448
  %5541 = vmatpush1.bf16.msra.mxu0 %v5447
  %5542 = vmatprep.subr.bf16.mxu0 %v5452
  %5543 = vmatpush1.bf16.msra.mxu0 %v5451
  %5544 = vmatprep.subr.bf16.mxu0 0
  %5545 = vmatpush1.bf16.msra.mxu0 0
  %5546 = vmatprep.subr.bf16.mxu0 0
  %5547 = vmatpush1.bf16.msra.mxu0 0
  %5548 = vmatprep.subr.bf16.mxu0 0
  %5549 = vmatpush1.bf16.msra.mxu0 0
  %5550 = vmatprep.subr.bf16.mxu0 0
  %5551 = vmatpush1.bf16.msra.mxu0 0
  %5552 = vmatprep.subr.bf16.mxu0 0
  %5553 = vmatpush1.bf16.msra.mxu0 0
  %5554 = vmatprep.subr.bf16.mxu0 0
  %5555 = vmatpush1.bf16.msra.mxu0 0
  %5556 = vmatprep.subr.bf16.mxu0 0
  %5557 = vmatpush1.bf16.msra.mxu0 0
  %5558 = vmatprep.subr.bf16.mxu0 0
  %5559 = vmatpush1.bf16.msra.mxu0 0
  %5560 = vmatprep.mubr.bf16.mxu0 0
  %5561 = vmatmul.mubr.bf16.gmra.mrb[0].mxu0 %v4036
  %v5562 = vpop.f32.mrb[0].mxu0
  %v5563 = vadd.f32 %v5319, %v5562
  %v5564 = vpop.f32.mrb[0].mxu0
  %v5565 = vadd.f32 %v5320, %v5564
  %v5566 = vpop.f32.mrb[0].mxu0
  %v5567 = vadd.f32 %v5323, %v5566
  %v5568 = vpop.f32.mrb[0].mxu0
  %v5569 = vadd.f32 %v5324, %v5568
  %5570 = vdwg.mxu0
  %5571 = vst [vmem:[%s14] sm:$0xff] %v5520
  %5572 = vst [vmem:[%s14 + $0x8] sm:$0xff] %v5522
  %5573 = vst [vmem:[%s14 + $0x10] sm:$0xff] %v5563
  %5574 = vst [vmem:[%s14 + $0x18] sm:$0xff] %v5565
  %5575 = vst [vmem:[%s14 + $0x20] sm:$0xff] %v5524
  %5576 = vst [vmem:[%s14 + $0x28] sm:$0xff] %v5526
  %5577 = vst [vmem:[%s14 + $0x30] sm:$0xff] %v5567
  %5578 = vst [vmem:[%s14 + $0x38] sm:$0xff] %v5569
  // Predicated region
  $region58: #{hg_block.1} parent=0 // pred_check
    _
  $region59: #{hg_block.1} parent=0 // pred_check_branch
    %5580 = sbr.rel (0) target = $region61
  $region60: #{hg_block.1} parent=0 // pred_region
    _
  $region61: #{hg_block.1} parent=0 // pred_fallthru
    _
  // Predicated region
  $region62: #{hg_block.1} parent=0 // pred_check
    _
  $region63: #{hg_block.1} parent=0 // pred_check_branch
    %5582 = sbr.rel (0) target = $region65
  $region64: #{hg_block.1} parent=0 // pred_region
    _
  $region65: #{hg_block.1} parent=0 // pred_fallthru
    _

</llo_original>
